<compile_context>
chip_gen: v5e
topology: v5e:2x2
jax: 0.10.0
libtpu: 0.0.40
codegen_flags: <defaults>
</compile_context>

<pallas_src>
import functools

import jax
import jax.numpy as jnp
from jax import lax
from jax.experimental import pallas as pl
from jax.experimental.pallas import tpu as pltpu

EPS = 1e-5
NUM_GROUPS = 32


# ------------------------------ fused UpBlock kernel ------------------------------
def _up_block_kernel(x_ref, norm_ref, cw_ref, cb_ref, mcg_ref, mgc_ref,
                     upw_ref, upb_ref, o_ref, pat_ref, *, H, W, C, G):
    """One grid step = one sample.  GN+SiLU, both 3x3 convs, residual adds for all 3
    resnet blocks and the 2x2/stride-2 conv-transpose run entirely in VMEM."""
    hw = H * W
    npad = hw + 2 * W            # activation zero-padded by one image row top & bottom
    c3 = 3 * C
    inv_cnt = 1.0 / float(hw * (C // G))

    x = x_ref[0].reshape(hw, C).astype(jnp.float32)   # running activation / residual
    mcg = mcg_ref[...]                                # (C, G) group membership
    mgc = mgc_ref[...]                                # (G, C) broadcast-back

    # Hoisted once: per-row x coordinate of the padded activation; masks for the
    # dx = -1 / +1 columns (zero the tap that crosses the left/right image edge).
    xcol = lax.broadcasted_iota(jnp.int32, (npad, C), 0) % W
    ok_l = xcol >= 1             # dx = -1 (left neighbour exists)
    ok_r = xcol < (W - 1)        # dx = +1 (right neighbour exists)
    zpad = jnp.zeros((W, C), jnp.float32)

    def gn_silu(v, gamma, beta):
        # GroupNorm(G, C) (biased var, eps=1e-5) with the 4 tiny mask matmuls fused to 2,
        # then gamma/beta folded into one scale/offset -> one v*a+b pass, then SiLU with
        # the reciprocal on the EUP slot.
        s = jnp.concatenate([jnp.sum(v, axis=0, keepdims=True),
                             jnp.sum(v * v, axis=0, keepdims=True)], axis=0)      # (2, C)
        sg = jnp.dot(s, mcg, preferred_element_type=jnp.float32) * inv_cnt        # (2, G)
        mean_g = sg[0:1, :]
        inv_g = lax.rsqrt(sg[1:2, :] - mean_g * mean_g + EPS)
        back = jnp.dot(jnp.concatenate([mean_g, inv_g], axis=0), mgc,
                       preferred_element_type=jnp.float32)                        # (2, C)
        a = back[1:2, :] * gamma                                                  # (1, C)
        b = beta - back[0:1, :] * a
        y = v * a + b
        return y * pl.reciprocal(1.0 + jnp.exp(-y), approx=True)                  # SiLU

    def conv3x3(v, blk, ci):
        # 3x3 "same" conv via 3 dx-columns + 3 vreg-aligned dy row slices:
        #   patches[:, kx*C:(kx+1)*C][r] = vpad[r + dx] (dx = kx-1), edge-masked,
        #   out[p] = sum_ky patches[ky*W + p, :] @ Wrow[ky]   (K = 3C, f32 accumulate)
        # pltpu.roll wraps only into rows that are zero padding / edge-masked anyway.
        vpad = jnp.concatenate([zpad, v, zpad], axis=0)                           # (npad, C)
        pat_ref[:, 0:C] = jnp.where(ok_l, pltpu.roll(vpad, 1, axis=0), 0.0)       # dx=-1
        pat_ref[:, C:2 * C] = vpad                                                # dx= 0
        pat_ref[:, 2 * C:c3] = jnp.where(ok_r, pltpu.roll(vpad, npad - 1, axis=0), 0.0)
        acc = cb_ref[blk, ci]                                # (1, C); conv1 bias holds temb
        for ky in range(3):                                  # dy = ky - 1
            acc = acc + jnp.dot(
                pat_ref[ky * W:ky * W + hw, :].astype(jnp.bfloat16),              # (hw, 3C)
                cw_ref[blk, ci, ky * c3:(ky + 1) * c3, :],                        # (3C, C)
                preferred_element_type=jnp.float32)
        return acc                                                                # (hw, C)

    h = x
    for blk in range(3):                                     # 3x ResnetBlock2D, unrolled
        res = h
        a = gn_silu(h, norm_ref[blk, 0], norm_ref[blk, 1])
        a = conv3x3(a, blk, 0)                               # conv1 (+ folded temb proj)
        a = gn_silu(a, norm_ref[blk, 2], norm_ref[blk, 3])
        a = conv3x3(a, blk, 1)                               # conv2 (dropout p=0 -> identity)
        h = res + a                                          # residual (in_ch == out_ch)

    # ConvTranspose2d(k=2, s=2): stride == kernel -> no tap overlap.  The 4 taps are
    # packed along output channels so the matmul output (4*Co = 128 lanes) stores dense.
    up = jnp.dot(h.astype(jnp.bfloat16), upw_ref[...],
                 preferred_element_type=jnp.float32) + upb_ref[...]
    o_ref[0] = up.reshape(o_ref.shape[1:]).astype(o_ref.dtype)


def _up_block_pallas(x, norm, cw, cb, mcg, mgc, upw, upb):
    N, H, W, C = x.shape
    Co4 = upw.shape[-1]
    G = mcg.shape[-1]
    kernel = functools.partial(_up_block_kernel, H=H, W=W, C=C, G=G)
    return pl.pallas_call(
        kernel,
        out_shape=jax.ShapeDtypeStruct((N, H, W, Co4), jnp.float32),
        grid=(N,),
        in_specs=[
            pl.BlockSpec((1, H, W, C), lambda n: (n, 0, 0, 0)),
            # Grid-invariant parameters: constant index maps -> fetched once, resident.
            # (At production C: pipeline_mode=pl.Buffered(1) + explicit vmem_limit_bytes.)
            pl.BlockSpec(norm.shape, lambda n: (0, 0, 0, 0)),
            pl.BlockSpec(cw.shape, lambda n: (0, 0, 0, 0)),
            pl.BlockSpec(cb.shape, lambda n: (0, 0, 0, 0)),
            pl.BlockSpec(mcg.shape, lambda n: (0, 0)),
            pl.BlockSpec(mgc.shape, lambda n: (0, 0)),
            pl.BlockSpec(upw.shape, lambda n: (0, 0)),
            pl.BlockSpec(upb.shape, lambda n: (0, 0)),
        ],
        out_specs=pl.BlockSpec((1, H, W, Co4), lambda n: (n, 0, 0, 0)),
        scratch_shapes=[pltpu.VMEM((H * W + 2 * W, 3 * C), jnp.float32)],  # im2col columns
        compiler_params=pltpu.CompilerParams(
            dimension_semantics=("parallel",)),              # batch across TCs (v7x)
    )(x, norm, cw, cb, mcg, mgc, upw, upb)


# --------------------------------- module wrapper ----------------------------------
def up_block_2d(x_nchw, t, params):
    """Matches UpBlock2D.forward (attention=False): 3 resnet blocks, then
    ConvTranspose2d(k=2, s=2).  Takes/returns NCHW like the PyTorch module."""
    N, C, H, W = x_nchw.shape
    G = NUM_GROUPS
    x = jnp.transpose(x_nchw, (0, 2, 3, 1))              # NCHW -> NHWC (channels -> lanes)

    resnets = params["resnets"]
    # GroupNorm affine params stacked as (3, 4, 1, C): rows = [n1_g, n1_b, n2_g, n2_b].
    norm = jnp.stack([jnp.stack([p["norm1_g"], p["norm1_b"], p["norm2_g"], p["norm2_b"]])
                      for p in resnets])[:, :, None, :]

    def w9(w):  # PyTorch Conv2d weight (Cout, Cin, 3, 3) -> im2col (9*Cin, Cout), bf16
        cout, cin = w.shape[0], w.shape[1]                 # rows ordered (ky, kx, cin)
        return jnp.transpose(w, (2, 3, 1, 0)).reshape(9 * cin, cout).astype(jnp.bfloat16)

    cw = jnp.stack([jnp.stack([w9(p["conv1_w"]), w9(p["conv2_w"])]) for p in resnets])

    # time_emb_proj(t) folded into conv1's bias (tiny (C,T) matvec kept as XLA glue;
    # exactly equivalent to the post-conv broadcast add in the PyTorch module).
    cb = jnp.stack([jnp.stack([p["conv1_b"] + p["time_w"] @ t + p["time_b"], p["conv2_b"]])
                    for p in resnets])[:, :, None, :]     # (3, 2, 1, C) f32

    gsize = C // G
    mcg = (jnp.arange(C)[:, None] // gsize == jnp.arange(G)[None, :]).astype(jnp.float32)
    mgc = jnp.transpose(mcg)

    up_w = params["up_w"]                                 # ConvTranspose2d: (Cin, Cout, 2, 2)
    Co = up_w.shape[1]
    upw = jnp.transpose(up_w, (0, 2, 3, 1)).reshape(C, 4 * Co).astype(jnp.bfloat16)
    upb = jnp.tile(params["up_b"], 4)[None, :]            # (1, 4*Co)

    taps = _up_block_pallas(x, norm, cw, cb, mcg, mgc, upw, upb)   # (N, H, W, 4*Co)

    # TODO(synk): at production shapes, keep the surrounding model NHWC end-to-end and
    # fuse this 2x2 tap interleave into the kernel's stores so no HBM glue pass remains;
    # here it is one cheap fused XLA rearrange on the lane-packed output.
    taps = taps.reshape(N, H, W, 2, 2, Co)
    out = jnp.transpose(taps, (0, 1, 3, 2, 4, 5)).reshape(N, 2 * H, 2 * W, Co)
    return jnp.transpose(out, (0, 3, 1, 2))               # NHWC -> NCHW


# ------------------------------ pure-JAX reference ---------------------------------
def _ref_group_norm(x, gamma, beta):
    N, H, W, C = x.shape
    G = NUM_GROUPS
    xg = x.reshape(N, H, W, G, C // G)
    mean = jnp.mean(xg, axis=(1, 2, 4), keepdims=True)
    var = jnp.mean((xg - mean) ** 2, axis=(1, 2, 4), keepdims=True)
    xn = ((xg - mean) * lax.rsqrt(var + EPS)).reshape(N, H, W, C)
    return xn * gamma + beta


def _ref_conv3x3(x, w, b):
    y = lax.conv_general_dilated(x, w, window_strides=(1, 1), padding=((1, 1), (1, 1)),
                                 dimension_numbers=("NHWC", "OIHW", "NHWC"))
    return y + b


def up_block_2d_ref(x_nchw, t, params):
    silu = lambda v: v * jax.nn.sigmoid(v)
    x = jnp.transpose(x_nchw, (0, 2, 3, 1)).astype(jnp.float32)
    for p in params["resnets"]:
        h = silu(_ref_group_norm(x, p["norm1_g"], p["norm1_b"]))
        h = _ref_conv3x3(h, p["conv1_w"], p["conv1_b"])
        h = h + (p["time_w"] @ t + p["time_b"])
        h = silu(_ref_group_norm(h, p["norm2_g"], p["norm2_b"]))
        h = _ref_conv3x3(h, p["conv2_w"], p["conv2_b"])
        x = x + h
    up_w, up_b = params["up_w"], params["up_b"]
    N, H, W, C = x.shape
    Co = up_w.shape[1]
    taps = jnp.einsum("nhwc,cokl->nhwklo", x, up_w)
    out = jnp.transpose(taps, (0, 1, 3, 2, 4, 5)).reshape(N, 2 * H, 2 * W, Co) + up_b
    return jnp.transpose(out, (0, 3, 1, 2))


# ------------------------------------ init -----------------------------------------
def init_params(key, C, Co, T):
    def nrm(k, shape, scale=0.05):
        return scale * jax.random.normal(k, shape, dtype=jnp.float32)

    keys = iter(jax.random.split(key, 40))
    resnets = []
    for _ in range(3):
        resnets.append(dict(
            norm1_g=1.0 + nrm(next(keys), (C,)),
            norm1_b=nrm(next(keys), (C,)),
            conv1_w=nrm(next(keys), (C, C, 3, 3)),        # PyTorch Conv2d layout
            conv1_b=nrm(next(keys), (C,)),
            time_w=nrm(next(keys), (C, T)),               # Linear(T, C) weight
            time_b=nrm(next(keys), (C,)),
            norm2_g=1.0 + nrm(next(keys), (C,)),
            norm2_b=nrm(next(keys), (C,)),
            conv2_w=nrm(next(keys), (C, C, 3, 3)),
            conv2_b=nrm(next(keys), (C,)),
        ))
    return dict(resnets=resnets,
                up_w=nrm(next(keys), (C, Co, 2, 2)),      # PyTorch ConvTranspose2d layout
                up_b=nrm(next(keys), (Co,)))


if __name__ == "__main__":
    # GroupNorm(32, C) requires C % 32 == 0, so channels must be >= 32.
    N, C, H, W = 2, 64, 8, 8
    Co = 32            # upsampler out_channels (4*Co = 128 -> lane-dense packed output)
    T = 32             # time_emb_dim

    key = jax.random.PRNGKey(0)
    kx, kt, kp = jax.random.split(key, 3)
    x = jax.random.normal(kx, (N, C, H, W), dtype=jnp.float32)   # NCHW, like PyTorch
    t = jax.random.normal(kt, (T,), dtype=jnp.float32)
    params = init_params(kp, C, Co, T)

    out = jax.block_until_ready(jax.jit(up_block_2d)(x, t, params))
    assert out.shape == (N, Co, 2 * H, 2 * W), out.shape
    assert bool(jnp.all(jnp.isfinite(out)))

    # Numerical check vs a pure-JAX f32 reference (kernel uses bf16 MXU + approx recip).
    ref = jax.block_until_ready(jax.jit(up_block_2d_ref)(x, t, params))
    rel = float(jnp.linalg.norm(out - ref) / (jnp.linalg.norm(ref) + 1e-12))
    assert rel < 5e-2, rel
    print("KERNEL_OK")
</pallas_src>

<mosaic_0001>
module attributes {stable_mosaic.version = 11 : i64} {
  func.func @_up_block_kernel(%arg0: i32, %arg1: memref<1x8x8x64xf32, #tpu.memory_space<vmem>>, %arg2: memref<3x4x1x64xf32, #tpu.memory_space<vmem>>, %arg3: memref<3x2x576x64xbf16, #tpu.memory_space<vmem>>, %arg4: memref<3x2x1x64xf32, #tpu.memory_space<vmem>>, %arg5: memref<64x32xf32, #tpu.memory_space<vmem>>, %arg6: memref<32x64xf32, #tpu.memory_space<vmem>>, %arg7: memref<64x128xbf16, #tpu.memory_space<vmem>>, %arg8: memref<1x128xf32, #tpu.memory_space<vmem>>, %arg9: memref<1x8x8x128xf32, #tpu.memory_space<vmem>>, %arg10: memref<80x192xf32, #tpu.memory_space<vmem>>) attributes {dimension_semantics = [#tpu.dimension_semantics<parallel>], iteration_bounds = array<i64: 2>, scalar_prefetch = 0 : i64, scratch_operands = 1 : i64, tpu.core_type = #tpu.core_type<tc>, window_params = [{transform_indices = @transform_0, window_bounds = array<i64: 1, 8, 8, 64>}, {pipeline_mode = #tpu.pipeline_mode<synchronous>, transform_indices = @transform_1, window_bounds = array<i64: 3, 4, 1, 64>}, {pipeline_mode = #tpu.pipeline_mode<synchronous>, transform_indices = @transform_2, window_bounds = array<i64: 3, 2, 576, 64>}, {pipeline_mode = #tpu.pipeline_mode<synchronous>, transform_indices = @transform_3, window_bounds = array<i64: 3, 2, 1, 64>}, {pipeline_mode = #tpu.pipeline_mode<synchronous>, transform_indices = @transform_4, window_bounds = array<i64: 64, 32>}, {pipeline_mode = #tpu.pipeline_mode<synchronous>, transform_indices = @transform_5, window_bounds = array<i64: 32, 64>}, {pipeline_mode = #tpu.pipeline_mode<synchronous>, transform_indices = @transform_6, window_bounds = array<i64: 64, 128>}, {pipeline_mode = #tpu.pipeline_mode<synchronous>, transform_indices = @transform_7, window_bounds = array<i64: 1, 128>}, {transform_indices = @transform_8, window_bounds = array<i64: 1, 8, 8, 128>}]} {
    %c0 = arith.constant 0 : index
    %c0_0 = arith.constant 0 : index
    %c0_1 = arith.constant 0 : index
    %c0_2 = arith.constant 0 : index
    %0 = vector.load %arg1[%c0, %c0_0, %c0_1, %c0_2] : memref<1x8x8x64xf32, #tpu.memory_space<vmem>>, vector<1x8x8x64xf32>
    %1 = vector.shape_cast %0 : vector<1x8x8x64xf32> to vector<8x8x64xf32>
    %2 = vector.shape_cast %1 : vector<8x8x64xf32> to vector<64x64xf32>
    %c0_3 = arith.constant 0 : index
    %c0_4 = arith.constant 0 : index
    %3 = vector.load %arg5[%c0_3, %c0_4] : memref<64x32xf32, #tpu.memory_space<vmem>>, vector<64x32xf32>
    %c0_5 = arith.constant 0 : index
    %c0_6 = arith.constant 0 : index
    %4 = vector.load %arg6[%c0_5, %c0_6] : memref<32x64xf32, #tpu.memory_space<vmem>>, vector<32x64xf32>
    %5 = tpu.iota {dimensions = array<i32: 0>} : vector<80x64xi32>
    %c8_i32 = arith.constant 8 : i32
    %c0_i32 = arith.constant 0 : i32
    %6 = arith.cmpi eq, %c8_i32, %c0_i32 : i32
    %c1_i32 = arith.constant 1 : i32
    %7 = arith.select %6, %c1_i32, %c8_i32 : i32
    %8 = vector.broadcast %7 : i32 to vector<80x64xi32>
    %9 = arith.remsi %5, %8 : vector<80x64xi32>
    %c0_i32_7 = arith.constant 0 : i32
    %10 = vector.broadcast %c0_i32_7 : i32 to vector<80x64xi32>
    %11 = arith.cmpi ne, %9, %10 : vector<80x64xi32>
    %c0_i32_8 = arith.constant 0 : i32
    %12 = vector.broadcast %c0_i32_8 : i32 to vector<80x64xi32>
    %13 = arith.cmpi slt, %9, %12 : vector<80x64xi32>
    %c0_i32_9 = arith.constant 0 : i32
    %14 = arith.cmpi slt, %7, %c0_i32_9 : i32
    %15 = vector.broadcast %14 : i1 to vector<80x64xi1>
    %16 = vector.broadcast %15 : vector<80x64xi1> to vector<80x64xi1>
    %17 = arith.xori %13, %16 : vector<80x64xi1>
    %18 = arith.andi %17, %11 : vector<80x64xi1>
    %19 = vector.broadcast %7 : i32 to vector<80x64xi32>
    %20 = arith.addi %9, %19 : vector<80x64xi32>
    %21 = arith.select %18, %20, %9 : vector<80x64xi1>, vector<80x64xi32>
    %c1_i32_10 = arith.constant 1 : i32
    %22 = vector.broadcast %c1_i32_10 : i32 to vector<80x64xi32>
    %23 = arith.cmpi sge, %21, %22 : vector<80x64xi32>
    %c7_i32 = arith.constant 7 : i32
    %24 = vector.broadcast %c7_i32 : i32 to vector<80x64xi32>
    %25 = arith.cmpi slt, %21, %24 : vector<80x64xi32>
    %cst = arith.constant 0.000000e+00 : f32
    %26 = vector.broadcast %cst : f32 to vector<8x64xf32>
    %c0_11 = arith.constant 0 : index
    %c0_12 = arith.constant 0 : index
    %c0_13 = arith.constant 0 : index
    %c0_14 = arith.constant 0 : index
    %27 = vector.load %arg2[%c0_11, %c0_12, %c0_13, %c0_14] : memref<3x4x1x64xf32, #tpu.memory_space<vmem>>, vector<1x1x1x64xf32>
    %28 = vector.shape_cast %27 : vector<1x1x1x64xf32> to vector<1x64xf32>
    %c0_15 = arith.constant 0 : index
    %c1 = arith.constant 1 : index
    %c0_16 = arith.constant 0 : index
    %c0_17 = arith.constant 0 : index
    %29 = vector.load %arg2[%c0_15, %c1, %c0_16, %c0_17] : memref<3x4x1x64xf32, #tpu.memory_space<vmem>>, vector<1x1x1x64xf32>
    %30 = vector.shape_cast %29 : vector<1x1x1x64xf32> to vector<1x64xf32>
    %cst_18 = arith.constant dense<0.000000e+00> : vector<64xf32>
    %31 = vector.multi_reduction <add>, %2, %cst_18 [0] : vector<64x64xf32> to vector<64xf32>
    %32 = vector.shape_cast %31 : vector<64xf32> to vector<1x64xf32>
    %33 = arith.mulf %2, %2 : vector<64x64xf32>
    %cst_19 = arith.constant dense<0.000000e+00> : vector<64xf32>
    %34 = vector.multi_reduction <add>, %33, %cst_19 [0] : vector<64x64xf32> to vector<64xf32>
    %35 = vector.shape_cast %34 : vector<64xf32> to vector<1x64xf32>
    %36 = tpu.concatenate %32, %35 in 0 : vector<1x64xf32>, vector<1x64xf32> -> vector<2x64xf32>
    %cst_20 = arith.constant dense<0.000000e+00> : vector<2x32xf32>
    %37 = tpu.matmul %36, %3, %cst_20 {dimension_numbers = #tpu.dot_dimension_numbers<[1], [0], [0], [1], [0, 0, 1, 1], [], []>} : vector<2x64xf32>, vector<64x32xf32>, vector<2x32xf32> -> vector<2x32xf32>
    %cst_21 = arith.constant 7.812500e-03 : f32
    %38 = vector.broadcast %cst_21 : f32 to vector<2x32xf32>
    %39 = arith.mulf %37, %38 : vector<2x32xf32>
    %40 = vector.extract_strided_slice %39 {offsets = [0, 0], sizes = [1, 32], strides = [1, 1]} : vector<2x32xf32> to vector<1x32xf32>
    %41 = vector.extract_strided_slice %39 {offsets = [1, 0], sizes = [1, 32], strides = [1, 1]} : vector<2x32xf32> to vector<1x32xf32>
    %42 = arith.mulf %40, %40 : vector<1x32xf32>
    %43 = arith.subf %41, %42 : vector<1x32xf32>
    %cst_22 = arith.constant 9.99999974E-6 : f32
    %44 = vector.broadcast %cst_22 : f32 to vector<1x32xf32>
    %45 = arith.addf %43, %44 : vector<1x32xf32>
    %46 = math.rsqrt %45 : vector<1x32xf32>
    %47 = tpu.concatenate %40, %46 in 0 : vector<1x32xf32>, vector<1x32xf32> -> vector<2x32xf32>
    %cst_23 = arith.constant dense<0.000000e+00> : vector<2x64xf32>
    %48 = tpu.matmul %47, %4, %cst_23 {dimension_numbers = #tpu.dot_dimension_numbers<[1], [0], [0], [1], [0, 0, 1, 1], [], []>} : vector<2x32xf32>, vector<32x64xf32>, vector<2x64xf32> -> vector<2x64xf32>
    %49 = vector.extract_strided_slice %48 {offsets = [1, 0], sizes = [1, 64], strides = [1, 1]} : vector<2x64xf32> to vector<1x64xf32>
    %50 = arith.mulf %49, %28 : vector<1x64xf32>
    %51 = vector.extract_strided_slice %48 {offsets = [0, 0], sizes = [1, 64], strides = [1, 1]} : vector<2x64xf32> to vector<1x64xf32>
    %52 = arith.mulf %51, %50 : vector<1x64xf32>
    %53 = arith.subf %30, %52 : vector<1x64xf32>
    %54 = vector.broadcast %50 : vector<1x64xf32> to vector<64x64xf32>
    %55 = arith.mulf %2, %54 : vector<64x64xf32>
    %56 = vector.broadcast %53 : vector<1x64xf32> to vector<64x64xf32>
    %57 = arith.addf %55, %56 : vector<64x64xf32>
    %cst_24 = arith.constant 0.000000e+00 : f32
    %58 = vector.broadcast %cst_24 : f32 to vector<64x64xf32>
    %59 = arith.subf %58, %57 : vector<64x64xf32>
    %60 = math.exp %59 : vector<64x64xf32>
    %cst_25 = arith.constant 1.000000e+00 : f32
    %61 = vector.broadcast %cst_25 : f32 to vector<64x64xf32>
    %62 = arith.addf %61, %60 : vector<64x64xf32>
    %63 = tpu.reciprocal %62 {approx = true} : vector<64x64xf32> -> vector<64x64xf32>
    %64 = arith.mulf %57, %63 : vector<64x64xf32>
    %65 = tpu.concatenate %26, %64, %26 in 0 : vector<8x64xf32>, vector<64x64xf32>, vector<8x64xf32> -> vector<80x64xf32>
    %c1_i32_26 = arith.constant 1 : i32
    %66 = tpu.dynamic_rotate %65 by %c1_i32_26 dim 0 : vector<80x64xf32>, i32 -> vector<80x64xf32>
    %cst_27 = arith.constant 0.000000e+00 : f32
    %67 = vector.broadcast %cst_27 : f32 to vector<80x64xf32>
    %68 = arith.select %23, %66, %67 : vector<80x64xi1>, vector<80x64xf32>
    %c0_28 = arith.constant 0 : index
    %c0_29 = arith.constant 0 : index
    %69 = vector.load %arg10[%c0_28, %c0_29] : memref<80x192xf32, #tpu.memory_space<vmem>>, vector<80x64xf32>
    tpu.vector_store %arg10[%c0_28, %c0_29], %68 {strides = array<i32>} : memref<80x192xf32, #tpu.memory_space<vmem>>, vector<80x64xf32>,
    %c0_30 = arith.constant 0 : index
    %c64 = arith.constant 64 : index
    %70 = vector.load %arg10[%c0_30, %c64] : memref<80x192xf32, #tpu.memory_space<vmem>>, vector<80x64xf32>
    tpu.vector_store %arg10[%c0_30, %c64], %65 {strides = array<i32>} : memref<80x192xf32, #tpu.memory_space<vmem>>, vector<80x64xf32>,
    %c79_i32 = arith.constant 79 : i32
    %71 = tpu.dynamic_rotate %65 by %c79_i32 dim 0 : vector<80x64xf32>, i32 -> vector<80x64xf32>
    %cst_31 = arith.constant 0.000000e+00 : f32
    %72 = vector.broadcast %cst_31 : f32 to vector<80x64xf32>
    %73 = arith.select %25, %71, %72 : vector<80x64xi1>, vector<80x64xf32>
    %c0_32 = arith.constant 0 : index
    %c128 = arith.constant 128 : index
    %74 = vector.load %arg10[%c0_32, %c128] : memref<80x192xf32, #tpu.memory_space<vmem>>, vector<80x64xf32>
    tpu.vector_store %arg10[%c0_32, %c128], %73 {strides = array<i32>} : memref<80x192xf32, #tpu.memory_space<vmem>>, vector<80x64xf32>,
    %c0_33 = arith.constant 0 : index
    %c0_34 = arith.constant 0 : index
    %c0_35 = arith.constant 0 : index
    %c0_36 = arith.constant 0 : index
    %75 = vector.load %arg4[%c0_33, %c0_34, %c0_35, %c0_36] : memref<3x2x1x64xf32, #tpu.memory_space<vmem>>, vector<1x1x1x64xf32>
    %76 = vector.shape_cast %75 : vector<1x1x1x64xf32> to vector<1x64xf32>
    %c0_37 = arith.constant 0 : index
    %c0_38 = arith.constant 0 : index
    %77 = vector.load %arg10[%c0_37, %c0_38] : memref<80x192xf32, #tpu.memory_space<vmem>>, vector<64x192xf32>
    %78 = arith.truncf %77 : vector<64x192xf32> to vector<64x192xbf16>
    %c0_39 = arith.constant 0 : index
    %c0_40 = arith.constant 0 : index
    %c0_41 = arith.constant 0 : index
    %c0_42 = arith.constant 0 : index
    %79 = vector.load %arg3[%c0_39, %c0_40, %c0_41, %c0_42] : memref<3x2x576x64xbf16, #tpu.memory_space<vmem>>, vector<1x1x192x64xbf16>
    %80 = vector.shape_cast %79 : vector<1x1x192x64xbf16> to vector<192x64xbf16>
    %cst_43 = arith.constant dense<0.000000e+00> : vector<64x64xf32>
    %81 = tpu.matmul %78, %80, %cst_43 {dimension_numbers = #tpu.dot_dimension_numbers<[1], [0], [0], [1], [0, 0, 1, 1], [], []>} : vector<64x192xbf16>, vector<192x64xbf16>, vector<64x64xf32> -> vector<64x64xf32>
    %82 = vector.broadcast %76 : vector<1x64xf32> to vector<64x64xf32>
    %83 = arith.addf %82, %81 : vector<64x64xf32>
    %c8 = arith.constant 8 : index
    %c0_44 = arith.constant 0 : index
    %84 = vector.load %arg10[%c8, %c0_44] : memref<80x192xf32, #tpu.memory_space<vmem>>, vector<64x192xf32>
    %85 = arith.truncf %84 : vector<64x192xf32> to vector<64x192xbf16>
    %c0_45 = arith.constant 0 : index
    %c0_46 = arith.constant 0 : index
    %c192 = arith.constant 192 : index
    %c0_47 = arith.constant 0 : index
    %86 = vector.load %arg3[%c0_45, %c0_46, %c192, %c0_47] : memref<3x2x576x64xbf16, #tpu.memory_space<vmem>>, vector<1x1x192x64xbf16>
    %87 = vector.shape_cast %86 : vector<1x1x192x64xbf16> to vector<192x64xbf16>
    %cst_48 = arith.constant dense<0.000000e+00> : vector<64x64xf32>
    %88 = tpu.matmul %85, %87, %cst_48 {dimension_numbers = #tpu.dot_dimension_numbers<[1], [0], [0], [1], [0, 0, 1, 1], [], []>} : vector<64x192xbf16>, vector<192x64xbf16>, vector<64x64xf32> -> vector<64x64xf32>
    %89 = arith.addf %83, %88 : vector<64x64xf32>
    %c16 = arith.constant 16 : index
    %c0_49 = arith.constant 0 : index
    %90 = vector.load %arg10[%c16, %c0_49] : memref<80x192xf32, #tpu.memory_space<vmem>>, vector<64x192xf32>
    %91 = arith.truncf %90 : vector<64x192xf32> to vector<64x192xbf16>
    %c0_50 = arith.constant 0 : index
    %c0_51 = arith.constant 0 : index
    %c384 = arith.constant 384 : index
    %c0_52 = arith.constant 0 : index
    %92 = vector.load %arg3[%c0_50, %c0_51, %c384, %c0_52] : memref<3x2x576x64xbf16, #tpu.memory_space<vmem>>, vector<1x1x192x64xbf16>
    %93 = vector.shape_cast %92 : vector<1x1x192x64xbf16> to vector<192x64xbf16>
    %cst_53 = arith.constant dense<0.000000e+00> : vector<64x64xf32>
    %94 = tpu.matmul %91, %93, %cst_53 {dimension_numbers = #tpu.dot_dimension_numbers<[1], [0], [0], [1], [0, 0, 1, 1], [], []>} : vector<64x192xbf16>, vector<192x64xbf16>, vector<64x64xf32> -> vector<64x64xf32>
    %95 = arith.addf %89, %94 : vector<64x64xf32>
    %c0_54 = arith.constant 0 : index
    %c2 = arith.constant 2 : index
    %c0_55 = arith.constant 0 : index
    %c0_56 = arith.constant 0 : index
    %96 = vector.load %arg2[%c0_54, %c2, %c0_55, %c0_56] : memref<3x4x1x64xf32, #tpu.memory_space<vmem>>, vector<1x1x1x64xf32>
    %97 = vector.shape_cast %96 : vector<1x1x1x64xf32> to vector<1x64xf32>
    %c0_57 = arith.constant 0 : index
    %c3 = arith.constant 3 : index
    %c0_58 = arith.constant 0 : index
    %c0_59 = arith.constant 0 : index
    %98 = vector.load %arg2[%c0_57, %c3, %c0_58, %c0_59] : memref<3x4x1x64xf32, #tpu.memory_space<vmem>>, vector<1x1x1x64xf32>
    %99 = vector.shape_cast %98 : vector<1x1x1x64xf32> to vector<1x64xf32>
    %cst_60 = arith.constant dense<0.000000e+00> : vector<64xf32>
    %100 = vector.multi_reduction <add>, %95, %cst_60 [0] : vector<64x64xf32> to vector<64xf32>
    %101 = vector.shape_cast %100 : vector<64xf32> to vector<1x64xf32>
    %102 = arith.mulf %95, %95 : vector<64x64xf32>
    %cst_61 = arith.constant dense<0.000000e+00> : vector<64xf32>
    %103 = vector.multi_reduction <add>, %102, %cst_61 [0] : vector<64x64xf32> to vector<64xf32>
    %104 = vector.shape_cast %103 : vector<64xf32> to vector<1x64xf32>
    %105 = tpu.concatenate %101, %104 in 0 : vector<1x64xf32>, vector<1x64xf32> -> vector<2x64xf32>
    %cst_62 = arith.constant dense<0.000000e+00> : vector<2x32xf32>
    %106 = tpu.matmul %105, %3, %cst_62 {dimension_numbers = #tpu.dot_dimension_numbers<[1], [0], [0], [1], [0, 0, 1, 1], [], []>} : vector<2x64xf32>, vector<64x32xf32>, vector<2x32xf32> -> vector<2x32xf32>
    %cst_63 = arith.constant 7.812500e-03 : f32
    %107 = vector.broadcast %cst_63 : f32 to vector<2x32xf32>
    %108 = arith.mulf %106, %107 : vector<2x32xf32>
    %109 = vector.extract_strided_slice %108 {offsets = [0, 0], sizes = [1, 32], strides = [1, 1]} : vector<2x32xf32> to vector<1x32xf32>
    %110 = vector.extract_strided_slice %108 {offsets = [1, 0], sizes = [1, 32], strides = [1, 1]} : vector<2x32xf32> to vector<1x32xf32>
    %111 = arith.mulf %109, %109 : vector<1x32xf32>
    %112 = arith.subf %110, %111 : vector<1x32xf32>
    %cst_64 = arith.constant 9.99999974E-6 : f32
    %113 = vector.broadcast %cst_64 : f32 to vector<1x32xf32>
    %114 = arith.addf %112, %113 : vector<1x32xf32>
    %115 = math.rsqrt %114 : vector<1x32xf32>
    %116 = tpu.concatenate %109, %115 in 0 : vector<1x32xf32>, vector<1x32xf32> -> vector<2x32xf32>
    %cst_65 = arith.constant dense<0.000000e+00> : vector<2x64xf32>
    %117 = tpu.matmul %116, %4, %cst_65 {dimension_numbers = #tpu.dot_dimension_numbers<[1], [0], [0], [1], [0, 0, 1, 1], [], []>} : vector<2x32xf32>, vector<32x64xf32>, vector<2x64xf32> -> vector<2x64xf32>
    %118 = vector.extract_strided_slice %117 {offsets = [1, 0], sizes = [1, 64], strides = [1, 1]} : vector<2x64xf32> to vector<1x64xf32>
    %119 = arith.mulf %118, %97 : vector<1x64xf32>
    %120 = vector.extract_strided_slice %117 {offsets = [0, 0], sizes = [1, 64], strides = [1, 1]} : vector<2x64xf32> to vector<1x64xf32>
    %121 = arith.mulf %120, %119 : vector<1x64xf32>
    %122 = arith.subf %99, %121 : vector<1x64xf32>
    %123 = vector.broadcast %119 : vector<1x64xf32> to vector<64x64xf32>
    %124 = arith.mulf %95, %123 : vector<64x64xf32>
    %125 = vector.broadcast %122 : vector<1x64xf32> to vector<64x64xf32>
    %126 = arith.addf %124, %125 : vector<64x64xf32>
    %cst_66 = arith.constant 0.000000e+00 : f32
    %127 = vector.broadcast %cst_66 : f32 to vector<64x64xf32>
    %128 = arith.subf %127, %126 : vector<64x64xf32>
    %129 = math.exp %128 : vector<64x64xf32>
    %cst_67 = arith.constant 1.000000e+00 : f32
    %130 = vector.broadcast %cst_67 : f32 to vector<64x64xf32>
    %131 = arith.addf %130, %129 : vector<64x64xf32>
    %132 = tpu.reciprocal %131 {approx = true} : vector<64x64xf32> -> vector<64x64xf32>
    %133 = arith.mulf %126, %132 : vector<64x64xf32>
    %134 = tpu.concatenate %26, %133, %26 in 0 : vector<8x64xf32>, vector<64x64xf32>, vector<8x64xf32> -> vector<80x64xf32>
    %c1_i32_68 = arith.constant 1 : i32
    %135 = tpu.dynamic_rotate %134 by %c1_i32_68 dim 0 : vector<80x64xf32>, i32 -> vector<80x64xf32>
    %cst_69 = arith.constant 0.000000e+00 : f32
    %136 = vector.broadcast %cst_69 : f32 to vector<80x64xf32>
    %137 = arith.select %23, %135, %136 : vector<80x64xi1>, vector<80x64xf32>
    %c0_70 = arith.constant 0 : index
    %c0_71 = arith.constant 0 : index
    %138 = vector.load %arg10[%c0_70, %c0_71] : memref<80x192xf32, #tpu.memory_space<vmem>>, vector<80x64xf32>
    tpu.vector_store %arg10[%c0_70, %c0_71], %137 {strides = array<i32>} : memref<80x192xf32, #tpu.memory_space<vmem>>, vector<80x64xf32>,
    %c0_72 = arith.constant 0 : index
    %c64_73 = arith.constant 64 : index
    %139 = vector.load %arg10[%c0_72, %c64_73] : memref<80x192xf32, #tpu.memory_space<vmem>>, vector<80x64xf32>
    tpu.vector_store %arg10[%c0_72, %c64_73], %134 {strides = array<i32>} : memref<80x192xf32, #tpu.memory_space<vmem>>, vector<80x64xf32>,
    %c79_i32_74 = arith.constant 79 : i32
    %140 = tpu.dynamic_rotate %134 by %c79_i32_74 dim 0 : vector<80x64xf32>, i32 -> vector<80x64xf32>
    %cst_75 = arith.constant 0.000000e+00 : f32
    %141 = vector.broadcast %cst_75 : f32 to vector<80x64xf32>
    %142 = arith.select %25, %140, %141 : vector<80x64xi1>, vector<80x64xf32>
    %c0_76 = arith.constant 0 : index
    %c128_77 = arith.constant 128 : index
    %143 = vector.load %arg10[%c0_76, %c128_77] : memref<80x192xf32, #tpu.memory_space<vmem>>, vector<80x64xf32>
    tpu.vector_store %arg10[%c0_76, %c128_77], %142 {strides = array<i32>} : memref<80x192xf32, #tpu.memory_space<vmem>>, vector<80x64xf32>,
    %c0_78 = arith.constant 0 : index
    %c1_79 = arith.constant 1 : index
    %c0_80 = arith.constant 0 : index
    %c0_81 = arith.constant 0 : index
    %144 = vector.load %arg4[%c0_78, %c1_79, %c0_80, %c0_81] : memref<3x2x1x64xf32, #tpu.memory_space<vmem>>, vector<1x1x1x64xf32>
    %145 = vector.shape_cast %144 : vector<1x1x1x64xf32> to vector<1x64xf32>
    %c0_82 = arith.constant 0 : index
    %c0_83 = arith.constant 0 : index
    %146 = vector.load %arg10[%c0_82, %c0_83] : memref<80x192xf32, #tpu.memory_space<vmem>>, vector<64x192xf32>
    %147 = arith.truncf %146 : vector<64x192xf32> to vector<64x192xbf16>
    %c0_84 = arith.constant 0 : index
    %c1_85 = arith.constant 1 : index
    %c0_86 = arith.constant 0 : index
    %c0_87 = arith.constant 0 : index
    %148 = vector.load %arg3[%c0_84, %c1_85, %c0_86, %c0_87] : memref<3x2x576x64xbf16, #tpu.memory_space<vmem>>, vector<1x1x192x64xbf16>
    %149 = vector.shape_cast %148 : vector<1x1x192x64xbf16> to vector<192x64xbf16>
    %cst_88 = arith.constant dense<0.000000e+00> : vector<64x64xf32>
    %150 = tpu.matmul %147, %149, %cst_88 {dimension_numbers = #tpu.dot_dimension_numbers<[1], [0], [0], [1], [0, 0, 1, 1], [], []>} : vector<64x192xbf16>, vector<192x64xbf16>, vector<64x64xf32> -> vector<64x64xf32>
    %151 = vector.broadcast %145 : vector<1x64xf32> to vector<64x64xf32>
    %152 = arith.addf %151, %150 : vector<64x64xf32>
    %c8_89 = arith.constant 8 : index
    %c0_90 = arith.constant 0 : index
    %153 = vector.load %arg10[%c8_89, %c0_90] : memref<80x192xf32, #tpu.memory_space<vmem>>, vector<64x192xf32>
    %154 = arith.truncf %153 : vector<64x192xf32> to vector<64x192xbf16>
    %c0_91 = arith.constant 0 : index
    %c1_92 = arith.constant 1 : index
    %c192_93 = arith.constant 192 : index
    %c0_94 = arith.constant 0 : index
    %155 = vector.load %arg3[%c0_91, %c1_92, %c192_93, %c0_94] : memref<3x2x576x64xbf16, #tpu.memory_space<vmem>>, vector<1x1x192x64xbf16>
    %156 = vector.shape_cast %155 : vector<1x1x192x64xbf16> to vector<192x64xbf16>
    %cst_95 = arith.constant dense<0.000000e+00> : vector<64x64xf32>
    %157 = tpu.matmul %154, %156, %cst_95 {dimension_numbers = #tpu.dot_dimension_numbers<[1], [0], [0], [1], [0, 0, 1, 1], [], []>} : vector<64x192xbf16>, vector<192x64xbf16>, vector<64x64xf32> -> vector<64x64xf32>
    %158 = arith.addf %152, %157 : vector<64x64xf32>
    %c16_96 = arith.constant 16 : index
    %c0_97 = arith.constant 0 : index
    %159 = vector.load %arg10[%c16_96, %c0_97] : memref<80x192xf32, #tpu.memory_space<vmem>>, vector<64x192xf32>
    %160 = arith.truncf %159 : vector<64x192xf32> to vector<64x192xbf16>
    %c0_98 = arith.constant 0 : index
    %c1_99 = arith.constant 1 : index
    %c384_100 = arith.constant 384 : index
    %c0_101 = arith.constant 0 : index
    %161 = vector.load %arg3[%c0_98, %c1_99, %c384_100, %c0_101] : memref<3x2x576x64xbf16, #tpu.memory_space<vmem>>, vector<1x1x192x64xbf16>
    %162 = vector.shape_cast %161 : vector<1x1x192x64xbf16> to vector<192x64xbf16>
    %cst_102 = arith.constant dense<0.000000e+00> : vector<64x64xf32>
    %163 = tpu.matmul %160, %162, %cst_102 {dimension_numbers = #tpu.dot_dimension_numbers<[1], [0], [0], [1], [0, 0, 1, 1], [], []>} : vector<64x192xbf16>, vector<192x64xbf16>, vector<64x64xf32> -> vector<64x64xf32>
    %164 = arith.addf %158, %163 : vector<64x64xf32>
    %165 = arith.addf %2, %164 : vector<64x64xf32>
    %c1_103 = arith.constant 1 : index
    %c0_104 = arith.constant 0 : index
    %c0_105 = arith.constant 0 : index
    %c0_106 = arith.constant 0 : index
    %166 = vector.load %arg2[%c1_103, %c0_104, %c0_105, %c0_106] : memref<3x4x1x64xf32, #tpu.memory_space<vmem>>, vector<1x1x1x64xf32>
    %167 = vector.shape_cast %166 : vector<1x1x1x64xf32> to vector<1x64xf32>
    %c1_107 = arith.constant 1 : index
    %c1_108 = arith.constant 1 : index
    %c0_109 = arith.constant 0 : index
    %c0_110 = arith.constant 0 : index
    %168 = vector.load %arg2[%c1_107, %c1_108, %c0_109, %c0_110] : memref<3x4x1x64xf32, #tpu.memory_space<vmem>>, vector<1x1x1x64xf32>
    %169 = vector.shape_cast %168 : vector<1x1x1x64xf32> to vector<1x64xf32>
    %cst_111 = arith.constant dense<0.000000e+00> : vector<64xf32>
    %170 = vector.multi_reduction <add>, %165, %cst_111 [0] : vector<64x64xf32> to vector<64xf32>
    %171 = vector.shape_cast %170 : vector<64xf32> to vector<1x64xf32>
    %172 = arith.mulf %165, %165 : vector<64x64xf32>
    %cst_112 = arith.constant dense<0.000000e+00> : vector<64xf32>
    %173 = vector.multi_reduction <add>, %172, %cst_112 [0] : vector<64x64xf32> to vector<64xf32>
    %174 = vector.shape_cast %173 : vector<64xf32> to vector<1x64xf32>
    %175 = tpu.concatenate %171, %174 in 0 : vector<1x64xf32>, vector<1x64xf32> -> vector<2x64xf32>
    %cst_113 = arith.constant dense<0.000000e+00> : vector<2x32xf32>
    %176 = tpu.matmul %175, %3, %cst_113 {dimension_numbers = #tpu.dot_dimension_numbers<[1], [0], [0], [1], [0, 0, 1, 1], [], []>} : vector<2x64xf32>, vector<64x32xf32>, vector<2x32xf32> -> vector<2x32xf32>
    %cst_114 = arith.constant 7.812500e-03 : f32
    %177 = vector.broadcast %cst_114 : f32 to vector<2x32xf32>
    %178 = arith.mulf %176, %177 : vector<2x32xf32>
    %179 = vector.extract_strided_slice %178 {offsets = [0, 0], sizes = [1, 32], strides = [1, 1]} : vector<2x32xf32> to vector<1x32xf32>
    %180 = vector.extract_strided_slice %178 {offsets = [1, 0], sizes = [1, 32], strides = [1, 1]} : vector<2x32xf32> to vector<1x32xf32>
    %181 = arith.mulf %179, %179 : vector<1x32xf32>
    %182 = arith.subf %180, %181 : vector<1x32xf32>
    %cst_115 = arith.constant 9.99999974E-6 : f32
    %183 = vector.broadcast %cst_115 : f32 to vector<1x32xf32>
    %184 = arith.addf %182, %183 : vector<1x32xf32>
    %185 = math.rsqrt %184 : vector<1x32xf32>
    %186 = tpu.concatenate %179, %185 in 0 : vector<1x32xf32>, vector<1x32xf32> -> vector<2x32xf32>
    %cst_116 = arith.constant dense<0.000000e+00> : vector<2x64xf32>
    %187 = tpu.matmul %186, %4, %cst_116 {dimension_numbers = #tpu.dot_dimension_numbers<[1], [0], [0], [1], [0, 0, 1, 1], [], []>} : vector<2x32xf32>, vector<32x64xf32>, vector<2x64xf32> -> vector<2x64xf32>
    %188 = vector.extract_strided_slice %187 {offsets = [1, 0], sizes = [1, 64], strides = [1, 1]} : vector<2x64xf32> to vector<1x64xf32>
    %189 = arith.mulf %188, %167 : vector<1x64xf32>
    %190 = vector.extract_strided_slice %187 {offsets = [0, 0], sizes = [1, 64], strides = [1, 1]} : vector<2x64xf32> to vector<1x64xf32>
    %191 = arith.mulf %190, %189 : vector<1x64xf32>
    %192 = arith.subf %169, %191 : vector<1x64xf32>
    %193 = vector.broadcast %189 : vector<1x64xf32> to vector<64x64xf32>
    %194 = arith.mulf %165, %193 : vector<64x64xf32>
    %195 = vector.broadcast %192 : vector<1x64xf32> to vector<64x64xf32>
    %196 = arith.addf %194, %195 : vector<64x64xf32>
    %cst_117 = arith.constant 0.000000e+00 : f32
    %197 = vector.broadcast %cst_117 : f32 to vector<64x64xf32>
    %198 = arith.subf %197, %196 : vector<64x64xf32>
    %199 = math.exp %198 : vector<64x64xf32>
    %cst_118 = arith.constant 1.000000e+00 : f32
    %200 = vector.broadcast %cst_118 : f32 to vector<64x64xf32>
    %201 = arith.addf %200, %199 : vector<64x64xf32>
    %202 = tpu.reciprocal %201 {approx = true} : vector<64x64xf32> -> vector<64x64xf32>
    %203 = arith.mulf %196, %202 : vector<64x64xf32>
    %204 = tpu.concatenate %26, %203, %26 in 0 : vector<8x64xf32>, vector<64x64xf32>, vector<8x64xf32> -> vector<80x64xf32>
    %c1_i32_119 = arith.constant 1 : i32
    %205 = tpu.dynamic_rotate %204 by %c1_i32_119 dim 0 : vector<80x64xf32>, i32 -> vector<80x64xf32>
    %cst_120 = arith.constant 0.000000e+00 : f32
    %206 = vector.broadcast %cst_120 : f32 to vector<80x64xf32>
    %207 = arith.select %23, %205, %206 : vector<80x64xi1>, vector<80x64xf32>
    %c0_121 = arith.constant 0 : index
    %c0_122 = arith.constant 0 : index
    %208 = vector.load %arg10[%c0_121, %c0_122] : memref<80x192xf32, #tpu.memory_space<vmem>>, vector<80x64xf32>
    tpu.vector_store %arg10[%c0_121, %c0_122], %207 {strides = array<i32>} : memref<80x192xf32, #tpu.memory_space<vmem>>, vector<80x64xf32>,
    %c0_123 = arith.constant 0 : index
    %c64_124 = arith.constant 64 : index
    %209 = vector.load %arg10[%c0_123, %c64_124] : memref<80x192xf32, #tpu.memory_space<vmem>>, vector<80x64xf32>
    tpu.vector_store %arg10[%c0_123, %c64_124], %204 {strides = array<i32>} : memref<80x192xf32, #tpu.memory_space<vmem>>, vector<80x64xf32>,
    %c79_i32_125 = arith.constant 79 : i32
    %210 = tpu.dynamic_rotate %204 by %c79_i32_125 dim 0 : vector<80x64xf32>, i32 -> vector<80x64xf32>
    %cst_126 = arith.constant 0.000000e+00 : f32
    %211 = vector.broadcast %cst_126 : f32 to vector<80x64xf32>
    %212 = arith.select %25, %210, %211 : vector<80x64xi1>, vector<80x64xf32>
    %c0_127 = arith.constant 0 : index
    %c128_128 = arith.constant 128 : index
    %213 = vector.load %arg10[%c0_127, %c128_128] : memref<80x192xf32, #tpu.memory_space<vmem>>, vector<80x64xf32>
    tpu.vector_store %arg10[%c0_127, %c128_128], %212 {strides = array<i32>} : memref<80x192xf32, #tpu.memory_space<vmem>>, vector<80x64xf32>,
    %c1_129 = arith.constant 1 : index
    %c0_130 = arith.constant 0 : index
    %c0_131 = arith.constant 0 : index
    %c0_132 = arith.constant 0 : index
    %214 = vector.load %arg4[%c1_129, %c0_130, %c0_131, %c0_132] : memref<3x2x1x64xf32, #tpu.memory_space<vmem>>, vector<1x1x1x64xf32>
    %215 = vector.shape_cast %214 : vector<1x1x1x64xf32> to vector<1x64xf32>
    %c0_133 = arith.constant 0 : index
    %c0_134 = arith.constant 0 : index
    %216 = vector.load %arg10[%c0_133, %c0_134] : memref<80x192xf32, #tpu.memory_space<vmem>>, vector<64x192xf32>
    %217 = arith.truncf %216 : vector<64x192xf32> to vector<64x192xbf16>
    %c1_135 = arith.constant 1 : index
    %c0_136 = arith.constant 0 : index
    %c0_137 = arith.constant 0 : index
    %c0_138 = arith.constant 0 : index
    %218 = vector.load %arg3[%c1_135, %c0_136, %c0_137, %c0_138] : memref<3x2x576x64xbf16, #tpu.memory_space<vmem>>, vector<1x1x192x64xbf16>
    %219 = vector.shape_cast %218 : vector<1x1x192x64xbf16> to vector<192x64xbf16>
    %cst_139 = arith.constant dense<0.000000e+00> : vector<64x64xf32>
    %220 = tpu.matmul %217, %219, %cst_139 {dimension_numbers = #tpu.dot_dimension_numbers<[1], [0], [0], [1], [0, 0, 1, 1], [], []>} : vector<64x192xbf16>, vector<192x64xbf16>, vector<64x64xf32> -> vector<64x64xf32>
    %221 = vector.broadcast %215 : vector<1x64xf32> to vector<64x64xf32>
    %222 = arith.addf %221, %220 : vector<64x64xf32>
    %c8_140 = arith.constant 8 : index
    %c0_141 = arith.constant 0 : index
    %223 = vector.load %arg10[%c8_140, %c0_141] : memref<80x192xf32, #tpu.memory_space<vmem>>, vector<64x192xf32>
    %224 = arith.truncf %223 : vector<64x192xf32> to vector<64x192xbf16>
    %c1_142 = arith.constant 1 : index
    %c0_143 = arith.constant 0 : index
    %c192_144 = arith.constant 192 : index
    %c0_145 = arith.constant 0 : index
    %225 = vector.load %arg3[%c1_142, %c0_143, %c192_144, %c0_145] : memref<3x2x576x64xbf16, #tpu.memory_space<vmem>>, vector<1x1x192x64xbf16>
    %226 = vector.shape_cast %225 : vector<1x1x192x64xbf16> to vector<192x64xbf16>
    %cst_146 = arith.constant dense<0.000000e+00> : vector<64x64xf32>
    %227 = tpu.matmul %224, %226, %cst_146 {dimension_numbers = #tpu.dot_dimension_numbers<[1], [0], [0], [1], [0, 0, 1, 1], [], []>} : vector<64x192xbf16>, vector<192x64xbf16>, vector<64x64xf32> -> vector<64x64xf32>
    %228 = arith.addf %222, %227 : vector<64x64xf32>
    %c16_147 = arith.constant 16 : index
    %c0_148 = arith.constant 0 : index
    %229 = vector.load %arg10[%c16_147, %c0_148] : memref<80x192xf32, #tpu.memory_space<vmem>>, vector<64x192xf32>
    %230 = arith.truncf %229 : vector<64x192xf32> to vector<64x192xbf16>
    %c1_149 = arith.constant 1 : index
    %c0_150 = arith.constant 0 : index
    %c384_151 = arith.constant 384 : index
    %c0_152 = arith.constant 0 : index
    %231 = vector.load %arg3[%c1_149, %c0_150, %c384_151, %c0_152] : memref<3x2x576x64xbf16, #tpu.memory_space<vmem>>, vector<1x1x192x64xbf16>
    %232 = vector.shape_cast %231 : vector<1x1x192x64xbf16> to vector<192x64xbf16>
    %cst_153 = arith.constant dense<0.000000e+00> : vector<64x64xf32>
    %233 = tpu.matmul %230, %232, %cst_153 {dimension_numbers = #tpu.dot_dimension_numbers<[1], [0], [0], [1], [0, 0, 1, 1], [], []>} : vector<64x192xbf16>, vector<192x64xbf16>, vector<64x64xf32> -> vector<64x64xf32>
    %234 = arith.addf %228, %233 : vector<64x64xf32>
    %c1_154 = arith.constant 1 : index
    %c2_155 = arith.constant 2 : index
    %c0_156 = arith.constant 0 : index
    %c0_157 = arith.constant 0 : index
    %235 = vector.load %arg2[%c1_154, %c2_155, %c0_156, %c0_157] : memref<3x4x1x64xf32, #tpu.memory_space<vmem>>, vector<1x1x1x64xf32>
    %236 = vector.shape_cast %235 : vector<1x1x1x64xf32> to vector<1x64xf32>
    %c1_158 = arith.constant 1 : index
    %c3_159 = arith.constant 3 : index
    %c0_160 = arith.constant 0 : index
    %c0_161 = arith.constant 0 : index
    %237 = vector.load %arg2[%c1_158, %c3_159, %c0_160, %c0_161] : memref<3x4x1x64xf32, #tpu.memory_space<vmem>>, vector<1x1x1x64xf32>
    %238 = vector.shape_cast %237 : vector<1x1x1x64xf32> to vector<1x64xf32>
    %cst_162 = arith.constant dense<0.000000e+00> : vector<64xf32>
    %239 = vector.multi_reduction <add>, %234, %cst_162 [0] : vector<64x64xf32> to vector<64xf32>
    %240 = vector.shape_cast %239 : vector<64xf32> to vector<1x64xf32>
    %241 = arith.mulf %234, %234 : vector<64x64xf32>
    %cst_163 = arith.constant dense<0.000000e+00> : vector<64xf32>
    %242 = vector.multi_reduction <add>, %241, %cst_163 [0] : vector<64x64xf32> to vector<64xf32>
    %243 = vector.shape_cast %242 : vector<64xf32> to vector<1x64xf32>
    %244 = tpu.concatenate %240, %243 in 0 : vector<1x64xf32>, vector<1x64xf32> -> vector<2x64xf32>
    %cst_164 = arith.constant dense<0.000000e+00> : vector<2x32xf32>
    %245 = tpu.matmul %244, %3, %cst_164 {dimension_numbers = #tpu.dot_dimension_numbers<[1], [0], [0], [1], [0, 0, 1, 1], [], []>} : vector<2x64xf32>, vector<64x32xf32>, vector<2x32xf32> -> vector<2x32xf32>
    %cst_165 = arith.constant 7.812500e-03 : f32
    %246 = vector.broadcast %cst_165 : f32 to vector<2x32xf32>
    %247 = arith.mulf %245, %246 : vector<2x32xf32>
    %248 = vector.extract_strided_slice %247 {offsets = [0, 0], sizes = [1, 32], strides = [1, 1]} : vector<2x32xf32> to vector<1x32xf32>
    %249 = vector.extract_strided_slice %247 {offsets = [1, 0], sizes = [1, 32], strides = [1, 1]} : vector<2x32xf32> to vector<1x32xf32>
    %250 = arith.mulf %248, %248 : vector<1x32xf32>
    %251 = arith.subf %249, %250 : vector<1x32xf32>
    %cst_166 = arith.constant 9.99999974E-6 : f32
    %252 = vector.broadcast %cst_166 : f32 to vector<1x32xf32>
    %253 = arith.addf %251, %252 : vector<1x32xf32>
    %254 = math.rsqrt %253 : vector<1x32xf32>
    %255 = tpu.concatenate %248, %254 in 0 : vector<1x32xf32>, vector<1x32xf32> -> vector<2x32xf32>
    %cst_167 = arith.constant dense<0.000000e+00> : vector<2x64xf32>
    %256 = tpu.matmul %255, %4, %cst_167 {dimension_numbers = #tpu.dot_dimension_numbers<[1], [0], [0], [1], [0, 0, 1, 1], [], []>} : vector<2x32xf32>, vector<32x64xf32>, vector<2x64xf32> -> vector<2x64xf32>
    %257 = vector.extract_strided_slice %256 {offsets = [1, 0], sizes = [1, 64], strides = [1, 1]} : vector<2x64xf32> to vector<1x64xf32>
    %258 = arith.mulf %257, %236 : vector<1x64xf32>
    %259 = vector.extract_strided_slice %256 {offsets = [0, 0], sizes = [1, 64], strides = [1, 1]} : vector<2x64xf32> to vector<1x64xf32>
    %260 = arith.mulf %259, %258 : vector<1x64xf32>
    %261 = arith.subf %238, %260 : vector<1x64xf32>
    %262 = vector.broadcast %258 : vector<1x64xf32> to vector<64x64xf32>
    %263 = arith.mulf %234, %262 : vector<64x64xf32>
    %264 = vector.broadcast %261 : vector<1x64xf32> to vector<64x64xf32>
    %265 = arith.addf %263, %264 : vector<64x64xf32>
    %cst_168 = arith.constant 0.000000e+00 : f32
    %266 = vector.broadcast %cst_168 : f32 to vector<64x64xf32>
    %267 = arith.subf %266, %265 : vector<64x64xf32>
    %268 = math.exp %267 : vector<64x64xf32>
    %cst_169 = arith.constant 1.000000e+00 : f32
    %269 = vector.broadcast %cst_169 : f32 to vector<64x64xf32>
    %270 = arith.addf %269, %268 : vector<64x64xf32>
    %271 = tpu.reciprocal %270 {approx = true} : vector<64x64xf32> -> vector<64x64xf32>
    %272 = arith.mulf %265, %271 : vector<64x64xf32>
    %273 = tpu.concatenate %26, %272, %26 in 0 : vector<8x64xf32>, vector<64x64xf32>, vector<8x64xf32> -> vector<80x64xf32>
    %c1_i32_170 = arith.constant 1 : i32
    %274 = tpu.dynamic_rotate %273 by %c1_i32_170 dim 0 : vector<80x64xf32>, i32 -> vector<80x64xf32>
    %cst_171 = arith.constant 0.000000e+00 : f32
    %275 = vector.broadcast %cst_171 : f32 to vector<80x64xf32>
    %276 = arith.select %23, %274, %275 : vector<80x64xi1>, vector<80x64xf32>
    %c0_172 = arith.constant 0 : index
    %c0_173 = arith.constant 0 : index
    %277 = vector.load %arg10[%c0_172, %c0_173] : memref<80x192xf32, #tpu.memory_space<vmem>>, vector<80x64xf32>
    tpu.vector_store %arg10[%c0_172, %c0_173], %276 {strides = array<i32>} : memref<80x192xf32, #tpu.memory_space<vmem>>, vector<80x64xf32>,
    %c0_174 = arith.constant 0 : index
    %c64_175 = arith.constant 64 : index
    %278 = vector.load %arg10[%c0_174, %c64_175] : memref<80x192xf32, #tpu.memory_space<vmem>>, vector<80x64xf32>
    tpu.vector_store %arg10[%c0_174, %c64_175], %273 {strides = array<i32>} : memref<80x192xf32, #tpu.memory_space<vmem>>, vector<80x64xf32>,
    %c79_i32_176 = arith.constant 79 : i32
    %279 = tpu.dynamic_rotate %273 by %c79_i32_176 dim 0 : vector<80x64xf32>, i32 -> vector<80x64xf32>
    %cst_177 = arith.constant 0.000000e+00 : f32
    %280 = vector.broadcast %cst_177 : f32 to vector<80x64xf32>
    %281 = arith.select %25, %279, %280 : vector<80x64xi1>, vector<80x64xf32>
    %c0_178 = arith.constant 0 : index
    %c128_179 = arith.constant 128 : index
    %282 = vector.load %arg10[%c0_178, %c128_179] : memref<80x192xf32, #tpu.memory_space<vmem>>, vector<80x64xf32>
    tpu.vector_store %arg10[%c0_178, %c128_179], %281 {strides = array<i32>} : memref<80x192xf32, #tpu.memory_space<vmem>>, vector<80x64xf32>,
    %c1_180 = arith.constant 1 : index
    %c1_181 = arith.constant 1 : index
    %c0_182 = arith.constant 0 : index
    %c0_183 = arith.constant 0 : index
    %283 = vector.load %arg4[%c1_180, %c1_181, %c0_182, %c0_183] : memref<3x2x1x64xf32, #tpu.memory_space<vmem>>, vector<1x1x1x64xf32>
    %284 = vector.shape_cast %283 : vector<1x1x1x64xf32> to vector<1x64xf32>
    %c0_184 = arith.constant 0 : index
    %c0_185 = arith.constant 0 : index
    %285 = vector.load %arg10[%c0_184, %c0_185] : memref<80x192xf32, #tpu.memory_space<vmem>>, vector<64x192xf32>
    %286 = arith.truncf %285 : vector<64x192xf32> to vector<64x192xbf16>
    %c1_186 = arith.constant 1 : index
    %c1_187 = arith.constant 1 : index
    %c0_188 = arith.constant 0 : index
    %c0_189 = arith.constant 0 : index
    %287 = vector.load %arg3[%c1_186, %c1_187, %c0_188, %c0_189] : memref<3x2x576x64xbf16, #tpu.memory_space<vmem>>, vector<1x1x192x64xbf16>
    %288 = vector.shape_cast %287 : vector<1x1x192x64xbf16> to vector<192x64xbf16>
    %cst_190 = arith.constant dense<0.000000e+00> : vector<64x64xf32>
    %289 = tpu.matmul %286, %288, %cst_190 {dimension_numbers = #tpu.dot_dimension_numbers<[1], [0], [0], [1], [0, 0, 1, 1], [], []>} : vector<64x192xbf16>, vector<192x64xbf16>, vector<64x64xf32> -> vector<64x64xf32>
    %290 = vector.broadcast %284 : vector<1x64xf32> to vector<64x64xf32>
    %291 = arith.addf %290, %289 : vector<64x64xf32>
    %c8_191 = arith.constant 8 : index
    %c0_192 = arith.constant 0 : index
    %292 = vector.load %arg10[%c8_191, %c0_192] : memref<80x192xf32, #tpu.memory_space<vmem>>, vector<64x192xf32>
    %293 = arith.truncf %292 : vector<64x192xf32> to vector<64x192xbf16>
    %c1_193 = arith.constant 1 : index
    %c1_194 = arith.constant 1 : index
    %c192_195 = arith.constant 192 : index
    %c0_196 = arith.constant 0 : index
    %294 = vector.load %arg3[%c1_193, %c1_194, %c192_195, %c0_196] : memref<3x2x576x64xbf16, #tpu.memory_space<vmem>>, vector<1x1x192x64xbf16>
    %295 = vector.shape_cast %294 : vector<1x1x192x64xbf16> to vector<192x64xbf16>
    %cst_197 = arith.constant dense<0.000000e+00> : vector<64x64xf32>
    %296 = tpu.matmul %293, %295, %cst_197 {dimension_numbers = #tpu.dot_dimension_numbers<[1], [0], [0], [1], [0, 0, 1, 1], [], []>} : vector<64x192xbf16>, vector<192x64xbf16>, vector<64x64xf32> -> vector<64x64xf32>
    %297 = arith.addf %291, %296 : vector<64x64xf32>
    %c16_198 = arith.constant 16 : index
    %c0_199 = arith.constant 0 : index
    %298 = vector.load %arg10[%c16_198, %c0_199] : memref<80x192xf32, #tpu.memory_space<vmem>>, vector<64x192xf32>
    %299 = arith.truncf %298 : vector<64x192xf32> to vector<64x192xbf16>
    %c1_200 = arith.constant 1 : index
    %c1_201 = arith.constant 1 : index
    %c384_202 = arith.constant 384 : index
    %c0_203 = arith.constant 0 : index
    %300 = vector.load %arg3[%c1_200, %c1_201, %c384_202, %c0_203] : memref<3x2x576x64xbf16, #tpu.memory_space<vmem>>, vector<1x1x192x64xbf16>
    %301 = vector.shape_cast %300 : vector<1x1x192x64xbf16> to vector<192x64xbf16>
    %cst_204 = arith.constant dense<0.000000e+00> : vector<64x64xf32>
    %302 = tpu.matmul %299, %301, %cst_204 {dimension_numbers = #tpu.dot_dimension_numbers<[1], [0], [0], [1], [0, 0, 1, 1], [], []>} : vector<64x192xbf16>, vector<192x64xbf16>, vector<64x64xf32> -> vector<64x64xf32>
    %303 = arith.addf %297, %302 : vector<64x64xf32>
    %304 = arith.addf %165, %303 : vector<64x64xf32>
    %c2_205 = arith.constant 2 : index
    %c0_206 = arith.constant 0 : index
    %c0_207 = arith.constant 0 : index
    %c0_208 = arith.constant 0 : index
    %305 = vector.load %arg2[%c2_205, %c0_206, %c0_207, %c0_208] : memref<3x4x1x64xf32, #tpu.memory_space<vmem>>, vector<1x1x1x64xf32>
    %306 = vector.shape_cast %305 : vector<1x1x1x64xf32> to vector<1x64xf32>
    %c2_209 = arith.constant 2 : index
    %c1_210 = arith.constant 1 : index
    %c0_211 = arith.constant 0 : index
    %c0_212 = arith.constant 0 : index
    %307 = vector.load %arg2[%c2_209, %c1_210, %c0_211, %c0_212] : memref<3x4x1x64xf32, #tpu.memory_space<vmem>>, vector<1x1x1x64xf32>
    %308 = vector.shape_cast %307 : vector<1x1x1x64xf32> to vector<1x64xf32>
    %cst_213 = arith.constant dense<0.000000e+00> : vector<64xf32>
    %309 = vector.multi_reduction <add>, %304, %cst_213 [0] : vector<64x64xf32> to vector<64xf32>
    %310 = vector.shape_cast %309 : vector<64xf32> to vector<1x64xf32>
    %311 = arith.mulf %304, %304 : vector<64x64xf32>
    %cst_214 = arith.constant dense<0.000000e+00> : vector<64xf32>
    %312 = vector.multi_reduction <add>, %311, %cst_214 [0] : vector<64x64xf32> to vector<64xf32>
    %313 = vector.shape_cast %312 : vector<64xf32> to vector<1x64xf32>
    %314 = tpu.concatenate %310, %313 in 0 : vector<1x64xf32>, vector<1x64xf32> -> vector<2x64xf32>
    %cst_215 = arith.constant dense<0.000000e+00> : vector<2x32xf32>
    %315 = tpu.matmul %314, %3, %cst_215 {dimension_numbers = #tpu.dot_dimension_numbers<[1], [0], [0], [1], [0, 0, 1, 1], [], []>} : vector<2x64xf32>, vector<64x32xf32>, vector<2x32xf32> -> vector<2x32xf32>
    %cst_216 = arith.constant 7.812500e-03 : f32
    %316 = vector.broadcast %cst_216 : f32 to vector<2x32xf32>
    %317 = arith.mulf %315, %316 : vector<2x32xf32>
    %318 = vector.extract_strided_slice %317 {offsets = [0, 0], sizes = [1, 32], strides = [1, 1]} : vector<2x32xf32> to vector<1x32xf32>
    %319 = vector.extract_strided_slice %317 {offsets = [1, 0], sizes = [1, 32], strides = [1, 1]} : vector<2x32xf32> to vector<1x32xf32>
    %320 = arith.mulf %318, %318 : vector<1x32xf32>
    %321 = arith.subf %319, %320 : vector<1x32xf32>
    %cst_217 = arith.constant 9.99999974E-6 : f32
    %322 = vector.broadcast %cst_217 : f32 to vector<1x32xf32>
    %323 = arith.addf %321, %322 : vector<1x32xf32>
    %324 = math.rsqrt %323 : vector<1x32xf32>
    %325 = tpu.concatenate %318, %324 in 0 : vector<1x32xf32>, vector<1x32xf32> -> vector<2x32xf32>
    %cst_218 = arith.constant dense<0.000000e+00> : vector<2x64xf32>
    %326 = tpu.matmul %325, %4, %cst_218 {dimension_numbers = #tpu.dot_dimension_numbers<[1], [0], [0], [1], [0, 0, 1, 1], [], []>} : vector<2x32xf32>, vector<32x64xf32>, vector<2x64xf32> -> vector<2x64xf32>
    %327 = vector.extract_strided_slice %326 {offsets = [1, 0], sizes = [1, 64], strides = [1, 1]} : vector<2x64xf32> to vector<1x64xf32>
    %328 = arith.mulf %327, %306 : vector<1x64xf32>
    %329 = vector.extract_strided_slice %326 {offsets = [0, 0], sizes = [1, 64], strides = [1, 1]} : vector<2x64xf32> to vector<1x64xf32>
    %330 = arith.mulf %329, %328 : vector<1x64xf32>
    %331 = arith.subf %308, %330 : vector<1x64xf32>
    %332 = vector.broadcast %328 : vector<1x64xf32> to vector<64x64xf32>
    %333 = arith.mulf %304, %332 : vector<64x64xf32>
    %334 = vector.broadcast %331 : vector<1x64xf32> to vector<64x64xf32>
    %335 = arith.addf %333, %334 : vector<64x64xf32>
    %cst_219 = arith.constant 0.000000e+00 : f32
    %336 = vector.broadcast %cst_219 : f32 to vector<64x64xf32>
    %337 = arith.subf %336, %335 : vector<64x64xf32>
    %338 = math.exp %337 : vector<64x64xf32>
    %cst_220 = arith.constant 1.000000e+00 : f32
    %339 = vector.broadcast %cst_220 : f32 to vector<64x64xf32>
    %340 = arith.addf %339, %338 : vector<64x64xf32>
    %341 = tpu.reciprocal %340 {approx = true} : vector<64x64xf32> -> vector<64x64xf32>
    %342 = arith.mulf %335, %341 : vector<64x64xf32>
    %343 = tpu.concatenate %26, %342, %26 in 0 : vector<8x64xf32>, vector<64x64xf32>, vector<8x64xf32> -> vector<80x64xf32>
    %c1_i32_221 = arith.constant 1 : i32
    %344 = tpu.dynamic_rotate %343 by %c1_i32_221 dim 0 : vector<80x64xf32>, i32 -> vector<80x64xf32>
    %cst_222 = arith.constant 0.000000e+00 : f32
    %345 = vector.broadcast %cst_222 : f32 to vector<80x64xf32>
    %346 = arith.select %23, %344, %345 : vector<80x64xi1>, vector<80x64xf32>
    %c0_223 = arith.constant 0 : index
    %c0_224 = arith.constant 0 : index
    %347 = vector.load %arg10[%c0_223, %c0_224] : memref<80x192xf32, #tpu.memory_space<vmem>>, vector<80x64xf32>
    tpu.vector_store %arg10[%c0_223, %c0_224], %346 {strides = array<i32>} : memref<80x192xf32, #tpu.memory_space<vmem>>, vector<80x64xf32>,
    %c0_225 = arith.constant 0 : index
    %c64_226 = arith.constant 64 : index
    %348 = vector.load %arg10[%c0_225, %c64_226] : memref<80x192xf32, #tpu.memory_space<vmem>>, vector<80x64xf32>
    tpu.vector_store %arg10[%c0_225, %c64_226], %343 {strides = array<i32>} : memref<80x192xf32, #tpu.memory_space<vmem>>, vector<80x64xf32>,
    %c79_i32_227 = arith.constant 79 : i32
    %349 = tpu.dynamic_rotate %343 by %c79_i32_227 dim 0 : vector<80x64xf32>, i32 -> vector<80x64xf32>
    %cst_228 = arith.constant 0.000000e+00 : f32
    %350 = vector.broadcast %cst_228 : f32 to vector<80x64xf32>
    %351 = arith.select %25, %349, %350 : vector<80x64xi1>, vector<80x64xf32>
    %c0_229 = arith.constant 0 : index
    %c128_230 = arith.constant 128 : index
    %352 = vector.load %arg10[%c0_229, %c128_230] : memref<80x192xf32, #tpu.memory_space<vmem>>, vector<80x64xf32>
    tpu.vector_store %arg10[%c0_229, %c128_230], %351 {strides = array<i32>} : memref<80x192xf32, #tpu.memory_space<vmem>>, vector<80x64xf32>,
    %c2_231 = arith.constant 2 : index
    %c0_232 = arith.constant 0 : index
    %c0_233 = arith.constant 0 : index
    %c0_234 = arith.constant 0 : index
    %353 = vector.load %arg4[%c2_231, %c0_232, %c0_233, %c0_234] : memref<3x2x1x64xf32, #tpu.memory_space<vmem>>, vector<1x1x1x64xf32>
    %354 = vector.shape_cast %353 : vector<1x1x1x64xf32> to vector<1x64xf32>
    %c0_235 = arith.constant 0 : index
    %c0_236 = arith.constant 0 : index
    %355 = vector.load %arg10[%c0_235, %c0_236] : memref<80x192xf32, #tpu.memory_space<vmem>>, vector<64x192xf32>
    %356 = arith.truncf %355 : vector<64x192xf32> to vector<64x192xbf16>
    %c2_237 = arith.constant 2 : index
    %c0_238 = arith.constant 0 : index
    %c0_239 = arith.constant 0 : index
    %c0_240 = arith.constant 0 : index
    %357 = vector.load %arg3[%c2_237, %c0_238, %c0_239, %c0_240] : memref<3x2x576x64xbf16, #tpu.memory_space<vmem>>, vector<1x1x192x64xbf16>
    %358 = vector.shape_cast %357 : vector<1x1x192x64xbf16> to vector<192x64xbf16>
    %cst_241 = arith.constant dense<0.000000e+00> : vector<64x64xf32>
    %359 = tpu.matmul %356, %358, %cst_241 {dimension_numbers = #tpu.dot_dimension_numbers<[1], [0], [0], [1], [0, 0, 1, 1], [], []>} : vector<64x192xbf16>, vector<192x64xbf16>, vector<64x64xf32> -> vector<64x64xf32>
    %360 = vector.broadcast %354 : vector<1x64xf32> to vector<64x64xf32>
    %361 = arith.addf %360, %359 : vector<64x64xf32>
    %c8_242 = arith.constant 8 : index
    %c0_243 = arith.constant 0 : index
    %362 = vector.load %arg10[%c8_242, %c0_243] : memref<80x192xf32, #tpu.memory_space<vmem>>, vector<64x192xf32>
    %363 = arith.truncf %362 : vector<64x192xf32> to vector<64x192xbf16>
    %c2_244 = arith.constant 2 : index
    %c0_245 = arith.constant 0 : index
    %c192_246 = arith.constant 192 : index
    %c0_247 = arith.constant 0 : index
    %364 = vector.load %arg3[%c2_244, %c0_245, %c192_246, %c0_247] : memref<3x2x576x64xbf16, #tpu.memory_space<vmem>>, vector<1x1x192x64xbf16>
    %365 = vector.shape_cast %364 : vector<1x1x192x64xbf16> to vector<192x64xbf16>
    %cst_248 = arith.constant dense<0.000000e+00> : vector<64x64xf32>
    %366 = tpu.matmul %363, %365, %cst_248 {dimension_numbers = #tpu.dot_dimension_numbers<[1], [0], [0], [1], [0, 0, 1, 1], [], []>} : vector<64x192xbf16>, vector<192x64xbf16>, vector<64x64xf32> -> vector<64x64xf32>
    %367 = arith.addf %361, %366 : vector<64x64xf32>
    %c16_249 = arith.constant 16 : index
    %c0_250 = arith.constant 0 : index
    %368 = vector.load %arg10[%c16_249, %c0_250] : memref<80x192xf32, #tpu.memory_space<vmem>>, vector<64x192xf32>
    %369 = arith.truncf %368 : vector<64x192xf32> to vector<64x192xbf16>
    %c2_251 = arith.constant 2 : index
    %c0_252 = arith.constant 0 : index
    %c384_253 = arith.constant 384 : index
    %c0_254 = arith.constant 0 : index
    %370 = vector.load %arg3[%c2_251, %c0_252, %c384_253, %c0_254] : memref<3x2x576x64xbf16, #tpu.memory_space<vmem>>, vector<1x1x192x64xbf16>
    %371 = vector.shape_cast %370 : vector<1x1x192x64xbf16> to vector<192x64xbf16>
    %cst_255 = arith.constant dense<0.000000e+00> : vector<64x64xf32>
    %372 = tpu.matmul %369, %371, %cst_255 {dimension_numbers = #tpu.dot_dimension_numbers<[1], [0], [0], [1], [0, 0, 1, 1], [], []>} : vector<64x192xbf16>, vector<192x64xbf16>, vector<64x64xf32> -> vector<64x64xf32>
    %373 = arith.addf %367, %372 : vector<64x64xf32>
    %c2_256 = arith.constant 2 : index
    %c2_257 = arith.constant 2 : index
    %c0_258 = arith.constant 0 : index
    %c0_259 = arith.constant 0 : index
    %374 = vector.load %arg2[%c2_256, %c2_257, %c0_258, %c0_259] : memref<3x4x1x64xf32, #tpu.memory_space<vmem>>, vector<1x1x1x64xf32>
    %375 = vector.shape_cast %374 : vector<1x1x1x64xf32> to vector<1x64xf32>
    %c2_260 = arith.constant 2 : index
    %c3_261 = arith.constant 3 : index
    %c0_262 = arith.constant 0 : index
    %c0_263 = arith.constant 0 : index
    %376 = vector.load %arg2[%c2_260, %c3_261, %c0_262, %c0_263] : memref<3x4x1x64xf32, #tpu.memory_space<vmem>>, vector<1x1x1x64xf32>
    %377 = vector.shape_cast %376 : vector<1x1x1x64xf32> to vector<1x64xf32>
    %cst_264 = arith.constant dense<0.000000e+00> : vector<64xf32>
    %378 = vector.multi_reduction <add>, %373, %cst_264 [0] : vector<64x64xf32> to vector<64xf32>
    %379 = vector.shape_cast %378 : vector<64xf32> to vector<1x64xf32>
    %380 = arith.mulf %373, %373 : vector<64x64xf32>
    %cst_265 = arith.constant dense<0.000000e+00> : vector<64xf32>
    %381 = vector.multi_reduction <add>, %380, %cst_265 [0] : vector<64x64xf32> to vector<64xf32>
    %382 = vector.shape_cast %381 : vector<64xf32> to vector<1x64xf32>
    %383 = tpu.concatenate %379, %382 in 0 : vector<1x64xf32>, vector<1x64xf32> -> vector<2x64xf32>
    %cst_266 = arith.constant dense<0.000000e+00> : vector<2x32xf32>
    %384 = tpu.matmul %383, %3, %cst_266 {dimension_numbers = #tpu.dot_dimension_numbers<[1], [0], [0], [1], [0, 0, 1, 1], [], []>} : vector<2x64xf32>, vector<64x32xf32>, vector<2x32xf32> -> vector<2x32xf32>
    %cst_267 = arith.constant 7.812500e-03 : f32
    %385 = vector.broadcast %cst_267 : f32 to vector<2x32xf32>
    %386 = arith.mulf %384, %385 : vector<2x32xf32>
    %387 = vector.extract_strided_slice %386 {offsets = [0, 0], sizes = [1, 32], strides = [1, 1]} : vector<2x32xf32> to vector<1x32xf32>
    %388 = vector.extract_strided_slice %386 {offsets = [1, 0], sizes = [1, 32], strides = [1, 1]} : vector<2x32xf32> to vector<1x32xf32>
    %389 = arith.mulf %387, %387 : vector<1x32xf32>
    %390 = arith.subf %388, %389 : vector<1x32xf32>
    %cst_268 = arith.constant 9.99999974E-6 : f32
    %391 = vector.broadcast %cst_268 : f32 to vector<1x32xf32>
    %392 = arith.addf %390, %391 : vector<1x32xf32>
    %393 = math.rsqrt %392 : vector<1x32xf32>
    %394 = tpu.concatenate %387, %393 in 0 : vector<1x32xf32>, vector<1x32xf32> -> vector<2x32xf32>
    %cst_269 = arith.constant dense<0.000000e+00> : vector<2x64xf32>
    %395 = tpu.matmul %394, %4, %cst_269 {dimension_numbers = #tpu.dot_dimension_numbers<[1], [0], [0], [1], [0, 0, 1, 1], [], []>} : vector<2x32xf32>, vector<32x64xf32>, vector<2x64xf32> -> vector<2x64xf32>
    %396 = vector.extract_strided_slice %395 {offsets = [1, 0], sizes = [1, 64], strides = [1, 1]} : vector<2x64xf32> to vector<1x64xf32>
    %397 = arith.mulf %396, %375 : vector<1x64xf32>
    %398 = vector.extract_strided_slice %395 {offsets = [0, 0], sizes = [1, 64], strides = [1, 1]} : vector<2x64xf32> to vector<1x64xf32>
    %399 = arith.mulf %398, %397 : vector<1x64xf32>
    %400 = arith.subf %377, %399 : vector<1x64xf32>
    %401 = vector.broadcast %397 : vector<1x64xf32> to vector<64x64xf32>
    %402 = arith.mulf %373, %401 : vector<64x64xf32>
    %403 = vector.broadcast %400 : vector<1x64xf32> to vector<64x64xf32>
    %404 = arith.addf %402, %403 : vector<64x64xf32>
    %cst_270 = arith.constant 0.000000e+00 : f32
    %405 = vector.broadcast %cst_270 : f32 to vector<64x64xf32>
    %406 = arith.subf %405, %404 : vector<64x64xf32>
    %407 = math.exp %406 : vector<64x64xf32>
    %cst_271 = arith.constant 1.000000e+00 : f32
    %408 = vector.broadcast %cst_271 : f32 to vector<64x64xf32>
    %409 = arith.addf %408, %407 : vector<64x64xf32>
    %410 = tpu.reciprocal %409 {approx = true} : vector<64x64xf32> -> vector<64x64xf32>
    %411 = arith.mulf %404, %410 : vector<64x64xf32>
    %412 = tpu.concatenate %26, %411, %26 in 0 : vector<8x64xf32>, vector<64x64xf32>, vector<8x64xf32> -> vector<80x64xf32>
    %c1_i32_272 = arith.constant 1 : i32
    %413 = tpu.dynamic_rotate %412 by %c1_i32_272 dim 0 : vector<80x64xf32>, i32 -> vector<80x64xf32>
    %cst_273 = arith.constant 0.000000e+00 : f32
    %414 = vector.broadcast %cst_273 : f32 to vector<80x64xf32>
    %415 = arith.select %23, %413, %414 : vector<80x64xi1>, vector<80x64xf32>
    %c0_274 = arith.constant 0 : index
    %c0_275 = arith.constant 0 : index
    %416 = vector.load %arg10[%c0_274, %c0_275] : memref<80x192xf32, #tpu.memory_space<vmem>>, vector<80x64xf32>
    tpu.vector_store %arg10[%c0_274, %c0_275], %415 {strides = array<i32>} : memref<80x192xf32, #tpu.memory_space<vmem>>, vector<80x64xf32>,
    %c0_276 = arith.constant 0 : index
    %c64_277 = arith.constant 64 : index
    %417 = vector.load %arg10[%c0_276, %c64_277] : memref<80x192xf32, #tpu.memory_space<vmem>>, vector<80x64xf32>
    tpu.vector_store %arg10[%c0_276, %c64_277], %412 {strides = array<i32>} : memref<80x192xf32, #tpu.memory_space<vmem>>, vector<80x64xf32>,
    %c79_i32_278 = arith.constant 79 : i32
    %418 = tpu.dynamic_rotate %412 by %c79_i32_278 dim 0 : vector<80x64xf32>, i32 -> vector<80x64xf32>
    %cst_279 = arith.constant 0.000000e+00 : f32
    %419 = vector.broadcast %cst_279 : f32 to vector<80x64xf32>
    %420 = arith.select %25, %418, %419 : vector<80x64xi1>, vector<80x64xf32>
    %c0_280 = arith.constant 0 : index
    %c128_281 = arith.constant 128 : index
    %421 = vector.load %arg10[%c0_280, %c128_281] : memref<80x192xf32, #tpu.memory_space<vmem>>, vector<80x64xf32>
    tpu.vector_store %arg10[%c0_280, %c128_281], %420 {strides = array<i32>} : memref<80x192xf32, #tpu.memory_space<vmem>>, vector<80x64xf32>,
    %c2_282 = arith.constant 2 : index
    %c1_283 = arith.constant 1 : index
    %c0_284 = arith.constant 0 : index
    %c0_285 = arith.constant 0 : index
    %422 = vector.load %arg4[%c2_282, %c1_283, %c0_284, %c0_285] : memref<3x2x1x64xf32, #tpu.memory_space<vmem>>, vector<1x1x1x64xf32>
    %423 = vector.shape_cast %422 : vector<1x1x1x64xf32> to vector<1x64xf32>
    %c0_286 = arith.constant 0 : index
    %c0_287 = arith.constant 0 : index
    %424 = vector.load %arg10[%c0_286, %c0_287] : memref<80x192xf32, #tpu.memory_space<vmem>>, vector<64x192xf32>
    %425 = arith.truncf %424 : vector<64x192xf32> to vector<64x192xbf16>
    %c2_288 = arith.constant 2 : index
    %c1_289 = arith.constant 1 : index
    %c0_290 = arith.constant 0 : index
    %c0_291 = arith.constant 0 : index
    %426 = vector.load %arg3[%c2_288, %c1_289, %c0_290, %c0_291] : memref<3x2x576x64xbf16, #tpu.memory_space<vmem>>, vector<1x1x192x64xbf16>
    %427 = vector.shape_cast %426 : vector<1x1x192x64xbf16> to vector<192x64xbf16>
    %cst_292 = arith.constant dense<0.000000e+00> : vector<64x64xf32>
    %428 = tpu.matmul %425, %427, %cst_292 {dimension_numbers = #tpu.dot_dimension_numbers<[1], [0], [0], [1], [0, 0, 1, 1], [], []>} : vector<64x192xbf16>, vector<192x64xbf16>, vector<64x64xf32> -> vector<64x64xf32>
    %429 = vector.broadcast %423 : vector<1x64xf32> to vector<64x64xf32>
    %430 = arith.addf %429, %428 : vector<64x64xf32>
    %c8_293 = arith.constant 8 : index
    %c0_294 = arith.constant 0 : index
    %431 = vector.load %arg10[%c8_293, %c0_294] : memref<80x192xf32, #tpu.memory_space<vmem>>, vector<64x192xf32>
    %432 = arith.truncf %431 : vector<64x192xf32> to vector<64x192xbf16>
    %c2_295 = arith.constant 2 : index
    %c1_296 = arith.constant 1 : index
    %c192_297 = arith.constant 192 : index
    %c0_298 = arith.constant 0 : index
    %433 = vector.load %arg3[%c2_295, %c1_296, %c192_297, %c0_298] : memref<3x2x576x64xbf16, #tpu.memory_space<vmem>>, vector<1x1x192x64xbf16>
    %434 = vector.shape_cast %433 : vector<1x1x192x64xbf16> to vector<192x64xbf16>
    %cst_299 = arith.constant dense<0.000000e+00> : vector<64x64xf32>
    %435 = tpu.matmul %432, %434, %cst_299 {dimension_numbers = #tpu.dot_dimension_numbers<[1], [0], [0], [1], [0, 0, 1, 1], [], []>} : vector<64x192xbf16>, vector<192x64xbf16>, vector<64x64xf32> -> vector<64x64xf32>
    %436 = arith.addf %430, %435 : vector<64x64xf32>
    %c16_300 = arith.constant 16 : index
    %c0_301 = arith.constant 0 : index
    %437 = vector.load %arg10[%c16_300, %c0_301] : memref<80x192xf32, #tpu.memory_space<vmem>>, vector<64x192xf32>
    %438 = arith.truncf %437 : vector<64x192xf32> to vector<64x192xbf16>
    %c2_302 = arith.constant 2 : index
    %c1_303 = arith.constant 1 : index
    %c384_304 = arith.constant 384 : index
    %c0_305 = arith.constant 0 : index
    %439 = vector.load %arg3[%c2_302, %c1_303, %c384_304, %c0_305] : memref<3x2x576x64xbf16, #tpu.memory_space<vmem>>, vector<1x1x192x64xbf16>
    %440 = vector.shape_cast %439 : vector<1x1x192x64xbf16> to vector<192x64xbf16>
    %cst_306 = arith.constant dense<0.000000e+00> : vector<64x64xf32>
    %441 = tpu.matmul %438, %440, %cst_306 {dimension_numbers = #tpu.dot_dimension_numbers<[1], [0], [0], [1], [0, 0, 1, 1], [], []>} : vector<64x192xbf16>, vector<192x64xbf16>, vector<64x64xf32> -> vector<64x64xf32>
    %442 = arith.addf %436, %441 : vector<64x64xf32>
    %443 = arith.addf %304, %442 : vector<64x64xf32>
    %444 = arith.truncf %443 : vector<64x64xf32> to vector<64x64xbf16>
    %c0_307 = arith.constant 0 : index
    %c0_308 = arith.constant 0 : index
    %445 = vector.load %arg7[%c0_307, %c0_308] : memref<64x128xbf16, #tpu.memory_space<vmem>>, vector<64x128xbf16>
    %cst_309 = arith.constant dense<0.000000e+00> : vector<64x128xf32>
    %446 = tpu.matmul %444, %445, %cst_309 {dimension_numbers = #tpu.dot_dimension_numbers<[1], [0], [0], [1], [0, 0, 1, 1], [], []>} : vector<64x64xbf16>, vector<64x128xbf16>, vector<64x128xf32> -> vector<64x128xf32>
    %c0_310 = arith.constant 0 : index
    %c0_311 = arith.constant 0 : index
    %447 = vector.load %arg8[%c0_310, %c0_311] : memref<1x128xf32, #tpu.memory_space<vmem>>, vector<1x128xf32>
    %448 = vector.broadcast %447 : vector<1x128xf32> to vector<64x128xf32>
    %449 = arith.addf %446, %448 : vector<64x128xf32>
    %450 = vector.shape_cast %449 : vector<64x128xf32> to vector<8x8x128xf32>
    %c0_312 = arith.constant 0 : index
    %c0_313 = arith.constant 0 : index
    %c0_314 = arith.constant 0 : index
    %c0_315 = arith.constant 0 : index
    %451 = vector.load %arg9[%c0_312, %c0_313, %c0_314, %c0_315] : memref<1x8x8x128xf32, #tpu.memory_space<vmem>>, vector<1x8x8x128xf32>
    %452 = vector.shape_cast %451 : vector<1x8x8x128xf32> to vector<8x8x128xf32>
    %453 = vector.shape_cast %450 : vector<8x8x128xf32> to vector<1x8x8x128xf32>
    tpu.vector_store %arg9[%c0_312, %c0_313, %c0_314, %c0_315], %453 {strides = array<i32>} : memref<1x8x8x128xf32, #tpu.memory_space<vmem>>, vector<1x8x8x128xf32>,
    return
  }
  func.func @transform_0(%arg0: i32) -> (i32, i32, i32, i32) {
    %c0_i32 = arith.constant 0 : i32
    %c0_i32_0 = arith.constant 0 : i32
    %c0_i32_1 = arith.constant 0 : i32
    %c0_i32_2 = arith.constant 0 : i32
    return %arg0, %c0_i32, %c0_i32_0, %c0_i32_1 : i32, i32, i32, i32
  }
  func.func @transform_1(%arg0: i32) -> (i32, i32, i32, i32) {
    %c0_i32 = arith.constant 0 : i32
    %c0_i32_0 = arith.constant 0 : i32
    %c0_i32_1 = arith.constant 0 : i32
    %c0_i32_2 = arith.constant 0 : i32
    %c0_i32_3 = arith.constant 0 : i32
    return %c0_i32, %c0_i32_0, %c0_i32_1, %c0_i32_2 : i32, i32, i32, i32
  }
  func.func @transform_2(%arg0: i32) -> (i32, i32, i32, i32) {
    %c0_i32 = arith.constant 0 : i32
    %c0_i32_0 = arith.constant 0 : i32
    %c0_i32_1 = arith.constant 0 : i32
    %c0_i32_2 = arith.constant 0 : i32
    %c0_i32_3 = arith.constant 0 : i32
    return %c0_i32, %c0_i32_0, %c0_i32_1, %c0_i32_2 : i32, i32, i32, i32
  }
  func.func @transform_3(%arg0: i32) -> (i32, i32, i32, i32) {
    %c0_i32 = arith.constant 0 : i32
    %c0_i32_0 = arith.constant 0 : i32
    %c0_i32_1 = arith.constant 0 : i32
    %c0_i32_2 = arith.constant 0 : i32
    %c0_i32_3 = arith.constant 0 : i32
    return %c0_i32, %c0_i32_0, %c0_i32_1, %c0_i32_2 : i32, i32, i32, i32
  }
  func.func @transform_4(%arg0: i32) -> (i32, i32) {
    %c0_i32 = arith.constant 0 : i32
    %c0_i32_0 = arith.constant 0 : i32
    %c0_i32_1 = arith.constant 0 : i32
    return %c0_i32, %c0_i32_0 : i32, i32
  }
  func.func @transform_5(%arg0: i32) -> (i32, i32) {
    %c0_i32 = arith.constant 0 : i32
    %c0_i32_0 = arith.constant 0 : i32
    %c0_i32_1 = arith.constant 0 : i32
    return %c0_i32, %c0_i32_0 : i32, i32
  }
  func.func @transform_6(%arg0: i32) -> (i32, i32) {
    %c0_i32 = arith.constant 0 : i32
    %c0_i32_0 = arith.constant 0 : i32
    %c0_i32_1 = arith.constant 0 : i32
    return %c0_i32, %c0_i32_0 : i32, i32
  }
  func.func @transform_7(%arg0: i32) -> (i32, i32) {
    %c0_i32 = arith.constant 0 : i32
    %c0_i32_0 = arith.constant 0 : i32
    %c0_i32_1 = arith.constant 0 : i32
    return %c0_i32, %c0_i32_0 : i32, i32
  }
  func.func @transform_8(%arg0: i32) -> (i32, i32, i32, i32) {
    %c0_i32 = arith.constant 0 : i32
    %c0_i32_0 = arith.constant 0 : i32
    %c0_i32_1 = arith.constant 0 : i32
    %c0_i32_2 = arith.constant 0 : i32
    return %arg0, %c0_i32, %c0_i32_0, %c0_i32_1 : i32, i32, i32, i32
  }
}

</mosaic_0001>

<llo_original>
// kernel: tile.8
$region0: #{tile.8}
  #allocation0 [shape = 's32[1]{0}', space=sflag, size = 0x4, scoped, tag = 'scoped memory for tile.8']
  %s0 = inlined_call_operand.vmem [shape: f32[32], index: 0, kind: input, shape index: {}]
  %s1 = inlined_call_operand.vmem [shape: f32[4,32], index: 1, kind: output, shape index: {}]
  // Predicated region
  $region2: #{tile.8} parent=0 // pred_check
    _
  $region3: #{tile.8} parent=0 // pred_check_branch
    %3 = sbr.rel (0) target = $region5
  $region4: #{tile.8} parent=0 // pred_region
    _
  $region5: #{tile.8} parent=0 // pred_fallthru
    _
  %v4 = vld [vmem:[%s0] ss:$0 sm:$0xff]
  %5 = vst [vmem:[%s1] sm:$0xf] %v4

// kernel: tile.9
$region0: #{tile.9}
  %s0 = inlined_call_operand.vmem [shape: f32[4,32], index: 0, kind: input, shape index: {}]
  %s1 = inlined_call_operand.vmem [shape: f32[1,128], index: 1, kind: output, shape index: {}]
  $region1: #{tile.9} parent=0
    #allocation0 [shape = 'u8[4096]{0}', space=vmem, size = 0x1000, scoped, tag = 'scoped mem for output reshape']
    #allocation1 [shape = 'u8[4096]{0}', space=vmem, size = 0x1000, scoped, tag = 'scoped mem for input reshape']
    %s3 = ssub.s32 16, 1
    %v4 = vld [vmem:[%s0] sm:%s3]
    %5 = vst [vmem:[#allocation1] sm:%s3] %v4
    %v6 = vld [vmem:[#allocation1] sm:$0x1]
    %vm7 = vcmask 261120
    %8 = vst.msk [vmem:[#allocation0] sm:$0x1] %vm7, %v6
    %s9 = scalar_lea.vmem [#allocation1], 3
    %v10 = vld [vmem:[%s9] sm:$0x1]
    %11 = vrot.lane.b32.xlu0 %v10, 96
    %v12 = vpop.permute.xlu0 %11
    %vm13 = vcmask 1048320
    %14 = vst.msk [vmem:[#allocation0] sm:$0x1] %vm13, %v12
    %s15 = scalar_lea.vmem [#allocation1], 2
    %v16 = vld [vmem:[%s15] sm:$0x1]
    %17 = vrot.lane.b32.xlu0 %v16, 64
    %v18 = vpop.permute.xlu0 %17
    %vm19 = vcmask 785920
    %20 = vst.msk [vmem:[#allocation0] sm:$0x1] %vm19, %v18
    %s21 = scalar_lea.vmem [#allocation1], 1
    %v22 = vld [vmem:[%s21] sm:$0x1]
    %23 = vrot.lane.b32.xlu0 %v22, 32
    %v24 = vpop.permute.xlu0 %23
    %vm25 = vcmask 523520
    %26 = vst.msk [vmem:[#allocation0] sm:$0x1] %vm25, %v24
    %s28 = ssub.s32 2, 1
    %v29 = vld [vmem:[#allocation0] sm:%s28]
    %s31 = ssub.s32 2, 1
    %32 = vst [vmem:[%s1] sm:%s31] %v29

// kernel: up_block_2d.1
$region0: #{up_block_2d.1}
  #allocation0 [shape = 'u32[]', space=smem, size = 0x4, offset = 0x4, fixed_abs, tag = 'smem constant byte address 0x4 - core index']
  #allocation1 [shape = 'u32[72,128]{1,0:T(1,128)}', space=vmem, size = 0x9000, scoped, tag = 'internal scratch']
  #allocation2 [shape = 'f32[80,192]{1,0:T(8,128)}', space=vmem, size = 0x14000, scoped, tag = 'scratch operand']
  %s0 = inlined_call_operand.vmem [shape: f32[2,8,8,64], index: 0, kind: input, shape index: {}]
  %s1 = inlined_call_operand.vmem [shape: f32[3,4,1,64], index: 1, kind: input, shape index: {}]
  %s2 = inlined_call_operand.vmem [shape: bf16[3,2,576,64], index: 2, kind: input, shape index: {}]
  %s3 = inlined_call_operand.vmem [shape: f32[3,2,1,64], index: 3, kind: input, shape index: {}]
  %s4 = inlined_call_operand.vmem [shape: f32[64,32], index: 4, kind: input, shape index: {}]
  %s5 = inlined_call_operand.vmem [shape: f32[32,64], index: 5, kind: input, shape index: {}]
  %s6 = inlined_call_operand.vmem [shape: bf16[64,128], index: 6, kind: input, shape index: {}]
  %s7 = inlined_call_operand.vmem [shape: f32[1,128], index: 7, kind: input, shape index: {}]
  %s8 = inlined_call_operand.vmem [shape: f32[2,8,8,128], index: 8, kind: output, shape index: {}]
  %s9 = sld [smem:[#allocation0]]
  $region65: #{up_block_2d.1} parent=0
    _
  %s11 = ssub.s32 1, %s9
  %s12 = scalar_select 0, %s11, %s9
  loop: start=0, step=1, limit=4
  $region2: #{up_block_2d.1} parent=0 // loop_pre_header
    _
  $region3: #{up_block_2d.1} parent=0 // loop_header
    %s14 = sphi 0, %s18
    %p15 = scmp.ge.s32.totalorder %s14, 4
    %s24 = sphi 0, %s26
    %s27 = sphi 0, %s24
    %s28 = sphi 0, %s27
    %s44 = sphi 0, %s28
    %s48 = sphi 0, %s48
    %s50 = sphi 0, %s48
    %s51 = sphi 0, %s50
    %s65 = sphi 0, %s51
    %s69 = sphi 0, %s69
    %s71 = sphi 0, %s69
    %s72 = sphi 0, %s71
    %s86 = sphi 0, %s72
    %s90 = sphi 0, %s90
    %s92 = sphi 0, %s90
    %s93 = sphi 0, %s92
    %s107 = sphi 0, %s93
    %s111 = sphi 0, %s111
    %s113 = sphi 0, %s111
    %s114 = sphi 0, %s113
    %s128 = sphi 0, %s114
    %s132 = sphi 0, %s132
    %s134 = sphi 0, %s132
    %s135 = sphi 0, %s134
    %s149 = sphi 0, %s135
    %s153 = sphi 0, %s153
    %s155 = sphi 0, %s153
    %s156 = sphi 0, %s155
    %s170 = sphi 0, %s156
    %s174 = sphi 0, %s174
    %s176 = sphi 0, %s174
    %s177 = sphi 0, %s176
    %s191 = sphi 0, %s177
    %s197 = sphi 0, %s199
    %s200 = sphi 0, %s197
    %s201 = sphi 0, %s200
    %s217 = sphi 0, %s201
  $region4: #{up_block_2d.1} parent=0 // loop_header_branch
    %17 = sbr.rel (%p15) target = $region8
  $region5: #{up_block_2d.1} parent=0 // loop_body
    %s19 = ssub.s32 %s14, 1
    %s20 = ssub.s32 %s14, 2
    %s21 = sadd.s32 %s14, 1
    %s22 = ssub.s32 %s14, %s21
    %p23 = scmp.eq.s32.totalorder %s22, 0
    %s25 = sadd.s32 %s24, 1
    %s26 = scalar_select %p23, %s24, %s25
    %p29 = pneg %p23
    %p30 = scmp.eq.s32.totalorder %s14, 1
    %p31 = por %p29, %p30
    %p32 = scmp.ne.s32.totalorder %s24, %s27
    %p33 = scmp.eq.s32.totalorder %s14, 0
    %p34 = por %p32, %p33
    %p35 = scmp.ne.s32.totalorder %s24, %s27
    %p36 = scmp.eq.s32.totalorder %s19, 1
    %p37 = por %p35, %p36
    %p38 = scmp.ne.s32.totalorder %s27, %s28
    %p39 = scmp.eq.s32.totalorder %s19, 0
    %p40 = por %p38, %p39
    %p41 = scmp.ne.s32.totalorder %s27, %s28
    %p42 = scmp.eq.s32.totalorder %s20, 1
    %p43 = por %p41, %p42
    %p45 = scmp.ne.s32.totalorder %s28, %s44
    %p46 = scmp.eq.s32.totalorder %s20, 0
    %p47 = por %p45, %p46
    %s49 = sadd.s32 %s48, 1
    %p52 = scmp.eq.s32.totalorder %s14, 1
    %p53 = scmp.ne.s32.totalorder %s48, %s50
    %p54 = scmp.eq.s32.totalorder %s14, 0
    %p55 = por %p53, %p54
    %p56 = scmp.ne.s32.totalorder %s48, %s50
    %p57 = scmp.eq.s32.totalorder %s19, 1
    %p58 = por %p56, %p57
    %p59 = scmp.ne.s32.totalorder %s50, %s51
    %p60 = scmp.eq.s32.totalorder %s19, 0
    %p61 = por %p59, %p60
    %p62 = scmp.ne.s32.totalorder %s50, %s51
    %p63 = scmp.eq.s32.totalorder %s20, 1
    %p64 = por %p62, %p63
    %p66 = scmp.ne.s32.totalorder %s51, %s65
    %p67 = scmp.eq.s32.totalorder %s20, 0
    %p68 = por %p66, %p67
    %s70 = sadd.s32 %s69, 1
    %p73 = scmp.eq.s32.totalorder %s14, 1
    %p74 = scmp.ne.s32.totalorder %s69, %s71
    %p75 = scmp.eq.s32.totalorder %s14, 0
    %p76 = por %p74, %p75
    %p77 = scmp.ne.s32.totalorder %s69, %s71
    %p78 = scmp.eq.s32.totalorder %s19, 1
    %p79 = por %p77, %p78
    %p80 = scmp.ne.s32.totalorder %s71, %s72
    %p81 = scmp.eq.s32.totalorder %s19, 0
    %p82 = por %p80, %p81
    %p83 = scmp.ne.s32.totalorder %s71, %s72
    %p84 = scmp.eq.s32.totalorder %s20, 1
    %p85 = por %p83, %p84
    %p87 = scmp.ne.s32.totalorder %s72, %s86
    %p88 = scmp.eq.s32.totalorder %s20, 0
    %p89 = por %p87, %p88
    %s91 = sadd.s32 %s90, 1
    %p94 = scmp.eq.s32.totalorder %s14, 1
    %p95 = scmp.ne.s32.totalorder %s90, %s92
    %p96 = scmp.eq.s32.totalorder %s14, 0
    %p97 = por %p95, %p96
    %p98 = scmp.ne.s32.totalorder %s90, %s92
    %p99 = scmp.eq.s32.totalorder %s19, 1
    %p100 = por %p98, %p99
    %p101 = scmp.ne.s32.totalorder %s92, %s93
    %p102 = scmp.eq.s32.totalorder %s19, 0
    %p103 = por %p101, %p102
    %p104 = scmp.ne.s32.totalorder %s92, %s93
    %p105 = scmp.eq.s32.totalorder %s20, 1
    %p106 = por %p104, %p105
    %p108 = scmp.ne.s32.totalorder %s93, %s107
    %p109 = scmp.eq.s32.totalorder %s20, 0
    %p110 = por %p108, %p109
    %s112 = sadd.s32 %s111, 1
    %p115 = scmp.eq.s32.totalorder %s14, 1
    %p116 = scmp.ne.s32.totalorder %s111, %s113
    %p117 = scmp.eq.s32.totalorder %s14, 0
    %p118 = por %p116, %p117
    %p119 = scmp.ne.s32.totalorder %s111, %s113
    %p120 = scmp.eq.s32.totalorder %s19, 1
    %p121 = por %p119, %p120
    %p122 = scmp.ne.s32.totalorder %s113, %s114
    %p123 = scmp.eq.s32.totalorder %s19, 0
    %p124 = por %p122, %p123
    %p125 = scmp.ne.s32.totalorder %s113, %s114
    %p126 = scmp.eq.s32.totalorder %s20, 1
    %p127 = por %p125, %p126
    %p129 = scmp.ne.s32.totalorder %s114, %s128
    %p130 = scmp.eq.s32.totalorder %s20, 0
    %p131 = por %p129, %p130
    %s133 = sadd.s32 %s132, 1
    %p136 = scmp.eq.s32.totalorder %s14, 1
    %p137 = scmp.ne.s32.totalorder %s132, %s134
    %p138 = scmp.eq.s32.totalorder %s14, 0
    %p139 = por %p137, %p138
    %p140 = scmp.ne.s32.totalorder %s132, %s134
    %p141 = scmp.eq.s32.totalorder %s19, 1
    %p142 = por %p140, %p141
    %p143 = scmp.ne.s32.totalorder %s134, %s135
    %p144 = scmp.eq.s32.totalorder %s19, 0
    %p145 = por %p143, %p144
    %p146 = scmp.ne.s32.totalorder %s134, %s135
    %p147 = scmp.eq.s32.totalorder %s20, 1
    %p148 = por %p146, %p147
    %p150 = scmp.ne.s32.totalorder %s135, %s149
    %p151 = scmp.eq.s32.totalorder %s20, 0
    %p152 = por %p150, %p151
    %s154 = sadd.s32 %s153, 1
    %p157 = scmp.eq.s32.totalorder %s14, 1
    %p158 = scmp.ne.s32.totalorder %s153, %s155
    %p159 = scmp.eq.s32.totalorder %s14, 0
    %p160 = por %p158, %p159
    %p161 = scmp.ne.s32.totalorder %s153, %s155
    %p162 = scmp.eq.s32.totalorder %s19, 1
    %p163 = por %p161, %p162
    %p164 = scmp.ne.s32.totalorder %s155, %s156
    %p165 = scmp.eq.s32.totalorder %s19, 0
    %p166 = por %p164, %p165
    %p167 = scmp.ne.s32.totalorder %s155, %s156
    %p168 = scmp.eq.s32.totalorder %s20, 1
    %p169 = por %p167, %p168
    %p171 = scmp.ne.s32.totalorder %s156, %s170
    %p172 = scmp.eq.s32.totalorder %s20, 0
    %p173 = por %p171, %p172
    %s175 = sadd.s32 %s174, 1
    %p178 = scmp.eq.s32.totalorder %s14, 1
    %p179 = scmp.ne.s32.totalorder %s174, %s176
    %p180 = scmp.eq.s32.totalorder %s14, 0
    %p181 = por %p179, %p180
    %p182 = scmp.ne.s32.totalorder %s174, %s176
    %p183 = scmp.eq.s32.totalorder %s19, 1
    %p184 = por %p182, %p183
    %p185 = scmp.ne.s32.totalorder %s176, %s177
    %p186 = scmp.eq.s32.totalorder %s19, 0
    %p187 = por %p185, %p186
    %p188 = scmp.ne.s32.totalorder %s176, %s177
    %p189 = scmp.eq.s32.totalorder %s20, 1
    %p190 = por %p188, %p189
    %p192 = scmp.ne.s32.totalorder %s177, %s191
    %p193 = scmp.eq.s32.totalorder %s20, 0
    %p194 = por %p192, %p193
    %s195 = ssub.s32 %s14, %s21
    %p196 = scmp.eq.s32.totalorder %s195, 0
    %s198 = sadd.s32 %s197, 1
    %s199 = scalar_select %p196, %s197, %s198
    %p202 = pneg %p196
    %p203 = scmp.eq.s32.totalorder %s14, 1
    %p204 = por %p202, %p203
    %p205 = scmp.ne.s32.totalorder %s197, %s200
    %p206 = scmp.eq.s32.totalorder %s14, 0
    %p207 = por %p205, %p206
    %p208 = scmp.ne.s32.totalorder %s197, %s200
    %p209 = scmp.eq.s32.totalorder %s19, 1
    %p210 = por %p208, %p209
    %p211 = scmp.ne.s32.totalorder %s200, %s201
    %p212 = scmp.eq.s32.totalorder %s19, 0
    %p213 = por %p211, %p212
    %p214 = scmp.ne.s32.totalorder %s200, %s201
    %p215 = scmp.eq.s32.totalorder %s20, 1
    %p216 = por %p214, %p215
    %p218 = scmp.ne.s32.totalorder %s201, %s217
    %p219 = scmp.eq.s32.totalorder %s20, 0
    %p220 = por %p218, %p219
    %p221 = scmp.le.s32.totalorder 1, %s14
    %p222 = scmp.lt.s32.totalorder %s14, 3
    %p223 = pnand %p221, %p222
    %p224 = pneg %p223
    // Predicated region
    $region9: #{up_block_2d.1} parent=5 // pred_check
      _
    $region10: #{up_block_2d.1} parent=5 // pred_check_branch
      %226 = sbr.rel (%p223) target = $region12
    $region11: #{up_block_2d.1} parent=5 // pred_region
      %s227 = ssub.s32 %s14, 1
      // Predicated region
      $region13: #{up_block_2d.1} parent=11 // pred_check
        %p228 = pneg %p61
      $region14: #{up_block_2d.1} parent=11 // pred_check_branch
        %230 = sbr.rel (%p228) target = $region16
      $region15: #{up_block_2d.1} parent=11 // pred_region
        _
      $region16: #{up_block_2d.1} parent=11 // pred_fallthru
        _
      // Predicated region
      $region17: #{up_block_2d.1} parent=11 // pred_check
        %p231 = pneg %p82
      $region18: #{up_block_2d.1} parent=11 // pred_check_branch
        %233 = sbr.rel (%p231) target = $region20
      $region19: #{up_block_2d.1} parent=11 // pred_region
        _
      $region20: #{up_block_2d.1} parent=11 // pred_fallthru
        _
      // Predicated region
      $region21: #{up_block_2d.1} parent=11 // pred_check
        %p234 = pneg %p103
      $region22: #{up_block_2d.1} parent=11 // pred_check_branch
        %236 = sbr.rel (%p234) target = $region24
      $region23: #{up_block_2d.1} parent=11 // pred_region
        _
      $region24: #{up_block_2d.1} parent=11 // pred_fallthru
        _
      // Predicated region
      $region25: #{up_block_2d.1} parent=11 // pred_check
        %p237 = pneg %p124
      $region26: #{up_block_2d.1} parent=11 // pred_check_branch
        %239 = sbr.rel (%p237) target = $region28
      $region27: #{up_block_2d.1} parent=11 // pred_region
        _
      $region28: #{up_block_2d.1} parent=11 // pred_fallthru
        _
      // Predicated region
      $region29: #{up_block_2d.1} parent=11 // pred_check
        %p240 = pneg %p145
      $region30: #{up_block_2d.1} parent=11 // pred_check_branch
        %242 = sbr.rel (%p240) target = $region32
      $region31: #{up_block_2d.1} parent=11 // pred_region
        _
      $region32: #{up_block_2d.1} parent=11 // pred_fallthru
        _
      // Predicated region
      $region33: #{up_block_2d.1} parent=11 // pred_check
        %p243 = pneg %p166
      $region34: #{up_block_2d.1} parent=11 // pred_check_branch
        %245 = sbr.rel (%p243) target = $region36
      $region35: #{up_block_2d.1} parent=11 // pred_region
        _
      $region36: #{up_block_2d.1} parent=11 // pred_fallthru
        _
      // Predicated region
      $region37: #{up_block_2d.1} parent=11 // pred_check
        %p246 = pneg %p187
      $region38: #{up_block_2d.1} parent=11 // pred_check_branch
        %248 = sbr.rel (%p246) target = $region40
      $region39: #{up_block_2d.1} parent=11 // pred_region
        _
      $region40: #{up_block_2d.1} parent=11 // pred_fallthru
        _
    $region12: #{up_block_2d.1} parent=5 // pred_fallthru
      _
    %p249 = scmp.lt.s32.totalorder %s14, 2
    // Predicated region
    $region41: #{up_block_2d.1} parent=5 // pred_check
      %p250 = pneg %p249
    $region42: #{up_block_2d.1} parent=5 // pred_check_branch
      %252 = sbr.rel (%p250) target = $region44
    $region43: #{up_block_2d.1} parent=5 // pred_region
      // Predicated region
      $region45: #{up_block_2d.1} parent=43 // pred_check
        %p253 = pneg %p34
      $region46: #{up_block_2d.1} parent=43 // pred_check_branch
        %255 = sbr.rel (%p253) target = $region48
      $region47: #{up_block_2d.1} parent=43 // pred_region
        %p256 = scmp.lt.s32.totalorder %s14, 1
        %s257 = scalar_select %p256, %s14, 1
        %s258 = smul.addr %s257, 8
        %s259 = smul.addr %s258, 8
        %s260 = scalar_lea.vmem %s0, %s259
      $region48: #{up_block_2d.1} parent=43 // pred_fallthru
        _
    $region44: #{up_block_2d.1} parent=5 // pred_fallthru
      _
    %p261 = scmp.le.s32.totalorder 1, %s14
    %p262 = scmp.lt.s32.totalorder %s14, 3
    %p263 = pnand %p261, %p262
    %p264 = pneg %p263
    // Predicated region
    $region49: #{up_block_2d.1} parent=5 // pred_check
      _
    $region50: #{up_block_2d.1} parent=5 // pred_check_branch
      %266 = sbr.rel (%p263) target = $region52
    $region51: #{up_block_2d.1} parent=5 // pred_region
      %s267 = ssub.s32 %s14, 1
      %p268 = scmp.lt.s32.totalorder %s19, 1
      %s269 = scalar_select %p268, %s19, 1
      %s270 = smul.addr %s269, 8
      %s271 = smul.addr %s270, 8
      %s272 = scalar_lea.vmem %s0, %s271
      %p273 = pneg %p40
      %p274 = pneg %p37
      %p275 = pneg %p61
      %p276 = pneg %p58
      %p277 = pneg %p82
      %p278 = pneg %p79
      %p279 = pneg %p103
      %p280 = pneg %p100
      %p281 = pneg %p124
      %p282 = pneg %p121
      %p283 = pneg %p145
      %p284 = pneg %p142
      %p285 = pneg %p166
      %p286 = pneg %p163
      %p287 = pneg %p187
      %p288 = pneg %p184
      %p289 = pneg %p213
      %p290 = pneg %p210
      %p291 = scmp.lt.s32.totalorder %s19, 1
      %s292 = scalar_select %p291, %s19, 1
      %s293 = smul.addr %s292, 8
      %s294 = smul.addr %s293, 8
      %s295 = scalar_lea.vmem %s8, %s294
      %p296 = scmp.lt.s32.totalorder %s19, 1
      %s297 = scalar_select %p296, %s19, 1
      %s298 = smul.addr %s297, 8
      %s299 = smul.addr %s298, 8
      %s300 = scalar_lea.vmem %s0, %s299
      %p301 = scmp.lt.s32.totalorder %s19, 1
      %s302 = scalar_select %p301, %s19, 1
      %s303 = smul.addr %s302, 8
      %s304 = smul.addr %s303, 8
      %s305 = scalar_lea.vmem %s8, %s304
      %v307 = vld [vmem:[%s300] sm:$0xff]
      %v308 = vld [vmem:[%s300 + $0x8] sm:$0xff]
      %v309 = vld [vmem:[%s300 + $0x10] sm:$0xff]
      %v310 = vld [vmem:[%s300 + $0x18] sm:$0xff]
      %v311 = vld [vmem:[%s300 + $0x20] sm:$0xff]
      %v312 = vld [vmem:[%s300 + $0x28] sm:$0xff]
      %v313 = vld [vmem:[%s300 + $0x30] sm:$0xff]
      %v314 = vld [vmem:[%s300 + $0x38] sm:$0xff]
      %v315 = vld [vmem:[%s4] sm:$0xff]
      %v316 = vld [vmem:[%s4 + $0x8] sm:$0xff]
      %v317 = vld [vmem:[%s4 + $0x10] sm:$0xff]
      %v318 = vld [vmem:[%s4 + $0x18] sm:$0xff]
      %v319 = vld [vmem:[%s4 + $0x20] sm:$0xff]
      %v320 = vld [vmem:[%s4 + $0x28] sm:$0xff]
      %v321 = vld [vmem:[%s4 + $0x30] sm:$0xff]
      %v322 = vld [vmem:[%s4 + $0x38] sm:$0xff]
      %v323 = vld [vmem:[%s5] sm:$0xff]
      %v324 = vld [vmem:[%s5 + $0x8] sm:$0xff]
      %v325 = vld [vmem:[%s5 + $0x10] sm:$0xff]
      %v326 = vld [vmem:[%s5 + $0x18] sm:$0xff]
      %v327 = vlaneseq
      %v328 = vshrl.u32 %v327, 7
      %v329 = vadd.s32 %v328, 8
      %v330 = vadd.s32 %v328, 16
      %v331 = vadd.s32 %v328, 24
      %v332 = vadd.s32 %v328, 32
      %v333 = vadd.s32 %v328, 40
      %v334 = vadd.s32 %v328, 48
      %v335 = vadd.s32 %v328, 56
      %v336 = vadd.s32 %v328, 64
      %v337 = vadd.s32 %v328, 72
      %vm338 = vcmp.lt.s32.totalorder %v328, 0
      %v339 = vsub.s32 0, %v328
      %v340 = vsel %vm338, %v339, %v328
      %v341 = vshrl.u32 %v340, 3
      %v342 = vand.u32 %v340, 7
      %v343 = vsub.s32 0, %v342
      %v344 = vsel %vm338, %v343, %v342
      %vm345 = vcmp.lt.s32.totalorder %v329, 0
      %v346 = vsub.s32 0, %v329
      %v347 = vsel %vm345, %v346, %v329
      %v348 = vshrl.u32 %v347, 3
      %v349 = vand.u32 %v347, 7
      %v350 = vsub.s32 0, %v349
      %v351 = vsel %vm345, %v350, %v349
      %vm352 = vcmp.lt.s32.totalorder %v330, 0
      %v353 = vsub.s32 0, %v330
      %v354 = vsel %vm352, %v353, %v330
      %v355 = vshrl.u32 %v354, 3
      %v356 = vand.u32 %v354, 7
      %v357 = vsub.s32 0, %v356
      %v358 = vsel %vm352, %v357, %v356
      %vm359 = vcmp.lt.s32.totalorder %v331, 0
      %v360 = vsub.s32 0, %v331
      %v361 = vsel %vm359, %v360, %v331
      %v362 = vshrl.u32 %v361, 3
      %v363 = vand.u32 %v361, 7
      %v364 = vsub.s32 0, %v363
      %v365 = vsel %vm359, %v364, %v363
      %vm366 = vcmp.lt.s32.totalorder %v332, 0
      %v367 = vsub.s32 0, %v332
      %v368 = vsel %vm366, %v367, %v332
      %v369 = vshrl.u32 %v368, 3
      %v370 = vand.u32 %v368, 7
      %v371 = vsub.s32 0, %v370
      %v372 = vsel %vm366, %v371, %v370
      %vm373 = vcmp.lt.s32.totalorder %v333, 0
      %v374 = vsub.s32 0, %v333
      %v375 = vsel %vm373, %v374, %v333
      %v376 = vshrl.u32 %v375, 3
      %v377 = vand.u32 %v375, 7
      %v378 = vsub.s32 0, %v377
      %v379 = vsel %vm373, %v378, %v377
      %vm380 = vcmp.lt.s32.totalorder %v334, 0
      %v381 = vsub.s32 0, %v334
      %v382 = vsel %vm380, %v381, %v334
      %v383 = vshrl.u32 %v382, 3
      %v384 = vand.u32 %v382, 7
      %v385 = vsub.s32 0, %v384
      %v386 = vsel %vm380, %v385, %v384
      %vm387 = vcmp.lt.s32.totalorder %v335, 0
      %v388 = vsub.s32 0, %v335
      %v389 = vsel %vm387, %v388, %v335
      %v390 = vshrl.u32 %v389, 3
      %v391 = vand.u32 %v389, 7
      %v392 = vsub.s32 0, %v391
      %v393 = vsel %vm387, %v392, %v391
      %vm394 = vcmp.lt.s32.totalorder %v336, 0
      %v395 = vsub.s32 0, %v336
      %v396 = vsel %vm394, %v395, %v336
      %v397 = vshrl.u32 %v396, 3
      %v398 = vand.u32 %v396, 7
      %v399 = vsub.s32 0, %v398
      %v400 = vsel %vm394, %v399, %v398
      %vm401 = vcmp.lt.s32.totalorder %v337, 0
      %v402 = vsub.s32 0, %v337
      %v403 = vsel %vm401, %v402, %v337
      %v404 = vshrl.u32 %v403, 3
      %v405 = vand.u32 %v403, 7
      %v406 = vsub.s32 0, %v405
      %v407 = vsel %vm401, %v406, %v405
      %vm408 = vcmp.ne.s32.totalorder %v344, 0
      %vm409 = vcmp.ne.s32.totalorder %v351, 0
      %vm410 = vcmp.ne.s32.totalorder %v358, 0
      %vm411 = vcmp.ne.s32.totalorder %v365, 0
      %vm412 = vcmp.ne.s32.totalorder %v372, 0
      %vm413 = vcmp.ne.s32.totalorder %v379, 0
      %vm414 = vcmp.ne.s32.totalorder %v386, 0
      %vm415 = vcmp.ne.s32.totalorder %v393, 0
      %vm416 = vcmp.ne.s32.totalorder %v400, 0
      %vm417 = vcmp.ne.s32.totalorder %v407, 0
      %vm418 = vcmp.lt.s32.totalorder %v344, 0
      %vm419 = vcmp.lt.s32.totalorder %v351, 0
      %vm420 = vcmp.lt.s32.totalorder %v358, 0
      %vm421 = vcmp.lt.s32.totalorder %v365, 0
      %vm422 = vcmp.lt.s32.totalorder %v372, 0
      %vm423 = vcmp.lt.s32.totalorder %v379, 0
      %vm424 = vcmp.lt.s32.totalorder %v386, 0
      %vm425 = vcmp.lt.s32.totalorder %v393, 0
      %vm426 = vcmp.lt.s32.totalorder %v400, 0
      %vm427 = vcmp.lt.s32.totalorder %v407, 0
      %vm428 = vmand %vm418, %vm408
      %vm429 = vmand %vm419, %vm409
      %vm430 = vmand %vm420, %vm410
      %vm431 = vmand %vm421, %vm411
      %vm432 = vmand %vm422, %vm412
      %vm433 = vmand %vm423, %vm413
      %vm434 = vmand %vm424, %vm414
      %vm435 = vmand %vm425, %vm415
      %vm436 = vmand %vm426, %vm416
      %vm437 = vmand %vm427, %vm417
      %v438 = vadd.s32 %v344, 8
      %v439 = vadd.s32 %v351, 8
      %v440 = vadd.s32 %v358, 8
      %v441 = vadd.s32 %v365, 8
      %v442 = vadd.s32 %v372, 8
      %v443 = vadd.s32 %v379, 8
      %v444 = vadd.s32 %v386, 8
      %v445 = vadd.s32 %v393, 8
      %v446 = vadd.s32 %v400, 8
      %v447 = vadd.s32 %v407, 8
      %v448 = vsel %vm428, %v438, %v344
      %v449 = vsel %vm429, %v439, %v351
      %v450 = vsel %vm430, %v440, %v358
      %v451 = vsel %vm431, %v441, %v365
      %v452 = vsel %vm432, %v442, %v372
      %v453 = vsel %vm433, %v443, %v379
      %v454 = vsel %vm434, %v444, %v386
      %v455 = vsel %vm435, %v445, %v393
      %v456 = vsel %vm436, %v446, %v400
      %v457 = vsel %vm437, %v447, %v407
      %vm458 = vcmp.ge.s32.totalorder %v448, 1
      %vm459 = vcmp.ge.s32.totalorder %v449, 1
      %vm460 = vcmp.ge.s32.totalorder %v450, 1
      %vm461 = vcmp.ge.s32.totalorder %v451, 1
      %vm462 = vcmp.ge.s32.totalorder %v452, 1
      %vm463 = vcmp.ge.s32.totalorder %v453, 1
      %vm464 = vcmp.ge.s32.totalorder %v454, 1
      %vm465 = vcmp.ge.s32.totalorder %v455, 1
      %vm466 = vcmp.ge.s32.totalorder %v456, 1
      %vm467 = vcmp.ge.s32.totalorder %v457, 1
      %vm468 = vcmp.lt.s32.totalorder %v448, 7
      %vm469 = vcmp.lt.s32.totalorder %v449, 7
      %vm470 = vcmp.lt.s32.totalorder %v450, 7
      %vm471 = vcmp.lt.s32.totalorder %v451, 7
      %vm472 = vcmp.lt.s32.totalorder %v452, 7
      %vm473 = vcmp.lt.s32.totalorder %v453, 7
      %vm474 = vcmp.lt.s32.totalorder %v454, 7
      %vm475 = vcmp.lt.s32.totalorder %v455, 7
      %vm476 = vcmp.lt.s32.totalorder %v456, 7
      %vm477 = vcmp.lt.s32.totalorder %v457, 7
      %v478 = vld [vmem:[%s1] sm:$0x1]
      %s479 = scalar_lea.vmem %s1, 1
      %v480 = vld [vmem:[%s479] sm:$0x1]
      %vm481 = vcmask 523264
      %v482 = vsel %vm481, %v307, 0.0
      %v483 = vsel %vm481, %v308, 0.0
      %v484 = vadd.f32 %v482, %v483
      %v485 = vsel %vm481, %v309, 0.0
      %v486 = vadd.f32 %v484, %v485
      %v487 = vsel %vm481, %v310, 0.0
      %v488 = vadd.f32 %v486, %v487
      %v489 = vsel %vm481, %v311, 0.0
      %v490 = vadd.f32 %v488, %v489
      %v491 = vsel %vm481, %v312, 0.0
      %v492 = vadd.f32 %v490, %v491
      %v493 = vsel %vm481, %v313, 0.0
      %v494 = vadd.f32 %v492, %v493
      %v495 = vsel %vm481, %v314, 0.0
      %v496 = vadd.f32 %v494, %v495
      %v497 = vrot.slane %v496, 4
      %v498 = vadd.f32 %v496, %v497
      %v499 = vrot.slane %v498, 2
      %v500 = vadd.f32 %v498, %v499
      %v501 = vrot.slane %v500, 1
      %v502 = vadd.f32 %v500, %v501
      %v503 = vmul.f32 %v307, %v307
      %v504 = vmul.f32 %v308, %v308
      %v505 = vmul.f32 %v309, %v309
      %v506 = vmul.f32 %v310, %v310
      %v507 = vmul.f32 %v311, %v311
      %v508 = vmul.f32 %v312, %v312
      %v509 = vmul.f32 %v313, %v313
      %v510 = vmul.f32 %v314, %v314
      %v511 = vsel %vm481, %v503, 0.0
      %v512 = vsel %vm481, %v504, 0.0
      %v513 = vadd.f32 %v511, %v512
      %v514 = vsel %vm481, %v505, 0.0
      %v515 = vadd.f32 %v513, %v514
      %v516 = vsel %vm481, %v506, 0.0
      %v517 = vadd.f32 %v515, %v516
      %v518 = vsel %vm481, %v507, 0.0
      %v519 = vadd.f32 %v517, %v518
      %v520 = vsel %vm481, %v508, 0.0
      %v521 = vadd.f32 %v519, %v520
      %v522 = vsel %vm481, %v509, 0.0
      %v523 = vadd.f32 %v521, %v522
      %v524 = vsel %vm481, %v510, 0.0
      %v525 = vadd.f32 %v523, %v524
      %v526 = vrot.slane %v525, 4
      %v527 = vadd.f32 %v525, %v526
      %v528 = vrot.slane %v527, 2
      %v529 = vadd.f32 %v527, %v528
      %v530 = vrot.slane %v529, 1
      %v531 = vadd.f32 %v529, %v530
      %vm532 = vcmask 1040384
      %v533 = vsel %vm532, %v502, %v531
      %v535 = vsel %vm481, %v533, 0
      %537 = vmatpush.msra.mxu0 0.0
      %538 = vmatpush.msra.mxu0 0.0
      %539 = vmatpush.msra.mxu0 0.0
      %540 = vmatpush.msra.mxu0 0.0
      %541 = vmatpush.msra.mxu0 0.0
      %542 = vmatpush.msra.mxu0 0.0
      %543 = vmatpush.msra.mxu0 0.0
      %544 = vmatpush.msra.mxu0 0.0
      %545 = vmatpush.msra.mxu0 %v322
      %546 = vmatpush.msra.mxu0 %v321
      %547 = vmatpush.msra.mxu0 %v320
      %548 = vmatpush.msra.mxu0 %v319
      %549 = vmatpush.msra.mxu0 %v318
      %550 = vmatpush.msra.mxu0 %v317
      %551 = vmatpush.msra.mxu0 %v316
      %552 = vmatpush.msra.mxu0 %v315
      %553 = vmatmul.f32.gmra.mxu0 %v535
      %v554 = vpop.f32.mrf.mxu0
      %v555 = vadd.f32 0.0, %v554
      %556 = vdwg.mxu0
      %v557 = vmul.f32 %v555, 0.0078125
      %v558 = vmul.f32 %v557, %v557
      %v560 = vrot.slane %v558, 7
      %v562 = vsub.f32 %v557, %v560
      %v563 = vadd.f32 %v562, 1e-05
      %v564 = vrsqrt.pop %v563
      %v565 = vmul.f32 %v564, %v563
      %v566 = vmul.f32 %v565, %v564
      %v567 = vmul.f32 0.5, %v566
      %v568 = vsub.f32 1.5, %v567
      %v569 = vmul.f32 %v564, %v568
      %vm570 = vweird.f32 %v563
      %vm571 = vweird.f32 %v564
      %vm572 = vmor %vm570, %vm571
      %v573 = vsel %vm572, %v564, %v569
      %v574 = vsel %vm532, %v557, %v573
      %vm575 = vcmask 261120
      %v577 = vsel %vm575, %v574, 0
      %579 = vmatpush.msra.mxu0 0.0
      %580 = vmatpush.msra.mxu0 0.0
      %581 = vmatpush.msra.mxu0 0.0
      %582 = vmatpush.msra.mxu0 0.0
      %583 = vmatpush.msra.mxu0 0.0
      %584 = vmatpush.msra.mxu0 0.0
      %585 = vmatpush.msra.mxu0 0.0
      %586 = vmatpush.msra.mxu0 0.0
      %587 = vmatpush.msra.mxu0 0.0
      %588 = vmatpush.msra.mxu0 0.0
      %589 = vmatpush.msra.mxu0 0.0
      %590 = vmatpush.msra.mxu0 0.0
      %591 = vmatpush.msra.mxu0 %v326
      %592 = vmatpush.msra.mxu0 %v325
      %593 = vmatpush.msra.mxu0 %v324
      %594 = vmatpush.msra.mxu0 %v323
      %595 = vmatmul.f32.gmra.mxu0 %v577
      %v596 = vpop.f32.mrf.mxu0
      %v597 = vadd.f32 0.0, %v596
      %598 = vdwg.mxu0
      %v600 = vperm.slane %v478, 0
      %v602 = vmul.f32 %v597, %v600
      %v604 = vrot.slane %v602, 1
      %v606 = vmul.f32 %v597, %v604
      %v607 = vsub.f32 %v480, %v606
      %v608 = vperm.slane %v602, 1
      %v609 = vmul.f32 %v307, %v608
      %v610 = vmul.f32 %v308, %v608
      %v611 = vmul.f32 %v309, %v608
      %v612 = vmul.f32 %v310, %v608
      %v613 = vmul.f32 %v311, %v608
      %v614 = vmul.f32 %v312, %v608
      %v615 = vmul.f32 %v313, %v608
      %v616 = vmul.f32 %v314, %v608
      %v618 = vperm.slane %v607, 0
      %v620 = vadd.f32 %v609, %v618
      %v621 = vadd.f32 %v610, %v618
      %v622 = vadd.f32 %v611, %v618
      %v623 = vadd.f32 %v612, %v618
      %v624 = vadd.f32 %v613, %v618
      %v625 = vadd.f32 %v614, %v618
      %v626 = vadd.f32 %v615, %v618
      %v627 = vadd.f32 %v616, %v618
      %v628 = vsub.f32 0.0, %v620
      %v629 = vsub.f32 0.0, %v621
      %v630 = vsub.f32 0.0, %v622
      %v631 = vsub.f32 0.0, %v623
      %v632 = vsub.f32 0.0, %v624
      %v633 = vsub.f32 0.0, %v625
      %v634 = vsub.f32 0.0, %v626
      %v635 = vsub.f32 0.0, %v627
      %v636 = vmul.f32 %v628, 1.442695
      %v637 = vpow.pop %v636
      %v638 = vmul.f32 %v629, 1.442695
      %v639 = vpow.pop %v638
      %v640 = vmul.f32 %v630, 1.442695
      %v641 = vpow.pop %v640
      %v642 = vmul.f32 %v631, 1.442695
      %v643 = vpow.pop %v642
      %v644 = vmul.f32 %v632, 1.442695
      %v645 = vpow.pop %v644
      %v646 = vmul.f32 %v633, 1.442695
      %v647 = vpow.pop %v646
      %v648 = vmul.f32 %v634, 1.442695
      %v649 = vpow.pop %v648
      %v650 = vmul.f32 %v635, 1.442695
      %v651 = vpow.pop %v650
      %v652 = vadd.f32 %v637, 1.0
      %v653 = vadd.f32 %v639, 1.0
      %v654 = vadd.f32 %v641, 1.0
      %v655 = vadd.f32 %v643, 1.0
      %v656 = vadd.f32 %v645, 1.0
      %v657 = vadd.f32 %v647, 1.0
      %v658 = vadd.f32 %v649, 1.0
      %v659 = vadd.f32 %v651, 1.0
      %v660 = vrcp.pop %v652
      %v661 = vrcp.pop %v653
      %v662 = vrcp.pop %v654
      %v663 = vrcp.pop %v655
      %v664 = vrcp.pop %v656
      %v665 = vrcp.pop %v657
      %v666 = vrcp.pop %v658
      %v667 = vrcp.pop %v659
      %v668 = vmul.f32 %v620, %v660
      %v669 = vmul.f32 %v621, %v661
      %v670 = vmul.f32 %v622, %v662
      %v671 = vmul.f32 %v623, %v663
      %v672 = vmul.f32 %v624, %v664
      %v673 = vmul.f32 %v625, %v665
      %v674 = vmul.f32 %v626, %v666
      %v675 = vmul.f32 %v627, %v667
      %v676 = vrot.slane %v668, 7
      %v677 = vrot.slane %v669, 7
      %v678 = vrot.slane %v670, 7
      %v679 = vrot.slane %v671, 7
      %v680 = vrot.slane %v672, 7
      %v681 = vrot.slane %v673, 7
      %v682 = vrot.slane %v674, 7
      %v683 = vrot.slane %v675, 7
      %vm684 = vcmp.lt.s32.totalorder %v328, 1
      %v685 = vsel %vm684, %v683, 0.0
      %v686 = vsel %vm684, %v682, %v683
      %v687 = vsel %vm684, %v681, %v682
      %v688 = vsel %vm684, %v680, %v681
      %v689 = vsel %vm684, %v679, %v680
      %v690 = vsel %vm684, %v678, %v679
      %v691 = vsel %vm684, %v677, %v678
      %v692 = vsel %vm684, %v676, %v677
      %v693 = vsel %vm684, 0.0, %v676
      %v694 = vsel %vm458, 0.0, 0.0
      %v695 = vsel %vm459, %v693, 0.0
      %v696 = vsel %vm460, %v692, 0.0
      %v697 = vsel %vm461, %v691, 0.0
      %v698 = vsel %vm462, %v690, 0.0
      %v699 = vsel %vm463, %v689, 0.0
      %v700 = vsel %vm464, %v688, 0.0
      %v701 = vsel %vm465, %v687, 0.0
      %v702 = vsel %vm466, %v686, 0.0
      %v703 = vsel %vm467, %v685, 0.0
      %704 = vst.msk [vmem:[#allocation2] sm:$0xff] %vm481, %v694
      %705 = vst.msk [vmem:[#allocation2 + $0x10] sm:$0xff] %vm481, %v695
      %706 = vst.msk [vmem:[#allocation2 + $0x20] sm:$0xff] %vm481, %v696
      %707 = vst.msk [vmem:[#allocation2 + $0x30] sm:$0xff] %vm481, %v697
      %708 = vst.msk [vmem:[#allocation2 + $0x40] sm:$0xff] %vm481, %v698
      %709 = vst.msk [vmem:[#allocation2 + $0x50] sm:$0xff] %vm481, %v699
      %710 = vst.msk [vmem:[#allocation2 + $0x60] sm:$0xff] %vm481, %v700
      %711 = vst.msk [vmem:[#allocation2 + $0x70] sm:$0xff] %vm481, %v701
      %712 = vst.msk [vmem:[#allocation2 + $0x80] sm:$0xff] %vm481, %v702
      %713 = vst.msk [vmem:[#allocation2 + $0x90] sm:$0xff] %vm481, %v703
      %723 = vrot.lane.b32.xlu0 0.0, 64
      %v724 = vpop.permute.xlu0 %723
      %725 = vrot.lane.b32.xlu0 %v668, 64
      %v726 = vpop.permute.xlu0 %725
      %727 = vrot.lane.b32.xlu0 %v669, 64
      %v728 = vpop.permute.xlu0 %727
      %729 = vrot.lane.b32.xlu0 %v670, 64
      %v730 = vpop.permute.xlu0 %729
      %731 = vrot.lane.b32.xlu0 %v671, 64
      %v732 = vpop.permute.xlu0 %731
      %733 = vrot.lane.b32.xlu0 %v672, 64
      %v734 = vpop.permute.xlu0 %733
      %735 = vrot.lane.b32.xlu0 %v673, 64
      %v736 = vpop.permute.xlu0 %735
      %737 = vrot.lane.b32.xlu0 %v674, 64
      %v738 = vpop.permute.xlu0 %737
      %739 = vrot.lane.b32.xlu0 %v675, 64
      %v740 = vpop.permute.xlu0 %739
      %vm750 = vcmask 1048064
      %751 = vst.msk [vmem:[#allocation2] sm:$0xff] %vm750, %v724
      %752 = vst.msk [vmem:[#allocation2 + $0x10] sm:$0xff] %vm750, %v726
      %753 = vst.msk [vmem:[#allocation2 + $0x20] sm:$0xff] %vm750, %v728
      %754 = vst.msk [vmem:[#allocation2 + $0x30] sm:$0xff] %vm750, %v730
      %755 = vst.msk [vmem:[#allocation2 + $0x40] sm:$0xff] %vm750, %v732
      %756 = vst.msk [vmem:[#allocation2 + $0x50] sm:$0xff] %vm750, %v734
      %757 = vst.msk [vmem:[#allocation2 + $0x60] sm:$0xff] %vm750, %v736
      %758 = vst.msk [vmem:[#allocation2 + $0x70] sm:$0xff] %vm750, %v738
      %759 = vst.msk [vmem:[#allocation2 + $0x80] sm:$0xff] %vm750, %v740
      %760 = vst.msk [vmem:[#allocation2 + $0x90] sm:$0xff] %vm750, %v724
      %v761 = vrot.slane %v668, 1
      %v762 = vrot.slane %v669, 1
      %v763 = vrot.slane %v670, 1
      %v764 = vrot.slane %v671, 1
      %v765 = vrot.slane %v672, 1
      %v766 = vrot.slane %v673, 1
      %v767 = vrot.slane %v674, 1
      %v768 = vrot.slane %v675, 1
      %vm769 = vcmp.lt.s32.totalorder %v328, 7
      %v770 = vsel %vm769, %v768, 0.0
      %v771 = vsel %vm769, %v767, %v768
      %v772 = vsel %vm769, %v766, %v767
      %v773 = vsel %vm769, %v765, %v766
      %v774 = vsel %vm769, %v764, %v765
      %v775 = vsel %vm769, %v763, %v764
      %v776 = vsel %vm769, %v762, %v763
      %v777 = vsel %vm769, %v761, %v762
      %v778 = vsel %vm769, 0.0, %v761
      %v779 = vsel %vm468, %v778, 0.0
      %v780 = vsel %vm469, %v777, 0.0
      %v781 = vsel %vm470, %v776, 0.0
      %v782 = vsel %vm471, %v775, 0.0
      %v783 = vsel %vm472, %v774, 0.0
      %v784 = vsel %vm473, %v773, 0.0
      %v785 = vsel %vm474, %v772, 0.0
      %v786 = vsel %vm475, %v771, 0.0
      %v787 = vsel %vm476, %v770, 0.0
      %v788 = vsel %vm477, 0.0, 0.0
      %789 = vst.msk [vmem:[#allocation2 + $0x8] sm:$0xff] %vm481, %v779
      %790 = vst.msk [vmem:[#allocation2 + $0x18] sm:$0xff] %vm481, %v780
      %791 = vst.msk [vmem:[#allocation2 + $0x28] sm:$0xff] %vm481, %v781
      %792 = vst.msk [vmem:[#allocation2 + $0x38] sm:$0xff] %vm481, %v782
      %793 = vst.msk [vmem:[#allocation2 + $0x48] sm:$0xff] %vm481, %v783
      %794 = vst.msk [vmem:[#allocation2 + $0x58] sm:$0xff] %vm481, %v784
      %795 = vst.msk [vmem:[#allocation2 + $0x68] sm:$0xff] %vm481, %v785
      %796 = vst.msk [vmem:[#allocation2 + $0x78] sm:$0xff] %vm481, %v786
      %797 = vst.msk [vmem:[#allocation2 + $0x88] sm:$0xff] %vm481, %v787
      %798 = vst.msk [vmem:[#allocation2 + $0x98] sm:$0xff] %vm481, %v788
      %v799 = vld [vmem:[%s3] sm:$0x1]
      %v800 = vld [vmem:[#allocation2] sm:$0xff]
      %v801 = vld [vmem:[#allocation2 + $0x8] sm:$0xff]
      %v802 = vld [vmem:[#allocation2 + $0x10] sm:$0xff]
      %v803 = vld [vmem:[#allocation2 + $0x18] sm:$0xff]
      %v804 = vld [vmem:[#allocation2 + $0x20] sm:$0xff]
      %v805 = vld [vmem:[#allocation2 + $0x28] sm:$0xff]
      %v806 = vld [vmem:[#allocation2 + $0x30] sm:$0xff]
      %v807 = vld [vmem:[#allocation2 + $0x38] sm:$0xff]
      %v808 = vld [vmem:[#allocation2 + $0x40] sm:$0xff]
      %v809 = vld [vmem:[#allocation2 + $0x48] sm:$0xff]
      %v810 = vld [vmem:[#allocation2 + $0x50] sm:$0xff]
      %v811 = vld [vmem:[#allocation2 + $0x58] sm:$0xff]
      %v812 = vld [vmem:[#allocation2 + $0x60] sm:$0xff]
      %v813 = vld [vmem:[#allocation2 + $0x68] sm:$0xff]
      %v814 = vld [vmem:[#allocation2 + $0x70] sm:$0xff]
      %v815 = vld [vmem:[#allocation2 + $0x78] sm:$0xff]
      %v816 = vpack.c.bf16 %v802, %v800
      %v817 = vpack.c.bf16 %v803, %v801
      %v818 = vpack.c.bf16 %v806, %v804
      %v819 = vpack.c.bf16 %v807, %v805
      %v820 = vpack.c.bf16 %v810, %v808
      %v821 = vpack.c.bf16 %v811, %v809
      %v822 = vpack.c.bf16 %v814, %v812
      %v823 = vpack.c.bf16 %v815, %v813
      %v824 = vld [vmem:[%s2] sm:$0xf]
      %v825 = vld [vmem:[%s2 + $0x4] sm:$0xf]
      %v826 = vld [vmem:[%s2 + $0x8] sm:$0xf]
      %v827 = vld [vmem:[%s2 + $0xc] sm:$0xf]
      %v828 = vld [vmem:[%s2 + $0x10] sm:$0xf]
      %v829 = vld [vmem:[%s2 + $0x14] sm:$0xf]
      %v830 = vld [vmem:[%s2 + $0x18] sm:$0xf]
      %v831 = vld [vmem:[%s2 + $0x1c] sm:$0xf]
      %v832 = vld [vmem:[%s2 + $0x20] sm:$0xf]
      %v833 = vld [vmem:[%s2 + $0x24] sm:$0xf]
      %v834 = vld [vmem:[%s2 + $0x28] sm:$0xf]
      %v835 = vld [vmem:[%s2 + $0x2c] sm:$0xf]
      %v836 = vld [vmem:[%s2 + $0x30] sm:$0xf]
      %v837 = vld [vmem:[%s2 + $0x34] sm:$0xf]
      %v838 = vld [vmem:[%s2 + $0x38] sm:$0xf]
      %v839 = vld [vmem:[%s2 + $0x3c] sm:$0xf]
      %v840 = vld [vmem:[%s2 + $0x40] sm:$0xf]
      %v841 = vld [vmem:[%s2 + $0x44] sm:$0xf]
      %v842 = vld [vmem:[%s2 + $0x48] sm:$0xf]
      %v843 = vld [vmem:[%s2 + $0x4c] sm:$0xf]
      %v844 = vld [vmem:[%s2 + $0x50] sm:$0xf]
      %v845 = vld [vmem:[%s2 + $0x54] sm:$0xf]
      %v846 = vld [vmem:[%s2 + $0x58] sm:$0xf]
      %v847 = vld [vmem:[%s2 + $0x5c] sm:$0xf]
      %v872 = vunpack.c.l.b16 %v824
      %v873 = vunpack.c.l.b16 %v825
      %v874 = vunpack.c.l.b16 %v826
      %v875 = vunpack.c.l.b16 %v827
      %v876 = vunpack.c.l.b16 %v828
      %v877 = vunpack.c.l.b16 %v829
      %v878 = vunpack.c.l.b16 %v830
      %v879 = vunpack.c.l.b16 %v831
      %v880 = vunpack.c.l.b16 %v832
      %v881 = vunpack.c.l.b16 %v833
      %v882 = vunpack.c.l.b16 %v834
      %v883 = vunpack.c.l.b16 %v835
      %v884 = vunpack.c.l.b16 %v836
      %v885 = vunpack.c.l.b16 %v837
      %v886 = vunpack.c.l.b16 %v838
      %v887 = vunpack.c.l.b16 %v839
      %v888 = vunpack.c.l.b16 %v840
      %v889 = vunpack.c.l.b16 %v841
      %v890 = vunpack.c.l.b16 %v842
      %v891 = vunpack.c.l.b16 %v843
      %v892 = vunpack.c.l.b16 %v844
      %v893 = vunpack.c.l.b16 %v845
      %v894 = vunpack.c.l.b16 %v846
      %v895 = vunpack.c.l.b16 %v847
      %v896 = vpack.c.b16 %v873, %v872
      %v897 = vpack.c.b16 %v875, %v874
      %v898 = vpack.c.b16 %v877, %v876
      %v899 = vpack.c.b16 %v879, %v878
      %v900 = vpack.c.b16 %v881, %v880
      %v901 = vpack.c.b16 %v883, %v882
      %v902 = vpack.c.b16 %v885, %v884
      %v903 = vpack.c.b16 %v887, %v886
      %v904 = vpack.c.b16 %v889, %v888
      %v905 = vpack.c.b16 %v891, %v890
      %v906 = vpack.c.b16 %v893, %v892
      %v907 = vpack.c.b16 %v895, %v894
      %v921 = vsel %vm481, %v817, 0
      %v924 = vsel %vm481, %v819, 0
      %v927 = vsel %vm481, %v821, 0
      %v930 = vsel %vm481, %v823, 0
      %932 = vmatpush.bf16.msra.mxu0 %v903
      %933 = vmatpush.bf16.msra.mxu0 %v902
      %934 = vmatpush.bf16.msra.mxu0 %v901
      %935 = vmatpush.bf16.msra.mxu0 %v900
      %936 = vmatpush.bf16.msra.mxu0 %v899
      %937 = vmatpush.bf16.msra.mxu0 %v898
      %938 = vmatpush.bf16.msra.mxu0 %v897
      %939 = vmatpush.bf16.msra.mxu0 %v896
      %940 = vmatmul.bf16.gmra.mxu0 %v816
      %v941 = vpop.f32.mrf.mxu0
      %v942 = vadd.f32 0.0, %v941
      %v943 = vpop.f32.mrf.mxu0
      %v944 = vadd.f32 0.0, %v943
      %945 = vmatmul.bf16.gmra.mxu0 %v818
      %v946 = vpop.f32.mrf.mxu0
      %v947 = vadd.f32 0.0, %v946
      %v948 = vpop.f32.mrf.mxu0
      %v949 = vadd.f32 0.0, %v948
      %950 = vmatmul.bf16.gmra.mxu0 %v820
      %v951 = vpop.f32.mrf.mxu0
      %v952 = vadd.f32 0.0, %v951
      %v953 = vpop.f32.mrf.mxu0
      %v954 = vadd.f32 0.0, %v953
      %955 = vmatmul.bf16.gmra.mxu0 %v822
      %v956 = vpop.f32.mrf.mxu0
      %v957 = vadd.f32 0.0, %v956
      %v958 = vpop.f32.mrf.mxu0
      %v959 = vadd.f32 0.0, %v958
      %960 = vdwg.mxu0
      %961 = vmatpush.bf16.msra.mxu0 0
      %962 = vmatpush.bf16.msra.mxu0 0
      %963 = vmatpush.bf16.msra.mxu0 0
      %964 = vmatpush.bf16.msra.mxu0 0
      %965 = vmatpush.bf16.msra.mxu0 %v907
      %966 = vmatpush.bf16.msra.mxu0 %v906
      %967 = vmatpush.bf16.msra.mxu0 %v905
      %968 = vmatpush.bf16.msra.mxu0 %v904
      %969 = vmatmul.bf16.gmra.mxu0 %v921
      %v970 = vpop.f32.mrf.mxu0
      %v971 = vadd.f32 %v942, %v970
      %v972 = vpop.f32.mrf.mxu0
      %v973 = vadd.f32 %v944, %v972
      %974 = vmatmul.bf16.gmra.mxu0 %v924
      %v975 = vpop.f32.mrf.mxu0
      %v976 = vadd.f32 %v947, %v975
      %v977 = vpop.f32.mrf.mxu0
      %v978 = vadd.f32 %v949, %v977
      %979 = vmatmul.bf16.gmra.mxu0 %v927
      %v980 = vpop.f32.mrf.mxu0
      %v981 = vadd.f32 %v952, %v980
      %v982 = vpop.f32.mrf.mxu0
      %v983 = vadd.f32 %v954, %v982
      %984 = vmatmul.bf16.gmra.mxu0 %v930
      %v985 = vpop.f32.mrf.mxu0
      %v986 = vadd.f32 %v957, %v985
      %v987 = vpop.f32.mrf.mxu0
      %v988 = vadd.f32 %v959, %v987
      %989 = vdwg.mxu0
      %v991 = vperm.slane %v799, 0
      %v993 = vadd.f32 %v991, %v971
      %v994 = vadd.f32 %v991, %v973
      %v995 = vadd.f32 %v991, %v976
      %v996 = vadd.f32 %v991, %v978
      %v997 = vadd.f32 %v991, %v981
      %v998 = vadd.f32 %v991, %v983
      %v999 = vadd.f32 %v991, %v986
      %v1000 = vadd.f32 %v991, %v988
      %v1001 = vld [vmem:[#allocation2 + $0x10] sm:$0xff]
      %v1002 = vld [vmem:[#allocation2 + $0x18] sm:$0xff]
      %v1003 = vld [vmem:[#allocation2 + $0x20] sm:$0xff]
      %v1004 = vld [vmem:[#allocation2 + $0x28] sm:$0xff]
      %v1005 = vld [vmem:[#allocation2 + $0x30] sm:$0xff]
      %v1006 = vld [vmem:[#allocation2 + $0x38] sm:$0xff]
      %v1007 = vld [vmem:[#allocation2 + $0x40] sm:$0xff]
      %v1008 = vld [vmem:[#allocation2 + $0x48] sm:$0xff]
      %v1009 = vld [vmem:[#allocation2 + $0x50] sm:$0xff]
      %v1010 = vld [vmem:[#allocation2 + $0x58] sm:$0xff]
      %v1011 = vld [vmem:[#allocation2 + $0x60] sm:$0xff]
      %v1012 = vld [vmem:[#allocation2 + $0x68] sm:$0xff]
      %v1013 = vld [vmem:[#allocation2 + $0x70] sm:$0xff]
      %v1014 = vld [vmem:[#allocation2 + $0x78] sm:$0xff]
      %v1015 = vld [vmem:[#allocation2 + $0x80] sm:$0xff]
      %v1016 = vld [vmem:[#allocation2 + $0x88] sm:$0xff]
      %v1017 = vpack.c.bf16 %v1003, %v1001
      %v1018 = vpack.c.bf16 %v1004, %v1002
      %v1019 = vpack.c.bf16 %v1007, %v1005
      %v1020 = vpack.c.bf16 %v1008, %v1006
      %v1021 = vpack.c.bf16 %v1011, %v1009
      %v1022 = vpack.c.bf16 %v1012, %v1010
      %v1023 = vpack.c.bf16 %v1015, %v1013
      %v1024 = vpack.c.bf16 %v1016, %v1014
      %v1025 = vld [vmem:[%s2 + $0x60] sm:$0xf]
      %v1026 = vld [vmem:[%s2 + $0x64] sm:$0xf]
      %v1027 = vld [vmem:[%s2 + $0x68] sm:$0xf]
      %v1028 = vld [vmem:[%s2 + $0x6c] sm:$0xf]
      %v1029 = vld [vmem:[%s2 + $0x70] sm:$0xf]
      %v1030 = vld [vmem:[%s2 + $0x74] sm:$0xf]
      %v1031 = vld [vmem:[%s2 + $0x78] sm:$0xf]
      %v1032 = vld [vmem:[%s2 + $0x7c] sm:$0xf]
      %v1033 = vld [vmem:[%s2 + $0x80] sm:$0xf]
      %v1034 = vld [vmem:[%s2 + $0x84] sm:$0xf]
      %v1035 = vld [vmem:[%s2 + $0x88] sm:$0xf]
      %v1036 = vld [vmem:[%s2 + $0x8c] sm:$0xf]
      %v1037 = vld [vmem:[%s2 + $0x90] sm:$0xf]
      %v1038 = vld [vmem:[%s2 + $0x94] sm:$0xf]
      %v1039 = vld [vmem:[%s2 + $0x98] sm:$0xf]
      %v1040 = vld [vmem:[%s2 + $0x9c] sm:$0xf]
      %v1041 = vld [vmem:[%s2 + $0xa0] sm:$0xf]
      %v1042 = vld [vmem:[%s2 + $0xa4] sm:$0xf]
      %v1043 = vld [vmem:[%s2 + $0xa8] sm:$0xf]
      %v1044 = vld [vmem:[%s2 + $0xac] sm:$0xf]
      %v1045 = vld [vmem:[%s2 + $0xb0] sm:$0xf]
      %v1046 = vld [vmem:[%s2 + $0xb4] sm:$0xf]
      %v1047 = vld [vmem:[%s2 + $0xb8] sm:$0xf]
      %v1048 = vld [vmem:[%s2 + $0xbc] sm:$0xf]
      %v1073 = vunpack.c.l.b16 %v1025
      %v1074 = vunpack.c.l.b16 %v1026
      %v1075 = vunpack.c.l.b16 %v1027
      %v1076 = vunpack.c.l.b16 %v1028
      %v1077 = vunpack.c.l.b16 %v1029
      %v1078 = vunpack.c.l.b16 %v1030
      %v1079 = vunpack.c.l.b16 %v1031
      %v1080 = vunpack.c.l.b16 %v1032
      %v1081 = vunpack.c.l.b16 %v1033
      %v1082 = vunpack.c.l.b16 %v1034
      %v1083 = vunpack.c.l.b16 %v1035
      %v1084 = vunpack.c.l.b16 %v1036
      %v1085 = vunpack.c.l.b16 %v1037
      %v1086 = vunpack.c.l.b16 %v1038
      %v1087 = vunpack.c.l.b16 %v1039
      %v1088 = vunpack.c.l.b16 %v1040
      %v1089 = vunpack.c.l.b16 %v1041
      %v1090 = vunpack.c.l.b16 %v1042
      %v1091 = vunpack.c.l.b16 %v1043
      %v1092 = vunpack.c.l.b16 %v1044
      %v1093 = vunpack.c.l.b16 %v1045
      %v1094 = vunpack.c.l.b16 %v1046
      %v1095 = vunpack.c.l.b16 %v1047
      %v1096 = vunpack.c.l.b16 %v1048
      %v1097 = vpack.c.b16 %v1074, %v1073
      %v1098 = vpack.c.b16 %v1076, %v1075
      %v1099 = vpack.c.b16 %v1078, %v1077
      %v1100 = vpack.c.b16 %v1080, %v1079
      %v1101 = vpack.c.b16 %v1082, %v1081
      %v1102 = vpack.c.b16 %v1084, %v1083
      %v1103 = vpack.c.b16 %v1086, %v1085
      %v1104 = vpack.c.b16 %v1088, %v1087
      %v1105 = vpack.c.b16 %v1090, %v1089
      %v1106 = vpack.c.b16 %v1092, %v1091
      %v1107 = vpack.c.b16 %v1094, %v1093
      %v1108 = vpack.c.b16 %v1096, %v1095
      %v1122 = vsel %vm481, %v1018, 0
      %v1125 = vsel %vm481, %v1020, 0
      %v1128 = vsel %vm481, %v1022, 0
      %v1131 = vsel %vm481, %v1024, 0
      %1133 = vmatpush.bf16.msra.mxu0 %v1104
      %1134 = vmatpush.bf16.msra.mxu0 %v1103
      %1135 = vmatpush.bf16.msra.mxu0 %v1102
      %1136 = vmatpush.bf16.msra.mxu0 %v1101
      %1137 = vmatpush.bf16.msra.mxu0 %v1100
      %1138 = vmatpush.bf16.msra.mxu0 %v1099
      %1139 = vmatpush.bf16.msra.mxu0 %v1098
      %1140 = vmatpush.bf16.msra.mxu0 %v1097
      %1141 = vmatmul.bf16.gmra.mxu0 %v1017
      %v1142 = vpop.f32.mrf.mxu0
      %v1143 = vadd.f32 0.0, %v1142
      %v1144 = vpop.f32.mrf.mxu0
      %v1145 = vadd.f32 0.0, %v1144
      %1146 = vmatmul.bf16.gmra.mxu0 %v1019
      %v1147 = vpop.f32.mrf.mxu0
      %v1148 = vadd.f32 0.0, %v1147
      %v1149 = vpop.f32.mrf.mxu0
      %v1150 = vadd.f32 0.0, %v1149
      %1151 = vmatmul.bf16.gmra.mxu0 %v1021
      %v1152 = vpop.f32.mrf.mxu0
      %v1153 = vadd.f32 0.0, %v1152
      %v1154 = vpop.f32.mrf.mxu0
      %v1155 = vadd.f32 0.0, %v1154
      %1156 = vmatmul.bf16.gmra.mxu0 %v1023
      %v1157 = vpop.f32.mrf.mxu0
      %v1158 = vadd.f32 0.0, %v1157
      %v1159 = vpop.f32.mrf.mxu0
      %v1160 = vadd.f32 0.0, %v1159
      %1161 = vdwg.mxu0
      %1162 = vmatpush.bf16.msra.mxu0 0
      %1163 = vmatpush.bf16.msra.mxu0 0
      %1164 = vmatpush.bf16.msra.mxu0 0
      %1165 = vmatpush.bf16.msra.mxu0 0
      %1166 = vmatpush.bf16.msra.mxu0 %v1108
      %1167 = vmatpush.bf16.msra.mxu0 %v1107
      %1168 = vmatpush.bf16.msra.mxu0 %v1106
      %1169 = vmatpush.bf16.msra.mxu0 %v1105
      %1170 = vmatmul.bf16.gmra.mxu0 %v1122
      %v1171 = vpop.f32.mrf.mxu0
      %v1172 = vadd.f32 %v1143, %v1171
      %v1173 = vpop.f32.mrf.mxu0
      %v1174 = vadd.f32 %v1145, %v1173
      %1175 = vmatmul.bf16.gmra.mxu0 %v1125
      %v1176 = vpop.f32.mrf.mxu0
      %v1177 = vadd.f32 %v1148, %v1176
      %v1178 = vpop.f32.mrf.mxu0
      %v1179 = vadd.f32 %v1150, %v1178
      %1180 = vmatmul.bf16.gmra.mxu0 %v1128
      %v1181 = vpop.f32.mrf.mxu0
      %v1182 = vadd.f32 %v1153, %v1181
      %v1183 = vpop.f32.mrf.mxu0
      %v1184 = vadd.f32 %v1155, %v1183
      %1185 = vmatmul.bf16.gmra.mxu0 %v1131
      %v1186 = vpop.f32.mrf.mxu0
      %v1187 = vadd.f32 %v1158, %v1186
      %v1188 = vpop.f32.mrf.mxu0
      %v1189 = vadd.f32 %v1160, %v1188
      %1190 = vdwg.mxu0
      %v1191 = vadd.f32 %v993, %v1172
      %v1192 = vadd.f32 %v994, %v1174
      %v1193 = vadd.f32 %v995, %v1177
      %v1194 = vadd.f32 %v996, %v1179
      %v1195 = vadd.f32 %v997, %v1182
      %v1196 = vadd.f32 %v998, %v1184
      %v1197 = vadd.f32 %v999, %v1187
      %v1198 = vadd.f32 %v1000, %v1189
      %v1199 = vld [vmem:[#allocation2 + $0x20] sm:$0xff]
      %v1200 = vld [vmem:[#allocation2 + $0x28] sm:$0xff]
      %v1201 = vld [vmem:[#allocation2 + $0x30] sm:$0xff]
      %v1202 = vld [vmem:[#allocation2 + $0x38] sm:$0xff]
      %v1203 = vld [vmem:[#allocation2 + $0x40] sm:$0xff]
      %v1204 = vld [vmem:[#allocation2 + $0x48] sm:$0xff]
      %v1205 = vld [vmem:[#allocation2 + $0x50] sm:$0xff]
      %v1206 = vld [vmem:[#allocation2 + $0x58] sm:$0xff]
      %v1207 = vld [vmem:[#allocation2 + $0x60] sm:$0xff]
      %v1208 = vld [vmem:[#allocation2 + $0x68] sm:$0xff]
      %v1209 = vld [vmem:[#allocation2 + $0x70] sm:$0xff]
      %v1210 = vld [vmem:[#allocation2 + $0x78] sm:$0xff]
      %v1211 = vld [vmem:[#allocation2 + $0x80] sm:$0xff]
      %v1212 = vld [vmem:[#allocation2 + $0x88] sm:$0xff]
      %v1213 = vld [vmem:[#allocation2 + $0x90] sm:$0xff]
      %v1214 = vld [vmem:[#allocation2 + $0x98] sm:$0xff]
      %v1215 = vpack.c.bf16 %v1201, %v1199
      %v1216 = vpack.c.bf16 %v1202, %v1200
      %v1217 = vpack.c.bf16 %v1205, %v1203
      %v1218 = vpack.c.bf16 %v1206, %v1204
      %v1219 = vpack.c.bf16 %v1209, %v1207
      %v1220 = vpack.c.bf16 %v1210, %v1208
      %v1221 = vpack.c.bf16 %v1213, %v1211
      %v1222 = vpack.c.bf16 %v1214, %v1212
      %v1223 = vld [vmem:[%s2 + $0xc0] sm:$0xf]
      %v1224 = vld [vmem:[%s2 + $0xc4] sm:$0xf]
      %v1225 = vld [vmem:[%s2 + $0xc8] sm:$0xf]
      %v1226 = vld [vmem:[%s2 + $0xcc] sm:$0xf]
      %v1227 = vld [vmem:[%s2 + $0xd0] sm:$0xf]
      %v1228 = vld [vmem:[%s2 + $0xd4] sm:$0xf]
      %v1229 = vld [vmem:[%s2 + $0xd8] sm:$0xf]
      %v1230 = vld [vmem:[%s2 + $0xdc] sm:$0xf]
      %v1231 = vld [vmem:[%s2 + $0xe0] sm:$0xf]
      %v1232 = vld [vmem:[%s2 + $0xe4] sm:$0xf]
      %v1233 = vld [vmem:[%s2 + $0xe8] sm:$0xf]
      %v1234 = vld [vmem:[%s2 + $0xec] sm:$0xf]
      %v1235 = vld [vmem:[%s2 + $0xf0] sm:$0xf]
      %v1236 = vld [vmem:[%s2 + $0xf4] sm:$0xf]
      %v1237 = vld [vmem:[%s2 + $0xf8] sm:$0xf]
      %v1238 = vld [vmem:[%s2 + $0xfc] sm:$0xf]
      %v1239 = vld [vmem:[%s2 + $0x100] sm:$0xf]
      %v1240 = vld [vmem:[%s2 + $0x104] sm:$0xf]
      %v1241 = vld [vmem:[%s2 + $0x108] sm:$0xf]
      %v1242 = vld [vmem:[%s2 + $0x10c] sm:$0xf]
      %v1243 = vld [vmem:[%s2 + $0x110] sm:$0xf]
      %v1244 = vld [vmem:[%s2 + $0x114] sm:$0xf]
      %v1245 = vld [vmem:[%s2 + $0x118] sm:$0xf]
      %v1246 = vld [vmem:[%s2 + $0x11c] sm:$0xf]
      %v1271 = vunpack.c.l.b16 %v1223
      %v1272 = vunpack.c.l.b16 %v1224
      %v1273 = vunpack.c.l.b16 %v1225
      %v1274 = vunpack.c.l.b16 %v1226
      %v1275 = vunpack.c.l.b16 %v1227
      %v1276 = vunpack.c.l.b16 %v1228
      %v1277 = vunpack.c.l.b16 %v1229
      %v1278 = vunpack.c.l.b16 %v1230
      %v1279 = vunpack.c.l.b16 %v1231
      %v1280 = vunpack.c.l.b16 %v1232
      %v1281 = vunpack.c.l.b16 %v1233
      %v1282 = vunpack.c.l.b16 %v1234
      %v1283 = vunpack.c.l.b16 %v1235
      %v1284 = vunpack.c.l.b16 %v1236
      %v1285 = vunpack.c.l.b16 %v1237
      %v1286 = vunpack.c.l.b16 %v1238
      %v1287 = vunpack.c.l.b16 %v1239
      %v1288 = vunpack.c.l.b16 %v1240
      %v1289 = vunpack.c.l.b16 %v1241
      %v1290 = vunpack.c.l.b16 %v1242
      %v1291 = vunpack.c.l.b16 %v1243
      %v1292 = vunpack.c.l.b16 %v1244
      %v1293 = vunpack.c.l.b16 %v1245
      %v1294 = vunpack.c.l.b16 %v1246
      %v1295 = vpack.c.b16 %v1272, %v1271
      %v1296 = vpack.c.b16 %v1274, %v1273
      %v1297 = vpack.c.b16 %v1276, %v1275
      %v1298 = vpack.c.b16 %v1278, %v1277
      %v1299 = vpack.c.b16 %v1280, %v1279
      %v1300 = vpack.c.b16 %v1282, %v1281
      %v1301 = vpack.c.b16 %v1284, %v1283
      %v1302 = vpack.c.b16 %v1286, %v1285
      %v1303 = vpack.c.b16 %v1288, %v1287
      %v1304 = vpack.c.b16 %v1290, %v1289
      %v1305 = vpack.c.b16 %v1292, %v1291
      %v1306 = vpack.c.b16 %v1294, %v1293
      %v1320 = vsel %vm481, %v1216, 0
      %v1323 = vsel %vm481, %v1218, 0
      %v1326 = vsel %vm481, %v1220, 0
      %v1329 = vsel %vm481, %v1222, 0
      %1331 = vmatpush.bf16.msra.mxu0 %v1302
      %1332 = vmatpush.bf16.msra.mxu0 %v1301
      %1333 = vmatpush.bf16.msra.mxu0 %v1300
      %1334 = vmatpush.bf16.msra.mxu0 %v1299
      %1335 = vmatpush.bf16.msra.mxu0 %v1298
      %1336 = vmatpush.bf16.msra.mxu0 %v1297
      %1337 = vmatpush.bf16.msra.mxu0 %v1296
      %1338 = vmatpush.bf16.msra.mxu0 %v1295
      %1339 = vmatmul.bf16.gmra.mxu0 %v1215
      %v1340 = vpop.f32.mrf.mxu0
      %v1341 = vadd.f32 0.0, %v1340
      %v1342 = vpop.f32.mrf.mxu0
      %v1343 = vadd.f32 0.0, %v1342
      %1344 = vmatmul.bf16.gmra.mxu0 %v1217
      %v1345 = vpop.f32.mrf.mxu0
      %v1346 = vadd.f32 0.0, %v1345
      %v1347 = vpop.f32.mrf.mxu0
      %v1348 = vadd.f32 0.0, %v1347
      %1349 = vmatmul.bf16.gmra.mxu0 %v1219
      %v1350 = vpop.f32.mrf.mxu0
      %v1351 = vadd.f32 0.0, %v1350
      %v1352 = vpop.f32.mrf.mxu0
      %v1353 = vadd.f32 0.0, %v1352
      %1354 = vmatmul.bf16.gmra.mxu0 %v1221
      %v1355 = vpop.f32.mrf.mxu0
      %v1356 = vadd.f32 0.0, %v1355
      %v1357 = vpop.f32.mrf.mxu0
      %v1358 = vadd.f32 0.0, %v1357
      %1359 = vdwg.mxu0
      %1360 = vmatpush.bf16.msra.mxu0 0
      %1361 = vmatpush.bf16.msra.mxu0 0
      %1362 = vmatpush.bf16.msra.mxu0 0
      %1363 = vmatpush.bf16.msra.mxu0 0
      %1364 = vmatpush.bf16.msra.mxu0 %v1306
      %1365 = vmatpush.bf16.msra.mxu0 %v1305
      %1366 = vmatpush.bf16.msra.mxu0 %v1304
      %1367 = vmatpush.bf16.msra.mxu0 %v1303
      %1368 = vmatmul.bf16.gmra.mxu0 %v1320
      %v1369 = vpop.f32.mrf.mxu0
      %v1370 = vadd.f32 %v1341, %v1369
      %v1371 = vpop.f32.mrf.mxu0
      %v1372 = vadd.f32 %v1343, %v1371
      %1373 = vmatmul.bf16.gmra.mxu0 %v1323
      %v1374 = vpop.f32.mrf.mxu0
      %v1375 = vadd.f32 %v1346, %v1374
      %v1376 = vpop.f32.mrf.mxu0
      %v1377 = vadd.f32 %v1348, %v1376
      %1378 = vmatmul.bf16.gmra.mxu0 %v1326
      %v1379 = vpop.f32.mrf.mxu0
      %v1380 = vadd.f32 %v1351, %v1379
      %v1381 = vpop.f32.mrf.mxu0
      %v1382 = vadd.f32 %v1353, %v1381
      %1383 = vmatmul.bf16.gmra.mxu0 %v1329
      %v1384 = vpop.f32.mrf.mxu0
      %v1385 = vadd.f32 %v1356, %v1384
      %v1386 = vpop.f32.mrf.mxu0
      %v1387 = vadd.f32 %v1358, %v1386
      %1388 = vdwg.mxu0
      %v1389 = vadd.f32 %v1191, %v1370
      %v1390 = vadd.f32 %v1192, %v1372
      %v1391 = vadd.f32 %v1193, %v1375
      %v1392 = vadd.f32 %v1194, %v1377
      %v1393 = vadd.f32 %v1195, %v1380
      %v1394 = vadd.f32 %v1196, %v1382
      %v1395 = vadd.f32 %v1197, %v1385
      %v1396 = vadd.f32 %v1198, %v1387
      %s1397 = scalar_lea.vmem %s1, 2
      %v1398 = vld [vmem:[%s1397] sm:$0x1]
      %s1399 = scalar_lea.vmem %s1, 3
      %v1400 = vld [vmem:[%s1399] sm:$0x1]
      %v1401 = vsel %vm481, %v1389, 0.0
      %v1402 = vsel %vm481, %v1390, 0.0
      %v1403 = vadd.f32 %v1401, %v1402
      %v1404 = vsel %vm481, %v1391, 0.0
      %v1405 = vadd.f32 %v1403, %v1404
      %v1406 = vsel %vm481, %v1392, 0.0
      %v1407 = vadd.f32 %v1405, %v1406
      %v1408 = vsel %vm481, %v1393, 0.0
      %v1409 = vadd.f32 %v1407, %v1408
      %v1410 = vsel %vm481, %v1394, 0.0
      %v1411 = vadd.f32 %v1409, %v1410
      %v1412 = vsel %vm481, %v1395, 0.0
      %v1413 = vadd.f32 %v1411, %v1412
      %v1414 = vsel %vm481, %v1396, 0.0
      %v1415 = vadd.f32 %v1413, %v1414
      %v1416 = vrot.slane %v1415, 4
      %v1417 = vadd.f32 %v1415, %v1416
      %v1418 = vrot.slane %v1417, 2
      %v1419 = vadd.f32 %v1417, %v1418
      %v1420 = vrot.slane %v1419, 1
      %v1421 = vadd.f32 %v1419, %v1420
      %v1422 = vmul.f32 %v1389, %v1389
      %v1423 = vmul.f32 %v1390, %v1390
      %v1424 = vmul.f32 %v1391, %v1391
      %v1425 = vmul.f32 %v1392, %v1392
      %v1426 = vmul.f32 %v1393, %v1393
      %v1427 = vmul.f32 %v1394, %v1394
      %v1428 = vmul.f32 %v1395, %v1395
      %v1429 = vmul.f32 %v1396, %v1396
      %v1430 = vsel %vm481, %v1422, 0.0
      %v1431 = vsel %vm481, %v1423, 0.0
      %v1432 = vadd.f32 %v1430, %v1431
      %v1433 = vsel %vm481, %v1424, 0.0
      %v1434 = vadd.f32 %v1432, %v1433
      %v1435 = vsel %vm481, %v1425, 0.0
      %v1436 = vadd.f32 %v1434, %v1435
      %v1437 = vsel %vm481, %v1426, 0.0
      %v1438 = vadd.f32 %v1436, %v1437
      %v1439 = vsel %vm481, %v1427, 0.0
      %v1440 = vadd.f32 %v1438, %v1439
      %v1441 = vsel %vm481, %v1428, 0.0
      %v1442 = vadd.f32 %v1440, %v1441
      %v1443 = vsel %vm481, %v1429, 0.0
      %v1444 = vadd.f32 %v1442, %v1443
      %v1445 = vrot.slane %v1444, 4
      %v1446 = vadd.f32 %v1444, %v1445
      %v1447 = vrot.slane %v1446, 2
      %v1448 = vadd.f32 %v1446, %v1447
      %v1449 = vrot.slane %v1448, 1
      %v1450 = vadd.f32 %v1448, %v1449
      %v1451 = vsel %vm532, %v1421, %v1450
      %v1453 = vsel %vm481, %v1451, 0
      %1455 = vmatpush.msra.mxu0 0.0
      %1456 = vmatpush.msra.mxu0 0.0
      %1457 = vmatpush.msra.mxu0 0.0
      %1458 = vmatpush.msra.mxu0 0.0
      %1459 = vmatpush.msra.mxu0 0.0
      %1460 = vmatpush.msra.mxu0 0.0
      %1461 = vmatpush.msra.mxu0 0.0
      %1462 = vmatpush.msra.mxu0 0.0
      %1463 = vmatpush.msra.mxu0 %v322
      %1464 = vmatpush.msra.mxu0 %v321
      %1465 = vmatpush.msra.mxu0 %v320
      %1466 = vmatpush.msra.mxu0 %v319
      %1467 = vmatpush.msra.mxu0 %v318
      %1468 = vmatpush.msra.mxu0 %v317
      %1469 = vmatpush.msra.mxu0 %v316
      %1470 = vmatpush.msra.mxu0 %v315
      %1471 = vmatmul.f32.gmra.mxu0 %v1453
      %v1472 = vpop.f32.mrf.mxu0
      %v1473 = vadd.f32 0.0, %v1472
      %1474 = vdwg.mxu0
      %v1475 = vmul.f32 %v1473, 0.0078125
      %v1476 = vmul.f32 %v1475, %v1475
      %v1478 = vrot.slane %v1476, 7
      %v1480 = vsub.f32 %v1475, %v1478
      %v1481 = vadd.f32 %v1480, 1e-05
      %v1482 = vrsqrt.pop %v1481
      %v1483 = vmul.f32 %v1482, %v1481
      %v1484 = vmul.f32 %v1483, %v1482
      %v1485 = vmul.f32 0.5, %v1484
      %v1486 = vsub.f32 1.5, %v1485
      %v1487 = vmul.f32 %v1482, %v1486
      %vm1488 = vweird.f32 %v1481
      %vm1489 = vweird.f32 %v1482
      %vm1490 = vmor %vm1488, %vm1489
      %v1491 = vsel %vm1490, %v1482, %v1487
      %v1492 = vsel %vm532, %v1475, %v1491
      %v1494 = vsel %vm575, %v1492, 0
      %1496 = vmatpush.msra.mxu0 0.0
      %1497 = vmatpush.msra.mxu0 0.0
      %1498 = vmatpush.msra.mxu0 0.0
      %1499 = vmatpush.msra.mxu0 0.0
      %1500 = vmatpush.msra.mxu0 0.0
      %1501 = vmatpush.msra.mxu0 0.0
      %1502 = vmatpush.msra.mxu0 0.0
      %1503 = vmatpush.msra.mxu0 0.0
      %1504 = vmatpush.msra.mxu0 0.0
      %1505 = vmatpush.msra.mxu0 0.0
      %1506 = vmatpush.msra.mxu0 0.0
      %1507 = vmatpush.msra.mxu0 0.0
      %1508 = vmatpush.msra.mxu0 %v326
      %1509 = vmatpush.msra.mxu0 %v325
      %1510 = vmatpush.msra.mxu0 %v324
      %1511 = vmatpush.msra.mxu0 %v323
      %1512 = vmatmul.f32.gmra.mxu0 %v1494
      %v1513 = vpop.f32.mrf.mxu0
      %v1514 = vadd.f32 0.0, %v1513
      %1515 = vdwg.mxu0
      %v1517 = vperm.slane %v1398, 0
      %v1519 = vmul.f32 %v1514, %v1517
      %v1521 = vrot.slane %v1519, 1
      %v1523 = vmul.f32 %v1514, %v1521
      %v1524 = vsub.f32 %v1400, %v1523
      %v1525 = vperm.slane %v1519, 1
      %v1526 = vmul.f32 %v1389, %v1525
      %v1527 = vmul.f32 %v1390, %v1525
      %v1528 = vmul.f32 %v1391, %v1525
      %v1529 = vmul.f32 %v1392, %v1525
      %v1530 = vmul.f32 %v1393, %v1525
      %v1531 = vmul.f32 %v1394, %v1525
      %v1532 = vmul.f32 %v1395, %v1525
      %v1533 = vmul.f32 %v1396, %v1525
      %v1535 = vperm.slane %v1524, 0
      %v1537 = vadd.f32 %v1526, %v1535
      %v1538 = vadd.f32 %v1527, %v1535
      %v1539 = vadd.f32 %v1528, %v1535
      %v1540 = vadd.f32 %v1529, %v1535
      %v1541 = vadd.f32 %v1530, %v1535
      %v1542 = vadd.f32 %v1531, %v1535
      %v1543 = vadd.f32 %v1532, %v1535
      %v1544 = vadd.f32 %v1533, %v1535
      %v1545 = vsub.f32 0.0, %v1537
      %v1546 = vsub.f32 0.0, %v1538
      %v1547 = vsub.f32 0.0, %v1539
      %v1548 = vsub.f32 0.0, %v1540
      %v1549 = vsub.f32 0.0, %v1541
      %v1550 = vsub.f32 0.0, %v1542
      %v1551 = vsub.f32 0.0, %v1543
      %v1552 = vsub.f32 0.0, %v1544
      %v1553 = vmul.f32 %v1545, 1.442695
      %v1554 = vpow.pop %v1553
      %v1555 = vmul.f32 %v1546, 1.442695
      %v1556 = vpow.pop %v1555
      %v1557 = vmul.f32 %v1547, 1.442695
      %v1558 = vpow.pop %v1557
      %v1559 = vmul.f32 %v1548, 1.442695
      %v1560 = vpow.pop %v1559
      %v1561 = vmul.f32 %v1549, 1.442695
      %v1562 = vpow.pop %v1561
      %v1563 = vmul.f32 %v1550, 1.442695
      %v1564 = vpow.pop %v1563
      %v1565 = vmul.f32 %v1551, 1.442695
      %v1566 = vpow.pop %v1565
      %v1567 = vmul.f32 %v1552, 1.442695
      %v1568 = vpow.pop %v1567
      %v1569 = vadd.f32 %v1554, 1.0
      %v1570 = vadd.f32 %v1556, 1.0
      %v1571 = vadd.f32 %v1558, 1.0
      %v1572 = vadd.f32 %v1560, 1.0
      %v1573 = vadd.f32 %v1562, 1.0
      %v1574 = vadd.f32 %v1564, 1.0
      %v1575 = vadd.f32 %v1566, 1.0
      %v1576 = vadd.f32 %v1568, 1.0
      %v1577 = vrcp.pop %v1569
      %v1578 = vrcp.pop %v1570
      %v1579 = vrcp.pop %v1571
      %v1580 = vrcp.pop %v1572
      %v1581 = vrcp.pop %v1573
      %v1582 = vrcp.pop %v1574
      %v1583 = vrcp.pop %v1575
      %v1584 = vrcp.pop %v1576
      %v1585 = vmul.f32 %v1537, %v1577
      %v1586 = vmul.f32 %v1538, %v1578
      %v1587 = vmul.f32 %v1539, %v1579
      %v1588 = vmul.f32 %v1540, %v1580
      %v1589 = vmul.f32 %v1541, %v1581
      %v1590 = vmul.f32 %v1542, %v1582
      %v1591 = vmul.f32 %v1543, %v1583
      %v1592 = vmul.f32 %v1544, %v1584
      %v1593 = vrot.slane %v1585, 7
      %v1594 = vrot.slane %v1586, 7
      %v1595 = vrot.slane %v1587, 7
      %v1596 = vrot.slane %v1588, 7
      %v1597 = vrot.slane %v1589, 7
      %v1598 = vrot.slane %v1590, 7
      %v1599 = vrot.slane %v1591, 7
      %v1600 = vrot.slane %v1592, 7
      %v1601 = vsel %vm684, %v1600, 0.0
      %v1602 = vsel %vm684, %v1599, %v1600
      %v1603 = vsel %vm684, %v1598, %v1599
      %v1604 = vsel %vm684, %v1597, %v1598
      %v1605 = vsel %vm684, %v1596, %v1597
      %v1606 = vsel %vm684, %v1595, %v1596
      %v1607 = vsel %vm684, %v1594, %v1595
      %v1608 = vsel %vm684, %v1593, %v1594
      %v1609 = vsel %vm684, 0.0, %v1593
      %v1610 = vsel %vm459, %v1609, 0.0
      %v1611 = vsel %vm460, %v1608, 0.0
      %v1612 = vsel %vm461, %v1607, 0.0
      %v1613 = vsel %vm462, %v1606, 0.0
      %v1614 = vsel %vm463, %v1605, 0.0
      %v1615 = vsel %vm464, %v1604, 0.0
      %v1616 = vsel %vm465, %v1603, 0.0
      %v1617 = vsel %vm466, %v1602, 0.0
      %v1618 = vsel %vm467, %v1601, 0.0
      %1619 = vst.msk [vmem:[#allocation2] sm:$0xff] %vm481, %v694
      %1620 = vst.msk [vmem:[#allocation2 + $0x10] sm:$0xff] %vm481, %v1610
      %1621 = vst.msk [vmem:[#allocation2 + $0x20] sm:$0xff] %vm481, %v1611
      %1622 = vst.msk [vmem:[#allocation2 + $0x30] sm:$0xff] %vm481, %v1612
      %1623 = vst.msk [vmem:[#allocation2 + $0x40] sm:$0xff] %vm481, %v1613
      %1624 = vst.msk [vmem:[#allocation2 + $0x50] sm:$0xff] %vm481, %v1614
      %1625 = vst.msk [vmem:[#allocation2 + $0x60] sm:$0xff] %vm481, %v1615
      %1626 = vst.msk [vmem:[#allocation2 + $0x70] sm:$0xff] %vm481, %v1616
      %1627 = vst.msk [vmem:[#allocation2 + $0x80] sm:$0xff] %vm481, %v1617
      %1628 = vst.msk [vmem:[#allocation2 + $0x90] sm:$0xff] %vm481, %v1618
      %1637 = vrot.lane.b32.xlu0 %v1585, 64
      %v1638 = vpop.permute.xlu0 %1637
      %1639 = vrot.lane.b32.xlu0 %v1586, 64
      %v1640 = vpop.permute.xlu0 %1639
      %1641 = vrot.lane.b32.xlu0 %v1587, 64
      %v1642 = vpop.permute.xlu0 %1641
      %1643 = vrot.lane.b32.xlu0 %v1588, 64
      %v1644 = vpop.permute.xlu0 %1643
      %1645 = vrot.lane.b32.xlu0 %v1589, 64
      %v1646 = vpop.permute.xlu0 %1645
      %1647 = vrot.lane.b32.xlu0 %v1590, 64
      %v1648 = vpop.permute.xlu0 %1647
      %1649 = vrot.lane.b32.xlu0 %v1591, 64
      %v1650 = vpop.permute.xlu0 %1649
      %1651 = vrot.lane.b32.xlu0 %v1592, 64
      %v1652 = vpop.permute.xlu0 %1651
      %1661 = vst.msk [vmem:[#allocation2] sm:$0xff] %vm750, %v724
      %1662 = vst.msk [vmem:[#allocation2 + $0x10] sm:$0xff] %vm750, %v1638
      %1663 = vst.msk [vmem:[#allocation2 + $0x20] sm:$0xff] %vm750, %v1640
      %1664 = vst.msk [vmem:[#allocation2 + $0x30] sm:$0xff] %vm750, %v1642
      %1665 = vst.msk [vmem:[#allocation2 + $0x40] sm:$0xff] %vm750, %v1644
      %1666 = vst.msk [vmem:[#allocation2 + $0x50] sm:$0xff] %vm750, %v1646
      %1667 = vst.msk [vmem:[#allocation2 + $0x60] sm:$0xff] %vm750, %v1648
      %1668 = vst.msk [vmem:[#allocation2 + $0x70] sm:$0xff] %vm750, %v1650
      %1669 = vst.msk [vmem:[#allocation2 + $0x80] sm:$0xff] %vm750, %v1652
      %1670 = vst.msk [vmem:[#allocation2 + $0x90] sm:$0xff] %vm750, %v724
      %v1671 = vrot.slane %v1585, 1
      %v1672 = vrot.slane %v1586, 1
      %v1673 = vrot.slane %v1587, 1
      %v1674 = vrot.slane %v1588, 1
      %v1675 = vrot.slane %v1589, 1
      %v1676 = vrot.slane %v1590, 1
      %v1677 = vrot.slane %v1591, 1
      %v1678 = vrot.slane %v1592, 1
      %v1679 = vsel %vm769, %v1678, 0.0
      %v1680 = vsel %vm769, %v1677, %v1678
      %v1681 = vsel %vm769, %v1676, %v1677
      %v1682 = vsel %vm769, %v1675, %v1676
      %v1683 = vsel %vm769, %v1674, %v1675
      %v1684 = vsel %vm769, %v1673, %v1674
      %v1685 = vsel %vm769, %v1672, %v1673
      %v1686 = vsel %vm769, %v1671, %v1672
      %v1687 = vsel %vm769, 0.0, %v1671
      %v1688 = vsel %vm468, %v1687, 0.0
      %v1689 = vsel %vm469, %v1686, 0.0
      %v1690 = vsel %vm470, %v1685, 0.0
      %v1691 = vsel %vm471, %v1684, 0.0
      %v1692 = vsel %vm472, %v1683, 0.0
      %v1693 = vsel %vm473, %v1682, 0.0
      %v1694 = vsel %vm474, %v1681, 0.0
      %v1695 = vsel %vm475, %v1680, 0.0
      %v1696 = vsel %vm476, %v1679, 0.0
      %1697 = vst.msk [vmem:[#allocation2 + $0x8] sm:$0xff] %vm481, %v1688
      %1698 = vst.msk [vmem:[#allocation2 + $0x18] sm:$0xff] %vm481, %v1689
      %1699 = vst.msk [vmem:[#allocation2 + $0x28] sm:$0xff] %vm481, %v1690
      %1700 = vst.msk [vmem:[#allocation2 + $0x38] sm:$0xff] %vm481, %v1691
      %1701 = vst.msk [vmem:[#allocation2 + $0x48] sm:$0xff] %vm481, %v1692
      %1702 = vst.msk [vmem:[#allocation2 + $0x58] sm:$0xff] %vm481, %v1693
      %1703 = vst.msk [vmem:[#allocation2 + $0x68] sm:$0xff] %vm481, %v1694
      %1704 = vst.msk [vmem:[#allocation2 + $0x78] sm:$0xff] %vm481, %v1695
      %1705 = vst.msk [vmem:[#allocation2 + $0x88] sm:$0xff] %vm481, %v1696
      %1706 = vst.msk [vmem:[#allocation2 + $0x98] sm:$0xff] %vm481, %v788
      %s1707 = scalar_lea.vmem %s3, 1
      %v1708 = vld [vmem:[%s1707] sm:$0x1]
      %v1709 = vld [vmem:[#allocation2] sm:$0xff]
      %v1710 = vld [vmem:[#allocation2 + $0x8] sm:$0xff]
      %v1711 = vld [vmem:[#allocation2 + $0x10] sm:$0xff]
      %v1712 = vld [vmem:[#allocation2 + $0x18] sm:$0xff]
      %v1713 = vld [vmem:[#allocation2 + $0x20] sm:$0xff]
      %v1714 = vld [vmem:[#allocation2 + $0x28] sm:$0xff]
      %v1715 = vld [vmem:[#allocation2 + $0x30] sm:$0xff]
      %v1716 = vld [vmem:[#allocation2 + $0x38] sm:$0xff]
      %v1717 = vld [vmem:[#allocation2 + $0x40] sm:$0xff]
      %v1718 = vld [vmem:[#allocation2 + $0x48] sm:$0xff]
      %v1719 = vld [vmem:[#allocation2 + $0x50] sm:$0xff]
      %v1720 = vld [vmem:[#allocation2 + $0x58] sm:$0xff]
      %v1721 = vld [vmem:[#allocation2 + $0x60] sm:$0xff]
      %v1722 = vld [vmem:[#allocation2 + $0x68] sm:$0xff]
      %v1723 = vld [vmem:[#allocation2 + $0x70] sm:$0xff]
      %v1724 = vld [vmem:[#allocation2 + $0x78] sm:$0xff]
      %v1725 = vpack.c.bf16 %v1711, %v1709
      %v1726 = vpack.c.bf16 %v1712, %v1710
      %v1727 = vpack.c.bf16 %v1715, %v1713
      %v1728 = vpack.c.bf16 %v1716, %v1714
      %v1729 = vpack.c.bf16 %v1719, %v1717
      %v1730 = vpack.c.bf16 %v1720, %v1718
      %v1731 = vpack.c.bf16 %v1723, %v1721
      %v1732 = vpack.c.bf16 %v1724, %v1722
      %s1733 = scalar_lea.vmem %s2, 288
      %v1734 = vld [vmem:[%s1733] sm:$0xf]
      %v1735 = vld [vmem:[%s1733 + $0x4] sm:$0xf]
      %v1736 = vld [vmem:[%s1733 + $0x8] sm:$0xf]
      %v1737 = vld [vmem:[%s1733 + $0xc] sm:$0xf]
      %v1738 = vld [vmem:[%s1733 + $0x10] sm:$0xf]
      %v1739 = vld [vmem:[%s1733 + $0x14] sm:$0xf]
      %v1740 = vld [vmem:[%s1733 + $0x18] sm:$0xf]
      %v1741 = vld [vmem:[%s1733 + $0x1c] sm:$0xf]
      %v1742 = vld [vmem:[%s1733 + $0x20] sm:$0xf]
      %v1743 = vld [vmem:[%s1733 + $0x24] sm:$0xf]
      %v1744 = vld [vmem:[%s1733 + $0x28] sm:$0xf]
      %v1745 = vld [vmem:[%s1733 + $0x2c] sm:$0xf]
      %v1746 = vld [vmem:[%s1733 + $0x30] sm:$0xf]
      %v1747 = vld [vmem:[%s1733 + $0x34] sm:$0xf]
      %v1748 = vld [vmem:[%s1733 + $0x38] sm:$0xf]
      %v1749 = vld [vmem:[%s1733 + $0x3c] sm:$0xf]
      %v1750 = vld [vmem:[%s1733 + $0x40] sm:$0xf]
      %v1751 = vld [vmem:[%s1733 + $0x44] sm:$0xf]
      %v1752 = vld [vmem:[%s1733 + $0x48] sm:$0xf]
      %v1753 = vld [vmem:[%s1733 + $0x4c] sm:$0xf]
      %v1754 = vld [vmem:[%s1733 + $0x50] sm:$0xf]
      %v1755 = vld [vmem:[%s1733 + $0x54] sm:$0xf]
      %v1756 = vld [vmem:[%s1733 + $0x58] sm:$0xf]
      %v1757 = vld [vmem:[%s1733 + $0x5c] sm:$0xf]
      %v1782 = vunpack.c.l.b16 %v1734
      %v1783 = vunpack.c.l.b16 %v1735
      %v1784 = vunpack.c.l.b16 %v1736
      %v1785 = vunpack.c.l.b16 %v1737
      %v1786 = vunpack.c.l.b16 %v1738
      %v1787 = vunpack.c.l.b16 %v1739
      %v1788 = vunpack.c.l.b16 %v1740
      %v1789 = vunpack.c.l.b16 %v1741
      %v1790 = vunpack.c.l.b16 %v1742
      %v1791 = vunpack.c.l.b16 %v1743
      %v1792 = vunpack.c.l.b16 %v1744
      %v1793 = vunpack.c.l.b16 %v1745
      %v1794 = vunpack.c.l.b16 %v1746
      %v1795 = vunpack.c.l.b16 %v1747
      %v1796 = vunpack.c.l.b16 %v1748
      %v1797 = vunpack.c.l.b16 %v1749
      %v1798 = vunpack.c.l.b16 %v1750
      %v1799 = vunpack.c.l.b16 %v1751
      %v1800 = vunpack.c.l.b16 %v1752
      %v1801 = vunpack.c.l.b16 %v1753
      %v1802 = vunpack.c.l.b16 %v1754
      %v1803 = vunpack.c.l.b16 %v1755
      %v1804 = vunpack.c.l.b16 %v1756
      %v1805 = vunpack.c.l.b16 %v1757
      %v1806 = vpack.c.b16 %v1783, %v1782
      %v1807 = vpack.c.b16 %v1785, %v1784
      %v1808 = vpack.c.b16 %v1787, %v1786
      %v1809 = vpack.c.b16 %v1789, %v1788
      %v1810 = vpack.c.b16 %v1791, %v1790
      %v1811 = vpack.c.b16 %v1793, %v1792
      %v1812 = vpack.c.b16 %v1795, %v1794
      %v1813 = vpack.c.b16 %v1797, %v1796
      %v1814 = vpack.c.b16 %v1799, %v1798
      %v1815 = vpack.c.b16 %v1801, %v1800
      %v1816 = vpack.c.b16 %v1803, %v1802
      %v1817 = vpack.c.b16 %v1805, %v1804
      %v1831 = vsel %vm481, %v1726, 0
      %v1834 = vsel %vm481, %v1728, 0
      %v1837 = vsel %vm481, %v1730, 0
      %v1840 = vsel %vm481, %v1732, 0
      %1842 = vmatpush.bf16.msra.mxu0 %v1813
      %1843 = vmatpush.bf16.msra.mxu0 %v1812
      %1844 = vmatpush.bf16.msra.mxu0 %v1811
      %1845 = vmatpush.bf16.msra.mxu0 %v1810
      %1846 = vmatpush.bf16.msra.mxu0 %v1809
      %1847 = vmatpush.bf16.msra.mxu0 %v1808
      %1848 = vmatpush.bf16.msra.mxu0 %v1807
      %1849 = vmatpush.bf16.msra.mxu0 %v1806
      %1850 = vmatmul.bf16.gmra.mxu0 %v1725
      %v1851 = vpop.f32.mrf.mxu0
      %v1852 = vadd.f32 0.0, %v1851
      %v1853 = vpop.f32.mrf.mxu0
      %v1854 = vadd.f32 0.0, %v1853
      %1855 = vmatmul.bf16.gmra.mxu0 %v1727
      %v1856 = vpop.f32.mrf.mxu0
      %v1857 = vadd.f32 0.0, %v1856
      %v1858 = vpop.f32.mrf.mxu0
      %v1859 = vadd.f32 0.0, %v1858
      %1860 = vmatmul.bf16.gmra.mxu0 %v1729
      %v1861 = vpop.f32.mrf.mxu0
      %v1862 = vadd.f32 0.0, %v1861
      %v1863 = vpop.f32.mrf.mxu0
      %v1864 = vadd.f32 0.0, %v1863
      %1865 = vmatmul.bf16.gmra.mxu0 %v1731
      %v1866 = vpop.f32.mrf.mxu0
      %v1867 = vadd.f32 0.0, %v1866
      %v1868 = vpop.f32.mrf.mxu0
      %v1869 = vadd.f32 0.0, %v1868
      %1870 = vdwg.mxu0
      %1871 = vmatpush.bf16.msra.mxu0 0
      %1872 = vmatpush.bf16.msra.mxu0 0
      %1873 = vmatpush.bf16.msra.mxu0 0
      %1874 = vmatpush.bf16.msra.mxu0 0
      %1875 = vmatpush.bf16.msra.mxu0 %v1817
      %1876 = vmatpush.bf16.msra.mxu0 %v1816
      %1877 = vmatpush.bf16.msra.mxu0 %v1815
      %1878 = vmatpush.bf16.msra.mxu0 %v1814
      %1879 = vmatmul.bf16.gmra.mxu0 %v1831
      %v1880 = vpop.f32.mrf.mxu0
      %v1881 = vadd.f32 %v1852, %v1880
      %v1882 = vpop.f32.mrf.mxu0
      %v1883 = vadd.f32 %v1854, %v1882
      %1884 = vmatmul.bf16.gmra.mxu0 %v1834
      %v1885 = vpop.f32.mrf.mxu0
      %v1886 = vadd.f32 %v1857, %v1885
      %v1887 = vpop.f32.mrf.mxu0
      %v1888 = vadd.f32 %v1859, %v1887
      %1889 = vmatmul.bf16.gmra.mxu0 %v1837
      %v1890 = vpop.f32.mrf.mxu0
      %v1891 = vadd.f32 %v1862, %v1890
      %v1892 = vpop.f32.mrf.mxu0
      %v1893 = vadd.f32 %v1864, %v1892
      %1894 = vmatmul.bf16.gmra.mxu0 %v1840
      %v1895 = vpop.f32.mrf.mxu0
      %v1896 = vadd.f32 %v1867, %v1895
      %v1897 = vpop.f32.mrf.mxu0
      %v1898 = vadd.f32 %v1869, %v1897
      %1899 = vdwg.mxu0
      %v1901 = vperm.slane %v1708, 0
      %v1903 = vadd.f32 %v1901, %v1881
      %v1904 = vadd.f32 %v1901, %v1883
      %v1905 = vadd.f32 %v1901, %v1886
      %v1906 = vadd.f32 %v1901, %v1888
      %v1907 = vadd.f32 %v1901, %v1891
      %v1908 = vadd.f32 %v1901, %v1893
      %v1909 = vadd.f32 %v1901, %v1896
      %v1910 = vadd.f32 %v1901, %v1898
      %v1911 = vld [vmem:[#allocation2 + $0x10] sm:$0xff]
      %v1912 = vld [vmem:[#allocation2 + $0x18] sm:$0xff]
      %v1913 = vld [vmem:[#allocation2 + $0x20] sm:$0xff]
      %v1914 = vld [vmem:[#allocation2 + $0x28] sm:$0xff]
      %v1915 = vld [vmem:[#allocation2 + $0x30] sm:$0xff]
      %v1916 = vld [vmem:[#allocation2 + $0x38] sm:$0xff]
      %v1917 = vld [vmem:[#allocation2 + $0x40] sm:$0xff]
      %v1918 = vld [vmem:[#allocation2 + $0x48] sm:$0xff]
      %v1919 = vld [vmem:[#allocation2 + $0x50] sm:$0xff]
      %v1920 = vld [vmem:[#allocation2 + $0x58] sm:$0xff]
      %v1921 = vld [vmem:[#allocation2 + $0x60] sm:$0xff]
      %v1922 = vld [vmem:[#allocation2 + $0x68] sm:$0xff]
      %v1923 = vld [vmem:[#allocation2 + $0x70] sm:$0xff]
      %v1924 = vld [vmem:[#allocation2 + $0x78] sm:$0xff]
      %v1925 = vld [vmem:[#allocation2 + $0x80] sm:$0xff]
      %v1926 = vld [vmem:[#allocation2 + $0x88] sm:$0xff]
      %v1927 = vpack.c.bf16 %v1913, %v1911
      %v1928 = vpack.c.bf16 %v1914, %v1912
      %v1929 = vpack.c.bf16 %v1917, %v1915
      %v1930 = vpack.c.bf16 %v1918, %v1916
      %v1931 = vpack.c.bf16 %v1921, %v1919
      %v1932 = vpack.c.bf16 %v1922, %v1920
      %v1933 = vpack.c.bf16 %v1925, %v1923
      %v1934 = vpack.c.bf16 %v1926, %v1924
      %v1935 = vld [vmem:[%s1733 + $0x60] sm:$0xf]
      %v1936 = vld [vmem:[%s1733 + $0x64] sm:$0xf]
      %v1937 = vld [vmem:[%s1733 + $0x68] sm:$0xf]
      %v1938 = vld [vmem:[%s1733 + $0x6c] sm:$0xf]
      %v1939 = vld [vmem:[%s1733 + $0x70] sm:$0xf]
      %v1940 = vld [vmem:[%s1733 + $0x74] sm:$0xf]
      %v1941 = vld [vmem:[%s1733 + $0x78] sm:$0xf]
      %v1942 = vld [vmem:[%s1733 + $0x7c] sm:$0xf]
      %v1943 = vld [vmem:[%s1733 + $0x80] sm:$0xf]
      %v1944 = vld [vmem:[%s1733 + $0x84] sm:$0xf]
      %v1945 = vld [vmem:[%s1733 + $0x88] sm:$0xf]
      %v1946 = vld [vmem:[%s1733 + $0x8c] sm:$0xf]
      %v1947 = vld [vmem:[%s1733 + $0x90] sm:$0xf]
      %v1948 = vld [vmem:[%s1733 + $0x94] sm:$0xf]
      %v1949 = vld [vmem:[%s1733 + $0x98] sm:$0xf]
      %v1950 = vld [vmem:[%s1733 + $0x9c] sm:$0xf]
      %v1951 = vld [vmem:[%s1733 + $0xa0] sm:$0xf]
      %v1952 = vld [vmem:[%s1733 + $0xa4] sm:$0xf]
      %v1953 = vld [vmem:[%s1733 + $0xa8] sm:$0xf]
      %v1954 = vld [vmem:[%s1733 + $0xac] sm:$0xf]
      %v1955 = vld [vmem:[%s1733 + $0xb0] sm:$0xf]
      %v1956 = vld [vmem:[%s1733 + $0xb4] sm:$0xf]
      %v1957 = vld [vmem:[%s1733 + $0xb8] sm:$0xf]
      %v1958 = vld [vmem:[%s1733 + $0xbc] sm:$0xf]
      %v1983 = vunpack.c.l.b16 %v1935
      %v1984 = vunpack.c.l.b16 %v1936
      %v1985 = vunpack.c.l.b16 %v1937
      %v1986 = vunpack.c.l.b16 %v1938
      %v1987 = vunpack.c.l.b16 %v1939
      %v1988 = vunpack.c.l.b16 %v1940
      %v1989 = vunpack.c.l.b16 %v1941
      %v1990 = vunpack.c.l.b16 %v1942
      %v1991 = vunpack.c.l.b16 %v1943
      %v1992 = vunpack.c.l.b16 %v1944
      %v1993 = vunpack.c.l.b16 %v1945
      %v1994 = vunpack.c.l.b16 %v1946
      %v1995 = vunpack.c.l.b16 %v1947
      %v1996 = vunpack.c.l.b16 %v1948
      %v1997 = vunpack.c.l.b16 %v1949
      %v1998 = vunpack.c.l.b16 %v1950
      %v1999 = vunpack.c.l.b16 %v1951
      %v2000 = vunpack.c.l.b16 %v1952
      %v2001 = vunpack.c.l.b16 %v1953
      %v2002 = vunpack.c.l.b16 %v1954
      %v2003 = vunpack.c.l.b16 %v1955
      %v2004 = vunpack.c.l.b16 %v1956
      %v2005 = vunpack.c.l.b16 %v1957
      %v2006 = vunpack.c.l.b16 %v1958
      %v2007 = vpack.c.b16 %v1984, %v1983
      %v2008 = vpack.c.b16 %v1986, %v1985
      %v2009 = vpack.c.b16 %v1988, %v1987
      %v2010 = vpack.c.b16 %v1990, %v1989
      %v2011 = vpack.c.b16 %v1992, %v1991
      %v2012 = vpack.c.b16 %v1994, %v1993
      %v2013 = vpack.c.b16 %v1996, %v1995
      %v2014 = vpack.c.b16 %v1998, %v1997
      %v2015 = vpack.c.b16 %v2000, %v1999
      %v2016 = vpack.c.b16 %v2002, %v2001
      %v2017 = vpack.c.b16 %v2004, %v2003
      %v2018 = vpack.c.b16 %v2006, %v2005
      %v2032 = vsel %vm481, %v1928, 0
      %v2035 = vsel %vm481, %v1930, 0
      %v2038 = vsel %vm481, %v1932, 0
      %v2041 = vsel %vm481, %v1934, 0
      %2043 = vmatpush.bf16.msra.mxu0 %v2014
      %2044 = vmatpush.bf16.msra.mxu0 %v2013
      %2045 = vmatpush.bf16.msra.mxu0 %v2012
      %2046 = vmatpush.bf16.msra.mxu0 %v2011
      %2047 = vmatpush.bf16.msra.mxu0 %v2010
      %2048 = vmatpush.bf16.msra.mxu0 %v2009
      %2049 = vmatpush.bf16.msra.mxu0 %v2008
      %2050 = vmatpush.bf16.msra.mxu0 %v2007
      %2051 = vmatmul.bf16.gmra.mxu0 %v1927
      %v2052 = vpop.f32.mrf.mxu0
      %v2053 = vadd.f32 0.0, %v2052
      %v2054 = vpop.f32.mrf.mxu0
      %v2055 = vadd.f32 0.0, %v2054
      %2056 = vmatmul.bf16.gmra.mxu0 %v1929
      %v2057 = vpop.f32.mrf.mxu0
      %v2058 = vadd.f32 0.0, %v2057
      %v2059 = vpop.f32.mrf.mxu0
      %v2060 = vadd.f32 0.0, %v2059
      %2061 = vmatmul.bf16.gmra.mxu0 %v1931
      %v2062 = vpop.f32.mrf.mxu0
      %v2063 = vadd.f32 0.0, %v2062
      %v2064 = vpop.f32.mrf.mxu0
      %v2065 = vadd.f32 0.0, %v2064
      %2066 = vmatmul.bf16.gmra.mxu0 %v1933
      %v2067 = vpop.f32.mrf.mxu0
      %v2068 = vadd.f32 0.0, %v2067
      %v2069 = vpop.f32.mrf.mxu0
      %v2070 = vadd.f32 0.0, %v2069
      %2071 = vdwg.mxu0
      %2072 = vmatpush.bf16.msra.mxu0 0
      %2073 = vmatpush.bf16.msra.mxu0 0
      %2074 = vmatpush.bf16.msra.mxu0 0
      %2075 = vmatpush.bf16.msra.mxu0 0
      %2076 = vmatpush.bf16.msra.mxu0 %v2018
      %2077 = vmatpush.bf16.msra.mxu0 %v2017
      %2078 = vmatpush.bf16.msra.mxu0 %v2016
      %2079 = vmatpush.bf16.msra.mxu0 %v2015
      %2080 = vmatmul.bf16.gmra.mxu0 %v2032
      %v2081 = vpop.f32.mrf.mxu0
      %v2082 = vadd.f32 %v2053, %v2081
      %v2083 = vpop.f32.mrf.mxu0
      %v2084 = vadd.f32 %v2055, %v2083
      %2085 = vmatmul.bf16.gmra.mxu0 %v2035
      %v2086 = vpop.f32.mrf.mxu0
      %v2087 = vadd.f32 %v2058, %v2086
      %v2088 = vpop.f32.mrf.mxu0
      %v2089 = vadd.f32 %v2060, %v2088
      %2090 = vmatmul.bf16.gmra.mxu0 %v2038
      %v2091 = vpop.f32.mrf.mxu0
      %v2092 = vadd.f32 %v2063, %v2091
      %v2093 = vpop.f32.mrf.mxu0
      %v2094 = vadd.f32 %v2065, %v2093
      %2095 = vmatmul.bf16.gmra.mxu0 %v2041
      %v2096 = vpop.f32.mrf.mxu0
      %v2097 = vadd.f32 %v2068, %v2096
      %v2098 = vpop.f32.mrf.mxu0
      %v2099 = vadd.f32 %v2070, %v2098
      %2100 = vdwg.mxu0
      %v2101 = vadd.f32 %v1903, %v2082
      %v2102 = vadd.f32 %v1904, %v2084
      %v2103 = vadd.f32 %v1905, %v2087
      %v2104 = vadd.f32 %v1906, %v2089
      %v2105 = vadd.f32 %v1907, %v2092
      %v2106 = vadd.f32 %v1908, %v2094
      %v2107 = vadd.f32 %v1909, %v2097
      %v2108 = vadd.f32 %v1910, %v2099
      %v2109 = vld [vmem:[#allocation2 + $0x20] sm:$0xff]
      %v2110 = vld [vmem:[#allocation2 + $0x28] sm:$0xff]
      %v2111 = vld [vmem:[#allocation2 + $0x30] sm:$0xff]
      %v2112 = vld [vmem:[#allocation2 + $0x38] sm:$0xff]
      %v2113 = vld [vmem:[#allocation2 + $0x40] sm:$0xff]
      %v2114 = vld [vmem:[#allocation2 + $0x48] sm:$0xff]
      %v2115 = vld [vmem:[#allocation2 + $0x50] sm:$0xff]
      %v2116 = vld [vmem:[#allocation2 + $0x58] sm:$0xff]
      %v2117 = vld [vmem:[#allocation2 + $0x60] sm:$0xff]
      %v2118 = vld [vmem:[#allocation2 + $0x68] sm:$0xff]
      %v2119 = vld [vmem:[#allocation2 + $0x70] sm:$0xff]
      %v2120 = vld [vmem:[#allocation2 + $0x78] sm:$0xff]
      %v2121 = vld [vmem:[#allocation2 + $0x80] sm:$0xff]
      %v2122 = vld [vmem:[#allocation2 + $0x88] sm:$0xff]
      %v2123 = vld [vmem:[#allocation2 + $0x90] sm:$0xff]
      %v2124 = vld [vmem:[#allocation2 + $0x98] sm:$0xff]
      %v2125 = vpack.c.bf16 %v2111, %v2109
      %v2126 = vpack.c.bf16 %v2112, %v2110
      %v2127 = vpack.c.bf16 %v2115, %v2113
      %v2128 = vpack.c.bf16 %v2116, %v2114
      %v2129 = vpack.c.bf16 %v2119, %v2117
      %v2130 = vpack.c.bf16 %v2120, %v2118
      %v2131 = vpack.c.bf16 %v2123, %v2121
      %v2132 = vpack.c.bf16 %v2124, %v2122
      %v2133 = vld [vmem:[%s1733 + $0xc0] sm:$0xf]
      %v2134 = vld [vmem:[%s1733 + $0xc4] sm:$0xf]
      %v2135 = vld [vmem:[%s1733 + $0xc8] sm:$0xf]
      %v2136 = vld [vmem:[%s1733 + $0xcc] sm:$0xf]
      %v2137 = vld [vmem:[%s1733 + $0xd0] sm:$0xf]
      %v2138 = vld [vmem:[%s1733 + $0xd4] sm:$0xf]
      %v2139 = vld [vmem:[%s1733 + $0xd8] sm:$0xf]
      %v2140 = vld [vmem:[%s1733 + $0xdc] sm:$0xf]
      %v2141 = vld [vmem:[%s1733 + $0xe0] sm:$0xf]
      %v2142 = vld [vmem:[%s1733 + $0xe4] sm:$0xf]
      %v2143 = vld [vmem:[%s1733 + $0xe8] sm:$0xf]
      %v2144 = vld [vmem:[%s1733 + $0xec] sm:$0xf]
      %v2145 = vld [vmem:[%s1733 + $0xf0] sm:$0xf]
      %v2146 = vld [vmem:[%s1733 + $0xf4] sm:$0xf]
      %v2147 = vld [vmem:[%s1733 + $0xf8] sm:$0xf]
      %v2148 = vld [vmem:[%s1733 + $0xfc] sm:$0xf]
      %v2149 = vld [vmem:[%s1733 + $0x100] sm:$0xf]
      %v2150 = vld [vmem:[%s1733 + $0x104] sm:$0xf]
      %v2151 = vld [vmem:[%s1733 + $0x108] sm:$0xf]
      %v2152 = vld [vmem:[%s1733 + $0x10c] sm:$0xf]
      %v2153 = vld [vmem:[%s1733 + $0x110] sm:$0xf]
      %v2154 = vld [vmem:[%s1733 + $0x114] sm:$0xf]
      %v2155 = vld [vmem:[%s1733 + $0x118] sm:$0xf]
      %v2156 = vld [vmem:[%s1733 + $0x11c] sm:$0xf]
      %v2181 = vunpack.c.l.b16 %v2133
      %v2182 = vunpack.c.l.b16 %v2134
      %v2183 = vunpack.c.l.b16 %v2135
      %v2184 = vunpack.c.l.b16 %v2136
      %v2185 = vunpack.c.l.b16 %v2137
      %v2186 = vunpack.c.l.b16 %v2138
      %v2187 = vunpack.c.l.b16 %v2139
      %v2188 = vunpack.c.l.b16 %v2140
      %v2189 = vunpack.c.l.b16 %v2141
      %v2190 = vunpack.c.l.b16 %v2142
      %v2191 = vunpack.c.l.b16 %v2143
      %v2192 = vunpack.c.l.b16 %v2144
      %v2193 = vunpack.c.l.b16 %v2145
      %v2194 = vunpack.c.l.b16 %v2146
      %v2195 = vunpack.c.l.b16 %v2147
      %v2196 = vunpack.c.l.b16 %v2148
      %v2197 = vunpack.c.l.b16 %v2149
      %v2198 = vunpack.c.l.b16 %v2150
      %v2199 = vunpack.c.l.b16 %v2151
      %v2200 = vunpack.c.l.b16 %v2152
      %v2201 = vunpack.c.l.b16 %v2153
      %v2202 = vunpack.c.l.b16 %v2154
      %v2203 = vunpack.c.l.b16 %v2155
      %v2204 = vunpack.c.l.b16 %v2156
      %v2205 = vpack.c.b16 %v2182, %v2181
      %v2206 = vpack.c.b16 %v2184, %v2183
      %v2207 = vpack.c.b16 %v2186, %v2185
      %v2208 = vpack.c.b16 %v2188, %v2187
      %v2209 = vpack.c.b16 %v2190, %v2189
      %v2210 = vpack.c.b16 %v2192, %v2191
      %v2211 = vpack.c.b16 %v2194, %v2193
      %v2212 = vpack.c.b16 %v2196, %v2195
      %v2213 = vpack.c.b16 %v2198, %v2197
      %v2214 = vpack.c.b16 %v2200, %v2199
      %v2215 = vpack.c.b16 %v2202, %v2201
      %v2216 = vpack.c.b16 %v2204, %v2203
      %v2230 = vsel %vm481, %v2126, 0
      %v2233 = vsel %vm481, %v2128, 0
      %v2236 = vsel %vm481, %v2130, 0
      %v2239 = vsel %vm481, %v2132, 0
      %2241 = vmatpush.bf16.msra.mxu0 %v2212
      %2242 = vmatpush.bf16.msra.mxu0 %v2211
      %2243 = vmatpush.bf16.msra.mxu0 %v2210
      %2244 = vmatpush.bf16.msra.mxu0 %v2209
      %2245 = vmatpush.bf16.msra.mxu0 %v2208
      %2246 = vmatpush.bf16.msra.mxu0 %v2207
      %2247 = vmatpush.bf16.msra.mxu0 %v2206
      %2248 = vmatpush.bf16.msra.mxu0 %v2205
      %2249 = vmatmul.bf16.gmra.mxu0 %v2125
      %v2250 = vpop.f32.mrf.mxu0
      %v2251 = vadd.f32 0.0, %v2250
      %v2252 = vpop.f32.mrf.mxu0
      %v2253 = vadd.f32 0.0, %v2252
      %2254 = vmatmul.bf16.gmra.mxu0 %v2127
      %v2255 = vpop.f32.mrf.mxu0
      %v2256 = vadd.f32 0.0, %v2255
      %v2257 = vpop.f32.mrf.mxu0
      %v2258 = vadd.f32 0.0, %v2257
      %2259 = vmatmul.bf16.gmra.mxu0 %v2129
      %v2260 = vpop.f32.mrf.mxu0
      %v2261 = vadd.f32 0.0, %v2260
      %v2262 = vpop.f32.mrf.mxu0
      %v2263 = vadd.f32 0.0, %v2262
      %2264 = vmatmul.bf16.gmra.mxu0 %v2131
      %v2265 = vpop.f32.mrf.mxu0
      %v2266 = vadd.f32 0.0, %v2265
      %v2267 = vpop.f32.mrf.mxu0
      %v2268 = vadd.f32 0.0, %v2267
      %2269 = vdwg.mxu0
      %2270 = vmatpush.bf16.msra.mxu0 0
      %2271 = vmatpush.bf16.msra.mxu0 0
      %2272 = vmatpush.bf16.msra.mxu0 0
      %2273 = vmatpush.bf16.msra.mxu0 0
      %2274 = vmatpush.bf16.msra.mxu0 %v2216
      %2275 = vmatpush.bf16.msra.mxu0 %v2215
      %2276 = vmatpush.bf16.msra.mxu0 %v2214
      %2277 = vmatpush.bf16.msra.mxu0 %v2213
      %2278 = vmatmul.bf16.gmra.mxu0 %v2230
      %v2279 = vpop.f32.mrf.mxu0
      %v2280 = vadd.f32 %v2251, %v2279
      %v2281 = vpop.f32.mrf.mxu0
      %v2282 = vadd.f32 %v2253, %v2281
      %2283 = vmatmul.bf16.gmra.mxu0 %v2233
      %v2284 = vpop.f32.mrf.mxu0
      %v2285 = vadd.f32 %v2256, %v2284
      %v2286 = vpop.f32.mrf.mxu0
      %v2287 = vadd.f32 %v2258, %v2286
      %2288 = vmatmul.bf16.gmra.mxu0 %v2236
      %v2289 = vpop.f32.mrf.mxu0
      %v2290 = vadd.f32 %v2261, %v2289
      %v2291 = vpop.f32.mrf.mxu0
      %v2292 = vadd.f32 %v2263, %v2291
      %2293 = vmatmul.bf16.gmra.mxu0 %v2239
      %v2294 = vpop.f32.mrf.mxu0
      %v2295 = vadd.f32 %v2266, %v2294
      %v2296 = vpop.f32.mrf.mxu0
      %v2297 = vadd.f32 %v2268, %v2296
      %2298 = vdwg.mxu0
      %v2299 = vadd.f32 %v2101, %v2280
      %v2300 = vadd.f32 %v2102, %v2282
      %v2301 = vadd.f32 %v2103, %v2285
      %v2302 = vadd.f32 %v2104, %v2287
      %v2303 = vadd.f32 %v2105, %v2290
      %v2304 = vadd.f32 %v2106, %v2292
      %v2305 = vadd.f32 %v2107, %v2295
      %v2306 = vadd.f32 %v2108, %v2297
      %v2307 = vadd.f32 %v307, %v2299
      %v2308 = vadd.f32 %v308, %v2300
      %v2309 = vadd.f32 %v309, %v2301
      %v2310 = vadd.f32 %v310, %v2302
      %v2311 = vadd.f32 %v311, %v2303
      %v2312 = vadd.f32 %v312, %v2304
      %v2313 = vadd.f32 %v313, %v2305
      %v2314 = vadd.f32 %v314, %v2306
      %s2315 = scalar_lea.vmem %s1, 4
      %v2316 = vld [vmem:[%s2315] sm:$0x1]
      %s2317 = scalar_lea.vmem %s1, 5
      %v2318 = vld [vmem:[%s2317] sm:$0x1]
      %v2319 = vsel %vm481, %v2307, 0.0
      %v2320 = vsel %vm481, %v2308, 0.0
      %v2321 = vadd.f32 %v2319, %v2320
      %v2322 = vsel %vm481, %v2309, 0.0
      %v2323 = vadd.f32 %v2321, %v2322
      %v2324 = vsel %vm481, %v2310, 0.0
      %v2325 = vadd.f32 %v2323, %v2324
      %v2326 = vsel %vm481, %v2311, 0.0
      %v2327 = vadd.f32 %v2325, %v2326
      %v2328 = vsel %vm481, %v2312, 0.0
      %v2329 = vadd.f32 %v2327, %v2328
      %v2330 = vsel %vm481, %v2313, 0.0
      %v2331 = vadd.f32 %v2329, %v2330
      %v2332 = vsel %vm481, %v2314, 0.0
      %v2333 = vadd.f32 %v2331, %v2332
      %v2334 = vrot.slane %v2333, 4
      %v2335 = vadd.f32 %v2333, %v2334
      %v2336 = vrot.slane %v2335, 2
      %v2337 = vadd.f32 %v2335, %v2336
      %v2338 = vrot.slane %v2337, 1
      %v2339 = vadd.f32 %v2337, %v2338
      %v2340 = vmul.f32 %v2307, %v2307
      %v2341 = vmul.f32 %v2308, %v2308
      %v2342 = vmul.f32 %v2309, %v2309
      %v2343 = vmul.f32 %v2310, %v2310
      %v2344 = vmul.f32 %v2311, %v2311
      %v2345 = vmul.f32 %v2312, %v2312
      %v2346 = vmul.f32 %v2313, %v2313
      %v2347 = vmul.f32 %v2314, %v2314
      %v2348 = vsel %vm481, %v2340, 0.0
      %v2349 = vsel %vm481, %v2341, 0.0
      %v2350 = vadd.f32 %v2348, %v2349
      %v2351 = vsel %vm481, %v2342, 0.0
      %v2352 = vadd.f32 %v2350, %v2351
      %v2353 = vsel %vm481, %v2343, 0.0
      %v2354 = vadd.f32 %v2352, %v2353
      %v2355 = vsel %vm481, %v2344, 0.0
      %v2356 = vadd.f32 %v2354, %v2355
      %v2357 = vsel %vm481, %v2345, 0.0
      %v2358 = vadd.f32 %v2356, %v2357
      %v2359 = vsel %vm481, %v2346, 0.0
      %v2360 = vadd.f32 %v2358, %v2359
      %v2361 = vsel %vm481, %v2347, 0.0
      %v2362 = vadd.f32 %v2360, %v2361
      %v2363 = vrot.slane %v2362, 4
      %v2364 = vadd.f32 %v2362, %v2363
      %v2365 = vrot.slane %v2364, 2
      %v2366 = vadd.f32 %v2364, %v2365
      %v2367 = vrot.slane %v2366, 1
      %v2368 = vadd.f32 %v2366, %v2367
      %v2369 = vsel %vm532, %v2339, %v2368
      %v2371 = vsel %vm481, %v2369, 0
      %2373 = vmatpush.msra.mxu0 0.0
      %2374 = vmatpush.msra.mxu0 0.0
      %2375 = vmatpush.msra.mxu0 0.0
      %2376 = vmatpush.msra.mxu0 0.0
      %2377 = vmatpush.msra.mxu0 0.0
      %2378 = vmatpush.msra.mxu0 0.0
      %2379 = vmatpush.msra.mxu0 0.0
      %2380 = vmatpush.msra.mxu0 0.0
      %2381 = vmatpush.msra.mxu0 %v322
      %2382 = vmatpush.msra.mxu0 %v321
      %2383 = vmatpush.msra.mxu0 %v320
      %2384 = vmatpush.msra.mxu0 %v319
      %2385 = vmatpush.msra.mxu0 %v318
      %2386 = vmatpush.msra.mxu0 %v317
      %2387 = vmatpush.msra.mxu0 %v316
      %2388 = vmatpush.msra.mxu0 %v315
      %2389 = vmatmul.f32.gmra.mxu0 %v2371
      %v2390 = vpop.f32.mrf.mxu0
      %v2391 = vadd.f32 0.0, %v2390
      %2392 = vdwg.mxu0
      %v2393 = vmul.f32 %v2391, 0.0078125
      %v2394 = vmul.f32 %v2393, %v2393
      %v2396 = vrot.slane %v2394, 7
      %v2398 = vsub.f32 %v2393, %v2396
      %v2399 = vadd.f32 %v2398, 1e-05
      %v2400 = vrsqrt.pop %v2399
      %v2401 = vmul.f32 %v2400, %v2399
      %v2402 = vmul.f32 %v2401, %v2400
      %v2403 = vmul.f32 0.5, %v2402
      %v2404 = vsub.f32 1.5, %v2403
      %v2405 = vmul.f32 %v2400, %v2404
      %vm2406 = vweird.f32 %v2399
      %vm2407 = vweird.f32 %v2400
      %vm2408 = vmor %vm2406, %vm2407
      %v2409 = vsel %vm2408, %v2400, %v2405
      %v2410 = vsel %vm532, %v2393, %v2409
      %v2412 = vsel %vm575, %v2410, 0
      %2414 = vmatpush.msra.mxu0 0.0
      %2415 = vmatpush.msra.mxu0 0.0
      %2416 = vmatpush.msra.mxu0 0.0
      %2417 = vmatpush.msra.mxu0 0.0
      %2418 = vmatpush.msra.mxu0 0.0
      %2419 = vmatpush.msra.mxu0 0.0
      %2420 = vmatpush.msra.mxu0 0.0
      %2421 = vmatpush.msra.mxu0 0.0
      %2422 = vmatpush.msra.mxu0 0.0
      %2423 = vmatpush.msra.mxu0 0.0
      %2424 = vmatpush.msra.mxu0 0.0
      %2425 = vmatpush.msra.mxu0 0.0
      %2426 = vmatpush.msra.mxu0 %v326
      %2427 = vmatpush.msra.mxu0 %v325
      %2428 = vmatpush.msra.mxu0 %v324
      %2429 = vmatpush.msra.mxu0 %v323
      %2430 = vmatmul.f32.gmra.mxu0 %v2412
      %v2431 = vpop.f32.mrf.mxu0
      %v2432 = vadd.f32 0.0, %v2431
      %2433 = vdwg.mxu0
      %v2435 = vperm.slane %v2316, 0
      %v2437 = vmul.f32 %v2432, %v2435
      %v2439 = vrot.slane %v2437, 1
      %v2441 = vmul.f32 %v2432, %v2439
      %v2442 = vsub.f32 %v2318, %v2441
      %v2443 = vperm.slane %v2437, 1
      %v2444 = vmul.f32 %v2307, %v2443
      %v2445 = vmul.f32 %v2308, %v2443
      %v2446 = vmul.f32 %v2309, %v2443
      %v2447 = vmul.f32 %v2310, %v2443
      %v2448 = vmul.f32 %v2311, %v2443
      %v2449 = vmul.f32 %v2312, %v2443
      %v2450 = vmul.f32 %v2313, %v2443
      %v2451 = vmul.f32 %v2314, %v2443
      %v2453 = vperm.slane %v2442, 0
      %v2455 = vadd.f32 %v2444, %v2453
      %v2456 = vadd.f32 %v2445, %v2453
      %v2457 = vadd.f32 %v2446, %v2453
      %v2458 = vadd.f32 %v2447, %v2453
      %v2459 = vadd.f32 %v2448, %v2453
      %v2460 = vadd.f32 %v2449, %v2453
      %v2461 = vadd.f32 %v2450, %v2453
      %v2462 = vadd.f32 %v2451, %v2453
      %v2463 = vsub.f32 0.0, %v2455
      %v2464 = vsub.f32 0.0, %v2456
      %v2465 = vsub.f32 0.0, %v2457
      %v2466 = vsub.f32 0.0, %v2458
      %v2467 = vsub.f32 0.0, %v2459
      %v2468 = vsub.f32 0.0, %v2460
      %v2469 = vsub.f32 0.0, %v2461
      %v2470 = vsub.f32 0.0, %v2462
      %v2471 = vmul.f32 %v2463, 1.442695
      %v2472 = vpow.pop %v2471
      %v2473 = vmul.f32 %v2464, 1.442695
      %v2474 = vpow.pop %v2473
      %v2475 = vmul.f32 %v2465, 1.442695
      %v2476 = vpow.pop %v2475
      %v2477 = vmul.f32 %v2466, 1.442695
      %v2478 = vpow.pop %v2477
      %v2479 = vmul.f32 %v2467, 1.442695
      %v2480 = vpow.pop %v2479
      %v2481 = vmul.f32 %v2468, 1.442695
      %v2482 = vpow.pop %v2481
      %v2483 = vmul.f32 %v2469, 1.442695
      %v2484 = vpow.pop %v2483
      %v2485 = vmul.f32 %v2470, 1.442695
      %v2486 = vpow.pop %v2485
      %v2487 = vadd.f32 %v2472, 1.0
      %v2488 = vadd.f32 %v2474, 1.0
      %v2489 = vadd.f32 %v2476, 1.0
      %v2490 = vadd.f32 %v2478, 1.0
      %v2491 = vadd.f32 %v2480, 1.0
      %v2492 = vadd.f32 %v2482, 1.0
      %v2493 = vadd.f32 %v2484, 1.0
      %v2494 = vadd.f32 %v2486, 1.0
      %v2495 = vrcp.pop %v2487
      %v2496 = vrcp.pop %v2488
      %v2497 = vrcp.pop %v2489
      %v2498 = vrcp.pop %v2490
      %v2499 = vrcp.pop %v2491
      %v2500 = vrcp.pop %v2492
      %v2501 = vrcp.pop %v2493
      %v2502 = vrcp.pop %v2494
      %v2503 = vmul.f32 %v2455, %v2495
      %v2504 = vmul.f32 %v2456, %v2496
      %v2505 = vmul.f32 %v2457, %v2497
      %v2506 = vmul.f32 %v2458, %v2498
      %v2507 = vmul.f32 %v2459, %v2499
      %v2508 = vmul.f32 %v2460, %v2500
      %v2509 = vmul.f32 %v2461, %v2501
      %v2510 = vmul.f32 %v2462, %v2502
      %v2511 = vrot.slane %v2503, 7
      %v2512 = vrot.slane %v2504, 7
      %v2513 = vrot.slane %v2505, 7
      %v2514 = vrot.slane %v2506, 7
      %v2515 = vrot.slane %v2507, 7
      %v2516 = vrot.slane %v2508, 7
      %v2517 = vrot.slane %v2509, 7
      %v2518 = vrot.slane %v2510, 7
      %v2519 = vsel %vm684, %v2518, 0.0
      %v2520 = vsel %vm684, %v2517, %v2518
      %v2521 = vsel %vm684, %v2516, %v2517
      %v2522 = vsel %vm684, %v2515, %v2516
      %v2523 = vsel %vm684, %v2514, %v2515
      %v2524 = vsel %vm684, %v2513, %v2514
      %v2525 = vsel %vm684, %v2512, %v2513
      %v2526 = vsel %vm684, %v2511, %v2512
      %v2527 = vsel %vm684, 0.0, %v2511
      %v2528 = vsel %vm459, %v2527, 0.0
      %v2529 = vsel %vm460, %v2526, 0.0
      %v2530 = vsel %vm461, %v2525, 0.0
      %v2531 = vsel %vm462, %v2524, 0.0
      %v2532 = vsel %vm463, %v2523, 0.0
      %v2533 = vsel %vm464, %v2522, 0.0
      %v2534 = vsel %vm465, %v2521, 0.0
      %v2535 = vsel %vm466, %v2520, 0.0
      %v2536 = vsel %vm467, %v2519, 0.0
      %2537 = vst.msk [vmem:[#allocation2] sm:$0xff] %vm481, %v694
      %2538 = vst.msk [vmem:[#allocation2 + $0x10] sm:$0xff] %vm481, %v2528
      %2539 = vst.msk [vmem:[#allocation2 + $0x20] sm:$0xff] %vm481, %v2529
      %2540 = vst.msk [vmem:[#allocation2 + $0x30] sm:$0xff] %vm481, %v2530
      %2541 = vst.msk [vmem:[#allocation2 + $0x40] sm:$0xff] %vm481, %v2531
      %2542 = vst.msk [vmem:[#allocation2 + $0x50] sm:$0xff] %vm481, %v2532
      %2543 = vst.msk [vmem:[#allocation2 + $0x60] sm:$0xff] %vm481, %v2533
      %2544 = vst.msk [vmem:[#allocation2 + $0x70] sm:$0xff] %vm481, %v2534
      %2545 = vst.msk [vmem:[#allocation2 + $0x80] sm:$0xff] %vm481, %v2535
      %2546 = vst.msk [vmem:[#allocation2 + $0x90] sm:$0xff] %vm481, %v2536
      %2555 = vrot.lane.b32.xlu0 %v2503, 64
      %v2556 = vpop.permute.xlu0 %2555
      %2557 = vrot.lane.b32.xlu0 %v2504, 64
      %v2558 = vpop.permute.xlu0 %2557
      %2559 = vrot.lane.b32.xlu0 %v2505, 64
      %v2560 = vpop.permute.xlu0 %2559
      %2561 = vrot.lane.b32.xlu0 %v2506, 64
      %v2562 = vpop.permute.xlu0 %2561
      %2563 = vrot.lane.b32.xlu0 %v2507, 64
      %v2564 = vpop.permute.xlu0 %2563
      %2565 = vrot.lane.b32.xlu0 %v2508, 64
      %v2566 = vpop.permute.xlu0 %2565
      %2567 = vrot.lane.b32.xlu0 %v2509, 64
      %v2568 = vpop.permute.xlu0 %2567
      %2569 = vrot.lane.b32.xlu0 %v2510, 64
      %v2570 = vpop.permute.xlu0 %2569
      %2579 = vst.msk [vmem:[#allocation2] sm:$0xff] %vm750, %v724
      %2580 = vst.msk [vmem:[#allocation2 + $0x10] sm:$0xff] %vm750, %v2556
      %2581 = vst.msk [vmem:[#allocation2 + $0x20] sm:$0xff] %vm750, %v2558
      %2582 = vst.msk [vmem:[#allocation2 + $0x30] sm:$0xff] %vm750, %v2560
      %2583 = vst.msk [vmem:[#allocation2 + $0x40] sm:$0xff] %vm750, %v2562
      %2584 = vst.msk [vmem:[#allocation2 + $0x50] sm:$0xff] %vm750, %v2564
      %2585 = vst.msk [vmem:[#allocation2 + $0x60] sm:$0xff] %vm750, %v2566
      %2586 = vst.msk [vmem:[#allocation2 + $0x70] sm:$0xff] %vm750, %v2568
      %2587 = vst.msk [vmem:[#allocation2 + $0x80] sm:$0xff] %vm750, %v2570
      %2588 = vst.msk [vmem:[#allocation2 + $0x90] sm:$0xff] %vm750, %v724
      %v2589 = vrot.slane %v2503, 1
      %v2590 = vrot.slane %v2504, 1
      %v2591 = vrot.slane %v2505, 1
      %v2592 = vrot.slane %v2506, 1
      %v2593 = vrot.slane %v2507, 1
      %v2594 = vrot.slane %v2508, 1
      %v2595 = vrot.slane %v2509, 1
      %v2596 = vrot.slane %v2510, 1
      %v2597 = vsel %vm769, %v2596, 0.0
      %v2598 = vsel %vm769, %v2595, %v2596
      %v2599 = vsel %vm769, %v2594, %v2595
      %v2600 = vsel %vm769, %v2593, %v2594
      %v2601 = vsel %vm769, %v2592, %v2593
      %v2602 = vsel %vm769, %v2591, %v2592
      %v2603 = vsel %vm769, %v2590, %v2591
      %v2604 = vsel %vm769, %v2589, %v2590
      %v2605 = vsel %vm769, 0.0, %v2589
      %v2606 = vsel %vm468, %v2605, 0.0
      %v2607 = vsel %vm469, %v2604, 0.0
      %v2608 = vsel %vm470, %v2603, 0.0
      %v2609 = vsel %vm471, %v2602, 0.0
      %v2610 = vsel %vm472, %v2601, 0.0
      %v2611 = vsel %vm473, %v2600, 0.0
      %v2612 = vsel %vm474, %v2599, 0.0
      %v2613 = vsel %vm475, %v2598, 0.0
      %v2614 = vsel %vm476, %v2597, 0.0
      %2615 = vst.msk [vmem:[#allocation2 + $0x8] sm:$0xff] %vm481, %v2606
      %2616 = vst.msk [vmem:[#allocation2 + $0x18] sm:$0xff] %vm481, %v2607
      %2617 = vst.msk [vmem:[#allocation2 + $0x28] sm:$0xff] %vm481, %v2608
      %2618 = vst.msk [vmem:[#allocation2 + $0x38] sm:$0xff] %vm481, %v2609
      %2619 = vst.msk [vmem:[#allocation2 + $0x48] sm:$0xff] %vm481, %v2610
      %2620 = vst.msk [vmem:[#allocation2 + $0x58] sm:$0xff] %vm481, %v2611
      %2621 = vst.msk [vmem:[#allocation2 + $0x68] sm:$0xff] %vm481, %v2612
      %2622 = vst.msk [vmem:[#allocation2 + $0x78] sm:$0xff] %vm481, %v2613
      %2623 = vst.msk [vmem:[#allocation2 + $0x88] sm:$0xff] %vm481, %v2614
      %2624 = vst.msk [vmem:[#allocation2 + $0x98] sm:$0xff] %vm481, %v788
      %s2625 = scalar_lea.vmem %s3, 2
      %v2626 = vld [vmem:[%s2625] sm:$0x1]
      %v2627 = vld [vmem:[#allocation2] sm:$0xff]
      %v2628 = vld [vmem:[#allocation2 + $0x8] sm:$0xff]
      %v2629 = vld [vmem:[#allocation2 + $0x10] sm:$0xff]
      %v2630 = vld [vmem:[#allocation2 + $0x18] sm:$0xff]
      %v2631 = vld [vmem:[#allocation2 + $0x20] sm:$0xff]
      %v2632 = vld [vmem:[#allocation2 + $0x28] sm:$0xff]
      %v2633 = vld [vmem:[#allocation2 + $0x30] sm:$0xff]
      %v2634 = vld [vmem:[#allocation2 + $0x38] sm:$0xff]
      %v2635 = vld [vmem:[#allocation2 + $0x40] sm:$0xff]
      %v2636 = vld [vmem:[#allocation2 + $0x48] sm:$0xff]
      %v2637 = vld [vmem:[#allocation2 + $0x50] sm:$0xff]
      %v2638 = vld [vmem:[#allocation2 + $0x58] sm:$0xff]
      %v2639 = vld [vmem:[#allocation2 + $0x60] sm:$0xff]
      %v2640 = vld [vmem:[#allocation2 + $0x68] sm:$0xff]
      %v2641 = vld [vmem:[#allocation2 + $0x70] sm:$0xff]
      %v2642 = vld [vmem:[#allocation2 + $0x78] sm:$0xff]
      %v2643 = vpack.c.bf16 %v2629, %v2627
      %v2644 = vpack.c.bf16 %v2630, %v2628
      %v2645 = vpack.c.bf16 %v2633, %v2631
      %v2646 = vpack.c.bf16 %v2634, %v2632
      %v2647 = vpack.c.bf16 %v2637, %v2635
      %v2648 = vpack.c.bf16 %v2638, %v2636
      %v2649 = vpack.c.bf16 %v2641, %v2639
      %v2650 = vpack.c.bf16 %v2642, %v2640
      %s2651 = scalar_lea.vmem %s2, 576
      %v2652 = vld [vmem:[%s2651] sm:$0xf]
      %v2653 = vld [vmem:[%s2651 + $0x4] sm:$0xf]
      %v2654 = vld [vmem:[%s2651 + $0x8] sm:$0xf]
      %v2655 = vld [vmem:[%s2651 + $0xc] sm:$0xf]
      %v2656 = vld [vmem:[%s2651 + $0x10] sm:$0xf]
      %v2657 = vld [vmem:[%s2651 + $0x14] sm:$0xf]
      %v2658 = vld [vmem:[%s2651 + $0x18] sm:$0xf]
      %v2659 = vld [vmem:[%s2651 + $0x1c] sm:$0xf]
      %v2660 = vld [vmem:[%s2651 + $0x20] sm:$0xf]
      %v2661 = vld [vmem:[%s2651 + $0x24] sm:$0xf]
      %v2662 = vld [vmem:[%s2651 + $0x28] sm:$0xf]
      %v2663 = vld [vmem:[%s2651 + $0x2c] sm:$0xf]
      %v2664 = vld [vmem:[%s2651 + $0x30] sm:$0xf]
      %v2665 = vld [vmem:[%s2651 + $0x34] sm:$0xf]
      %v2666 = vld [vmem:[%s2651 + $0x38] sm:$0xf]
      %v2667 = vld [vmem:[%s2651 + $0x3c] sm:$0xf]
      %v2668 = vld [vmem:[%s2651 + $0x40] sm:$0xf]
      %v2669 = vld [vmem:[%s2651 + $0x44] sm:$0xf]
      %v2670 = vld [vmem:[%s2651 + $0x48] sm:$0xf]
      %v2671 = vld [vmem:[%s2651 + $0x4c] sm:$0xf]
      %v2672 = vld [vmem:[%s2651 + $0x50] sm:$0xf]
      %v2673 = vld [vmem:[%s2651 + $0x54] sm:$0xf]
      %v2674 = vld [vmem:[%s2651 + $0x58] sm:$0xf]
      %v2675 = vld [vmem:[%s2651 + $0x5c] sm:$0xf]
      %v2700 = vunpack.c.l.b16 %v2652
      %v2701 = vunpack.c.l.b16 %v2653
      %v2702 = vunpack.c.l.b16 %v2654
      %v2703 = vunpack.c.l.b16 %v2655
      %v2704 = vunpack.c.l.b16 %v2656
      %v2705 = vunpack.c.l.b16 %v2657
      %v2706 = vunpack.c.l.b16 %v2658
      %v2707 = vunpack.c.l.b16 %v2659
      %v2708 = vunpack.c.l.b16 %v2660
      %v2709 = vunpack.c.l.b16 %v2661
      %v2710 = vunpack.c.l.b16 %v2662
      %v2711 = vunpack.c.l.b16 %v2663
      %v2712 = vunpack.c.l.b16 %v2664
      %v2713 = vunpack.c.l.b16 %v2665
      %v2714 = vunpack.c.l.b16 %v2666
      %v2715 = vunpack.c.l.b16 %v2667
      %v2716 = vunpack.c.l.b16 %v2668
      %v2717 = vunpack.c.l.b16 %v2669
      %v2718 = vunpack.c.l.b16 %v2670
      %v2719 = vunpack.c.l.b16 %v2671
      %v2720 = vunpack.c.l.b16 %v2672
      %v2721 = vunpack.c.l.b16 %v2673
      %v2722 = vunpack.c.l.b16 %v2674
      %v2723 = vunpack.c.l.b16 %v2675
      %v2724 = vpack.c.b16 %v2701, %v2700
      %v2725 = vpack.c.b16 %v2703, %v2702
      %v2726 = vpack.c.b16 %v2705, %v2704
      %v2727 = vpack.c.b16 %v2707, %v2706
      %v2728 = vpack.c.b16 %v2709, %v2708
      %v2729 = vpack.c.b16 %v2711, %v2710
      %v2730 = vpack.c.b16 %v2713, %v2712
      %v2731 = vpack.c.b16 %v2715, %v2714
      %v2732 = vpack.c.b16 %v2717, %v2716
      %v2733 = vpack.c.b16 %v2719, %v2718
      %v2734 = vpack.c.b16 %v2721, %v2720
      %v2735 = vpack.c.b16 %v2723, %v2722
      %v2749 = vsel %vm481, %v2644, 0
      %v2752 = vsel %vm481, %v2646, 0
      %v2755 = vsel %vm481, %v2648, 0
      %v2758 = vsel %vm481, %v2650, 0
      %2760 = vmatpush.bf16.msra.mxu0 %v2731
      %2761 = vmatpush.bf16.msra.mxu0 %v2730
      %2762 = vmatpush.bf16.msra.mxu0 %v2729
      %2763 = vmatpush.bf16.msra.mxu0 %v2728
      %2764 = vmatpush.bf16.msra.mxu0 %v2727
      %2765 = vmatpush.bf16.msra.mxu0 %v2726
      %2766 = vmatpush.bf16.msra.mxu0 %v2725
      %2767 = vmatpush.bf16.msra.mxu0 %v2724
      %2768 = vmatmul.bf16.gmra.mxu0 %v2643
      %v2769 = vpop.f32.mrf.mxu0
      %v2770 = vadd.f32 0.0, %v2769
      %v2771 = vpop.f32.mrf.mxu0
      %v2772 = vadd.f32 0.0, %v2771
      %2773 = vmatmul.bf16.gmra.mxu0 %v2645
      %v2774 = vpop.f32.mrf.mxu0
      %v2775 = vadd.f32 0.0, %v2774
      %v2776 = vpop.f32.mrf.mxu0
      %v2777 = vadd.f32 0.0, %v2776
      %2778 = vmatmul.bf16.gmra.mxu0 %v2647
      %v2779 = vpop.f32.mrf.mxu0
      %v2780 = vadd.f32 0.0, %v2779
      %v2781 = vpop.f32.mrf.mxu0
      %v2782 = vadd.f32 0.0, %v2781
      %2783 = vmatmul.bf16.gmra.mxu0 %v2649
      %v2784 = vpop.f32.mrf.mxu0
      %v2785 = vadd.f32 0.0, %v2784
      %v2786 = vpop.f32.mrf.mxu0
      %v2787 = vadd.f32 0.0, %v2786
      %2788 = vdwg.mxu0
      %2789 = vmatpush.bf16.msra.mxu0 0
      %2790 = vmatpush.bf16.msra.mxu0 0
      %2791 = vmatpush.bf16.msra.mxu0 0
      %2792 = vmatpush.bf16.msra.mxu0 0
      %2793 = vmatpush.bf16.msra.mxu0 %v2735
      %2794 = vmatpush.bf16.msra.mxu0 %v2734
      %2795 = vmatpush.bf16.msra.mxu0 %v2733
      %2796 = vmatpush.bf16.msra.mxu0 %v2732
      %2797 = vmatmul.bf16.gmra.mxu0 %v2749
      %v2798 = vpop.f32.mrf.mxu0
      %v2799 = vadd.f32 %v2770, %v2798
      %v2800 = vpop.f32.mrf.mxu0
      %v2801 = vadd.f32 %v2772, %v2800
      %2802 = vmatmul.bf16.gmra.mxu0 %v2752
      %v2803 = vpop.f32.mrf.mxu0
      %v2804 = vadd.f32 %v2775, %v2803
      %v2805 = vpop.f32.mrf.mxu0
      %v2806 = vadd.f32 %v2777, %v2805
      %2807 = vmatmul.bf16.gmra.mxu0 %v2755
      %v2808 = vpop.f32.mrf.mxu0
      %v2809 = vadd.f32 %v2780, %v2808
      %v2810 = vpop.f32.mrf.mxu0
      %v2811 = vadd.f32 %v2782, %v2810
      %2812 = vmatmul.bf16.gmra.mxu0 %v2758
      %v2813 = vpop.f32.mrf.mxu0
      %v2814 = vadd.f32 %v2785, %v2813
      %v2815 = vpop.f32.mrf.mxu0
      %v2816 = vadd.f32 %v2787, %v2815
      %2817 = vdwg.mxu0
      %v2819 = vperm.slane %v2626, 0
      %v2821 = vadd.f32 %v2819, %v2799
      %v2822 = vadd.f32 %v2819, %v2801
      %v2823 = vadd.f32 %v2819, %v2804
      %v2824 = vadd.f32 %v2819, %v2806
      %v2825 = vadd.f32 %v2819, %v2809
      %v2826 = vadd.f32 %v2819, %v2811
      %v2827 = vadd.f32 %v2819, %v2814
      %v2828 = vadd.f32 %v2819, %v2816
      %v2829 = vld [vmem:[#allocation2 + $0x10] sm:$0xff]
      %v2830 = vld [vmem:[#allocation2 + $0x18] sm:$0xff]
      %v2831 = vld [vmem:[#allocation2 + $0x20] sm:$0xff]
      %v2832 = vld [vmem:[#allocation2 + $0x28] sm:$0xff]
      %v2833 = vld [vmem:[#allocation2 + $0x30] sm:$0xff]
      %v2834 = vld [vmem:[#allocation2 + $0x38] sm:$0xff]
      %v2835 = vld [vmem:[#allocation2 + $0x40] sm:$0xff]
      %v2836 = vld [vmem:[#allocation2 + $0x48] sm:$0xff]
      %v2837 = vld [vmem:[#allocation2 + $0x50] sm:$0xff]
      %v2838 = vld [vmem:[#allocation2 + $0x58] sm:$0xff]
      %v2839 = vld [vmem:[#allocation2 + $0x60] sm:$0xff]
      %v2840 = vld [vmem:[#allocation2 + $0x68] sm:$0xff]
      %v2841 = vld [vmem:[#allocation2 + $0x70] sm:$0xff]
      %v2842 = vld [vmem:[#allocation2 + $0x78] sm:$0xff]
      %v2843 = vld [vmem:[#allocation2 + $0x80] sm:$0xff]
      %v2844 = vld [vmem:[#allocation2 + $0x88] sm:$0xff]
      %v2845 = vpack.c.bf16 %v2831, %v2829
      %v2846 = vpack.c.bf16 %v2832, %v2830
      %v2847 = vpack.c.bf16 %v2835, %v2833
      %v2848 = vpack.c.bf16 %v2836, %v2834
      %v2849 = vpack.c.bf16 %v2839, %v2837
      %v2850 = vpack.c.bf16 %v2840, %v2838
      %v2851 = vpack.c.bf16 %v2843, %v2841
      %v2852 = vpack.c.bf16 %v2844, %v2842
      %v2853 = vld [vmem:[%s2651 + $0x60] sm:$0xf]
      %v2854 = vld [vmem:[%s2651 + $0x64] sm:$0xf]
      %v2855 = vld [vmem:[%s2651 + $0x68] sm:$0xf]
      %v2856 = vld [vmem:[%s2651 + $0x6c] sm:$0xf]
      %v2857 = vld [vmem:[%s2651 + $0x70] sm:$0xf]
      %v2858 = vld [vmem:[%s2651 + $0x74] sm:$0xf]
      %v2859 = vld [vmem:[%s2651 + $0x78] sm:$0xf]
      %v2860 = vld [vmem:[%s2651 + $0x7c] sm:$0xf]
      %v2861 = vld [vmem:[%s2651 + $0x80] sm:$0xf]
      %v2862 = vld [vmem:[%s2651 + $0x84] sm:$0xf]
      %v2863 = vld [vmem:[%s2651 + $0x88] sm:$0xf]
      %v2864 = vld [vmem:[%s2651 + $0x8c] sm:$0xf]
      %v2865 = vld [vmem:[%s2651 + $0x90] sm:$0xf]
      %v2866 = vld [vmem:[%s2651 + $0x94] sm:$0xf]
      %v2867 = vld [vmem:[%s2651 + $0x98] sm:$0xf]
      %v2868 = vld [vmem:[%s2651 + $0x9c] sm:$0xf]
      %v2869 = vld [vmem:[%s2651 + $0xa0] sm:$0xf]
      %v2870 = vld [vmem:[%s2651 + $0xa4] sm:$0xf]
      %v2871 = vld [vmem:[%s2651 + $0xa8] sm:$0xf]
      %v2872 = vld [vmem:[%s2651 + $0xac] sm:$0xf]
      %v2873 = vld [vmem:[%s2651 + $0xb0] sm:$0xf]
      %v2874 = vld [vmem:[%s2651 + $0xb4] sm:$0xf]
      %v2875 = vld [vmem:[%s2651 + $0xb8] sm:$0xf]
      %v2876 = vld [vmem:[%s2651 + $0xbc] sm:$0xf]
      %v2901 = vunpack.c.l.b16 %v2853
      %v2902 = vunpack.c.l.b16 %v2854
      %v2903 = vunpack.c.l.b16 %v2855
      %v2904 = vunpack.c.l.b16 %v2856
      %v2905 = vunpack.c.l.b16 %v2857
      %v2906 = vunpack.c.l.b16 %v2858
      %v2907 = vunpack.c.l.b16 %v2859
      %v2908 = vunpack.c.l.b16 %v2860
      %v2909 = vunpack.c.l.b16 %v2861
      %v2910 = vunpack.c.l.b16 %v2862
      %v2911 = vunpack.c.l.b16 %v2863
      %v2912 = vunpack.c.l.b16 %v2864
      %v2913 = vunpack.c.l.b16 %v2865
      %v2914 = vunpack.c.l.b16 %v2866
      %v2915 = vunpack.c.l.b16 %v2867
      %v2916 = vunpack.c.l.b16 %v2868
      %v2917 = vunpack.c.l.b16 %v2869
      %v2918 = vunpack.c.l.b16 %v2870
      %v2919 = vunpack.c.l.b16 %v2871
      %v2920 = vunpack.c.l.b16 %v2872
      %v2921 = vunpack.c.l.b16 %v2873
      %v2922 = vunpack.c.l.b16 %v2874
      %v2923 = vunpack.c.l.b16 %v2875
      %v2924 = vunpack.c.l.b16 %v2876
      %v2925 = vpack.c.b16 %v2902, %v2901
      %v2926 = vpack.c.b16 %v2904, %v2903
      %v2927 = vpack.c.b16 %v2906, %v2905
      %v2928 = vpack.c.b16 %v2908, %v2907
      %v2929 = vpack.c.b16 %v2910, %v2909
      %v2930 = vpack.c.b16 %v2912, %v2911
      %v2931 = vpack.c.b16 %v2914, %v2913
      %v2932 = vpack.c.b16 %v2916, %v2915
      %v2933 = vpack.c.b16 %v2918, %v2917
      %v2934 = vpack.c.b16 %v2920, %v2919
      %v2935 = vpack.c.b16 %v2922, %v2921
      %v2936 = vpack.c.b16 %v2924, %v2923
      %v2950 = vsel %vm481, %v2846, 0
      %v2953 = vsel %vm481, %v2848, 0
      %v2956 = vsel %vm481, %v2850, 0
      %v2959 = vsel %vm481, %v2852, 0
      %2961 = vmatpush.bf16.msra.mxu0 %v2932
      %2962 = vmatpush.bf16.msra.mxu0 %v2931
      %2963 = vmatpush.bf16.msra.mxu0 %v2930
      %2964 = vmatpush.bf16.msra.mxu0 %v2929
      %2965 = vmatpush.bf16.msra.mxu0 %v2928
      %2966 = vmatpush.bf16.msra.mxu0 %v2927
      %2967 = vmatpush.bf16.msra.mxu0 %v2926
      %2968 = vmatpush.bf16.msra.mxu0 %v2925
      %2969 = vmatmul.bf16.gmra.mxu0 %v2845
      %v2970 = vpop.f32.mrf.mxu0
      %v2971 = vadd.f32 0.0, %v2970
      %v2972 = vpop.f32.mrf.mxu0
      %v2973 = vadd.f32 0.0, %v2972
      %2974 = vmatmul.bf16.gmra.mxu0 %v2847
      %v2975 = vpop.f32.mrf.mxu0
      %v2976 = vadd.f32 0.0, %v2975
      %v2977 = vpop.f32.mrf.mxu0
      %v2978 = vadd.f32 0.0, %v2977
      %2979 = vmatmul.bf16.gmra.mxu0 %v2849
      %v2980 = vpop.f32.mrf.mxu0
      %v2981 = vadd.f32 0.0, %v2980
      %v2982 = vpop.f32.mrf.mxu0
      %v2983 = vadd.f32 0.0, %v2982
      %2984 = vmatmul.bf16.gmra.mxu0 %v2851
      %v2985 = vpop.f32.mrf.mxu0
      %v2986 = vadd.f32 0.0, %v2985
      %v2987 = vpop.f32.mrf.mxu0
      %v2988 = vadd.f32 0.0, %v2987
      %2989 = vdwg.mxu0
      %2990 = vmatpush.bf16.msra.mxu0 0
      %2991 = vmatpush.bf16.msra.mxu0 0
      %2992 = vmatpush.bf16.msra.mxu0 0
      %2993 = vmatpush.bf16.msra.mxu0 0
      %2994 = vmatpush.bf16.msra.mxu0 %v2936
      %2995 = vmatpush.bf16.msra.mxu0 %v2935
      %2996 = vmatpush.bf16.msra.mxu0 %v2934
      %2997 = vmatpush.bf16.msra.mxu0 %v2933
      %2998 = vmatmul.bf16.gmra.mxu0 %v2950
      %v2999 = vpop.f32.mrf.mxu0
      %v3000 = vadd.f32 %v2971, %v2999
      %v3001 = vpop.f32.mrf.mxu0
      %v3002 = vadd.f32 %v2973, %v3001
      %3003 = vmatmul.bf16.gmra.mxu0 %v2953
      %v3004 = vpop.f32.mrf.mxu0
      %v3005 = vadd.f32 %v2976, %v3004
      %v3006 = vpop.f32.mrf.mxu0
      %v3007 = vadd.f32 %v2978, %v3006
      %3008 = vmatmul.bf16.gmra.mxu0 %v2956
      %v3009 = vpop.f32.mrf.mxu0
      %v3010 = vadd.f32 %v2981, %v3009
      %v3011 = vpop.f32.mrf.mxu0
      %v3012 = vadd.f32 %v2983, %v3011
      %3013 = vmatmul.bf16.gmra.mxu0 %v2959
      %v3014 = vpop.f32.mrf.mxu0
      %v3015 = vadd.f32 %v2986, %v3014
      %v3016 = vpop.f32.mrf.mxu0
      %v3017 = vadd.f32 %v2988, %v3016
      %3018 = vdwg.mxu0
      %v3019 = vadd.f32 %v2821, %v3000
      %v3020 = vadd.f32 %v2822, %v3002
      %v3021 = vadd.f32 %v2823, %v3005
      %v3022 = vadd.f32 %v2824, %v3007
      %v3023 = vadd.f32 %v2825, %v3010
      %v3024 = vadd.f32 %v2826, %v3012
      %v3025 = vadd.f32 %v2827, %v3015
      %v3026 = vadd.f32 %v2828, %v3017
      %v3027 = vld [vmem:[#allocation2 + $0x20] sm:$0xff]
      %v3028 = vld [vmem:[#allocation2 + $0x28] sm:$0xff]
      %v3029 = vld [vmem:[#allocation2 + $0x30] sm:$0xff]
      %v3030 = vld [vmem:[#allocation2 + $0x38] sm:$0xff]
      %v3031 = vld [vmem:[#allocation2 + $0x40] sm:$0xff]
      %v3032 = vld [vmem:[#allocation2 + $0x48] sm:$0xff]
      %v3033 = vld [vmem:[#allocation2 + $0x50] sm:$0xff]
      %v3034 = vld [vmem:[#allocation2 + $0x58] sm:$0xff]
      %v3035 = vld [vmem:[#allocation2 + $0x60] sm:$0xff]
      %v3036 = vld [vmem:[#allocation2 + $0x68] sm:$0xff]
      %v3037 = vld [vmem:[#allocation2 + $0x70] sm:$0xff]
      %v3038 = vld [vmem:[#allocation2 + $0x78] sm:$0xff]
      %v3039 = vld [vmem:[#allocation2 + $0x80] sm:$0xff]
      %v3040 = vld [vmem:[#allocation2 + $0x88] sm:$0xff]
      %v3041 = vld [vmem:[#allocation2 + $0x90] sm:$0xff]
      %v3042 = vld [vmem:[#allocation2 + $0x98] sm:$0xff]
      %v3043 = vpack.c.bf16 %v3029, %v3027
      %v3044 = vpack.c.bf16 %v3030, %v3028
      %v3045 = vpack.c.bf16 %v3033, %v3031
      %v3046 = vpack.c.bf16 %v3034, %v3032
      %v3047 = vpack.c.bf16 %v3037, %v3035
      %v3048 = vpack.c.bf16 %v3038, %v3036
      %v3049 = vpack.c.bf16 %v3041, %v3039
      %v3050 = vpack.c.bf16 %v3042, %v3040
      %v3051 = vld [vmem:[%s2651 + $0xc0] sm:$0xf]
      %v3052 = vld [vmem:[%s2651 + $0xc4] sm:$0xf]
      %v3053 = vld [vmem:[%s2651 + $0xc8] sm:$0xf]
      %v3054 = vld [vmem:[%s2651 + $0xcc] sm:$0xf]
      %v3055 = vld [vmem:[%s2651 + $0xd0] sm:$0xf]
      %v3056 = vld [vmem:[%s2651 + $0xd4] sm:$0xf]
      %v3057 = vld [vmem:[%s2651 + $0xd8] sm:$0xf]
      %v3058 = vld [vmem:[%s2651 + $0xdc] sm:$0xf]
      %v3059 = vld [vmem:[%s2651 + $0xe0] sm:$0xf]
      %v3060 = vld [vmem:[%s2651 + $0xe4] sm:$0xf]
      %v3061 = vld [vmem:[%s2651 + $0xe8] sm:$0xf]
      %v3062 = vld [vmem:[%s2651 + $0xec] sm:$0xf]
      %v3063 = vld [vmem:[%s2651 + $0xf0] sm:$0xf]
      %v3064 = vld [vmem:[%s2651 + $0xf4] sm:$0xf]
      %v3065 = vld [vmem:[%s2651 + $0xf8] sm:$0xf]
      %v3066 = vld [vmem:[%s2651 + $0xfc] sm:$0xf]
      %v3067 = vld [vmem:[%s2651 + $0x100] sm:$0xf]
      %v3068 = vld [vmem:[%s2651 + $0x104] sm:$0xf]
      %v3069 = vld [vmem:[%s2651 + $0x108] sm:$0xf]
      %v3070 = vld [vmem:[%s2651 + $0x10c] sm:$0xf]
      %v3071 = vld [vmem:[%s2651 + $0x110] sm:$0xf]
      %v3072 = vld [vmem:[%s2651 + $0x114] sm:$0xf]
      %v3073 = vld [vmem:[%s2651 + $0x118] sm:$0xf]
      %v3074 = vld [vmem:[%s2651 + $0x11c] sm:$0xf]
      %v3099 = vunpack.c.l.b16 %v3051
      %v3100 = vunpack.c.l.b16 %v3052
      %v3101 = vunpack.c.l.b16 %v3053
      %v3102 = vunpack.c.l.b16 %v3054
      %v3103 = vunpack.c.l.b16 %v3055
      %v3104 = vunpack.c.l.b16 %v3056
      %v3105 = vunpack.c.l.b16 %v3057
      %v3106 = vunpack.c.l.b16 %v3058
      %v3107 = vunpack.c.l.b16 %v3059
      %v3108 = vunpack.c.l.b16 %v3060
      %v3109 = vunpack.c.l.b16 %v3061
      %v3110 = vunpack.c.l.b16 %v3062
      %v3111 = vunpack.c.l.b16 %v3063
      %v3112 = vunpack.c.l.b16 %v3064
      %v3113 = vunpack.c.l.b16 %v3065
      %v3114 = vunpack.c.l.b16 %v3066
      %v3115 = vunpack.c.l.b16 %v3067
      %v3116 = vunpack.c.l.b16 %v3068
      %v3117 = vunpack.c.l.b16 %v3069
      %v3118 = vunpack.c.l.b16 %v3070
      %v3119 = vunpack.c.l.b16 %v3071
      %v3120 = vunpack.c.l.b16 %v3072
      %v3121 = vunpack.c.l.b16 %v3073
      %v3122 = vunpack.c.l.b16 %v3074
      %v3123 = vpack.c.b16 %v3100, %v3099
      %v3124 = vpack.c.b16 %v3102, %v3101
      %v3125 = vpack.c.b16 %v3104, %v3103
      %v3126 = vpack.c.b16 %v3106, %v3105
      %v3127 = vpack.c.b16 %v3108, %v3107
      %v3128 = vpack.c.b16 %v3110, %v3109
      %v3129 = vpack.c.b16 %v3112, %v3111
      %v3130 = vpack.c.b16 %v3114, %v3113
      %v3131 = vpack.c.b16 %v3116, %v3115
      %v3132 = vpack.c.b16 %v3118, %v3117
      %v3133 = vpack.c.b16 %v3120, %v3119
      %v3134 = vpack.c.b16 %v3122, %v3121
      %v3148 = vsel %vm481, %v3044, 0
      %v3151 = vsel %vm481, %v3046, 0
      %v3154 = vsel %vm481, %v3048, 0
      %v3157 = vsel %vm481, %v3050, 0
      %3159 = vmatpush.bf16.msra.mxu0 %v3130
      %3160 = vmatpush.bf16.msra.mxu0 %v3129
      %3161 = vmatpush.bf16.msra.mxu0 %v3128
      %3162 = vmatpush.bf16.msra.mxu0 %v3127
      %3163 = vmatpush.bf16.msra.mxu0 %v3126
      %3164 = vmatpush.bf16.msra.mxu0 %v3125
      %3165 = vmatpush.bf16.msra.mxu0 %v3124
      %3166 = vmatpush.bf16.msra.mxu0 %v3123
      %3167 = vmatmul.bf16.gmra.mxu0 %v3043
      %v3168 = vpop.f32.mrf.mxu0
      %v3169 = vadd.f32 0.0, %v3168
      %v3170 = vpop.f32.mrf.mxu0
      %v3171 = vadd.f32 0.0, %v3170
      %3172 = vmatmul.bf16.gmra.mxu0 %v3045
      %v3173 = vpop.f32.mrf.mxu0
      %v3174 = vadd.f32 0.0, %v3173
      %v3175 = vpop.f32.mrf.mxu0
      %v3176 = vadd.f32 0.0, %v3175
      %3177 = vmatmul.bf16.gmra.mxu0 %v3047
      %v3178 = vpop.f32.mrf.mxu0
      %v3179 = vadd.f32 0.0, %v3178
      %v3180 = vpop.f32.mrf.mxu0
      %v3181 = vadd.f32 0.0, %v3180
      %3182 = vmatmul.bf16.gmra.mxu0 %v3049
      %v3183 = vpop.f32.mrf.mxu0
      %v3184 = vadd.f32 0.0, %v3183
      %v3185 = vpop.f32.mrf.mxu0
      %v3186 = vadd.f32 0.0, %v3185
      %3187 = vdwg.mxu0
      %3188 = vmatpush.bf16.msra.mxu0 0
      %3189 = vmatpush.bf16.msra.mxu0 0
      %3190 = vmatpush.bf16.msra.mxu0 0
      %3191 = vmatpush.bf16.msra.mxu0 0
      %3192 = vmatpush.bf16.msra.mxu0 %v3134
      %3193 = vmatpush.bf16.msra.mxu0 %v3133
      %3194 = vmatpush.bf16.msra.mxu0 %v3132
      %3195 = vmatpush.bf16.msra.mxu0 %v3131
      %3196 = vmatmul.bf16.gmra.mxu0 %v3148
      %v3197 = vpop.f32.mrf.mxu0
      %v3198 = vadd.f32 %v3169, %v3197
      %v3199 = vpop.f32.mrf.mxu0
      %v3200 = vadd.f32 %v3171, %v3199
      %3201 = vmatmul.bf16.gmra.mxu0 %v3151
      %v3202 = vpop.f32.mrf.mxu0
      %v3203 = vadd.f32 %v3174, %v3202
      %v3204 = vpop.f32.mrf.mxu0
      %v3205 = vadd.f32 %v3176, %v3204
      %3206 = vmatmul.bf16.gmra.mxu0 %v3154
      %v3207 = vpop.f32.mrf.mxu0
      %v3208 = vadd.f32 %v3179, %v3207
      %v3209 = vpop.f32.mrf.mxu0
      %v3210 = vadd.f32 %v3181, %v3209
      %3211 = vmatmul.bf16.gmra.mxu0 %v3157
      %v3212 = vpop.f32.mrf.mxu0
      %v3213 = vadd.f32 %v3184, %v3212
      %v3214 = vpop.f32.mrf.mxu0
      %v3215 = vadd.f32 %v3186, %v3214
      %3216 = vdwg.mxu0
      %v3217 = vadd.f32 %v3019, %v3198
      %v3218 = vadd.f32 %v3020, %v3200
      %v3219 = vadd.f32 %v3021, %v3203
      %v3220 = vadd.f32 %v3022, %v3205
      %v3221 = vadd.f32 %v3023, %v3208
      %v3222 = vadd.f32 %v3024, %v3210
      %v3223 = vadd.f32 %v3025, %v3213
      %v3224 = vadd.f32 %v3026, %v3215
      %s3225 = scalar_lea.vmem %s1, 6
      %v3226 = vld [vmem:[%s3225] sm:$0x1]
      %s3227 = scalar_lea.vmem %s1, 7
      %v3228 = vld [vmem:[%s3227] sm:$0x1]
      %v3229 = vsel %vm481, %v3217, 0.0
      %v3230 = vsel %vm481, %v3218, 0.0
      %v3231 = vadd.f32 %v3229, %v3230
      %v3232 = vsel %vm481, %v3219, 0.0
      %v3233 = vadd.f32 %v3231, %v3232
      %v3234 = vsel %vm481, %v3220, 0.0
      %v3235 = vadd.f32 %v3233, %v3234
      %v3236 = vsel %vm481, %v3221, 0.0
      %v3237 = vadd.f32 %v3235, %v3236
      %v3238 = vsel %vm481, %v3222, 0.0
      %v3239 = vadd.f32 %v3237, %v3238
      %v3240 = vsel %vm481, %v3223, 0.0
      %v3241 = vadd.f32 %v3239, %v3240
      %v3242 = vsel %vm481, %v3224, 0.0
      %v3243 = vadd.f32 %v3241, %v3242
      %v3244 = vrot.slane %v3243, 4
      %v3245 = vadd.f32 %v3243, %v3244
      %v3246 = vrot.slane %v3245, 2
      %v3247 = vadd.f32 %v3245, %v3246
      %v3248 = vrot.slane %v3247, 1
      %v3249 = vadd.f32 %v3247, %v3248
      %v3250 = vmul.f32 %v3217, %v3217
      %v3251 = vmul.f32 %v3218, %v3218
      %v3252 = vmul.f32 %v3219, %v3219
      %v3253 = vmul.f32 %v3220, %v3220
      %v3254 = vmul.f32 %v3221, %v3221
      %v3255 = vmul.f32 %v3222, %v3222
      %v3256 = vmul.f32 %v3223, %v3223
      %v3257 = vmul.f32 %v3224, %v3224
      %v3258 = vsel %vm481, %v3250, 0.0
      %v3259 = vsel %vm481, %v3251, 0.0
      %v3260 = vadd.f32 %v3258, %v3259
      %v3261 = vsel %vm481, %v3252, 0.0
      %v3262 = vadd.f32 %v3260, %v3261
      %v3263 = vsel %vm481, %v3253, 0.0
      %v3264 = vadd.f32 %v3262, %v3263
      %v3265 = vsel %vm481, %v3254, 0.0
      %v3266 = vadd.f32 %v3264, %v3265
      %v3267 = vsel %vm481, %v3255, 0.0
      %v3268 = vadd.f32 %v3266, %v3267
      %v3269 = vsel %vm481, %v3256, 0.0
      %v3270 = vadd.f32 %v3268, %v3269
      %v3271 = vsel %vm481, %v3257, 0.0
      %v3272 = vadd.f32 %v3270, %v3271
      %v3273 = vrot.slane %v3272, 4
      %v3274 = vadd.f32 %v3272, %v3273
      %v3275 = vrot.slane %v3274, 2
      %v3276 = vadd.f32 %v3274, %v3275
      %v3277 = vrot.slane %v3276, 1
      %v3278 = vadd.f32 %v3276, %v3277
      %v3279 = vsel %vm532, %v3249, %v3278
      %v3281 = vsel %vm481, %v3279, 0
      %3283 = vmatpush.msra.mxu0 0.0
      %3284 = vmatpush.msra.mxu0 0.0
      %3285 = vmatpush.msra.mxu0 0.0
      %3286 = vmatpush.msra.mxu0 0.0
      %3287 = vmatpush.msra.mxu0 0.0
      %3288 = vmatpush.msra.mxu0 0.0
      %3289 = vmatpush.msra.mxu0 0.0
      %3290 = vmatpush.msra.mxu0 0.0
      %3291 = vmatpush.msra.mxu0 %v322
      %3292 = vmatpush.msra.mxu0 %v321
      %3293 = vmatpush.msra.mxu0 %v320
      %3294 = vmatpush.msra.mxu0 %v319
      %3295 = vmatpush.msra.mxu0 %v318
      %3296 = vmatpush.msra.mxu0 %v317
      %3297 = vmatpush.msra.mxu0 %v316
      %3298 = vmatpush.msra.mxu0 %v315
      %3299 = vmatmul.f32.gmra.mxu0 %v3281
      %v3300 = vpop.f32.mrf.mxu0
      %v3301 = vadd.f32 0.0, %v3300
      %3302 = vdwg.mxu0
      %v3303 = vmul.f32 %v3301, 0.0078125
      %v3304 = vmul.f32 %v3303, %v3303
      %v3306 = vrot.slane %v3304, 7
      %v3308 = vsub.f32 %v3303, %v3306
      %v3309 = vadd.f32 %v3308, 1e-05
      %v3310 = vrsqrt.pop %v3309
      %v3311 = vmul.f32 %v3310, %v3309
      %v3312 = vmul.f32 %v3311, %v3310
      %v3313 = vmul.f32 0.5, %v3312
      %v3314 = vsub.f32 1.5, %v3313
      %v3315 = vmul.f32 %v3310, %v3314
      %vm3316 = vweird.f32 %v3309
      %vm3317 = vweird.f32 %v3310
      %vm3318 = vmor %vm3316, %vm3317
      %v3319 = vsel %vm3318, %v3310, %v3315
      %v3320 = vsel %vm532, %v3303, %v3319
      %v3322 = vsel %vm575, %v3320, 0
      %3324 = vmatpush.msra.mxu0 0.0
      %3325 = vmatpush.msra.mxu0 0.0
      %3326 = vmatpush.msra.mxu0 0.0
      %3327 = vmatpush.msra.mxu0 0.0
      %3328 = vmatpush.msra.mxu0 0.0
      %3329 = vmatpush.msra.mxu0 0.0
      %3330 = vmatpush.msra.mxu0 0.0
      %3331 = vmatpush.msra.mxu0 0.0
      %3332 = vmatpush.msra.mxu0 0.0
      %3333 = vmatpush.msra.mxu0 0.0
      %3334 = vmatpush.msra.mxu0 0.0
      %3335 = vmatpush.msra.mxu0 0.0
      %3336 = vmatpush.msra.mxu0 %v326
      %3337 = vmatpush.msra.mxu0 %v325
      %3338 = vmatpush.msra.mxu0 %v324
      %3339 = vmatpush.msra.mxu0 %v323
      %3340 = vmatmul.f32.gmra.mxu0 %v3322
      %v3341 = vpop.f32.mrf.mxu0
      %v3342 = vadd.f32 0.0, %v3341
      %3343 = vdwg.mxu0
      %v3345 = vperm.slane %v3226, 0
      %v3347 = vmul.f32 %v3342, %v3345
      %v3349 = vrot.slane %v3347, 1
      %v3351 = vmul.f32 %v3342, %v3349
      %v3352 = vsub.f32 %v3228, %v3351
      %v3353 = vperm.slane %v3347, 1
      %v3354 = vmul.f32 %v3217, %v3353
      %v3355 = vmul.f32 %v3218, %v3353
      %v3356 = vmul.f32 %v3219, %v3353
      %v3357 = vmul.f32 %v3220, %v3353
      %v3358 = vmul.f32 %v3221, %v3353
      %v3359 = vmul.f32 %v3222, %v3353
      %v3360 = vmul.f32 %v3223, %v3353
      %v3361 = vmul.f32 %v3224, %v3353
      %v3363 = vperm.slane %v3352, 0
      %v3365 = vadd.f32 %v3354, %v3363
      %v3366 = vadd.f32 %v3355, %v3363
      %v3367 = vadd.f32 %v3356, %v3363
      %v3368 = vadd.f32 %v3357, %v3363
      %v3369 = vadd.f32 %v3358, %v3363
      %v3370 = vadd.f32 %v3359, %v3363
      %v3371 = vadd.f32 %v3360, %v3363
      %v3372 = vadd.f32 %v3361, %v3363
      %v3373 = vsub.f32 0.0, %v3365
      %v3374 = vsub.f32 0.0, %v3366
      %v3375 = vsub.f32 0.0, %v3367
      %v3376 = vsub.f32 0.0, %v3368
      %v3377 = vsub.f32 0.0, %v3369
      %v3378 = vsub.f32 0.0, %v3370
      %v3379 = vsub.f32 0.0, %v3371
      %v3380 = vsub.f32 0.0, %v3372
      %v3381 = vmul.f32 %v3373, 1.442695
      %v3382 = vpow.pop %v3381
      %v3383 = vmul.f32 %v3374, 1.442695
      %v3384 = vpow.pop %v3383
      %v3385 = vmul.f32 %v3375, 1.442695
      %v3386 = vpow.pop %v3385
      %v3387 = vmul.f32 %v3376, 1.442695
      %v3388 = vpow.pop %v3387
      %v3389 = vmul.f32 %v3377, 1.442695
      %v3390 = vpow.pop %v3389
      %v3391 = vmul.f32 %v3378, 1.442695
      %v3392 = vpow.pop %v3391
      %v3393 = vmul.f32 %v3379, 1.442695
      %v3394 = vpow.pop %v3393
      %v3395 = vmul.f32 %v3380, 1.442695
      %v3396 = vpow.pop %v3395
      %v3397 = vadd.f32 %v3382, 1.0
      %v3398 = vadd.f32 %v3384, 1.0
      %v3399 = vadd.f32 %v3386, 1.0
      %v3400 = vadd.f32 %v3388, 1.0
      %v3401 = vadd.f32 %v3390, 1.0
      %v3402 = vadd.f32 %v3392, 1.0
      %v3403 = vadd.f32 %v3394, 1.0
      %v3404 = vadd.f32 %v3396, 1.0
      %v3405 = vrcp.pop %v3397
      %v3406 = vrcp.pop %v3398
      %v3407 = vrcp.pop %v3399
      %v3408 = vrcp.pop %v3400
      %v3409 = vrcp.pop %v3401
      %v3410 = vrcp.pop %v3402
      %v3411 = vrcp.pop %v3403
      %v3412 = vrcp.pop %v3404
      %v3413 = vmul.f32 %v3365, %v3405
      %v3414 = vmul.f32 %v3366, %v3406
      %v3415 = vmul.f32 %v3367, %v3407
      %v3416 = vmul.f32 %v3368, %v3408
      %v3417 = vmul.f32 %v3369, %v3409
      %v3418 = vmul.f32 %v3370, %v3410
      %v3419 = vmul.f32 %v3371, %v3411
      %v3420 = vmul.f32 %v3372, %v3412
      %v3421 = vrot.slane %v3413, 7
      %v3422 = vrot.slane %v3414, 7
      %v3423 = vrot.slane %v3415, 7
      %v3424 = vrot.slane %v3416, 7
      %v3425 = vrot.slane %v3417, 7
      %v3426 = vrot.slane %v3418, 7
      %v3427 = vrot.slane %v3419, 7
      %v3428 = vrot.slane %v3420, 7
      %v3429 = vsel %vm684, %v3428, 0.0
      %v3430 = vsel %vm684, %v3427, %v3428
      %v3431 = vsel %vm684, %v3426, %v3427
      %v3432 = vsel %vm684, %v3425, %v3426
      %v3433 = vsel %vm684, %v3424, %v3425
      %v3434 = vsel %vm684, %v3423, %v3424
      %v3435 = vsel %vm684, %v3422, %v3423
      %v3436 = vsel %vm684, %v3421, %v3422
      %v3437 = vsel %vm684, 0.0, %v3421
      %v3438 = vsel %vm459, %v3437, 0.0
      %v3439 = vsel %vm460, %v3436, 0.0
      %v3440 = vsel %vm461, %v3435, 0.0
      %v3441 = vsel %vm462, %v3434, 0.0
      %v3442 = vsel %vm463, %v3433, 0.0
      %v3443 = vsel %vm464, %v3432, 0.0
      %v3444 = vsel %vm465, %v3431, 0.0
      %v3445 = vsel %vm466, %v3430, 0.0
      %v3446 = vsel %vm467, %v3429, 0.0
      %3447 = vst.msk [vmem:[#allocation2] sm:$0xff] %vm481, %v694
      %3448 = vst.msk [vmem:[#allocation2 + $0x10] sm:$0xff] %vm481, %v3438
      %3449 = vst.msk [vmem:[#allocation2 + $0x20] sm:$0xff] %vm481, %v3439
      %3450 = vst.msk [vmem:[#allocation2 + $0x30] sm:$0xff] %vm481, %v3440
      %3451 = vst.msk [vmem:[#allocation2 + $0x40] sm:$0xff] %vm481, %v3441
      %3452 = vst.msk [vmem:[#allocation2 + $0x50] sm:$0xff] %vm481, %v3442
      %3453 = vst.msk [vmem:[#allocation2 + $0x60] sm:$0xff] %vm481, %v3443
      %3454 = vst.msk [vmem:[#allocation2 + $0x70] sm:$0xff] %vm481, %v3444
      %3455 = vst.msk [vmem:[#allocation2 + $0x80] sm:$0xff] %vm481, %v3445
      %3456 = vst.msk [vmem:[#allocation2 + $0x90] sm:$0xff] %vm481, %v3446
      %3465 = vrot.lane.b32.xlu0 %v3413, 64
      %v3466 = vpop.permute.xlu0 %3465
      %3467 = vrot.lane.b32.xlu0 %v3414, 64
      %v3468 = vpop.permute.xlu0 %3467
      %3469 = vrot.lane.b32.xlu0 %v3415, 64
      %v3470 = vpop.permute.xlu0 %3469
      %3471 = vrot.lane.b32.xlu0 %v3416, 64
      %v3472 = vpop.permute.xlu0 %3471
      %3473 = vrot.lane.b32.xlu0 %v3417, 64
      %v3474 = vpop.permute.xlu0 %3473
      %3475 = vrot.lane.b32.xlu0 %v3418, 64
      %v3476 = vpop.permute.xlu0 %3475
      %3477 = vrot.lane.b32.xlu0 %v3419, 64
      %v3478 = vpop.permute.xlu0 %3477
      %3479 = vrot.lane.b32.xlu0 %v3420, 64
      %v3480 = vpop.permute.xlu0 %3479
      %3489 = vst.msk [vmem:[#allocation2] sm:$0xff] %vm750, %v724
      %3490 = vst.msk [vmem:[#allocation2 + $0x10] sm:$0xff] %vm750, %v3466
      %3491 = vst.msk [vmem:[#allocation2 + $0x20] sm:$0xff] %vm750, %v3468
      %3492 = vst.msk [vmem:[#allocation2 + $0x30] sm:$0xff] %vm750, %v3470
      %3493 = vst.msk [vmem:[#allocation2 + $0x40] sm:$0xff] %vm750, %v3472
      %3494 = vst.msk [vmem:[#allocation2 + $0x50] sm:$0xff] %vm750, %v3474
      %3495 = vst.msk [vmem:[#allocation2 + $0x60] sm:$0xff] %vm750, %v3476
      %3496 = vst.msk [vmem:[#allocation2 + $0x70] sm:$0xff] %vm750, %v3478
      %3497 = vst.msk [vmem:[#allocation2 + $0x80] sm:$0xff] %vm750, %v3480
      %3498 = vst.msk [vmem:[#allocation2 + $0x90] sm:$0xff] %vm750, %v724
      %v3499 = vrot.slane %v3413, 1
      %v3500 = vrot.slane %v3414, 1
      %v3501 = vrot.slane %v3415, 1
      %v3502 = vrot.slane %v3416, 1
      %v3503 = vrot.slane %v3417, 1
      %v3504 = vrot.slane %v3418, 1
      %v3505 = vrot.slane %v3419, 1
      %v3506 = vrot.slane %v3420, 1
      %v3507 = vsel %vm769, %v3506, 0.0
      %v3508 = vsel %vm769, %v3505, %v3506
      %v3509 = vsel %vm769, %v3504, %v3505
      %v3510 = vsel %vm769, %v3503, %v3504
      %v3511 = vsel %vm769, %v3502, %v3503
      %v3512 = vsel %vm769, %v3501, %v3502
      %v3513 = vsel %vm769, %v3500, %v3501
      %v3514 = vsel %vm769, %v3499, %v3500
      %v3515 = vsel %vm769, 0.0, %v3499
      %v3516 = vsel %vm468, %v3515, 0.0
      %v3517 = vsel %vm469, %v3514, 0.0
      %v3518 = vsel %vm470, %v3513, 0.0
      %v3519 = vsel %vm471, %v3512, 0.0
      %v3520 = vsel %vm472, %v3511, 0.0
      %v3521 = vsel %vm473, %v3510, 0.0
      %v3522 = vsel %vm474, %v3509, 0.0
      %v3523 = vsel %vm475, %v3508, 0.0
      %v3524 = vsel %vm476, %v3507, 0.0
      %3525 = vst.msk [vmem:[#allocation2 + $0x8] sm:$0xff] %vm481, %v3516
      %3526 = vst.msk [vmem:[#allocation2 + $0x18] sm:$0xff] %vm481, %v3517
      %3527 = vst.msk [vmem:[#allocation2 + $0x28] sm:$0xff] %vm481, %v3518
      %3528 = vst.msk [vmem:[#allocation2 + $0x38] sm:$0xff] %vm481, %v3519
      %3529 = vst.msk [vmem:[#allocation2 + $0x48] sm:$0xff] %vm481, %v3520
      %3530 = vst.msk [vmem:[#allocation2 + $0x58] sm:$0xff] %vm481, %v3521
      %3531 = vst.msk [vmem:[#allocation2 + $0x68] sm:$0xff] %vm481, %v3522
      %3532 = vst.msk [vmem:[#allocation2 + $0x78] sm:$0xff] %vm481, %v3523
      %3533 = vst.msk [vmem:[#allocation2 + $0x88] sm:$0xff] %vm481, %v3524
      %3534 = vst.msk [vmem:[#allocation2 + $0x98] sm:$0xff] %vm481, %v788
      %s3535 = scalar_lea.vmem %s3, 3
      %v3536 = vld [vmem:[%s3535] sm:$0x1]
      %v3537 = vld [vmem:[#allocation2] sm:$0xff]
      %v3538 = vld [vmem:[#allocation2 + $0x8] sm:$0xff]
      %v3539 = vld [vmem:[#allocation2 + $0x10] sm:$0xff]
      %v3540 = vld [vmem:[#allocation2 + $0x18] sm:$0xff]
      %v3541 = vld [vmem:[#allocation2 + $0x20] sm:$0xff]
      %v3542 = vld [vmem:[#allocation2 + $0x28] sm:$0xff]
      %v3543 = vld [vmem:[#allocation2 + $0x30] sm:$0xff]
      %v3544 = vld [vmem:[#allocation2 + $0x38] sm:$0xff]
      %v3545 = vld [vmem:[#allocation2 + $0x40] sm:$0xff]
      %v3546 = vld [vmem:[#allocation2 + $0x48] sm:$0xff]
      %v3547 = vld [vmem:[#allocation2 + $0x50] sm:$0xff]
      %v3548 = vld [vmem:[#allocation2 + $0x58] sm:$0xff]
      %v3549 = vld [vmem:[#allocation2 + $0x60] sm:$0xff]
      %v3550 = vld [vmem:[#allocation2 + $0x68] sm:$0xff]
      %v3551 = vld [vmem:[#allocation2 + $0x70] sm:$0xff]
      %v3552 = vld [vmem:[#allocation2 + $0x78] sm:$0xff]
      %v3553 = vpack.c.bf16 %v3539, %v3537
      %v3554 = vpack.c.bf16 %v3540, %v3538
      %v3555 = vpack.c.bf16 %v3543, %v3541
      %v3556 = vpack.c.bf16 %v3544, %v3542
      %v3557 = vpack.c.bf16 %v3547, %v3545
      %v3558 = vpack.c.bf16 %v3548, %v3546
      %v3559 = vpack.c.bf16 %v3551, %v3549
      %v3560 = vpack.c.bf16 %v3552, %v3550
      %s3561 = scalar_lea.vmem %s2, 864
      %v3562 = vld [vmem:[%s3561] sm:$0xf]
      %v3563 = vld [vmem:[%s3561 + $0x4] sm:$0xf]
      %v3564 = vld [vmem:[%s3561 + $0x8] sm:$0xf]
      %v3565 = vld [vmem:[%s3561 + $0xc] sm:$0xf]
      %v3566 = vld [vmem:[%s3561 + $0x10] sm:$0xf]
      %v3567 = vld [vmem:[%s3561 + $0x14] sm:$0xf]
      %v3568 = vld [vmem:[%s3561 + $0x18] sm:$0xf]
      %v3569 = vld [vmem:[%s3561 + $0x1c] sm:$0xf]
      %v3570 = vld [vmem:[%s3561 + $0x20] sm:$0xf]
      %v3571 = vld [vmem:[%s3561 + $0x24] sm:$0xf]
      %v3572 = vld [vmem:[%s3561 + $0x28] sm:$0xf]
      %v3573 = vld [vmem:[%s3561 + $0x2c] sm:$0xf]
      %v3574 = vld [vmem:[%s3561 + $0x30] sm:$0xf]
      %v3575 = vld [vmem:[%s3561 + $0x34] sm:$0xf]
      %v3576 = vld [vmem:[%s3561 + $0x38] sm:$0xf]
      %v3577 = vld [vmem:[%s3561 + $0x3c] sm:$0xf]
      %v3578 = vld [vmem:[%s3561 + $0x40] sm:$0xf]
      %v3579 = vld [vmem:[%s3561 + $0x44] sm:$0xf]
      %v3580 = vld [vmem:[%s3561 + $0x48] sm:$0xf]
      %v3581 = vld [vmem:[%s3561 + $0x4c] sm:$0xf]
      %v3582 = vld [vmem:[%s3561 + $0x50] sm:$0xf]
      %v3583 = vld [vmem:[%s3561 + $0x54] sm:$0xf]
      %v3584 = vld [vmem:[%s3561 + $0x58] sm:$0xf]
      %v3585 = vld [vmem:[%s3561 + $0x5c] sm:$0xf]
      %v3610 = vunpack.c.l.b16 %v3562
      %v3611 = vunpack.c.l.b16 %v3563
      %v3612 = vunpack.c.l.b16 %v3564
      %v3613 = vunpack.c.l.b16 %v3565
      %v3614 = vunpack.c.l.b16 %v3566
      %v3615 = vunpack.c.l.b16 %v3567
      %v3616 = vunpack.c.l.b16 %v3568
      %v3617 = vunpack.c.l.b16 %v3569
      %v3618 = vunpack.c.l.b16 %v3570
      %v3619 = vunpack.c.l.b16 %v3571
      %v3620 = vunpack.c.l.b16 %v3572
      %v3621 = vunpack.c.l.b16 %v3573
      %v3622 = vunpack.c.l.b16 %v3574
      %v3623 = vunpack.c.l.b16 %v3575
      %v3624 = vunpack.c.l.b16 %v3576
      %v3625 = vunpack.c.l.b16 %v3577
      %v3626 = vunpack.c.l.b16 %v3578
      %v3627 = vunpack.c.l.b16 %v3579
      %v3628 = vunpack.c.l.b16 %v3580
      %v3629 = vunpack.c.l.b16 %v3581
      %v3630 = vunpack.c.l.b16 %v3582
      %v3631 = vunpack.c.l.b16 %v3583
      %v3632 = vunpack.c.l.b16 %v3584
      %v3633 = vunpack.c.l.b16 %v3585
      %v3634 = vpack.c.b16 %v3611, %v3610
      %v3635 = vpack.c.b16 %v3613, %v3612
      %v3636 = vpack.c.b16 %v3615, %v3614
      %v3637 = vpack.c.b16 %v3617, %v3616
      %v3638 = vpack.c.b16 %v3619, %v3618
      %v3639 = vpack.c.b16 %v3621, %v3620
      %v3640 = vpack.c.b16 %v3623, %v3622
      %v3641 = vpack.c.b16 %v3625, %v3624
      %v3642 = vpack.c.b16 %v3627, %v3626
      %v3643 = vpack.c.b16 %v3629, %v3628
      %v3644 = vpack.c.b16 %v3631, %v3630
      %v3645 = vpack.c.b16 %v3633, %v3632
      %v3659 = vsel %vm481, %v3554, 0
      %v3662 = vsel %vm481, %v3556, 0
      %v3665 = vsel %vm481, %v3558, 0
      %v3668 = vsel %vm481, %v3560, 0
      %3670 = vmatpush.bf16.msra.mxu0 %v3641
      %3671 = vmatpush.bf16.msra.mxu0 %v3640
      %3672 = vmatpush.bf16.msra.mxu0 %v3639
      %3673 = vmatpush.bf16.msra.mxu0 %v3638
      %3674 = vmatpush.bf16.msra.mxu0 %v3637
      %3675 = vmatpush.bf16.msra.mxu0 %v3636
      %3676 = vmatpush.bf16.msra.mxu0 %v3635
      %3677 = vmatpush.bf16.msra.mxu0 %v3634
      %3678 = vmatmul.bf16.gmra.mxu0 %v3553
      %v3679 = vpop.f32.mrf.mxu0
      %v3680 = vadd.f32 0.0, %v3679
      %v3681 = vpop.f32.mrf.mxu0
      %v3682 = vadd.f32 0.0, %v3681
      %3683 = vmatmul.bf16.gmra.mxu0 %v3555
      %v3684 = vpop.f32.mrf.mxu0
      %v3685 = vadd.f32 0.0, %v3684
      %v3686 = vpop.f32.mrf.mxu0
      %v3687 = vadd.f32 0.0, %v3686
      %3688 = vmatmul.bf16.gmra.mxu0 %v3557
      %v3689 = vpop.f32.mrf.mxu0
      %v3690 = vadd.f32 0.0, %v3689
      %v3691 = vpop.f32.mrf.mxu0
      %v3692 = vadd.f32 0.0, %v3691
      %3693 = vmatmul.bf16.gmra.mxu0 %v3559
      %v3694 = vpop.f32.mrf.mxu0
      %v3695 = vadd.f32 0.0, %v3694
      %v3696 = vpop.f32.mrf.mxu0
      %v3697 = vadd.f32 0.0, %v3696
      %3698 = vdwg.mxu0
      %3699 = vmatpush.bf16.msra.mxu0 0
      %3700 = vmatpush.bf16.msra.mxu0 0
      %3701 = vmatpush.bf16.msra.mxu0 0
      %3702 = vmatpush.bf16.msra.mxu0 0
      %3703 = vmatpush.bf16.msra.mxu0 %v3645
      %3704 = vmatpush.bf16.msra.mxu0 %v3644
      %3705 = vmatpush.bf16.msra.mxu0 %v3643
      %3706 = vmatpush.bf16.msra.mxu0 %v3642
      %3707 = vmatmul.bf16.gmra.mxu0 %v3659
      %v3708 = vpop.f32.mrf.mxu0
      %v3709 = vadd.f32 %v3680, %v3708
      %v3710 = vpop.f32.mrf.mxu0
      %v3711 = vadd.f32 %v3682, %v3710
      %3712 = vmatmul.bf16.gmra.mxu0 %v3662
      %v3713 = vpop.f32.mrf.mxu0
      %v3714 = vadd.f32 %v3685, %v3713
      %v3715 = vpop.f32.mrf.mxu0
      %v3716 = vadd.f32 %v3687, %v3715
      %3717 = vmatmul.bf16.gmra.mxu0 %v3665
      %v3718 = vpop.f32.mrf.mxu0
      %v3719 = vadd.f32 %v3690, %v3718
      %v3720 = vpop.f32.mrf.mxu0
      %v3721 = vadd.f32 %v3692, %v3720
      %3722 = vmatmul.bf16.gmra.mxu0 %v3668
      %v3723 = vpop.f32.mrf.mxu0
      %v3724 = vadd.f32 %v3695, %v3723
      %v3725 = vpop.f32.mrf.mxu0
      %v3726 = vadd.f32 %v3697, %v3725
      %3727 = vdwg.mxu0
      %v3729 = vperm.slane %v3536, 0
      %v3731 = vadd.f32 %v3729, %v3709
      %v3732 = vadd.f32 %v3729, %v3711
      %v3733 = vadd.f32 %v3729, %v3714
      %v3734 = vadd.f32 %v3729, %v3716
      %v3735 = vadd.f32 %v3729, %v3719
      %v3736 = vadd.f32 %v3729, %v3721
      %v3737 = vadd.f32 %v3729, %v3724
      %v3738 = vadd.f32 %v3729, %v3726
      %v3739 = vld [vmem:[#allocation2 + $0x10] sm:$0xff]
      %v3740 = vld [vmem:[#allocation2 + $0x18] sm:$0xff]
      %v3741 = vld [vmem:[#allocation2 + $0x20] sm:$0xff]
      %v3742 = vld [vmem:[#allocation2 + $0x28] sm:$0xff]
      %v3743 = vld [vmem:[#allocation2 + $0x30] sm:$0xff]
      %v3744 = vld [vmem:[#allocation2 + $0x38] sm:$0xff]
      %v3745 = vld [vmem:[#allocation2 + $0x40] sm:$0xff]
      %v3746 = vld [vmem:[#allocation2 + $0x48] sm:$0xff]
      %v3747 = vld [vmem:[#allocation2 + $0x50] sm:$0xff]
      %v3748 = vld [vmem:[#allocation2 + $0x58] sm:$0xff]
      %v3749 = vld [vmem:[#allocation2 + $0x60] sm:$0xff]
      %v3750 = vld [vmem:[#allocation2 + $0x68] sm:$0xff]
      %v3751 = vld [vmem:[#allocation2 + $0x70] sm:$0xff]
      %v3752 = vld [vmem:[#allocation2 + $0x78] sm:$0xff]
      %v3753 = vld [vmem:[#allocation2 + $0x80] sm:$0xff]
      %v3754 = vld [vmem:[#allocation2 + $0x88] sm:$0xff]
      %v3755 = vpack.c.bf16 %v3741, %v3739
      %v3756 = vpack.c.bf16 %v3742, %v3740
      %v3757 = vpack.c.bf16 %v3745, %v3743
      %v3758 = vpack.c.bf16 %v3746, %v3744
      %v3759 = vpack.c.bf16 %v3749, %v3747
      %v3760 = vpack.c.bf16 %v3750, %v3748
      %v3761 = vpack.c.bf16 %v3753, %v3751
      %v3762 = vpack.c.bf16 %v3754, %v3752
      %v3763 = vld [vmem:[%s3561 + $0x60] sm:$0xf]
      %v3764 = vld [vmem:[%s3561 + $0x64] sm:$0xf]
      %v3765 = vld [vmem:[%s3561 + $0x68] sm:$0xf]
      %v3766 = vld [vmem:[%s3561 + $0x6c] sm:$0xf]
      %v3767 = vld [vmem:[%s3561 + $0x70] sm:$0xf]
      %v3768 = vld [vmem:[%s3561 + $0x74] sm:$0xf]
      %v3769 = vld [vmem:[%s3561 + $0x78] sm:$0xf]
      %v3770 = vld [vmem:[%s3561 + $0x7c] sm:$0xf]
      %v3771 = vld [vmem:[%s3561 + $0x80] sm:$0xf]
      %v3772 = vld [vmem:[%s3561 + $0x84] sm:$0xf]
      %v3773 = vld [vmem:[%s3561 + $0x88] sm:$0xf]
      %v3774 = vld [vmem:[%s3561 + $0x8c] sm:$0xf]
      %v3775 = vld [vmem:[%s3561 + $0x90] sm:$0xf]
      %v3776 = vld [vmem:[%s3561 + $0x94] sm:$0xf]
      %v3777 = vld [vmem:[%s3561 + $0x98] sm:$0xf]
      %v3778 = vld [vmem:[%s3561 + $0x9c] sm:$0xf]
      %v3779 = vld [vmem:[%s3561 + $0xa0] sm:$0xf]
      %v3780 = vld [vmem:[%s3561 + $0xa4] sm:$0xf]
      %v3781 = vld [vmem:[%s3561 + $0xa8] sm:$0xf]
      %v3782 = vld [vmem:[%s3561 + $0xac] sm:$0xf]
      %v3783 = vld [vmem:[%s3561 + $0xb0] sm:$0xf]
      %v3784 = vld [vmem:[%s3561 + $0xb4] sm:$0xf]
      %v3785 = vld [vmem:[%s3561 + $0xb8] sm:$0xf]
      %v3786 = vld [vmem:[%s3561 + $0xbc] sm:$0xf]
      %v3811 = vunpack.c.l.b16 %v3763
      %v3812 = vunpack.c.l.b16 %v3764
      %v3813 = vunpack.c.l.b16 %v3765
      %v3814 = vunpack.c.l.b16 %v3766
      %v3815 = vunpack.c.l.b16 %v3767
      %v3816 = vunpack.c.l.b16 %v3768
      %v3817 = vunpack.c.l.b16 %v3769
      %v3818 = vunpack.c.l.b16 %v3770
      %v3819 = vunpack.c.l.b16 %v3771
      %v3820 = vunpack.c.l.b16 %v3772
      %v3821 = vunpack.c.l.b16 %v3773
      %v3822 = vunpack.c.l.b16 %v3774
      %v3823 = vunpack.c.l.b16 %v3775
      %v3824 = vunpack.c.l.b16 %v3776
      %v3825 = vunpack.c.l.b16 %v3777
      %v3826 = vunpack.c.l.b16 %v3778
      %v3827 = vunpack.c.l.b16 %v3779
      %v3828 = vunpack.c.l.b16 %v3780
      %v3829 = vunpack.c.l.b16 %v3781
      %v3830 = vunpack.c.l.b16 %v3782
      %v3831 = vunpack.c.l.b16 %v3783
      %v3832 = vunpack.c.l.b16 %v3784
      %v3833 = vunpack.c.l.b16 %v3785
      %v3834 = vunpack.c.l.b16 %v3786
      %v3835 = vpack.c.b16 %v3812, %v3811
      %v3836 = vpack.c.b16 %v3814, %v3813
      %v3837 = vpack.c.b16 %v3816, %v3815
      %v3838 = vpack.c.b16 %v3818, %v3817
      %v3839 = vpack.c.b16 %v3820, %v3819
      %v3840 = vpack.c.b16 %v3822, %v3821
      %v3841 = vpack.c.b16 %v3824, %v3823
      %v3842 = vpack.c.b16 %v3826, %v3825
      %v3843 = vpack.c.b16 %v3828, %v3827
      %v3844 = vpack.c.b16 %v3830, %v3829
      %v3845 = vpack.c.b16 %v3832, %v3831
      %v3846 = vpack.c.b16 %v3834, %v3833
      %v3860 = vsel %vm481, %v3756, 0
      %v3863 = vsel %vm481, %v3758, 0
      %v3866 = vsel %vm481, %v3760, 0
      %v3869 = vsel %vm481, %v3762, 0
      %3871 = vmatpush.bf16.msra.mxu0 %v3842
      %3872 = vmatpush.bf16.msra.mxu0 %v3841
      %3873 = vmatpush.bf16.msra.mxu0 %v3840
      %3874 = vmatpush.bf16.msra.mxu0 %v3839
      %3875 = vmatpush.bf16.msra.mxu0 %v3838
      %3876 = vmatpush.bf16.msra.mxu0 %v3837
      %3877 = vmatpush.bf16.msra.mxu0 %v3836
      %3878 = vmatpush.bf16.msra.mxu0 %v3835
      %3879 = vmatmul.bf16.gmra.mxu0 %v3755
      %v3880 = vpop.f32.mrf.mxu0
      %v3881 = vadd.f32 0.0, %v3880
      %v3882 = vpop.f32.mrf.mxu0
      %v3883 = vadd.f32 0.0, %v3882
      %3884 = vmatmul.bf16.gmra.mxu0 %v3757
      %v3885 = vpop.f32.mrf.mxu0
      %v3886 = vadd.f32 0.0, %v3885
      %v3887 = vpop.f32.mrf.mxu0
      %v3888 = vadd.f32 0.0, %v3887
      %3889 = vmatmul.bf16.gmra.mxu0 %v3759
      %v3890 = vpop.f32.mrf.mxu0
      %v3891 = vadd.f32 0.0, %v3890
      %v3892 = vpop.f32.mrf.mxu0
      %v3893 = vadd.f32 0.0, %v3892
      %3894 = vmatmul.bf16.gmra.mxu0 %v3761
      %v3895 = vpop.f32.mrf.mxu0
      %v3896 = vadd.f32 0.0, %v3895
      %v3897 = vpop.f32.mrf.mxu0
      %v3898 = vadd.f32 0.0, %v3897
      %3899 = vdwg.mxu0
      %3900 = vmatpush.bf16.msra.mxu0 0
      %3901 = vmatpush.bf16.msra.mxu0 0
      %3902 = vmatpush.bf16.msra.mxu0 0
      %3903 = vmatpush.bf16.msra.mxu0 0
      %3904 = vmatpush.bf16.msra.mxu0 %v3846
      %3905 = vmatpush.bf16.msra.mxu0 %v3845
      %3906 = vmatpush.bf16.msra.mxu0 %v3844
      %3907 = vmatpush.bf16.msra.mxu0 %v3843
      %3908 = vmatmul.bf16.gmra.mxu0 %v3860
      %v3909 = vpop.f32.mrf.mxu0
      %v3910 = vadd.f32 %v3881, %v3909
      %v3911 = vpop.f32.mrf.mxu0
      %v3912 = vadd.f32 %v3883, %v3911
      %3913 = vmatmul.bf16.gmra.mxu0 %v3863
      %v3914 = vpop.f32.mrf.mxu0
      %v3915 = vadd.f32 %v3886, %v3914
      %v3916 = vpop.f32.mrf.mxu0
      %v3917 = vadd.f32 %v3888, %v3916
      %3918 = vmatmul.bf16.gmra.mxu0 %v3866
      %v3919 = vpop.f32.mrf.mxu0
      %v3920 = vadd.f32 %v3891, %v3919
      %v3921 = vpop.f32.mrf.mxu0
      %v3922 = vadd.f32 %v3893, %v3921
      %3923 = vmatmul.bf16.gmra.mxu0 %v3869
      %v3924 = vpop.f32.mrf.mxu0
      %v3925 = vadd.f32 %v3896, %v3924
      %v3926 = vpop.f32.mrf.mxu0
      %v3927 = vadd.f32 %v3898, %v3926
      %3928 = vdwg.mxu0
      %v3929 = vadd.f32 %v3731, %v3910
      %v3930 = vadd.f32 %v3732, %v3912
      %v3931 = vadd.f32 %v3733, %v3915
      %v3932 = vadd.f32 %v3734, %v3917
      %v3933 = vadd.f32 %v3735, %v3920
      %v3934 = vadd.f32 %v3736, %v3922
      %v3935 = vadd.f32 %v3737, %v3925
      %v3936 = vadd.f32 %v3738, %v3927
      %v3937 = vld [vmem:[#allocation2 + $0x20] sm:$0xff]
      %v3938 = vld [vmem:[#allocation2 + $0x28] sm:$0xff]
      %v3939 = vld [vmem:[#allocation2 + $0x30] sm:$0xff]
      %v3940 = vld [vmem:[#allocation2 + $0x38] sm:$0xff]
      %v3941 = vld [vmem:[#allocation2 + $0x40] sm:$0xff]
      %v3942 = vld [vmem:[#allocation2 + $0x48] sm:$0xff]
      %v3943 = vld [vmem:[#allocation2 + $0x50] sm:$0xff]
      %v3944 = vld [vmem:[#allocation2 + $0x58] sm:$0xff]
      %v3945 = vld [vmem:[#allocation2 + $0x60] sm:$0xff]
      %v3946 = vld [vmem:[#allocation2 + $0x68] sm:$0xff]
      %v3947 = vld [vmem:[#allocation2 + $0x70] sm:$0xff]
      %v3948 = vld [vmem:[#allocation2 + $0x78] sm:$0xff]
      %v3949 = vld [vmem:[#allocation2 + $0x80] sm:$0xff]
      %v3950 = vld [vmem:[#allocation2 + $0x88] sm:$0xff]
      %v3951 = vld [vmem:[#allocation2 + $0x90] sm:$0xff]
      %v3952 = vld [vmem:[#allocation2 + $0x98] sm:$0xff]
      %v3953 = vpack.c.bf16 %v3939, %v3937
      %v3954 = vpack.c.bf16 %v3940, %v3938
      %v3955 = vpack.c.bf16 %v3943, %v3941
      %v3956 = vpack.c.bf16 %v3944, %v3942
      %v3957 = vpack.c.bf16 %v3947, %v3945
      %v3958 = vpack.c.bf16 %v3948, %v3946
      %v3959 = vpack.c.bf16 %v3951, %v3949
      %v3960 = vpack.c.bf16 %v3952, %v3950
      %v3961 = vld [vmem:[%s3561 + $0xc0] sm:$0xf]
      %v3962 = vld [vmem:[%s3561 + $0xc4] sm:$0xf]
      %v3963 = vld [vmem:[%s3561 + $0xc8] sm:$0xf]
      %v3964 = vld [vmem:[%s3561 + $0xcc] sm:$0xf]
      %v3965 = vld [vmem:[%s3561 + $0xd0] sm:$0xf]
      %v3966 = vld [vmem:[%s3561 + $0xd4] sm:$0xf]
      %v3967 = vld [vmem:[%s3561 + $0xd8] sm:$0xf]
      %v3968 = vld [vmem:[%s3561 + $0xdc] sm:$0xf]
      %v3969 = vld [vmem:[%s3561 + $0xe0] sm:$0xf]
      %v3970 = vld [vmem:[%s3561 + $0xe4] sm:$0xf]
      %v3971 = vld [vmem:[%s3561 + $0xe8] sm:$0xf]
      %v3972 = vld [vmem:[%s3561 + $0xec] sm:$0xf]
      %v3973 = vld [vmem:[%s3561 + $0xf0] sm:$0xf]
      %v3974 = vld [vmem:[%s3561 + $0xf4] sm:$0xf]
      %v3975 = vld [vmem:[%s3561 + $0xf8] sm:$0xf]
      %v3976 = vld [vmem:[%s3561 + $0xfc] sm:$0xf]
      %v3977 = vld [vmem:[%s3561 + $0x100] sm:$0xf]
      %v3978 = vld [vmem:[%s3561 + $0x104] sm:$0xf]
      %v3979 = vld [vmem:[%s3561 + $0x108] sm:$0xf]
      %v3980 = vld [vmem:[%s3561 + $0x10c] sm:$0xf]
      %v3981 = vld [vmem:[%s3561 + $0x110] sm:$0xf]
      %v3982 = vld [vmem:[%s3561 + $0x114] sm:$0xf]
      %v3983 = vld [vmem:[%s3561 + $0x118] sm:$0xf]
      %v3984 = vld [vmem:[%s3561 + $0x11c] sm:$0xf]
      %v4009 = vunpack.c.l.b16 %v3961
      %v4010 = vunpack.c.l.b16 %v3962
      %v4011 = vunpack.c.l.b16 %v3963
      %v4012 = vunpack.c.l.b16 %v3964
      %v4013 = vunpack.c.l.b16 %v3965
      %v4014 = vunpack.c.l.b16 %v3966
      %v4015 = vunpack.c.l.b16 %v3967
      %v4016 = vunpack.c.l.b16 %v3968
      %v4017 = vunpack.c.l.b16 %v3969
      %v4018 = vunpack.c.l.b16 %v3970
      %v4019 = vunpack.c.l.b16 %v3971
      %v4020 = vunpack.c.l.b16 %v3972
      %v4021 = vunpack.c.l.b16 %v3973
      %v4022 = vunpack.c.l.b16 %v3974
      %v4023 = vunpack.c.l.b16 %v3975
      %v4024 = vunpack.c.l.b16 %v3976
      %v4025 = vunpack.c.l.b16 %v3977
      %v4026 = vunpack.c.l.b16 %v3978
      %v4027 = vunpack.c.l.b16 %v3979
      %v4028 = vunpack.c.l.b16 %v3980
      %v4029 = vunpack.c.l.b16 %v3981
      %v4030 = vunpack.c.l.b16 %v3982
      %v4031 = vunpack.c.l.b16 %v3983
      %v4032 = vunpack.c.l.b16 %v3984
      %v4033 = vpack.c.b16 %v4010, %v4009
      %v4034 = vpack.c.b16 %v4012, %v4011
      %v4035 = vpack.c.b16 %v4014, %v4013
      %v4036 = vpack.c.b16 %v4016, %v4015
      %v4037 = vpack.c.b16 %v4018, %v4017
      %v4038 = vpack.c.b16 %v4020, %v4019
      %v4039 = vpack.c.b16 %v4022, %v4021
      %v4040 = vpack.c.b16 %v4024, %v4023
      %v4041 = vpack.c.b16 %v4026, %v4025
      %v4042 = vpack.c.b16 %v4028, %v4027
      %v4043 = vpack.c.b16 %v4030, %v4029
      %v4044 = vpack.c.b16 %v4032, %v4031
      %v4058 = vsel %vm481, %v3954, 0
      %v4061 = vsel %vm481, %v3956, 0
      %v4064 = vsel %vm481, %v3958, 0
      %v4067 = vsel %vm481, %v3960, 0
      %4069 = vmatpush.bf16.msra.mxu0 %v4040
      %4070 = vmatpush.bf16.msra.mxu0 %v4039
      %4071 = vmatpush.bf16.msra.mxu0 %v4038
      %4072 = vmatpush.bf16.msra.mxu0 %v4037
      %4073 = vmatpush.bf16.msra.mxu0 %v4036
      %4074 = vmatpush.bf16.msra.mxu0 %v4035
      %4075 = vmatpush.bf16.msra.mxu0 %v4034
      %4076 = vmatpush.bf16.msra.mxu0 %v4033
      %4077 = vmatmul.bf16.gmra.mxu0 %v3953
      %v4078 = vpop.f32.mrf.mxu0
      %v4079 = vadd.f32 0.0, %v4078
      %v4080 = vpop.f32.mrf.mxu0
      %v4081 = vadd.f32 0.0, %v4080
      %4082 = vmatmul.bf16.gmra.mxu0 %v3955
      %v4083 = vpop.f32.mrf.mxu0
      %v4084 = vadd.f32 0.0, %v4083
      %v4085 = vpop.f32.mrf.mxu0
      %v4086 = vadd.f32 0.0, %v4085
      %4087 = vmatmul.bf16.gmra.mxu0 %v3957
      %v4088 = vpop.f32.mrf.mxu0
      %v4089 = vadd.f32 0.0, %v4088
      %v4090 = vpop.f32.mrf.mxu0
      %v4091 = vadd.f32 0.0, %v4090
      %4092 = vmatmul.bf16.gmra.mxu0 %v3959
      %v4093 = vpop.f32.mrf.mxu0
      %v4094 = vadd.f32 0.0, %v4093
      %v4095 = vpop.f32.mrf.mxu0
      %v4096 = vadd.f32 0.0, %v4095
      %4097 = vdwg.mxu0
      %4098 = vmatpush.bf16.msra.mxu0 0
      %4099 = vmatpush.bf16.msra.mxu0 0
      %4100 = vmatpush.bf16.msra.mxu0 0
      %4101 = vmatpush.bf16.msra.mxu0 0
      %4102 = vmatpush.bf16.msra.mxu0 %v4044
      %4103 = vmatpush.bf16.msra.mxu0 %v4043
      %4104 = vmatpush.bf16.msra.mxu0 %v4042
      %4105 = vmatpush.bf16.msra.mxu0 %v4041
      %4106 = vmatmul.bf16.gmra.mxu0 %v4058
      %v4107 = vpop.f32.mrf.mxu0
      %v4108 = vadd.f32 %v4079, %v4107
      %v4109 = vpop.f32.mrf.mxu0
      %v4110 = vadd.f32 %v4081, %v4109
      %4111 = vmatmul.bf16.gmra.mxu0 %v4061
      %v4112 = vpop.f32.mrf.mxu0
      %v4113 = vadd.f32 %v4084, %v4112
      %v4114 = vpop.f32.mrf.mxu0
      %v4115 = vadd.f32 %v4086, %v4114
      %4116 = vmatmul.bf16.gmra.mxu0 %v4064
      %v4117 = vpop.f32.mrf.mxu0
      %v4118 = vadd.f32 %v4089, %v4117
      %v4119 = vpop.f32.mrf.mxu0
      %v4120 = vadd.f32 %v4091, %v4119
      %4121 = vmatmul.bf16.gmra.mxu0 %v4067
      %v4122 = vpop.f32.mrf.mxu0
      %v4123 = vadd.f32 %v4094, %v4122
      %v4124 = vpop.f32.mrf.mxu0
      %v4125 = vadd.f32 %v4096, %v4124
      %4126 = vdwg.mxu0
      %v4127 = vadd.f32 %v3929, %v4108
      %v4128 = vadd.f32 %v3930, %v4110
      %v4129 = vadd.f32 %v3931, %v4113
      %v4130 = vadd.f32 %v3932, %v4115
      %v4131 = vadd.f32 %v3933, %v4118
      %v4132 = vadd.f32 %v3934, %v4120
      %v4133 = vadd.f32 %v3935, %v4123
      %v4134 = vadd.f32 %v3936, %v4125
      %v4135 = vadd.f32 %v2307, %v4127
      %v4136 = vadd.f32 %v2308, %v4128
      %v4137 = vadd.f32 %v2309, %v4129
      %v4138 = vadd.f32 %v2310, %v4130
      %v4139 = vadd.f32 %v2311, %v4131
      %v4140 = vadd.f32 %v2312, %v4132
      %v4141 = vadd.f32 %v2313, %v4133
      %v4142 = vadd.f32 %v2314, %v4134
      %s4143 = scalar_lea.vmem %s1, 8
      %v4144 = vld [vmem:[%s4143] sm:$0x1]
      %s4145 = scalar_lea.vmem %s1, 9
      %v4146 = vld [vmem:[%s4145] sm:$0x1]
      %v4147 = vsel %vm481, %v4135, 0.0
      %v4148 = vsel %vm481, %v4136, 0.0
      %v4149 = vadd.f32 %v4147, %v4148
      %v4150 = vsel %vm481, %v4137, 0.0
      %v4151 = vadd.f32 %v4149, %v4150
      %v4152 = vsel %vm481, %v4138, 0.0
      %v4153 = vadd.f32 %v4151, %v4152
      %v4154 = vsel %vm481, %v4139, 0.0
      %v4155 = vadd.f32 %v4153, %v4154
      %v4156 = vsel %vm481, %v4140, 0.0
      %v4157 = vadd.f32 %v4155, %v4156
      %v4158 = vsel %vm481, %v4141, 0.0
      %v4159 = vadd.f32 %v4157, %v4158
      %v4160 = vsel %vm481, %v4142, 0.0
      %v4161 = vadd.f32 %v4159, %v4160
      %v4162 = vrot.slane %v4161, 4
      %v4163 = vadd.f32 %v4161, %v4162
      %v4164 = vrot.slane %v4163, 2
      %v4165 = vadd.f32 %v4163, %v4164
      %v4166 = vrot.slane %v4165, 1
      %v4167 = vadd.f32 %v4165, %v4166
      %v4168 = vmul.f32 %v4135, %v4135
      %v4169 = vmul.f32 %v4136, %v4136
      %v4170 = vmul.f32 %v4137, %v4137
      %v4171 = vmul.f32 %v4138, %v4138
      %v4172 = vmul.f32 %v4139, %v4139
      %v4173 = vmul.f32 %v4140, %v4140
      %v4174 = vmul.f32 %v4141, %v4141
      %v4175 = vmul.f32 %v4142, %v4142
      %v4176 = vsel %vm481, %v4168, 0.0
      %v4177 = vsel %vm481, %v4169, 0.0
      %v4178 = vadd.f32 %v4176, %v4177
      %v4179 = vsel %vm481, %v4170, 0.0
      %v4180 = vadd.f32 %v4178, %v4179
      %v4181 = vsel %vm481, %v4171, 0.0
      %v4182 = vadd.f32 %v4180, %v4181
      %v4183 = vsel %vm481, %v4172, 0.0
      %v4184 = vadd.f32 %v4182, %v4183
      %v4185 = vsel %vm481, %v4173, 0.0
      %v4186 = vadd.f32 %v4184, %v4185
      %v4187 = vsel %vm481, %v4174, 0.0
      %v4188 = vadd.f32 %v4186, %v4187
      %v4189 = vsel %vm481, %v4175, 0.0
      %v4190 = vadd.f32 %v4188, %v4189
      %v4191 = vrot.slane %v4190, 4
      %v4192 = vadd.f32 %v4190, %v4191
      %v4193 = vrot.slane %v4192, 2
      %v4194 = vadd.f32 %v4192, %v4193
      %v4195 = vrot.slane %v4194, 1
      %v4196 = vadd.f32 %v4194, %v4195
      %v4197 = vsel %vm532, %v4167, %v4196
      %v4199 = vsel %vm481, %v4197, 0
      %4201 = vmatpush.msra.mxu0 0.0
      %4202 = vmatpush.msra.mxu0 0.0
      %4203 = vmatpush.msra.mxu0 0.0
      %4204 = vmatpush.msra.mxu0 0.0
      %4205 = vmatpush.msra.mxu0 0.0
      %4206 = vmatpush.msra.mxu0 0.0
      %4207 = vmatpush.msra.mxu0 0.0
      %4208 = vmatpush.msra.mxu0 0.0
      %4209 = vmatpush.msra.mxu0 %v322
      %4210 = vmatpush.msra.mxu0 %v321
      %4211 = vmatpush.msra.mxu0 %v320
      %4212 = vmatpush.msra.mxu0 %v319
      %4213 = vmatpush.msra.mxu0 %v318
      %4214 = vmatpush.msra.mxu0 %v317
      %4215 = vmatpush.msra.mxu0 %v316
      %4216 = vmatpush.msra.mxu0 %v315
      %4217 = vmatmul.f32.gmra.mxu0 %v4199
      %v4218 = vpop.f32.mrf.mxu0
      %v4219 = vadd.f32 0.0, %v4218
      %4220 = vdwg.mxu0
      %v4221 = vmul.f32 %v4219, 0.0078125
      %v4222 = vmul.f32 %v4221, %v4221
      %v4224 = vrot.slane %v4222, 7
      %v4226 = vsub.f32 %v4221, %v4224
      %v4227 = vadd.f32 %v4226, 1e-05
      %v4228 = vrsqrt.pop %v4227
      %v4229 = vmul.f32 %v4228, %v4227
      %v4230 = vmul.f32 %v4229, %v4228
      %v4231 = vmul.f32 0.5, %v4230
      %v4232 = vsub.f32 1.5, %v4231
      %v4233 = vmul.f32 %v4228, %v4232
      %vm4234 = vweird.f32 %v4227
      %vm4235 = vweird.f32 %v4228
      %vm4236 = vmor %vm4234, %vm4235
      %v4237 = vsel %vm4236, %v4228, %v4233
      %v4238 = vsel %vm532, %v4221, %v4237
      %v4240 = vsel %vm575, %v4238, 0
      %4242 = vmatpush.msra.mxu0 0.0
      %4243 = vmatpush.msra.mxu0 0.0
      %4244 = vmatpush.msra.mxu0 0.0
      %4245 = vmatpush.msra.mxu0 0.0
      %4246 = vmatpush.msra.mxu0 0.0
      %4247 = vmatpush.msra.mxu0 0.0
      %4248 = vmatpush.msra.mxu0 0.0
      %4249 = vmatpush.msra.mxu0 0.0
      %4250 = vmatpush.msra.mxu0 0.0
      %4251 = vmatpush.msra.mxu0 0.0
      %4252 = vmatpush.msra.mxu0 0.0
      %4253 = vmatpush.msra.mxu0 0.0
      %4254 = vmatpush.msra.mxu0 %v326
      %4255 = vmatpush.msra.mxu0 %v325
      %4256 = vmatpush.msra.mxu0 %v324
      %4257 = vmatpush.msra.mxu0 %v323
      %4258 = vmatmul.f32.gmra.mxu0 %v4240
      %v4259 = vpop.f32.mrf.mxu0
      %v4260 = vadd.f32 0.0, %v4259
      %4261 = vdwg.mxu0
      %v4263 = vperm.slane %v4144, 0
      %v4265 = vmul.f32 %v4260, %v4263
      %v4267 = vrot.slane %v4265, 1
      %v4269 = vmul.f32 %v4260, %v4267
      %v4270 = vsub.f32 %v4146, %v4269
      %v4271 = vperm.slane %v4265, 1
      %v4272 = vmul.f32 %v4135, %v4271
      %v4273 = vmul.f32 %v4136, %v4271
      %v4274 = vmul.f32 %v4137, %v4271
      %v4275 = vmul.f32 %v4138, %v4271
      %v4276 = vmul.f32 %v4139, %v4271
      %v4277 = vmul.f32 %v4140, %v4271
      %v4278 = vmul.f32 %v4141, %v4271
      %v4279 = vmul.f32 %v4142, %v4271
      %v4281 = vperm.slane %v4270, 0
      %v4283 = vadd.f32 %v4272, %v4281
      %v4284 = vadd.f32 %v4273, %v4281
      %v4285 = vadd.f32 %v4274, %v4281
      %v4286 = vadd.f32 %v4275, %v4281
      %v4287 = vadd.f32 %v4276, %v4281
      %v4288 = vadd.f32 %v4277, %v4281
      %v4289 = vadd.f32 %v4278, %v4281
      %v4290 = vadd.f32 %v4279, %v4281
      %v4291 = vsub.f32 0.0, %v4283
      %v4292 = vsub.f32 0.0, %v4284
      %v4293 = vsub.f32 0.0, %v4285
      %v4294 = vsub.f32 0.0, %v4286
      %v4295 = vsub.f32 0.0, %v4287
      %v4296 = vsub.f32 0.0, %v4288
      %v4297 = vsub.f32 0.0, %v4289
      %v4298 = vsub.f32 0.0, %v4290
      %v4299 = vmul.f32 %v4291, 1.442695
      %v4300 = vpow.pop %v4299
      %v4301 = vmul.f32 %v4292, 1.442695
      %v4302 = vpow.pop %v4301
      %v4303 = vmul.f32 %v4293, 1.442695
      %v4304 = vpow.pop %v4303
      %v4305 = vmul.f32 %v4294, 1.442695
      %v4306 = vpow.pop %v4305
      %v4307 = vmul.f32 %v4295, 1.442695
      %v4308 = vpow.pop %v4307
      %v4309 = vmul.f32 %v4296, 1.442695
      %v4310 = vpow.pop %v4309
      %v4311 = vmul.f32 %v4297, 1.442695
      %v4312 = vpow.pop %v4311
      %v4313 = vmul.f32 %v4298, 1.442695
      %v4314 = vpow.pop %v4313
      %v4315 = vadd.f32 %v4300, 1.0
      %v4316 = vadd.f32 %v4302, 1.0
      %v4317 = vadd.f32 %v4304, 1.0
      %v4318 = vadd.f32 %v4306, 1.0
      %v4319 = vadd.f32 %v4308, 1.0
      %v4320 = vadd.f32 %v4310, 1.0
      %v4321 = vadd.f32 %v4312, 1.0
      %v4322 = vadd.f32 %v4314, 1.0
      %v4323 = vrcp.pop %v4315
      %v4324 = vrcp.pop %v4316
      %v4325 = vrcp.pop %v4317
      %v4326 = vrcp.pop %v4318
      %v4327 = vrcp.pop %v4319
      %v4328 = vrcp.pop %v4320
      %v4329 = vrcp.pop %v4321
      %v4330 = vrcp.pop %v4322
      %v4331 = vmul.f32 %v4283, %v4323
      %v4332 = vmul.f32 %v4284, %v4324
      %v4333 = vmul.f32 %v4285, %v4325
      %v4334 = vmul.f32 %v4286, %v4326
      %v4335 = vmul.f32 %v4287, %v4327
      %v4336 = vmul.f32 %v4288, %v4328
      %v4337 = vmul.f32 %v4289, %v4329
      %v4338 = vmul.f32 %v4290, %v4330
      %v4339 = vrot.slane %v4331, 7
      %v4340 = vrot.slane %v4332, 7
      %v4341 = vrot.slane %v4333, 7
      %v4342 = vrot.slane %v4334, 7
      %v4343 = vrot.slane %v4335, 7
      %v4344 = vrot.slane %v4336, 7
      %v4345 = vrot.slane %v4337, 7
      %v4346 = vrot.slane %v4338, 7
      %v4347 = vsel %vm684, %v4346, 0.0
      %v4348 = vsel %vm684, %v4345, %v4346
      %v4349 = vsel %vm684, %v4344, %v4345
      %v4350 = vsel %vm684, %v4343, %v4344
      %v4351 = vsel %vm684, %v4342, %v4343
      %v4352 = vsel %vm684, %v4341, %v4342
      %v4353 = vsel %vm684, %v4340, %v4341
      %v4354 = vsel %vm684, %v4339, %v4340
      %v4355 = vsel %vm684, 0.0, %v4339
      %v4356 = vsel %vm459, %v4355, 0.0
      %v4357 = vsel %vm460, %v4354, 0.0
      %v4358 = vsel %vm461, %v4353, 0.0
      %v4359 = vsel %vm462, %v4352, 0.0
      %v4360 = vsel %vm463, %v4351, 0.0
      %v4361 = vsel %vm464, %v4350, 0.0
      %v4362 = vsel %vm465, %v4349, 0.0
      %v4363 = vsel %vm466, %v4348, 0.0
      %v4364 = vsel %vm467, %v4347, 0.0
      %4365 = vst.msk [vmem:[#allocation2] sm:$0xff] %vm481, %v694
      %4366 = vst.msk [vmem:[#allocation2 + $0x10] sm:$0xff] %vm481, %v4356
      %4367 = vst.msk [vmem:[#allocation2 + $0x20] sm:$0xff] %vm481, %v4357
      %4368 = vst.msk [vmem:[#allocation2 + $0x30] sm:$0xff] %vm481, %v4358
      %4369 = vst.msk [vmem:[#allocation2 + $0x40] sm:$0xff] %vm481, %v4359
      %4370 = vst.msk [vmem:[#allocation2 + $0x50] sm:$0xff] %vm481, %v4360
      %4371 = vst.msk [vmem:[#allocation2 + $0x60] sm:$0xff] %vm481, %v4361
      %4372 = vst.msk [vmem:[#allocation2 + $0x70] sm:$0xff] %vm481, %v4362
      %4373 = vst.msk [vmem:[#allocation2 + $0x80] sm:$0xff] %vm481, %v4363
      %4374 = vst.msk [vmem:[#allocation2 + $0x90] sm:$0xff] %vm481, %v4364
      %4383 = vrot.lane.b32.xlu0 %v4331, 64
      %v4384 = vpop.permute.xlu0 %4383
      %4385 = vrot.lane.b32.xlu0 %v4332, 64
      %v4386 = vpop.permute.xlu0 %4385
      %4387 = vrot.lane.b32.xlu0 %v4333, 64
      %v4388 = vpop.permute.xlu0 %4387
      %4389 = vrot.lane.b32.xlu0 %v4334, 64
      %v4390 = vpop.permute.xlu0 %4389
      %4391 = vrot.lane.b32.xlu0 %v4335, 64
      %v4392 = vpop.permute.xlu0 %4391
      %4393 = vrot.lane.b32.xlu0 %v4336, 64
      %v4394 = vpop.permute.xlu0 %4393
      %4395 = vrot.lane.b32.xlu0 %v4337, 64
      %v4396 = vpop.permute.xlu0 %4395
      %4397 = vrot.lane.b32.xlu0 %v4338, 64
      %v4398 = vpop.permute.xlu0 %4397
      %4407 = vst.msk [vmem:[#allocation2] sm:$0xff] %vm750, %v724
      %4408 = vst.msk [vmem:[#allocation2 + $0x10] sm:$0xff] %vm750, %v4384
      %4409 = vst.msk [vmem:[#allocation2 + $0x20] sm:$0xff] %vm750, %v4386
      %4410 = vst.msk [vmem:[#allocation2 + $0x30] sm:$0xff] %vm750, %v4388
      %4411 = vst.msk [vmem:[#allocation2 + $0x40] sm:$0xff] %vm750, %v4390
      %4412 = vst.msk [vmem:[#allocation2 + $0x50] sm:$0xff] %vm750, %v4392
      %4413 = vst.msk [vmem:[#allocation2 + $0x60] sm:$0xff] %vm750, %v4394
      %4414 = vst.msk [vmem:[#allocation2 + $0x70] sm:$0xff] %vm750, %v4396
      %4415 = vst.msk [vmem:[#allocation2 + $0x80] sm:$0xff] %vm750, %v4398
      %4416 = vst.msk [vmem:[#allocation2 + $0x90] sm:$0xff] %vm750, %v724
      %v4417 = vrot.slane %v4331, 1
      %v4418 = vrot.slane %v4332, 1
      %v4419 = vrot.slane %v4333, 1
      %v4420 = vrot.slane %v4334, 1
      %v4421 = vrot.slane %v4335, 1
      %v4422 = vrot.slane %v4336, 1
      %v4423 = vrot.slane %v4337, 1
      %v4424 = vrot.slane %v4338, 1
      %v4425 = vsel %vm769, %v4424, 0.0
      %v4426 = vsel %vm769, %v4423, %v4424
      %v4427 = vsel %vm769, %v4422, %v4423
      %v4428 = vsel %vm769, %v4421, %v4422
      %v4429 = vsel %vm769, %v4420, %v4421
      %v4430 = vsel %vm769, %v4419, %v4420
      %v4431 = vsel %vm769, %v4418, %v4419
      %v4432 = vsel %vm769, %v4417, %v4418
      %v4433 = vsel %vm769, 0.0, %v4417
      %v4434 = vsel %vm468, %v4433, 0.0
      %v4435 = vsel %vm469, %v4432, 0.0
      %v4436 = vsel %vm470, %v4431, 0.0
      %v4437 = vsel %vm471, %v4430, 0.0
      %v4438 = vsel %vm472, %v4429, 0.0
      %v4439 = vsel %vm473, %v4428, 0.0
      %v4440 = vsel %vm474, %v4427, 0.0
      %v4441 = vsel %vm475, %v4426, 0.0
      %v4442 = vsel %vm476, %v4425, 0.0
      %4443 = vst.msk [vmem:[#allocation2 + $0x8] sm:$0xff] %vm481, %v4434
      %4444 = vst.msk [vmem:[#allocation2 + $0x18] sm:$0xff] %vm481, %v4435
      %4445 = vst.msk [vmem:[#allocation2 + $0x28] sm:$0xff] %vm481, %v4436
      %4446 = vst.msk [vmem:[#allocation2 + $0x38] sm:$0xff] %vm481, %v4437
      %4447 = vst.msk [vmem:[#allocation2 + $0x48] sm:$0xff] %vm481, %v4438
      %4448 = vst.msk [vmem:[#allocation2 + $0x58] sm:$0xff] %vm481, %v4439
      %4449 = vst.msk [vmem:[#allocation2 + $0x68] sm:$0xff] %vm481, %v4440
      %4450 = vst.msk [vmem:[#allocation2 + $0x78] sm:$0xff] %vm481, %v4441
      %4451 = vst.msk [vmem:[#allocation2 + $0x88] sm:$0xff] %vm481, %v4442
      %4452 = vst.msk [vmem:[#allocation2 + $0x98] sm:$0xff] %vm481, %v788
      %s4453 = scalar_lea.vmem %s3, 4
      %v4454 = vld [vmem:[%s4453] sm:$0x1]
      %v4455 = vld [vmem:[#allocation2] sm:$0xff]
      %v4456 = vld [vmem:[#allocation2 + $0x8] sm:$0xff]
      %v4457 = vld [vmem:[#allocation2 + $0x10] sm:$0xff]
      %v4458 = vld [vmem:[#allocation2 + $0x18] sm:$0xff]
      %v4459 = vld [vmem:[#allocation2 + $0x20] sm:$0xff]
      %v4460 = vld [vmem:[#allocation2 + $0x28] sm:$0xff]
      %v4461 = vld [vmem:[#allocation2 + $0x30] sm:$0xff]
      %v4462 = vld [vmem:[#allocation2 + $0x38] sm:$0xff]
      %v4463 = vld [vmem:[#allocation2 + $0x40] sm:$0xff]
      %v4464 = vld [vmem:[#allocation2 + $0x48] sm:$0xff]
      %v4465 = vld [vmem:[#allocation2 + $0x50] sm:$0xff]
      %v4466 = vld [vmem:[#allocation2 + $0x58] sm:$0xff]
      %v4467 = vld [vmem:[#allocation2 + $0x60] sm:$0xff]
      %v4468 = vld [vmem:[#allocation2 + $0x68] sm:$0xff]
      %v4469 = vld [vmem:[#allocation2 + $0x70] sm:$0xff]
      %v4470 = vld [vmem:[#allocation2 + $0x78] sm:$0xff]
      %v4471 = vpack.c.bf16 %v4457, %v4455
      %v4472 = vpack.c.bf16 %v4458, %v4456
      %v4473 = vpack.c.bf16 %v4461, %v4459
      %v4474 = vpack.c.bf16 %v4462, %v4460
      %v4475 = vpack.c.bf16 %v4465, %v4463
      %v4476 = vpack.c.bf16 %v4466, %v4464
      %v4477 = vpack.c.bf16 %v4469, %v4467
      %v4478 = vpack.c.bf16 %v4470, %v4468
      %s4479 = scalar_lea.vmem %s2, 1152
      %v4480 = vld [vmem:[%s4479] sm:$0xf]
      %v4481 = vld [vmem:[%s4479 + $0x4] sm:$0xf]
      %v4482 = vld [vmem:[%s4479 + $0x8] sm:$0xf]
      %v4483 = vld [vmem:[%s4479 + $0xc] sm:$0xf]
      %v4484 = vld [vmem:[%s4479 + $0x10] sm:$0xf]
      %v4485 = vld [vmem:[%s4479 + $0x14] sm:$0xf]
      %v4486 = vld [vmem:[%s4479 + $0x18] sm:$0xf]
      %v4487 = vld [vmem:[%s4479 + $0x1c] sm:$0xf]
      %v4488 = vld [vmem:[%s4479 + $0x20] sm:$0xf]
      %v4489 = vld [vmem:[%s4479 + $0x24] sm:$0xf]
      %v4490 = vld [vmem:[%s4479 + $0x28] sm:$0xf]
      %v4491 = vld [vmem:[%s4479 + $0x2c] sm:$0xf]
      %v4492 = vld [vmem:[%s4479 + $0x30] sm:$0xf]
      %v4493 = vld [vmem:[%s4479 + $0x34] sm:$0xf]
      %v4494 = vld [vmem:[%s4479 + $0x38] sm:$0xf]
      %v4495 = vld [vmem:[%s4479 + $0x3c] sm:$0xf]
      %v4496 = vld [vmem:[%s4479 + $0x40] sm:$0xf]
      %v4497 = vld [vmem:[%s4479 + $0x44] sm:$0xf]
      %v4498 = vld [vmem:[%s4479 + $0x48] sm:$0xf]
      %v4499 = vld [vmem:[%s4479 + $0x4c] sm:$0xf]
      %v4500 = vld [vmem:[%s4479 + $0x50] sm:$0xf]
      %v4501 = vld [vmem:[%s4479 + $0x54] sm:$0xf]
      %v4502 = vld [vmem:[%s4479 + $0x58] sm:$0xf]
      %v4503 = vld [vmem:[%s4479 + $0x5c] sm:$0xf]
      %v4528 = vunpack.c.l.b16 %v4480
      %v4529 = vunpack.c.l.b16 %v4481
      %v4530 = vunpack.c.l.b16 %v4482
      %v4531 = vunpack.c.l.b16 %v4483
      %v4532 = vunpack.c.l.b16 %v4484
      %v4533 = vunpack.c.l.b16 %v4485
      %v4534 = vunpack.c.l.b16 %v4486
      %v4535 = vunpack.c.l.b16 %v4487
      %v4536 = vunpack.c.l.b16 %v4488
      %v4537 = vunpack.c.l.b16 %v4489
      %v4538 = vunpack.c.l.b16 %v4490
      %v4539 = vunpack.c.l.b16 %v4491
      %v4540 = vunpack.c.l.b16 %v4492
      %v4541 = vunpack.c.l.b16 %v4493
      %v4542 = vunpack.c.l.b16 %v4494
      %v4543 = vunpack.c.l.b16 %v4495
      %v4544 = vunpack.c.l.b16 %v4496
      %v4545 = vunpack.c.l.b16 %v4497
      %v4546 = vunpack.c.l.b16 %v4498
      %v4547 = vunpack.c.l.b16 %v4499
      %v4548 = vunpack.c.l.b16 %v4500
      %v4549 = vunpack.c.l.b16 %v4501
      %v4550 = vunpack.c.l.b16 %v4502
      %v4551 = vunpack.c.l.b16 %v4503
      %v4552 = vpack.c.b16 %v4529, %v4528
      %v4553 = vpack.c.b16 %v4531, %v4530
      %v4554 = vpack.c.b16 %v4533, %v4532
      %v4555 = vpack.c.b16 %v4535, %v4534
      %v4556 = vpack.c.b16 %v4537, %v4536
      %v4557 = vpack.c.b16 %v4539, %v4538
      %v4558 = vpack.c.b16 %v4541, %v4540
      %v4559 = vpack.c.b16 %v4543, %v4542
      %v4560 = vpack.c.b16 %v4545, %v4544
      %v4561 = vpack.c.b16 %v4547, %v4546
      %v4562 = vpack.c.b16 %v4549, %v4548
      %v4563 = vpack.c.b16 %v4551, %v4550
      %v4577 = vsel %vm481, %v4472, 0
      %v4580 = vsel %vm481, %v4474, 0
      %v4583 = vsel %vm481, %v4476, 0
      %v4586 = vsel %vm481, %v4478, 0
      %4588 = vmatpush.bf16.msra.mxu0 %v4559
      %4589 = vmatpush.bf16.msra.mxu0 %v4558
      %4590 = vmatpush.bf16.msra.mxu0 %v4557
      %4591 = vmatpush.bf16.msra.mxu0 %v4556
      %4592 = vmatpush.bf16.msra.mxu0 %v4555
      %4593 = vmatpush.bf16.msra.mxu0 %v4554
      %4594 = vmatpush.bf16.msra.mxu0 %v4553
      %4595 = vmatpush.bf16.msra.mxu0 %v4552
      %4596 = vmatmul.bf16.gmra.mxu0 %v4471
      %v4597 = vpop.f32.mrf.mxu0
      %v4598 = vadd.f32 0.0, %v4597
      %v4599 = vpop.f32.mrf.mxu0
      %v4600 = vadd.f32 0.0, %v4599
      %4601 = vmatmul.bf16.gmra.mxu0 %v4473
      %v4602 = vpop.f32.mrf.mxu0
      %v4603 = vadd.f32 0.0, %v4602
      %v4604 = vpop.f32.mrf.mxu0
      %v4605 = vadd.f32 0.0, %v4604
      %4606 = vmatmul.bf16.gmra.mxu0 %v4475
      %v4607 = vpop.f32.mrf.mxu0
      %v4608 = vadd.f32 0.0, %v4607
      %v4609 = vpop.f32.mrf.mxu0
      %v4610 = vadd.f32 0.0, %v4609
      %4611 = vmatmul.bf16.gmra.mxu0 %v4477
      %v4612 = vpop.f32.mrf.mxu0
      %v4613 = vadd.f32 0.0, %v4612
      %v4614 = vpop.f32.mrf.mxu0
      %v4615 = vadd.f32 0.0, %v4614
      %4616 = vdwg.mxu0
      %4617 = vmatpush.bf16.msra.mxu0 0
      %4618 = vmatpush.bf16.msra.mxu0 0
      %4619 = vmatpush.bf16.msra.mxu0 0
      %4620 = vmatpush.bf16.msra.mxu0 0
      %4621 = vmatpush.bf16.msra.mxu0 %v4563
      %4622 = vmatpush.bf16.msra.mxu0 %v4562
      %4623 = vmatpush.bf16.msra.mxu0 %v4561
      %4624 = vmatpush.bf16.msra.mxu0 %v4560
      %4625 = vmatmul.bf16.gmra.mxu0 %v4577
      %v4626 = vpop.f32.mrf.mxu0
      %v4627 = vadd.f32 %v4598, %v4626
      %v4628 = vpop.f32.mrf.mxu0
      %v4629 = vadd.f32 %v4600, %v4628
      %4630 = vmatmul.bf16.gmra.mxu0 %v4580
      %v4631 = vpop.f32.mrf.mxu0
      %v4632 = vadd.f32 %v4603, %v4631
      %v4633 = vpop.f32.mrf.mxu0
      %v4634 = vadd.f32 %v4605, %v4633
      %4635 = vmatmul.bf16.gmra.mxu0 %v4583
      %v4636 = vpop.f32.mrf.mxu0
      %v4637 = vadd.f32 %v4608, %v4636
      %v4638 = vpop.f32.mrf.mxu0
      %v4639 = vadd.f32 %v4610, %v4638
      %4640 = vmatmul.bf16.gmra.mxu0 %v4586
      %v4641 = vpop.f32.mrf.mxu0
      %v4642 = vadd.f32 %v4613, %v4641
      %v4643 = vpop.f32.mrf.mxu0
      %v4644 = vadd.f32 %v4615, %v4643
      %4645 = vdwg.mxu0
      %v4647 = vperm.slane %v4454, 0
      %v4649 = vadd.f32 %v4647, %v4627
      %v4650 = vadd.f32 %v4647, %v4629
      %v4651 = vadd.f32 %v4647, %v4632
      %v4652 = vadd.f32 %v4647, %v4634
      %v4653 = vadd.f32 %v4647, %v4637
      %v4654 = vadd.f32 %v4647, %v4639
      %v4655 = vadd.f32 %v4647, %v4642
      %v4656 = vadd.f32 %v4647, %v4644
      %v4657 = vld [vmem:[#allocation2 + $0x10] sm:$0xff]
      %v4658 = vld [vmem:[#allocation2 + $0x18] sm:$0xff]
      %v4659 = vld [vmem:[#allocation2 + $0x20] sm:$0xff]
      %v4660 = vld [vmem:[#allocation2 + $0x28] sm:$0xff]
      %v4661 = vld [vmem:[#allocation2 + $0x30] sm:$0xff]
      %v4662 = vld [vmem:[#allocation2 + $0x38] sm:$0xff]
      %v4663 = vld [vmem:[#allocation2 + $0x40] sm:$0xff]
      %v4664 = vld [vmem:[#allocation2 + $0x48] sm:$0xff]
      %v4665 = vld [vmem:[#allocation2 + $0x50] sm:$0xff]
      %v4666 = vld [vmem:[#allocation2 + $0x58] sm:$0xff]
      %v4667 = vld [vmem:[#allocation2 + $0x60] sm:$0xff]
      %v4668 = vld [vmem:[#allocation2 + $0x68] sm:$0xff]
      %v4669 = vld [vmem:[#allocation2 + $0x70] sm:$0xff]
      %v4670 = vld [vmem:[#allocation2 + $0x78] sm:$0xff]
      %v4671 = vld [vmem:[#allocation2 + $0x80] sm:$0xff]
      %v4672 = vld [vmem:[#allocation2 + $0x88] sm:$0xff]
      %v4673 = vpack.c.bf16 %v4659, %v4657
      %v4674 = vpack.c.bf16 %v4660, %v4658
      %v4675 = vpack.c.bf16 %v4663, %v4661
      %v4676 = vpack.c.bf16 %v4664, %v4662
      %v4677 = vpack.c.bf16 %v4667, %v4665
      %v4678 = vpack.c.bf16 %v4668, %v4666
      %v4679 = vpack.c.bf16 %v4671, %v4669
      %v4680 = vpack.c.bf16 %v4672, %v4670
      %v4681 = vld [vmem:[%s4479 + $0x60] sm:$0xf]
      %v4682 = vld [vmem:[%s4479 + $0x64] sm:$0xf]
      %v4683 = vld [vmem:[%s4479 + $0x68] sm:$0xf]
      %v4684 = vld [vmem:[%s4479 + $0x6c] sm:$0xf]
      %v4685 = vld [vmem:[%s4479 + $0x70] sm:$0xf]
      %v4686 = vld [vmem:[%s4479 + $0x74] sm:$0xf]
      %v4687 = vld [vmem:[%s4479 + $0x78] sm:$0xf]
      %v4688 = vld [vmem:[%s4479 + $0x7c] sm:$0xf]
      %v4689 = vld [vmem:[%s4479 + $0x80] sm:$0xf]
      %v4690 = vld [vmem:[%s4479 + $0x84] sm:$0xf]
      %v4691 = vld [vmem:[%s4479 + $0x88] sm:$0xf]
      %v4692 = vld [vmem:[%s4479 + $0x8c] sm:$0xf]
      %v4693 = vld [vmem:[%s4479 + $0x90] sm:$0xf]
      %v4694 = vld [vmem:[%s4479 + $0x94] sm:$0xf]
      %v4695 = vld [vmem:[%s4479 + $0x98] sm:$0xf]
      %v4696 = vld [vmem:[%s4479 + $0x9c] sm:$0xf]
      %v4697 = vld [vmem:[%s4479 + $0xa0] sm:$0xf]
      %v4698 = vld [vmem:[%s4479 + $0xa4] sm:$0xf]
      %v4699 = vld [vmem:[%s4479 + $0xa8] sm:$0xf]
      %v4700 = vld [vmem:[%s4479 + $0xac] sm:$0xf]
      %v4701 = vld [vmem:[%s4479 + $0xb0] sm:$0xf]
      %v4702 = vld [vmem:[%s4479 + $0xb4] sm:$0xf]
      %v4703 = vld [vmem:[%s4479 + $0xb8] sm:$0xf]
      %v4704 = vld [vmem:[%s4479 + $0xbc] sm:$0xf]
      %v4729 = vunpack.c.l.b16 %v4681
      %v4730 = vunpack.c.l.b16 %v4682
      %v4731 = vunpack.c.l.b16 %v4683
      %v4732 = vunpack.c.l.b16 %v4684
      %v4733 = vunpack.c.l.b16 %v4685
      %v4734 = vunpack.c.l.b16 %v4686
      %v4735 = vunpack.c.l.b16 %v4687
      %v4736 = vunpack.c.l.b16 %v4688
      %v4737 = vunpack.c.l.b16 %v4689
      %v4738 = vunpack.c.l.b16 %v4690
      %v4739 = vunpack.c.l.b16 %v4691
      %v4740 = vunpack.c.l.b16 %v4692
      %v4741 = vunpack.c.l.b16 %v4693
      %v4742 = vunpack.c.l.b16 %v4694
      %v4743 = vunpack.c.l.b16 %v4695
      %v4744 = vunpack.c.l.b16 %v4696
      %v4745 = vunpack.c.l.b16 %v4697
      %v4746 = vunpack.c.l.b16 %v4698
      %v4747 = vunpack.c.l.b16 %v4699
      %v4748 = vunpack.c.l.b16 %v4700
      %v4749 = vunpack.c.l.b16 %v4701
      %v4750 = vunpack.c.l.b16 %v4702
      %v4751 = vunpack.c.l.b16 %v4703
      %v4752 = vunpack.c.l.b16 %v4704
      %v4753 = vpack.c.b16 %v4730, %v4729
      %v4754 = vpack.c.b16 %v4732, %v4731
      %v4755 = vpack.c.b16 %v4734, %v4733
      %v4756 = vpack.c.b16 %v4736, %v4735
      %v4757 = vpack.c.b16 %v4738, %v4737
      %v4758 = vpack.c.b16 %v4740, %v4739
      %v4759 = vpack.c.b16 %v4742, %v4741
      %v4760 = vpack.c.b16 %v4744, %v4743
      %v4761 = vpack.c.b16 %v4746, %v4745
      %v4762 = vpack.c.b16 %v4748, %v4747
      %v4763 = vpack.c.b16 %v4750, %v4749
      %v4764 = vpack.c.b16 %v4752, %v4751
      %v4778 = vsel %vm481, %v4674, 0
      %v4781 = vsel %vm481, %v4676, 0
      %v4784 = vsel %vm481, %v4678, 0
      %v4787 = vsel %vm481, %v4680, 0
      %4789 = vmatpush.bf16.msra.mxu0 %v4760
      %4790 = vmatpush.bf16.msra.mxu0 %v4759
      %4791 = vmatpush.bf16.msra.mxu0 %v4758
      %4792 = vmatpush.bf16.msra.mxu0 %v4757
      %4793 = vmatpush.bf16.msra.mxu0 %v4756
      %4794 = vmatpush.bf16.msra.mxu0 %v4755
      %4795 = vmatpush.bf16.msra.mxu0 %v4754
      %4796 = vmatpush.bf16.msra.mxu0 %v4753
      %4797 = vmatmul.bf16.gmra.mxu0 %v4673
      %v4798 = vpop.f32.mrf.mxu0
      %v4799 = vadd.f32 0.0, %v4798
      %v4800 = vpop.f32.mrf.mxu0
      %v4801 = vadd.f32 0.0, %v4800
      %4802 = vmatmul.bf16.gmra.mxu0 %v4675
      %v4803 = vpop.f32.mrf.mxu0
      %v4804 = vadd.f32 0.0, %v4803
      %v4805 = vpop.f32.mrf.mxu0
      %v4806 = vadd.f32 0.0, %v4805
      %4807 = vmatmul.bf16.gmra.mxu0 %v4677
      %v4808 = vpop.f32.mrf.mxu0
      %v4809 = vadd.f32 0.0, %v4808
      %v4810 = vpop.f32.mrf.mxu0
      %v4811 = vadd.f32 0.0, %v4810
      %4812 = vmatmul.bf16.gmra.mxu0 %v4679
      %v4813 = vpop.f32.mrf.mxu0
      %v4814 = vadd.f32 0.0, %v4813
      %v4815 = vpop.f32.mrf.mxu0
      %v4816 = vadd.f32 0.0, %v4815
      %4817 = vdwg.mxu0
      %4818 = vmatpush.bf16.msra.mxu0 0
      %4819 = vmatpush.bf16.msra.mxu0 0
      %4820 = vmatpush.bf16.msra.mxu0 0
      %4821 = vmatpush.bf16.msra.mxu0 0
      %4822 = vmatpush.bf16.msra.mxu0 %v4764
      %4823 = vmatpush.bf16.msra.mxu0 %v4763
      %4824 = vmatpush.bf16.msra.mxu0 %v4762
      %4825 = vmatpush.bf16.msra.mxu0 %v4761
      %4826 = vmatmul.bf16.gmra.mxu0 %v4778
      %v4827 = vpop.f32.mrf.mxu0
      %v4828 = vadd.f32 %v4799, %v4827
      %v4829 = vpop.f32.mrf.mxu0
      %v4830 = vadd.f32 %v4801, %v4829
      %4831 = vmatmul.bf16.gmra.mxu0 %v4781
      %v4832 = vpop.f32.mrf.mxu0
      %v4833 = vadd.f32 %v4804, %v4832
      %v4834 = vpop.f32.mrf.mxu0
      %v4835 = vadd.f32 %v4806, %v4834
      %4836 = vmatmul.bf16.gmra.mxu0 %v4784
      %v4837 = vpop.f32.mrf.mxu0
      %v4838 = vadd.f32 %v4809, %v4837
      %v4839 = vpop.f32.mrf.mxu0
      %v4840 = vadd.f32 %v4811, %v4839
      %4841 = vmatmul.bf16.gmra.mxu0 %v4787
      %v4842 = vpop.f32.mrf.mxu0
      %v4843 = vadd.f32 %v4814, %v4842
      %v4844 = vpop.f32.mrf.mxu0
      %v4845 = vadd.f32 %v4816, %v4844
      %4846 = vdwg.mxu0
      %v4847 = vadd.f32 %v4649, %v4828
      %v4848 = vadd.f32 %v4650, %v4830
      %v4849 = vadd.f32 %v4651, %v4833
      %v4850 = vadd.f32 %v4652, %v4835
      %v4851 = vadd.f32 %v4653, %v4838
      %v4852 = vadd.f32 %v4654, %v4840
      %v4853 = vadd.f32 %v4655, %v4843
      %v4854 = vadd.f32 %v4656, %v4845
      %v4855 = vld [vmem:[#allocation2 + $0x20] sm:$0xff]
      %v4856 = vld [vmem:[#allocation2 + $0x28] sm:$0xff]
      %v4857 = vld [vmem:[#allocation2 + $0x30] sm:$0xff]
      %v4858 = vld [vmem:[#allocation2 + $0x38] sm:$0xff]
      %v4859 = vld [vmem:[#allocation2 + $0x40] sm:$0xff]
      %v4860 = vld [vmem:[#allocation2 + $0x48] sm:$0xff]
      %v4861 = vld [vmem:[#allocation2 + $0x50] sm:$0xff]
      %v4862 = vld [vmem:[#allocation2 + $0x58] sm:$0xff]
      %v4863 = vld [vmem:[#allocation2 + $0x60] sm:$0xff]
      %v4864 = vld [vmem:[#allocation2 + $0x68] sm:$0xff]
      %v4865 = vld [vmem:[#allocation2 + $0x70] sm:$0xff]
      %v4866 = vld [vmem:[#allocation2 + $0x78] sm:$0xff]
      %v4867 = vld [vmem:[#allocation2 + $0x80] sm:$0xff]
      %v4868 = vld [vmem:[#allocation2 + $0x88] sm:$0xff]
      %v4869 = vld [vmem:[#allocation2 + $0x90] sm:$0xff]
      %v4870 = vld [vmem:[#allocation2 + $0x98] sm:$0xff]
      %v4871 = vpack.c.bf16 %v4857, %v4855
      %v4872 = vpack.c.bf16 %v4858, %v4856
      %v4873 = vpack.c.bf16 %v4861, %v4859
      %v4874 = vpack.c.bf16 %v4862, %v4860
      %v4875 = vpack.c.bf16 %v4865, %v4863
      %v4876 = vpack.c.bf16 %v4866, %v4864
      %v4877 = vpack.c.bf16 %v4869, %v4867
      %v4878 = vpack.c.bf16 %v4870, %v4868
      %v4879 = vld [vmem:[%s4479 + $0xc0] sm:$0xf]
      %v4880 = vld [vmem:[%s4479 + $0xc4] sm:$0xf]
      %v4881 = vld [vmem:[%s4479 + $0xc8] sm:$0xf]
      %v4882 = vld [vmem:[%s4479 + $0xcc] sm:$0xf]
      %v4883 = vld [vmem:[%s4479 + $0xd0] sm:$0xf]
      %v4884 = vld [vmem:[%s4479 + $0xd4] sm:$0xf]
      %v4885 = vld [vmem:[%s4479 + $0xd8] sm:$0xf]
      %v4886 = vld [vmem:[%s4479 + $0xdc] sm:$0xf]
      %v4887 = vld [vmem:[%s4479 + $0xe0] sm:$0xf]
      %v4888 = vld [vmem:[%s4479 + $0xe4] sm:$0xf]
      %v4889 = vld [vmem:[%s4479 + $0xe8] sm:$0xf]
      %v4890 = vld [vmem:[%s4479 + $0xec] sm:$0xf]
      %v4891 = vld [vmem:[%s4479 + $0xf0] sm:$0xf]
      %v4892 = vld [vmem:[%s4479 + $0xf4] sm:$0xf]
      %v4893 = vld [vmem:[%s4479 + $0xf8] sm:$0xf]
      %v4894 = vld [vmem:[%s4479 + $0xfc] sm:$0xf]
      %v4895 = vld [vmem:[%s4479 + $0x100] sm:$0xf]
      %v4896 = vld [vmem:[%s4479 + $0x104] sm:$0xf]
      %v4897 = vld [vmem:[%s4479 + $0x108] sm:$0xf]
      %v4898 = vld [vmem:[%s4479 + $0x10c] sm:$0xf]
      %v4899 = vld [vmem:[%s4479 + $0x110] sm:$0xf]
      %v4900 = vld [vmem:[%s4479 + $0x114] sm:$0xf]
      %v4901 = vld [vmem:[%s4479 + $0x118] sm:$0xf]
      %v4902 = vld [vmem:[%s4479 + $0x11c] sm:$0xf]
      %v4927 = vunpack.c.l.b16 %v4879
      %v4928 = vunpack.c.l.b16 %v4880
      %v4929 = vunpack.c.l.b16 %v4881
      %v4930 = vunpack.c.l.b16 %v4882
      %v4931 = vunpack.c.l.b16 %v4883
      %v4932 = vunpack.c.l.b16 %v4884
      %v4933 = vunpack.c.l.b16 %v4885
      %v4934 = vunpack.c.l.b16 %v4886
      %v4935 = vunpack.c.l.b16 %v4887
      %v4936 = vunpack.c.l.b16 %v4888
      %v4937 = vunpack.c.l.b16 %v4889
      %v4938 = vunpack.c.l.b16 %v4890
      %v4939 = vunpack.c.l.b16 %v4891
      %v4940 = vunpack.c.l.b16 %v4892
      %v4941 = vunpack.c.l.b16 %v4893
      %v4942 = vunpack.c.l.b16 %v4894
      %v4943 = vunpack.c.l.b16 %v4895
      %v4944 = vunpack.c.l.b16 %v4896
      %v4945 = vunpack.c.l.b16 %v4897
      %v4946 = vunpack.c.l.b16 %v4898
      %v4947 = vunpack.c.l.b16 %v4899
      %v4948 = vunpack.c.l.b16 %v4900
      %v4949 = vunpack.c.l.b16 %v4901
      %v4950 = vunpack.c.l.b16 %v4902
      %v4951 = vpack.c.b16 %v4928, %v4927
      %v4952 = vpack.c.b16 %v4930, %v4929
      %v4953 = vpack.c.b16 %v4932, %v4931
      %v4954 = vpack.c.b16 %v4934, %v4933
      %v4955 = vpack.c.b16 %v4936, %v4935
      %v4956 = vpack.c.b16 %v4938, %v4937
      %v4957 = vpack.c.b16 %v4940, %v4939
      %v4958 = vpack.c.b16 %v4942, %v4941
      %v4959 = vpack.c.b16 %v4944, %v4943
      %v4960 = vpack.c.b16 %v4946, %v4945
      %v4961 = vpack.c.b16 %v4948, %v4947
      %v4962 = vpack.c.b16 %v4950, %v4949
      %v4976 = vsel %vm481, %v4872, 0
      %v4979 = vsel %vm481, %v4874, 0
      %v4982 = vsel %vm481, %v4876, 0
      %v4985 = vsel %vm481, %v4878, 0
      %4987 = vmatpush.bf16.msra.mxu0 %v4958
      %4988 = vmatpush.bf16.msra.mxu0 %v4957
      %4989 = vmatpush.bf16.msra.mxu0 %v4956
      %4990 = vmatpush.bf16.msra.mxu0 %v4955
      %4991 = vmatpush.bf16.msra.mxu0 %v4954
      %4992 = vmatpush.bf16.msra.mxu0 %v4953
      %4993 = vmatpush.bf16.msra.mxu0 %v4952
      %4994 = vmatpush.bf16.msra.mxu0 %v4951
      %4995 = vmatmul.bf16.gmra.mxu0 %v4871
      %v4996 = vpop.f32.mrf.mxu0
      %v4997 = vadd.f32 0.0, %v4996
      %v4998 = vpop.f32.mrf.mxu0
      %v4999 = vadd.f32 0.0, %v4998
      %5000 = vmatmul.bf16.gmra.mxu0 %v4873
      %v5001 = vpop.f32.mrf.mxu0
      %v5002 = vadd.f32 0.0, %v5001
      %v5003 = vpop.f32.mrf.mxu0
      %v5004 = vadd.f32 0.0, %v5003
      %5005 = vmatmul.bf16.gmra.mxu0 %v4875
      %v5006 = vpop.f32.mrf.mxu0
      %v5007 = vadd.f32 0.0, %v5006
      %v5008 = vpop.f32.mrf.mxu0
      %v5009 = vadd.f32 0.0, %v5008
      %5010 = vmatmul.bf16.gmra.mxu0 %v4877
      %v5011 = vpop.f32.mrf.mxu0
      %v5012 = vadd.f32 0.0, %v5011
      %v5013 = vpop.f32.mrf.mxu0
      %v5014 = vadd.f32 0.0, %v5013
      %5015 = vdwg.mxu0
      %5016 = vmatpush.bf16.msra.mxu0 0
      %5017 = vmatpush.bf16.msra.mxu0 0
      %5018 = vmatpush.bf16.msra.mxu0 0
      %5019 = vmatpush.bf16.msra.mxu0 0
      %5020 = vmatpush.bf16.msra.mxu0 %v4962
      %5021 = vmatpush.bf16.msra.mxu0 %v4961
      %5022 = vmatpush.bf16.msra.mxu0 %v4960
      %5023 = vmatpush.bf16.msra.mxu0 %v4959
      %5024 = vmatmul.bf16.gmra.mxu0 %v4976
      %v5025 = vpop.f32.mrf.mxu0
      %v5026 = vadd.f32 %v4997, %v5025
      %v5027 = vpop.f32.mrf.mxu0
      %v5028 = vadd.f32 %v4999, %v5027
      %5029 = vmatmul.bf16.gmra.mxu0 %v4979
      %v5030 = vpop.f32.mrf.mxu0
      %v5031 = vadd.f32 %v5002, %v5030
      %v5032 = vpop.f32.mrf.mxu0
      %v5033 = vadd.f32 %v5004, %v5032
      %5034 = vmatmul.bf16.gmra.mxu0 %v4982
      %v5035 = vpop.f32.mrf.mxu0
      %v5036 = vadd.f32 %v5007, %v5035
      %v5037 = vpop.f32.mrf.mxu0
      %v5038 = vadd.f32 %v5009, %v5037
      %5039 = vmatmul.bf16.gmra.mxu0 %v4985
      %v5040 = vpop.f32.mrf.mxu0
      %v5041 = vadd.f32 %v5012, %v5040
      %v5042 = vpop.f32.mrf.mxu0
      %v5043 = vadd.f32 %v5014, %v5042
      %5044 = vdwg.mxu0
      %v5045 = vadd.f32 %v4847, %v5026
      %v5046 = vadd.f32 %v4848, %v5028
      %v5047 = vadd.f32 %v4849, %v5031
      %v5048 = vadd.f32 %v4850, %v5033
      %v5049 = vadd.f32 %v4851, %v5036
      %v5050 = vadd.f32 %v4852, %v5038
      %v5051 = vadd.f32 %v4853, %v5041
      %v5052 = vadd.f32 %v4854, %v5043
      %s5053 = scalar_lea.vmem %s1, 10
      %v5054 = vld [vmem:[%s5053] sm:$0x1]
      %s5055 = scalar_lea.vmem %s1, 11
      %v5056 = vld [vmem:[%s5055] sm:$0x1]
      %v5057 = vsel %vm481, %v5045, 0.0
      %v5058 = vsel %vm481, %v5046, 0.0
      %v5059 = vadd.f32 %v5057, %v5058
      %v5060 = vsel %vm481, %v5047, 0.0
      %v5061 = vadd.f32 %v5059, %v5060
      %v5062 = vsel %vm481, %v5048, 0.0
      %v5063 = vadd.f32 %v5061, %v5062
      %v5064 = vsel %vm481, %v5049, 0.0
      %v5065 = vadd.f32 %v5063, %v5064
      %v5066 = vsel %vm481, %v5050, 0.0
      %v5067 = vadd.f32 %v5065, %v5066
      %v5068 = vsel %vm481, %v5051, 0.0
      %v5069 = vadd.f32 %v5067, %v5068
      %v5070 = vsel %vm481, %v5052, 0.0
      %v5071 = vadd.f32 %v5069, %v5070
      %v5072 = vrot.slane %v5071, 4
      %v5073 = vadd.f32 %v5071, %v5072
      %v5074 = vrot.slane %v5073, 2
      %v5075 = vadd.f32 %v5073, %v5074
      %v5076 = vrot.slane %v5075, 1
      %v5077 = vadd.f32 %v5075, %v5076
      %v5078 = vmul.f32 %v5045, %v5045
      %v5079 = vmul.f32 %v5046, %v5046
      %v5080 = vmul.f32 %v5047, %v5047
      %v5081 = vmul.f32 %v5048, %v5048
      %v5082 = vmul.f32 %v5049, %v5049
      %v5083 = vmul.f32 %v5050, %v5050
      %v5084 = vmul.f32 %v5051, %v5051
      %v5085 = vmul.f32 %v5052, %v5052
      %v5086 = vsel %vm481, %v5078, 0.0
      %v5087 = vsel %vm481, %v5079, 0.0
      %v5088 = vadd.f32 %v5086, %v5087
      %v5089 = vsel %vm481, %v5080, 0.0
      %v5090 = vadd.f32 %v5088, %v5089
      %v5091 = vsel %vm481, %v5081, 0.0
      %v5092 = vadd.f32 %v5090, %v5091
      %v5093 = vsel %vm481, %v5082, 0.0
      %v5094 = vadd.f32 %v5092, %v5093
      %v5095 = vsel %vm481, %v5083, 0.0
      %v5096 = vadd.f32 %v5094, %v5095
      %v5097 = vsel %vm481, %v5084, 0.0
      %v5098 = vadd.f32 %v5096, %v5097
      %v5099 = vsel %vm481, %v5085, 0.0
      %v5100 = vadd.f32 %v5098, %v5099
      %v5101 = vrot.slane %v5100, 4
      %v5102 = vadd.f32 %v5100, %v5101
      %v5103 = vrot.slane %v5102, 2
      %v5104 = vadd.f32 %v5102, %v5103
      %v5105 = vrot.slane %v5104, 1
      %v5106 = vadd.f32 %v5104, %v5105
      %v5107 = vsel %vm532, %v5077, %v5106
      %v5109 = vsel %vm481, %v5107, 0
      %5111 = vmatpush.msra.mxu0 0.0
      %5112 = vmatpush.msra.mxu0 0.0
      %5113 = vmatpush.msra.mxu0 0.0
      %5114 = vmatpush.msra.mxu0 0.0
      %5115 = vmatpush.msra.mxu0 0.0
      %5116 = vmatpush.msra.mxu0 0.0
      %5117 = vmatpush.msra.mxu0 0.0
      %5118 = vmatpush.msra.mxu0 0.0
      %5119 = vmatpush.msra.mxu0 %v322
      %5120 = vmatpush.msra.mxu0 %v321
      %5121 = vmatpush.msra.mxu0 %v320
      %5122 = vmatpush.msra.mxu0 %v319
      %5123 = vmatpush.msra.mxu0 %v318
      %5124 = vmatpush.msra.mxu0 %v317
      %5125 = vmatpush.msra.mxu0 %v316
      %5126 = vmatpush.msra.mxu0 %v315
      %5127 = vmatmul.f32.gmra.mxu0 %v5109
      %v5128 = vpop.f32.mrf.mxu0
      %v5129 = vadd.f32 0.0, %v5128
      %5130 = vdwg.mxu0
      %v5131 = vmul.f32 %v5129, 0.0078125
      %v5132 = vmul.f32 %v5131, %v5131
      %v5134 = vrot.slane %v5132, 7
      %v5136 = vsub.f32 %v5131, %v5134
      %v5137 = vadd.f32 %v5136, 1e-05
      %v5138 = vrsqrt.pop %v5137
      %v5139 = vmul.f32 %v5138, %v5137
      %v5140 = vmul.f32 %v5139, %v5138
      %v5141 = vmul.f32 0.5, %v5140
      %v5142 = vsub.f32 1.5, %v5141
      %v5143 = vmul.f32 %v5138, %v5142
      %vm5144 = vweird.f32 %v5137
      %vm5145 = vweird.f32 %v5138
      %vm5146 = vmor %vm5144, %vm5145
      %v5147 = vsel %vm5146, %v5138, %v5143
      %v5148 = vsel %vm532, %v5131, %v5147
      %v5150 = vsel %vm575, %v5148, 0
      %5152 = vmatpush.msra.mxu0 0.0
      %5153 = vmatpush.msra.mxu0 0.0
      %5154 = vmatpush.msra.mxu0 0.0
      %5155 = vmatpush.msra.mxu0 0.0
      %5156 = vmatpush.msra.mxu0 0.0
      %5157 = vmatpush.msra.mxu0 0.0
      %5158 = vmatpush.msra.mxu0 0.0
      %5159 = vmatpush.msra.mxu0 0.0
      %5160 = vmatpush.msra.mxu0 0.0
      %5161 = vmatpush.msra.mxu0 0.0
      %5162 = vmatpush.msra.mxu0 0.0
      %5163 = vmatpush.msra.mxu0 0.0
      %5164 = vmatpush.msra.mxu0 %v326
      %5165 = vmatpush.msra.mxu0 %v325
      %5166 = vmatpush.msra.mxu0 %v324
      %5167 = vmatpush.msra.mxu0 %v323
      %5168 = vmatmul.f32.gmra.mxu0 %v5150
      %v5169 = vpop.f32.mrf.mxu0
      %v5170 = vadd.f32 0.0, %v5169
      %5171 = vdwg.mxu0
      %v5173 = vperm.slane %v5054, 0
      %v5175 = vmul.f32 %v5170, %v5173
      %v5177 = vrot.slane %v5175, 1
      %v5179 = vmul.f32 %v5170, %v5177
      %v5180 = vsub.f32 %v5056, %v5179
      %v5181 = vperm.slane %v5175, 1
      %v5182 = vmul.f32 %v5045, %v5181
      %v5183 = vmul.f32 %v5046, %v5181
      %v5184 = vmul.f32 %v5047, %v5181
      %v5185 = vmul.f32 %v5048, %v5181
      %v5186 = vmul.f32 %v5049, %v5181
      %v5187 = vmul.f32 %v5050, %v5181
      %v5188 = vmul.f32 %v5051, %v5181
      %v5189 = vmul.f32 %v5052, %v5181
      %v5191 = vperm.slane %v5180, 0
      %v5193 = vadd.f32 %v5182, %v5191
      %v5194 = vadd.f32 %v5183, %v5191
      %v5195 = vadd.f32 %v5184, %v5191
      %v5196 = vadd.f32 %v5185, %v5191
      %v5197 = vadd.f32 %v5186, %v5191
      %v5198 = vadd.f32 %v5187, %v5191
      %v5199 = vadd.f32 %v5188, %v5191
      %v5200 = vadd.f32 %v5189, %v5191
      %v5201 = vsub.f32 0.0, %v5193
      %v5202 = vsub.f32 0.0, %v5194
      %v5203 = vsub.f32 0.0, %v5195
      %v5204 = vsub.f32 0.0, %v5196
      %v5205 = vsub.f32 0.0, %v5197
      %v5206 = vsub.f32 0.0, %v5198
      %v5207 = vsub.f32 0.0, %v5199
      %v5208 = vsub.f32 0.0, %v5200
      %v5209 = vmul.f32 %v5201, 1.442695
      %v5210 = vpow.pop %v5209
      %v5211 = vmul.f32 %v5202, 1.442695
      %v5212 = vpow.pop %v5211
      %v5213 = vmul.f32 %v5203, 1.442695
      %v5214 = vpow.pop %v5213
      %v5215 = vmul.f32 %v5204, 1.442695
      %v5216 = vpow.pop %v5215
      %v5217 = vmul.f32 %v5205, 1.442695
      %v5218 = vpow.pop %v5217
      %v5219 = vmul.f32 %v5206, 1.442695
      %v5220 = vpow.pop %v5219
      %v5221 = vmul.f32 %v5207, 1.442695
      %v5222 = vpow.pop %v5221
      %v5223 = vmul.f32 %v5208, 1.442695
      %v5224 = vpow.pop %v5223
      %v5225 = vadd.f32 %v5210, 1.0
      %v5226 = vadd.f32 %v5212, 1.0
      %v5227 = vadd.f32 %v5214, 1.0
      %v5228 = vadd.f32 %v5216, 1.0
      %v5229 = vadd.f32 %v5218, 1.0
      %v5230 = vadd.f32 %v5220, 1.0
      %v5231 = vadd.f32 %v5222, 1.0
      %v5232 = vadd.f32 %v5224, 1.0
      %v5233 = vrcp.pop %v5225
      %v5234 = vrcp.pop %v5226
      %v5235 = vrcp.pop %v5227
      %v5236 = vrcp.pop %v5228
      %v5237 = vrcp.pop %v5229
      %v5238 = vrcp.pop %v5230
      %v5239 = vrcp.pop %v5231
      %v5240 = vrcp.pop %v5232
      %v5241 = vmul.f32 %v5193, %v5233
      %v5242 = vmul.f32 %v5194, %v5234
      %v5243 = vmul.f32 %v5195, %v5235
      %v5244 = vmul.f32 %v5196, %v5236
      %v5245 = vmul.f32 %v5197, %v5237
      %v5246 = vmul.f32 %v5198, %v5238
      %v5247 = vmul.f32 %v5199, %v5239
      %v5248 = vmul.f32 %v5200, %v5240
      %v5249 = vrot.slane %v5241, 7
      %v5250 = vrot.slane %v5242, 7
      %v5251 = vrot.slane %v5243, 7
      %v5252 = vrot.slane %v5244, 7
      %v5253 = vrot.slane %v5245, 7
      %v5254 = vrot.slane %v5246, 7
      %v5255 = vrot.slane %v5247, 7
      %v5256 = vrot.slane %v5248, 7
      %v5257 = vsel %vm684, %v5256, 0.0
      %v5258 = vsel %vm684, %v5255, %v5256
      %v5259 = vsel %vm684, %v5254, %v5255
      %v5260 = vsel %vm684, %v5253, %v5254
      %v5261 = vsel %vm684, %v5252, %v5253
      %v5262 = vsel %vm684, %v5251, %v5252
      %v5263 = vsel %vm684, %v5250, %v5251
      %v5264 = vsel %vm684, %v5249, %v5250
      %v5265 = vsel %vm684, 0.0, %v5249
      %v5266 = vsel %vm459, %v5265, 0.0
      %v5267 = vsel %vm460, %v5264, 0.0
      %v5268 = vsel %vm461, %v5263, 0.0
      %v5269 = vsel %vm462, %v5262, 0.0
      %v5270 = vsel %vm463, %v5261, 0.0
      %v5271 = vsel %vm464, %v5260, 0.0
      %v5272 = vsel %vm465, %v5259, 0.0
      %v5273 = vsel %vm466, %v5258, 0.0
      %v5274 = vsel %vm467, %v5257, 0.0
      %5275 = vst.msk [vmem:[#allocation2] sm:$0xff] %vm481, %v694
      %5276 = vst.msk [vmem:[#allocation2 + $0x10] sm:$0xff] %vm481, %v5266
      %5277 = vst.msk [vmem:[#allocation2 + $0x20] sm:$0xff] %vm481, %v5267
      %5278 = vst.msk [vmem:[#allocation2 + $0x30] sm:$0xff] %vm481, %v5268
      %5279 = vst.msk [vmem:[#allocation2 + $0x40] sm:$0xff] %vm481, %v5269
      %5280 = vst.msk [vmem:[#allocation2 + $0x50] sm:$0xff] %vm481, %v5270
      %5281 = vst.msk [vmem:[#allocation2 + $0x60] sm:$0xff] %vm481, %v5271
      %5282 = vst.msk [vmem:[#allocation2 + $0x70] sm:$0xff] %vm481, %v5272
      %5283 = vst.msk [vmem:[#allocation2 + $0x80] sm:$0xff] %vm481, %v5273
      %5284 = vst.msk [vmem:[#allocation2 + $0x90] sm:$0xff] %vm481, %v5274
      %5293 = vrot.lane.b32.xlu0 %v5241, 64
      %v5294 = vpop.permute.xlu0 %5293
      %5295 = vrot.lane.b32.xlu0 %v5242, 64
      %v5296 = vpop.permute.xlu0 %5295
      %5297 = vrot.lane.b32.xlu0 %v5243, 64
      %v5298 = vpop.permute.xlu0 %5297
      %5299 = vrot.lane.b32.xlu0 %v5244, 64
      %v5300 = vpop.permute.xlu0 %5299
      %5301 = vrot.lane.b32.xlu0 %v5245, 64
      %v5302 = vpop.permute.xlu0 %5301
      %5303 = vrot.lane.b32.xlu0 %v5246, 64
      %v5304 = vpop.permute.xlu0 %5303
      %5305 = vrot.lane.b32.xlu0 %v5247, 64
      %v5306 = vpop.permute.xlu0 %5305
      %5307 = vrot.lane.b32.xlu0 %v5248, 64
      %v5308 = vpop.permute.xlu0 %5307
      %5317 = vst.msk [vmem:[#allocation2] sm:$0xff] %vm750, %v724
      %5318 = vst.msk [vmem:[#allocation2 + $0x10] sm:$0xff] %vm750, %v5294
      %5319 = vst.msk [vmem:[#allocation2 + $0x20] sm:$0xff] %vm750, %v5296
      %5320 = vst.msk [vmem:[#allocation2 + $0x30] sm:$0xff] %vm750, %v5298
      %5321 = vst.msk [vmem:[#allocation2 + $0x40] sm:$0xff] %vm750, %v5300
      %5322 = vst.msk [vmem:[#allocation2 + $0x50] sm:$0xff] %vm750, %v5302
      %5323 = vst.msk [vmem:[#allocation2 + $0x60] sm:$0xff] %vm750, %v5304
      %5324 = vst.msk [vmem:[#allocation2 + $0x70] sm:$0xff] %vm750, %v5306
      %5325 = vst.msk [vmem:[#allocation2 + $0x80] sm:$0xff] %vm750, %v5308
      %5326 = vst.msk [vmem:[#allocation2 + $0x90] sm:$0xff] %vm750, %v724
      %v5327 = vrot.slane %v5241, 1
      %v5328 = vrot.slane %v5242, 1
      %v5329 = vrot.slane %v5243, 1
      %v5330 = vrot.slane %v5244, 1
      %v5331 = vrot.slane %v5245, 1
      %v5332 = vrot.slane %v5246, 1
      %v5333 = vrot.slane %v5247, 1
      %v5334 = vrot.slane %v5248, 1
      %v5335 = vsel %vm769, %v5334, 0.0
      %v5336 = vsel %vm769, %v5333, %v5334
      %v5337 = vsel %vm769, %v5332, %v5333
      %v5338 = vsel %vm769, %v5331, %v5332
      %v5339 = vsel %vm769, %v5330, %v5331
      %v5340 = vsel %vm769, %v5329, %v5330
      %v5341 = vsel %vm769, %v5328, %v5329
      %v5342 = vsel %vm769, %v5327, %v5328
      %v5343 = vsel %vm769, 0.0, %v5327
      %v5344 = vsel %vm468, %v5343, 0.0
      %v5345 = vsel %vm469, %v5342, 0.0
      %v5346 = vsel %vm470, %v5341, 0.0
      %v5347 = vsel %vm471, %v5340, 0.0
      %v5348 = vsel %vm472, %v5339, 0.0
      %v5349 = vsel %vm473, %v5338, 0.0
      %v5350 = vsel %vm474, %v5337, 0.0
      %v5351 = vsel %vm475, %v5336, 0.0
      %v5352 = vsel %vm476, %v5335, 0.0
      %5353 = vst.msk [vmem:[#allocation2 + $0x8] sm:$0xff] %vm481, %v5344
      %5354 = vst.msk [vmem:[#allocation2 + $0x18] sm:$0xff] %vm481, %v5345
      %5355 = vst.msk [vmem:[#allocation2 + $0x28] sm:$0xff] %vm481, %v5346
      %5356 = vst.msk [vmem:[#allocation2 + $0x38] sm:$0xff] %vm481, %v5347
      %5357 = vst.msk [vmem:[#allocation2 + $0x48] sm:$0xff] %vm481, %v5348
      %5358 = vst.msk [vmem:[#allocation2 + $0x58] sm:$0xff] %vm481, %v5349
      %5359 = vst.msk [vmem:[#allocation2 + $0x68] sm:$0xff] %vm481, %v5350
      %5360 = vst.msk [vmem:[#allocation2 + $0x78] sm:$0xff] %vm481, %v5351
      %5361 = vst.msk [vmem:[#allocation2 + $0x88] sm:$0xff] %vm481, %v5352
      %5362 = vst.msk [vmem:[#allocation2 + $0x98] sm:$0xff] %vm481, %v788
      %s5363 = scalar_lea.vmem %s3, 5
      %v5364 = vld [vmem:[%s5363] sm:$0x1]
      %v5365 = vld [vmem:[#allocation2] sm:$0xff]
      %v5366 = vld [vmem:[#allocation2 + $0x8] sm:$0xff]
      %v5367 = vld [vmem:[#allocation2 + $0x10] sm:$0xff]
      %v5368 = vld [vmem:[#allocation2 + $0x18] sm:$0xff]
      %v5369 = vld [vmem:[#allocation2 + $0x20] sm:$0xff]
      %v5370 = vld [vmem:[#allocation2 + $0x28] sm:$0xff]
      %v5371 = vld [vmem:[#allocation2 + $0x30] sm:$0xff]
      %v5372 = vld [vmem:[#allocation2 + $0x38] sm:$0xff]
      %v5373 = vld [vmem:[#allocation2 + $0x40] sm:$0xff]
      %v5374 = vld [vmem:[#allocation2 + $0x48] sm:$0xff]
      %v5375 = vld [vmem:[#allocation2 + $0x50] sm:$0xff]
      %v5376 = vld [vmem:[#allocation2 + $0x58] sm:$0xff]
      %v5377 = vld [vmem:[#allocation2 + $0x60] sm:$0xff]
      %v5378 = vld [vmem:[#allocation2 + $0x68] sm:$0xff]
      %v5379 = vld [vmem:[#allocation2 + $0x70] sm:$0xff]
      %v5380 = vld [vmem:[#allocation2 + $0x78] sm:$0xff]
      %v5381 = vpack.c.bf16 %v5367, %v5365
      %v5382 = vpack.c.bf16 %v5368, %v5366
      %v5383 = vpack.c.bf16 %v5371, %v5369
      %v5384 = vpack.c.bf16 %v5372, %v5370
      %v5385 = vpack.c.bf16 %v5375, %v5373
      %v5386 = vpack.c.bf16 %v5376, %v5374
      %v5387 = vpack.c.bf16 %v5379, %v5377
      %v5388 = vpack.c.bf16 %v5380, %v5378
      %s5389 = scalar_lea.vmem %s2, 1440
      %v5390 = vld [vmem:[%s5389] sm:$0xf]
      %v5391 = vld [vmem:[%s5389 + $0x4] sm:$0xf]
      %v5392 = vld [vmem:[%s5389 + $0x8] sm:$0xf]
      %v5393 = vld [vmem:[%s5389 + $0xc] sm:$0xf]
      %v5394 = vld [vmem:[%s5389 + $0x10] sm:$0xf]
      %v5395 = vld [vmem:[%s5389 + $0x14] sm:$0xf]
      %v5396 = vld [vmem:[%s5389 + $0x18] sm:$0xf]
      %v5397 = vld [vmem:[%s5389 + $0x1c] sm:$0xf]
      %v5398 = vld [vmem:[%s5389 + $0x20] sm:$0xf]
      %v5399 = vld [vmem:[%s5389 + $0x24] sm:$0xf]
      %v5400 = vld [vmem:[%s5389 + $0x28] sm:$0xf]
      %v5401 = vld [vmem:[%s5389 + $0x2c] sm:$0xf]
      %v5402 = vld [vmem:[%s5389 + $0x30] sm:$0xf]
      %v5403 = vld [vmem:[%s5389 + $0x34] sm:$0xf]
      %v5404 = vld [vmem:[%s5389 + $0x38] sm:$0xf]
      %v5405 = vld [vmem:[%s5389 + $0x3c] sm:$0xf]
      %v5406 = vld [vmem:[%s5389 + $0x40] sm:$0xf]
      %v5407 = vld [vmem:[%s5389 + $0x44] sm:$0xf]
      %v5408 = vld [vmem:[%s5389 + $0x48] sm:$0xf]
      %v5409 = vld [vmem:[%s5389 + $0x4c] sm:$0xf]
      %v5410 = vld [vmem:[%s5389 + $0x50] sm:$0xf]
      %v5411 = vld [vmem:[%s5389 + $0x54] sm:$0xf]
      %v5412 = vld [vmem:[%s5389 + $0x58] sm:$0xf]
      %v5413 = vld [vmem:[%s5389 + $0x5c] sm:$0xf]
      %v5438 = vunpack.c.l.b16 %v5390
      %v5439 = vunpack.c.l.b16 %v5391
      %v5440 = vunpack.c.l.b16 %v5392
      %v5441 = vunpack.c.l.b16 %v5393
      %v5442 = vunpack.c.l.b16 %v5394
      %v5443 = vunpack.c.l.b16 %v5395
      %v5444 = vunpack.c.l.b16 %v5396
      %v5445 = vunpack.c.l.b16 %v5397
      %v5446 = vunpack.c.l.b16 %v5398
      %v5447 = vunpack.c.l.b16 %v5399
      %v5448 = vunpack.c.l.b16 %v5400
      %v5449 = vunpack.c.l.b16 %v5401
      %v5450 = vunpack.c.l.b16 %v5402
      %v5451 = vunpack.c.l.b16 %v5403
      %v5452 = vunpack.c.l.b16 %v5404
      %v5453 = vunpack.c.l.b16 %v5405
      %v5454 = vunpack.c.l.b16 %v5406
      %v5455 = vunpack.c.l.b16 %v5407
      %v5456 = vunpack.c.l.b16 %v5408
      %v5457 = vunpack.c.l.b16 %v5409
      %v5458 = vunpack.c.l.b16 %v5410
      %v5459 = vunpack.c.l.b16 %v5411
      %v5460 = vunpack.c.l.b16 %v5412
      %v5461 = vunpack.c.l.b16 %v5413
      %v5462 = vpack.c.b16 %v5439, %v5438
      %v5463 = vpack.c.b16 %v5441, %v5440
      %v5464 = vpack.c.b16 %v5443, %v5442
      %v5465 = vpack.c.b16 %v5445, %v5444
      %v5466 = vpack.c.b16 %v5447, %v5446
      %v5467 = vpack.c.b16 %v5449, %v5448
      %v5468 = vpack.c.b16 %v5451, %v5450
      %v5469 = vpack.c.b16 %v5453, %v5452
      %v5470 = vpack.c.b16 %v5455, %v5454
      %v5471 = vpack.c.b16 %v5457, %v5456
      %v5472 = vpack.c.b16 %v5459, %v5458
      %v5473 = vpack.c.b16 %v5461, %v5460
      %v5487 = vsel %vm481, %v5382, 0
      %v5490 = vsel %vm481, %v5384, 0
      %v5493 = vsel %vm481, %v5386, 0
      %v5496 = vsel %vm481, %v5388, 0
      %5498 = vmatpush.bf16.msra.mxu0 %v5469
      %5499 = vmatpush.bf16.msra.mxu0 %v5468
      %5500 = vmatpush.bf16.msra.mxu0 %v5467
      %5501 = vmatpush.bf16.msra.mxu0 %v5466
      %5502 = vmatpush.bf16.msra.mxu0 %v5465
      %5503 = vmatpush.bf16.msra.mxu0 %v5464
      %5504 = vmatpush.bf16.msra.mxu0 %v5463
      %5505 = vmatpush.bf16.msra.mxu0 %v5462
      %5506 = vmatmul.bf16.gmra.mxu0 %v5381
      %v5507 = vpop.f32.mrf.mxu0
      %v5508 = vadd.f32 0.0, %v5507
      %v5509 = vpop.f32.mrf.mxu0
      %v5510 = vadd.f32 0.0, %v5509
      %5511 = vmatmul.bf16.gmra.mxu0 %v5383
      %v5512 = vpop.f32.mrf.mxu0
      %v5513 = vadd.f32 0.0, %v5512
      %v5514 = vpop.f32.mrf.mxu0
      %v5515 = vadd.f32 0.0, %v5514
      %5516 = vmatmul.bf16.gmra.mxu0 %v5385
      %v5517 = vpop.f32.mrf.mxu0
      %v5518 = vadd.f32 0.0, %v5517
      %v5519 = vpop.f32.mrf.mxu0
      %v5520 = vadd.f32 0.0, %v5519
      %5521 = vmatmul.bf16.gmra.mxu0 %v5387
      %v5522 = vpop.f32.mrf.mxu0
      %v5523 = vadd.f32 0.0, %v5522
      %v5524 = vpop.f32.mrf.mxu0
      %v5525 = vadd.f32 0.0, %v5524
      %5526 = vdwg.mxu0
      %5527 = vmatpush.bf16.msra.mxu0 0
      %5528 = vmatpush.bf16.msra.mxu0 0
      %5529 = vmatpush.bf16.msra.mxu0 0
      %5530 = vmatpush.bf16.msra.mxu0 0
      %5531 = vmatpush.bf16.msra.mxu0 %v5473
      %5532 = vmatpush.bf16.msra.mxu0 %v5472
      %5533 = vmatpush.bf16.msra.mxu0 %v5471
      %5534 = vmatpush.bf16.msra.mxu0 %v5470
      %5535 = vmatmul.bf16.gmra.mxu0 %v5487
      %v5536 = vpop.f32.mrf.mxu0
      %v5537 = vadd.f32 %v5508, %v5536
      %v5538 = vpop.f32.mrf.mxu0
      %v5539 = vadd.f32 %v5510, %v5538
      %5540 = vmatmul.bf16.gmra.mxu0 %v5490
      %v5541 = vpop.f32.mrf.mxu0
      %v5542 = vadd.f32 %v5513, %v5541
      %v5543 = vpop.f32.mrf.mxu0
      %v5544 = vadd.f32 %v5515, %v5543
      %5545 = vmatmul.bf16.gmra.mxu0 %v5493
      %v5546 = vpop.f32.mrf.mxu0
      %v5547 = vadd.f32 %v5518, %v5546
      %v5548 = vpop.f32.mrf.mxu0
      %v5549 = vadd.f32 %v5520, %v5548
      %5550 = vmatmul.bf16.gmra.mxu0 %v5496
      %v5551 = vpop.f32.mrf.mxu0
      %v5552 = vadd.f32 %v5523, %v5551
      %v5553 = vpop.f32.mrf.mxu0
      %v5554 = vadd.f32 %v5525, %v5553
      %5555 = vdwg.mxu0
      %v5557 = vperm.slane %v5364, 0
      %v5559 = vadd.f32 %v5557, %v5537
      %v5560 = vadd.f32 %v5557, %v5539
      %v5561 = vadd.f32 %v5557, %v5542
      %v5562 = vadd.f32 %v5557, %v5544
      %v5563 = vadd.f32 %v5557, %v5547
      %v5564 = vadd.f32 %v5557, %v5549
      %v5565 = vadd.f32 %v5557, %v5552
      %v5566 = vadd.f32 %v5557, %v5554
      %v5567 = vld [vmem:[#allocation2 + $0x10] sm:$0xff]
      %v5568 = vld [vmem:[#allocation2 + $0x18] sm:$0xff]
      %v5569 = vld [vmem:[#allocation2 + $0x20] sm:$0xff]
      %v5570 = vld [vmem:[#allocation2 + $0x28] sm:$0xff]
      %v5571 = vld [vmem:[#allocation2 + $0x30] sm:$0xff]
      %v5572 = vld [vmem:[#allocation2 + $0x38] sm:$0xff]
      %v5573 = vld [vmem:[#allocation2 + $0x40] sm:$0xff]
      %v5574 = vld [vmem:[#allocation2 + $0x48] sm:$0xff]
      %v5575 = vld [vmem:[#allocation2 + $0x50] sm:$0xff]
      %v5576 = vld [vmem:[#allocation2 + $0x58] sm:$0xff]
      %v5577 = vld [vmem:[#allocation2 + $0x60] sm:$0xff]
      %v5578 = vld [vmem:[#allocation2 + $0x68] sm:$0xff]
      %v5579 = vld [vmem:[#allocation2 + $0x70] sm:$0xff]
      %v5580 = vld [vmem:[#allocation2 + $0x78] sm:$0xff]
      %v5581 = vld [vmem:[#allocation2 + $0x80] sm:$0xff]
      %v5582 = vld [vmem:[#allocation2 + $0x88] sm:$0xff]
      %v5583 = vpack.c.bf16 %v5569, %v5567
      %v5584 = vpack.c.bf16 %v5570, %v5568
      %v5585 = vpack.c.bf16 %v5573, %v5571
      %v5586 = vpack.c.bf16 %v5574, %v5572
      %v5587 = vpack.c.bf16 %v5577, %v5575
      %v5588 = vpack.c.bf16 %v5578, %v5576
      %v5589 = vpack.c.bf16 %v5581, %v5579
      %v5590 = vpack.c.bf16 %v5582, %v5580
      %v5591 = vld [vmem:[%s5389 + $0x60] sm:$0xf]
      %v5592 = vld [vmem:[%s5389 + $0x64] sm:$0xf]
      %v5593 = vld [vmem:[%s5389 + $0x68] sm:$0xf]
      %v5594 = vld [vmem:[%s5389 + $0x6c] sm:$0xf]
      %v5595 = vld [vmem:[%s5389 + $0x70] sm:$0xf]
      %v5596 = vld [vmem:[%s5389 + $0x74] sm:$0xf]
      %v5597 = vld [vmem:[%s5389 + $0x78] sm:$0xf]
      %v5598 = vld [vmem:[%s5389 + $0x7c] sm:$0xf]
      %v5599 = vld [vmem:[%s5389 + $0x80] sm:$0xf]
      %v5600 = vld [vmem:[%s5389 + $0x84] sm:$0xf]
      %v5601 = vld [vmem:[%s5389 + $0x88] sm:$0xf]
      %v5602 = vld [vmem:[%s5389 + $0x8c] sm:$0xf]
      %v5603 = vld [vmem:[%s5389 + $0x90] sm:$0xf]
      %v5604 = vld [vmem:[%s5389 + $0x94] sm:$0xf]
      %v5605 = vld [vmem:[%s5389 + $0x98] sm:$0xf]
      %v5606 = vld [vmem:[%s5389 + $0x9c] sm:$0xf]
      %v5607 = vld [vmem:[%s5389 + $0xa0] sm:$0xf]
      %v5608 = vld [vmem:[%s5389 + $0xa4] sm:$0xf]
      %v5609 = vld [vmem:[%s5389 + $0xa8] sm:$0xf]
      %v5610 = vld [vmem:[%s5389 + $0xac] sm:$0xf]
      %v5611 = vld [vmem:[%s5389 + $0xb0] sm:$0xf]
      %v5612 = vld [vmem:[%s5389 + $0xb4] sm:$0xf]
      %v5613 = vld [vmem:[%s5389 + $0xb8] sm:$0xf]
      %v5614 = vld [vmem:[%s5389 + $0xbc] sm:$0xf]
      %v5639 = vunpack.c.l.b16 %v5591
      %v5640 = vunpack.c.l.b16 %v5592
      %v5641 = vunpack.c.l.b16 %v5593
      %v5642 = vunpack.c.l.b16 %v5594
      %v5643 = vunpack.c.l.b16 %v5595
      %v5644 = vunpack.c.l.b16 %v5596
      %v5645 = vunpack.c.l.b16 %v5597
      %v5646 = vunpack.c.l.b16 %v5598
      %v5647 = vunpack.c.l.b16 %v5599
      %v5648 = vunpack.c.l.b16 %v5600
      %v5649 = vunpack.c.l.b16 %v5601
      %v5650 = vunpack.c.l.b16 %v5602
      %v5651 = vunpack.c.l.b16 %v5603
      %v5652 = vunpack.c.l.b16 %v5604
      %v5653 = vunpack.c.l.b16 %v5605
      %v5654 = vunpack.c.l.b16 %v5606
      %v5655 = vunpack.c.l.b16 %v5607
      %v5656 = vunpack.c.l.b16 %v5608
      %v5657 = vunpack.c.l.b16 %v5609
      %v5658 = vunpack.c.l.b16 %v5610
      %v5659 = vunpack.c.l.b16 %v5611
      %v5660 = vunpack.c.l.b16 %v5612
      %v5661 = vunpack.c.l.b16 %v5613
      %v5662 = vunpack.c.l.b16 %v5614
      %v5663 = vpack.c.b16 %v5640, %v5639
      %v5664 = vpack.c.b16 %v5642, %v5641
      %v5665 = vpack.c.b16 %v5644, %v5643
      %v5666 = vpack.c.b16 %v5646, %v5645
      %v5667 = vpack.c.b16 %v5648, %v5647
      %v5668 = vpack.c.b16 %v5650, %v5649
      %v5669 = vpack.c.b16 %v5652, %v5651
      %v5670 = vpack.c.b16 %v5654, %v5653
      %v5671 = vpack.c.b16 %v5656, %v5655
      %v5672 = vpack.c.b16 %v5658, %v5657
      %v5673 = vpack.c.b16 %v5660, %v5659
      %v5674 = vpack.c.b16 %v5662, %v5661
      %v5688 = vsel %vm481, %v5584, 0
      %v5691 = vsel %vm481, %v5586, 0
      %v5694 = vsel %vm481, %v5588, 0
      %v5697 = vsel %vm481, %v5590, 0
      %5699 = vmatpush.bf16.msra.mxu0 %v5670
      %5700 = vmatpush.bf16.msra.mxu0 %v5669
      %5701 = vmatpush.bf16.msra.mxu0 %v5668
      %5702 = vmatpush.bf16.msra.mxu0 %v5667
      %5703 = vmatpush.bf16.msra.mxu0 %v5666
      %5704 = vmatpush.bf16.msra.mxu0 %v5665
      %5705 = vmatpush.bf16.msra.mxu0 %v5664
      %5706 = vmatpush.bf16.msra.mxu0 %v5663
      %5707 = vmatmul.bf16.gmra.mxu0 %v5583
      %v5708 = vpop.f32.mrf.mxu0
      %v5709 = vadd.f32 0.0, %v5708
      %v5710 = vpop.f32.mrf.mxu0
      %v5711 = vadd.f32 0.0, %v5710
      %5712 = vmatmul.bf16.gmra.mxu0 %v5585
      %v5713 = vpop.f32.mrf.mxu0
      %v5714 = vadd.f32 0.0, %v5713
      %v5715 = vpop.f32.mrf.mxu0
      %v5716 = vadd.f32 0.0, %v5715
      %5717 = vmatmul.bf16.gmra.mxu0 %v5587
      %v5718 = vpop.f32.mrf.mxu0
      %v5719 = vadd.f32 0.0, %v5718
      %v5720 = vpop.f32.mrf.mxu0
      %v5721 = vadd.f32 0.0, %v5720
      %5722 = vmatmul.bf16.gmra.mxu0 %v5589
      %v5723 = vpop.f32.mrf.mxu0
      %v5724 = vadd.f32 0.0, %v5723
      %v5725 = vpop.f32.mrf.mxu0
      %v5726 = vadd.f32 0.0, %v5725
      %5727 = vdwg.mxu0
      %5728 = vmatpush.bf16.msra.mxu0 0
      %5729 = vmatpush.bf16.msra.mxu0 0
      %5730 = vmatpush.bf16.msra.mxu0 0
      %5731 = vmatpush.bf16.msra.mxu0 0
      %5732 = vmatpush.bf16.msra.mxu0 %v5674
      %5733 = vmatpush.bf16.msra.mxu0 %v5673
      %5734 = vmatpush.bf16.msra.mxu0 %v5672
      %5735 = vmatpush.bf16.msra.mxu0 %v5671
      %5736 = vmatmul.bf16.gmra.mxu0 %v5688
      %v5737 = vpop.f32.mrf.mxu0
      %v5738 = vadd.f32 %v5709, %v5737
      %v5739 = vpop.f32.mrf.mxu0
      %v5740 = vadd.f32 %v5711, %v5739
      %5741 = vmatmul.bf16.gmra.mxu0 %v5691
      %v5742 = vpop.f32.mrf.mxu0
      %v5743 = vadd.f32 %v5714, %v5742
      %v5744 = vpop.f32.mrf.mxu0
      %v5745 = vadd.f32 %v5716, %v5744
      %5746 = vmatmul.bf16.gmra.mxu0 %v5694
      %v5747 = vpop.f32.mrf.mxu0
      %v5748 = vadd.f32 %v5719, %v5747
      %v5749 = vpop.f32.mrf.mxu0
      %v5750 = vadd.f32 %v5721, %v5749
      %5751 = vmatmul.bf16.gmra.mxu0 %v5697
      %v5752 = vpop.f32.mrf.mxu0
      %v5753 = vadd.f32 %v5724, %v5752
      %v5754 = vpop.f32.mrf.mxu0
      %v5755 = vadd.f32 %v5726, %v5754
      %5756 = vdwg.mxu0
      %v5757 = vadd.f32 %v5559, %v5738
      %v5758 = vadd.f32 %v5560, %v5740
      %v5759 = vadd.f32 %v5561, %v5743
      %v5760 = vadd.f32 %v5562, %v5745
      %v5761 = vadd.f32 %v5563, %v5748
      %v5762 = vadd.f32 %v5564, %v5750
      %v5763 = vadd.f32 %v5565, %v5753
      %v5764 = vadd.f32 %v5566, %v5755
      %v5765 = vld [vmem:[#allocation2 + $0x20] sm:$0xff]
      %v5766 = vld [vmem:[#allocation2 + $0x28] sm:$0xff]
      %v5767 = vld [vmem:[#allocation2 + $0x30] sm:$0xff]
      %v5768 = vld [vmem:[#allocation2 + $0x38] sm:$0xff]
      %v5769 = vld [vmem:[#allocation2 + $0x40] sm:$0xff]
      %v5770 = vld [vmem:[#allocation2 + $0x48] sm:$0xff]
      %v5771 = vld [vmem:[#allocation2 + $0x50] sm:$0xff]
      %v5772 = vld [vmem:[#allocation2 + $0x58] sm:$0xff]
      %v5773 = vld [vmem:[#allocation2 + $0x60] sm:$0xff]
      %v5774 = vld [vmem:[#allocation2 + $0x68] sm:$0xff]
      %v5775 = vld [vmem:[#allocation2 + $0x70] sm:$0xff]
      %v5776 = vld [vmem:[#allocation2 + $0x78] sm:$0xff]
      %v5777 = vld [vmem:[#allocation2 + $0x80] sm:$0xff]
      %v5778 = vld [vmem:[#allocation2 + $0x88] sm:$0xff]
      %v5779 = vld [vmem:[#allocation2 + $0x90] sm:$0xff]
      %v5780 = vld [vmem:[#allocation2 + $0x98] sm:$0xff]
      %v5781 = vpack.c.bf16 %v5767, %v5765
      %v5782 = vpack.c.bf16 %v5768, %v5766
      %v5783 = vpack.c.bf16 %v5771, %v5769
      %v5784 = vpack.c.bf16 %v5772, %v5770
      %v5785 = vpack.c.bf16 %v5775, %v5773
      %v5786 = vpack.c.bf16 %v5776, %v5774
      %v5787 = vpack.c.bf16 %v5779, %v5777
      %v5788 = vpack.c.bf16 %v5780, %v5778
      %v5789 = vld [vmem:[%s5389 + $0xc0] sm:$0xf]
      %v5790 = vld [vmem:[%s5389 + $0xc4] sm:$0xf]
      %v5791 = vld [vmem:[%s5389 + $0xc8] sm:$0xf]
      %v5792 = vld [vmem:[%s5389 + $0xcc] sm:$0xf]
      %v5793 = vld [vmem:[%s5389 + $0xd0] sm:$0xf]
      %v5794 = vld [vmem:[%s5389 + $0xd4] sm:$0xf]
      %v5795 = vld [vmem:[%s5389 + $0xd8] sm:$0xf]
      %v5796 = vld [vmem:[%s5389 + $0xdc] sm:$0xf]
      %v5797 = vld [vmem:[%s5389 + $0xe0] sm:$0xf]
      %v5798 = vld [vmem:[%s5389 + $0xe4] sm:$0xf]
      %v5799 = vld [vmem:[%s5389 + $0xe8] sm:$0xf]
      %v5800 = vld [vmem:[%s5389 + $0xec] sm:$0xf]
      %v5801 = vld [vmem:[%s5389 + $0xf0] sm:$0xf]
      %v5802 = vld [vmem:[%s5389 + $0xf4] sm:$0xf]
      %v5803 = vld [vmem:[%s5389 + $0xf8] sm:$0xf]
      %v5804 = vld [vmem:[%s5389 + $0xfc] sm:$0xf]
      %v5805 = vld [vmem:[%s5389 + $0x100] sm:$0xf]
      %v5806 = vld [vmem:[%s5389 + $0x104] sm:$0xf]
      %v5807 = vld [vmem:[%s5389 + $0x108] sm:$0xf]
      %v5808 = vld [vmem:[%s5389 + $0x10c] sm:$0xf]
      %v5809 = vld [vmem:[%s5389 + $0x110] sm:$0xf]
      %v5810 = vld [vmem:[%s5389 + $0x114] sm:$0xf]
      %v5811 = vld [vmem:[%s5389 + $0x118] sm:$0xf]
      %v5812 = vld [vmem:[%s5389 + $0x11c] sm:$0xf]
      %v5837 = vunpack.c.l.b16 %v5789
      %v5838 = vunpack.c.l.b16 %v5790
      %v5839 = vunpack.c.l.b16 %v5791
      %v5840 = vunpack.c.l.b16 %v5792
      %v5841 = vunpack.c.l.b16 %v5793
      %v5842 = vunpack.c.l.b16 %v5794
      %v5843 = vunpack.c.l.b16 %v5795
      %v5844 = vunpack.c.l.b16 %v5796
      %v5845 = vunpack.c.l.b16 %v5797
      %v5846 = vunpack.c.l.b16 %v5798
      %v5847 = vunpack.c.l.b16 %v5799
      %v5848 = vunpack.c.l.b16 %v5800
      %v5849 = vunpack.c.l.b16 %v5801
      %v5850 = vunpack.c.l.b16 %v5802
      %v5851 = vunpack.c.l.b16 %v5803
      %v5852 = vunpack.c.l.b16 %v5804
      %v5853 = vunpack.c.l.b16 %v5805
      %v5854 = vunpack.c.l.b16 %v5806
      %v5855 = vunpack.c.l.b16 %v5807
      %v5856 = vunpack.c.l.b16 %v5808
      %v5857 = vunpack.c.l.b16 %v5809
      %v5858 = vunpack.c.l.b16 %v5810
      %v5859 = vunpack.c.l.b16 %v5811
      %v5860 = vunpack.c.l.b16 %v5812
      %v5861 = vpack.c.b16 %v5838, %v5837
      %v5862 = vpack.c.b16 %v5840, %v5839
      %v5863 = vpack.c.b16 %v5842, %v5841
      %v5864 = vpack.c.b16 %v5844, %v5843
      %v5865 = vpack.c.b16 %v5846, %v5845
      %v5866 = vpack.c.b16 %v5848, %v5847
      %v5867 = vpack.c.b16 %v5850, %v5849
      %v5868 = vpack.c.b16 %v5852, %v5851
      %v5869 = vpack.c.b16 %v5854, %v5853
      %v5870 = vpack.c.b16 %v5856, %v5855
      %v5871 = vpack.c.b16 %v5858, %v5857
      %v5872 = vpack.c.b16 %v5860, %v5859
      %v5886 = vsel %vm481, %v5782, 0
      %v5889 = vsel %vm481, %v5784, 0
      %v5892 = vsel %vm481, %v5786, 0
      %v5895 = vsel %vm481, %v5788, 0
      %5897 = vmatpush.bf16.msra.mxu0 %v5868
      %5898 = vmatpush.bf16.msra.mxu0 %v5867
      %5899 = vmatpush.bf16.msra.mxu0 %v5866
      %5900 = vmatpush.bf16.msra.mxu0 %v5865
      %5901 = vmatpush.bf16.msra.mxu0 %v5864
      %5902 = vmatpush.bf16.msra.mxu0 %v5863
      %5903 = vmatpush.bf16.msra.mxu0 %v5862
      %5904 = vmatpush.bf16.msra.mxu0 %v5861
      %5905 = vmatmul.bf16.gmra.mxu0 %v5781
      %v5906 = vpop.f32.mrf.mxu0
      %v5907 = vadd.f32 0.0, %v5906
      %v5908 = vpop.f32.mrf.mxu0
      %v5909 = vadd.f32 0.0, %v5908
      %5910 = vmatmul.bf16.gmra.mxu0 %v5783
      %v5911 = vpop.f32.mrf.mxu0
      %v5912 = vadd.f32 0.0, %v5911
      %v5913 = vpop.f32.mrf.mxu0
      %v5914 = vadd.f32 0.0, %v5913
      %5915 = vmatmul.bf16.gmra.mxu0 %v5785
      %v5916 = vpop.f32.mrf.mxu0
      %v5917 = vadd.f32 0.0, %v5916
      %v5918 = vpop.f32.mrf.mxu0
      %v5919 = vadd.f32 0.0, %v5918
      %5920 = vmatmul.bf16.gmra.mxu0 %v5787
      %v5921 = vpop.f32.mrf.mxu0
      %v5922 = vadd.f32 0.0, %v5921
      %v5923 = vpop.f32.mrf.mxu0
      %v5924 = vadd.f32 0.0, %v5923
      %5925 = vdwg.mxu0
      %5926 = vmatpush.bf16.msra.mxu0 0
      %5927 = vmatpush.bf16.msra.mxu0 0
      %5928 = vmatpush.bf16.msra.mxu0 0
      %5929 = vmatpush.bf16.msra.mxu0 0
      %5930 = vmatpush.bf16.msra.mxu0 %v5872
      %5931 = vmatpush.bf16.msra.mxu0 %v5871
      %5932 = vmatpush.bf16.msra.mxu0 %v5870
      %5933 = vmatpush.bf16.msra.mxu0 %v5869
      %5934 = vmatmul.bf16.gmra.mxu0 %v5886
      %v5935 = vpop.f32.mrf.mxu0
      %v5936 = vadd.f32 %v5907, %v5935
      %v5937 = vpop.f32.mrf.mxu0
      %v5938 = vadd.f32 %v5909, %v5937
      %5939 = vmatmul.bf16.gmra.mxu0 %v5889
      %v5940 = vpop.f32.mrf.mxu0
      %v5941 = vadd.f32 %v5912, %v5940
      %v5942 = vpop.f32.mrf.mxu0
      %v5943 = vadd.f32 %v5914, %v5942
      %5944 = vmatmul.bf16.gmra.mxu0 %v5892
      %v5945 = vpop.f32.mrf.mxu0
      %v5946 = vadd.f32 %v5917, %v5945
      %v5947 = vpop.f32.mrf.mxu0
      %v5948 = vadd.f32 %v5919, %v5947
      %5949 = vmatmul.bf16.gmra.mxu0 %v5895
      %v5950 = vpop.f32.mrf.mxu0
      %v5951 = vadd.f32 %v5922, %v5950
      %v5952 = vpop.f32.mrf.mxu0
      %v5953 = vadd.f32 %v5924, %v5952
      %5954 = vdwg.mxu0
      %v5955 = vadd.f32 %v5757, %v5936
      %v5956 = vadd.f32 %v5758, %v5938
      %v5957 = vadd.f32 %v5759, %v5941
      %v5958 = vadd.f32 %v5760, %v5943
      %v5959 = vadd.f32 %v5761, %v5946
      %v5960 = vadd.f32 %v5762, %v5948
      %v5961 = vadd.f32 %v5763, %v5951
      %v5962 = vadd.f32 %v5764, %v5953
      %v5963 = vadd.f32 %v4135, %v5955
      %v5964 = vadd.f32 %v4136, %v5956
      %v5965 = vadd.f32 %v4137, %v5957
      %v5966 = vadd.f32 %v4138, %v5958
      %v5967 = vadd.f32 %v4139, %v5959
      %v5968 = vadd.f32 %v4140, %v5960
      %v5969 = vadd.f32 %v4141, %v5961
      %v5970 = vadd.f32 %v4142, %v5962
      %v5971 = vpack.c.bf16 %v5964, %v5963
      %v5972 = vpack.c.bf16 %v5966, %v5965
      %v5973 = vpack.c.bf16 %v5968, %v5967
      %v5974 = vpack.c.bf16 %v5970, %v5969
      %v5975 = vld [vmem:[%s6] sm:$0xf]
      %v5976 = vld [vmem:[%s6 + $0x4] sm:$0xf]
      %v5977 = vld [vmem:[%s6 + $0x8] sm:$0xf]
      %v5978 = vld [vmem:[%s6 + $0xc] sm:$0xf]
      %v5979 = vld [vmem:[%s6 + $0x10] sm:$0xf]
      %v5980 = vld [vmem:[%s6 + $0x14] sm:$0xf]
      %v5981 = vld [vmem:[%s6 + $0x18] sm:$0xf]
      %v5982 = vld [vmem:[%s6 + $0x1c] sm:$0xf]
      %v5983 = vld [vmem:[%s7] sm:$0x1]
      %v5985 = vperm.slane %v5983, 0
      %v5995 = vunpack.c.l.b16 %v5975
      %v5996 = vunpack.c.l.b16 %v5976
      %v5997 = vunpack.c.l.b16 %v5977
      %v5998 = vunpack.c.l.b16 %v5978
      %v5999 = vunpack.c.l.b16 %v5979
      %v6000 = vunpack.c.l.b16 %v5980
      %v6001 = vunpack.c.l.b16 %v5981
      %v6002 = vunpack.c.l.b16 %v5982
      %v6003 = vpack.c.b16 %v5996, %v5995
      %v6004 = vpack.c.b16 %v5998, %v5997
      %v6005 = vpack.c.b16 %v6000, %v5999
      %v6006 = vpack.c.b16 %v6002, %v6001
      %v6012 = vsel %vm481, %v5971, 0
      %v6015 = vsel %vm481, %v5972, 0
      %v6018 = vsel %vm481, %v5973, 0
      %v6021 = vsel %vm481, %v5974, 0
      %6023 = vmatpush.bf16.msra.mxu0 0
      %6024 = vmatpush.bf16.msra.mxu0 0
      %6025 = vmatpush.bf16.msra.mxu0 0
      %6026 = vmatpush.bf16.msra.mxu0 0
      %6027 = vmatpush.bf16.msra.mxu0 %v6006
      %6028 = vmatpush.bf16.msra.mxu0 %v6005
      %6029 = vmatpush.bf16.msra.mxu0 %v6004
      %6030 = vmatpush.bf16.msra.mxu0 %v6003
      %6031 = vmatmul.bf16.gmra.mxu0 %v6012
      %v6032 = vpop.f32.mrf.mxu0
      %v6033 = vadd.f32 %v5985, %v6032
      %v6034 = vpop.f32.mrf.mxu0
      %v6035 = vadd.f32 %v5985, %v6034
      %6036 = vmatmul.bf16.gmra.mxu0 %v6015
      %v6037 = vpop.f32.mrf.mxu0
      %v6038 = vadd.f32 %v5985, %v6037
      %v6039 = vpop.f32.mrf.mxu0
      %v6040 = vadd.f32 %v5985, %v6039
      %6041 = vmatmul.bf16.gmra.mxu0 %v6018
      %v6042 = vpop.f32.mrf.mxu0
      %v6043 = vadd.f32 %v5985, %v6042
      %v6044 = vpop.f32.mrf.mxu0
      %v6045 = vadd.f32 %v5985, %v6044
      %6046 = vmatmul.bf16.gmra.mxu0 %v6021
      %v6047 = vpop.f32.mrf.mxu0
      %v6048 = vadd.f32 %v5985, %v6047
      %v6049 = vpop.f32.mrf.mxu0
      %v6050 = vadd.f32 %v5985, %v6049
      %6051 = vdwg.mxu0
      %6052 = vst [vmem:[%s305] sm:$0xff] %v6033
      %6053 = vst [vmem:[%s305 + $0x8] sm:$0xff] %v6035
      %6054 = vst [vmem:[%s305 + $0x10] sm:$0xff] %v6038
      %6055 = vst [vmem:[%s305 + $0x18] sm:$0xff] %v6040
      %6056 = vst [vmem:[%s305 + $0x20] sm:$0xff] %v6043
      %6057 = vst [vmem:[%s305 + $0x28] sm:$0xff] %v6045
      %6058 = vst [vmem:[%s305 + $0x30] sm:$0xff] %v6048
      %6059 = vst [vmem:[%s305 + $0x38] sm:$0xff] %v6050
      %p6060 = scmp.lt.s32.totalorder %s19, 1
      %s6061 = scalar_select %p6060, %s19, 1
      %s6062 = smul.addr %s6061, 8
      %s6063 = smul.addr %s6062, 8
      %s6064 = scalar_lea.vmem %s8, %s6063
      // Predicated region
      $region53: #{up_block_2d.1} parent=51 // pred_check
        %p6065 = pneg %p210
      $region54: #{up_block_2d.1} parent=51 // pred_check_branch
        %6067 = sbr.rel (%p6065) target = $region56
      $region55: #{up_block_2d.1} parent=51 // pred_region
        _
      $region56: #{up_block_2d.1} parent=51 // pred_fallthru
        _
    $region52: #{up_block_2d.1} parent=5 // pred_fallthru
      _
    %p6068 = scmp.le.s32.totalorder 2, %s14
    // Predicated region
    $region57: #{up_block_2d.1} parent=5 // pred_check
      %p6069 = pneg %p6068
    $region58: #{up_block_2d.1} parent=5 // pred_check_branch
      %6071 = sbr.rel (%p6069) target = $region60
    $region59: #{up_block_2d.1} parent=5 // pred_region
      %s6072 = ssub.s32 %s14, 2
      // Predicated region
      $region61: #{up_block_2d.1} parent=59 // pred_check
        %p6073 = pneg %p216
      $region62: #{up_block_2d.1} parent=59 // pred_check_branch
        %6075 = sbr.rel (%p6073) target = $region64
      $region63: #{up_block_2d.1} parent=59 // pred_region
        %p6076 = scmp.lt.s32.totalorder %s20, 1
        %s6077 = scalar_select %p6076, %s20, 1
        %s6078 = smul.addr %s6077, 8
        %s6079 = smul.addr %s6078, 8
        %s6080 = scalar_lea.vmem %s8, %s6079
      $region64: #{up_block_2d.1} parent=59 // pred_fallthru
        _
    $region60: #{up_block_2d.1} parent=5 // pred_fallthru
      _
  $region6: #{up_block_2d.1} parent=0 // loop_footer
    %s18 = sadd.s32 1, %s14
  $region7: #{up_block_2d.1} parent=0 // loop_footer_branch
    %13 = sbr.rel target = $region3
  $region8: #{up_block_2d.1} parent=0 // loop_exit
    _

</llo_original>
